<compile_context>
chip_gen: v7x
topology: tpu7x:2x2x1
jax: 0.10.0
libtpu: 0.0.40
codegen_flags: <defaults>
</compile_context>

<pallas_src>
import jax
import jax.numpy as jnp
from jax.experimental import pallas as pl
from jax.experimental.pallas import tpu as pltpu

H, W = 14, 14
P = H * W            # 196 flattened spatial positions (p = y*W + x)
C_IN = 624
C_OUT = 128
EPS = 1e-5


def fused_kernel(x_ref, wdw_ref, gamma_ref, beta_ref, wpw_ref, ml_ref, mr_ref, o_ref):
    # x_ref:     (C_IN, P)     input, channels-first, spatial flattened
    # wdw_ref:   (C_IN, 9)     depthwise 3x3 taps, tap index k = ky*3 + kx
    # gamma_ref: (C_IN, 1)     BN scale
    # beta_ref:  (C_IN, 1)     BN shift
    # wpw_ref:   (C_OUT, C_IN) 1x1 (pointwise) conv weights
    # ml_ref:    (1, P)        1.0 where col(p) >= 1     (left neighbor valid)
    # mr_ref:    (1, P)        1.0 where col(p) <= W - 2 (right neighbor valid)
    # o_ref:     (C_OUT, P)    output, channels-first

    # ---- ReLU (relu20) ----
    x = jnp.maximum(x_ref[...], 0.0)

    # ---- depthwise 3x3 conv, stride 1, padding 1 (conv2d31, groups=C_IN) ----
    w = wdw_ref[...]                                        # (C_IN, 9), hoisted once

    # Row-shifted copies along the flattened spatial (lane) axis: shift by +-W.
    zrow = jnp.zeros((C_IN, W), jnp.float32)
    x_up = jnp.concatenate([zrow, x[:, :P - W]], axis=1)    # pixel one row above (ky=0)
    x_dn = jnp.concatenate([x[:, W:], zrow], axis=1)        # pixel one row below (ky=2)

    # Per-column-offset terms: u_kx[q] = sum_ky w[:, ky*3+kx] * x[row-shifted by ky-1][q]
    def col_term(kx):
        return (w[:, kx:kx + 1] * x_up
                + w[:, 3 + kx:4 + kx] * x
                + w[:, 6 + kx:7 + kx] * x_dn)

    u_l = col_term(0)          # taps with kx=0 (left neighbor column)
    u_c = col_term(1)          # taps with kx=1 (same column)
    u_r = col_term(2)          # taps with kx=2 (right neighbor column)

    # Horizontal +-1 shifts; column masks prevent wraparound across image rows.
    zcol = jnp.zeros((C_IN, 1), jnp.float32)
    left = jnp.concatenate([zcol, u_l[:, :P - 1]], axis=1) * ml_ref[...]
    right = jnp.concatenate([u_r[:, 1:], zcol], axis=1) * mr_ref[...]
    acc = left + u_c + right                                 # (C_IN, P) depthwise output

    # ---- BatchNorm2d, training mode (batch stats over N*H*W = P), folded affine ----
    inv_n = 1.0 / P
    mean = jnp.sum(acc, axis=1, keepdims=True) * inv_n                      # (C_IN, 1)
    var = jnp.maximum(
        jnp.sum(acc * acc, axis=1, keepdims=True) * inv_n - mean * mean, 0.0)
    scale = gamma_ref[...] * jax.lax.rsqrt(var + EPS)                       # (C_IN, 1)
    shift = beta_ref[...] - mean * scale

    # ---- BN affine + ReLU (relu21): single multiply-add + max ----
    y = jnp.maximum(acc * scale + shift, 0.0)                               # (C_IN, P)

    # ---- 1x1 conv (conv2d32): one MXU matmul (C_OUT, C_IN) @ (C_IN, P) ----
    o_ref[...] = jnp.dot(wpw_ref[...], y, preferred_element_type=jnp.float32)


@jax.jit
def fused_forward(x_nchw, w_dw, gamma, beta, w_pw):
    """x_nchw: (1, C_IN, H, W); w_dw: (C_IN, 1, 3, 3); w_pw: (C_OUT, C_IN, 1, 1)."""
    # Reshapes only -- no transposes, no extra HBM round trips.
    x2d = x_nchw.reshape(C_IN, P)
    wdw = w_dw.reshape(C_IN, 9)
    wpw = w_pw.reshape(C_OUT, C_IN)
    g = gamma.reshape(C_IN, 1)
    b = beta.reshape(C_IN, 1)

    # Column-boundary masks (constants, folded by XLA).
    col = jnp.arange(P, dtype=jnp.int32) % W
    ml = (col >= 1).astype(jnp.float32).reshape(1, P)
    mr = (col <= W - 2).astype(jnp.float32).reshape(1, P)

    vmem = pl.BlockSpec(memory_space=pltpu.MemorySpace.VMEM)
    out = pl.pallas_call(
        fused_kernel,
        out_shape=jax.ShapeDtypeStruct((C_OUT, P), jnp.float32),
        in_specs=[vmem] * 7,
        out_specs=vmem,
        compiler_params=pltpu.CompilerParams(vmem_limit_bytes=32 << 20),
    )(x2d, wdw, g, b, wpw, ml, mr)

    return out.reshape(1, C_OUT, H, W)


def reference_forward(x_nchw, w_dw, gamma, beta, w_pw):
    """Pure-JAX reference mirroring the PyTorch forward (training-mode BN)."""
    x = jnp.maximum(x_nchw, 0.0)
    y = jax.lax.conv_general_dilated(
        x, w_dw, window_strides=(1, 1), padding=((1, 1), (1, 1)),
        dimension_numbers=("NCHW", "OIHW", "NCHW"), feature_group_count=C_IN)
    mean = jnp.mean(y, axis=(0, 2, 3), keepdims=True)
    var = jnp.mean((y - mean) ** 2, axis=(0, 2, 3), keepdims=True)
    y = (y - mean) * jax.lax.rsqrt(var + EPS)
    y = y * gamma.reshape(1, -1, 1, 1) + beta.reshape(1, -1, 1, 1)
    y = jnp.maximum(y, 0.0)
    return jax.lax.conv_general_dilated(
        y, w_pw, window_strides=(1, 1), padding="VALID",
        dimension_numbers=("NCHW", "OIHW", "NCHW"))


if __name__ == "__main__":
    key = jax.random.PRNGKey(0)
    k1, k2, k3, k4, k5 = jax.random.split(key, 5)

    # deterministic synthetic parameters (shapes from the module's __init__)
    x88 = jax.random.normal(k1, (1, C_IN, H, W), jnp.float32)
    w_dw = jax.random.normal(k2, (C_IN, 1, 3, 3), jnp.float32) * 0.1       # conv2d31
    w_pw = jax.random.normal(k3, (C_OUT, C_IN, 1, 1), jnp.float32) * 0.05  # conv2d32
    gamma = 1.0 + 0.1 * jax.random.normal(k4, (C_IN,), jnp.float32)        # bn weight
    beta = 0.1 * jax.random.normal(k5, (C_IN,), jnp.float32)               # bn bias

    out = jax.block_until_ready(fused_forward(x88, w_dw, gamma, beta, w_pw))
    ref = jax.block_until_ready(reference_forward(x88, w_dw, gamma, beta, w_pw))

    assert out.shape == (1, C_OUT, H, W), out.shape
    max_err = float(jnp.max(jnp.abs(out - ref)))
    assert jnp.allclose(out, ref, rtol=1e-4, atol=2e-4), max_err
    print("KERNEL_OK")
</pallas_src>

<mosaic_0001>
module attributes {stable_mosaic.version = 11 : i64} {
  func.func @fused_kernel(%arg0: memref<624x196xf32, #tpu.memory_space<vmem>>, %arg1: memref<624x9xf32, #tpu.memory_space<vmem>>, %arg2: memref<624x1xf32, #tpu.memory_space<vmem>>, %arg3: memref<624x1xf32, #tpu.memory_space<vmem>>, %arg4: memref<128x624xf32, #tpu.memory_space<vmem>>, %arg5: memref<1x196xf32, #tpu.memory_space<vmem>>, %arg6: memref<1x196xf32, #tpu.memory_space<vmem>>, %arg7: memref<128x196xf32, #tpu.memory_space<vmem>>) attributes {dimension_semantics = [], scalar_prefetch = 0 : i64, scratch_operands = 0 : i64, tpu.core_type = #tpu.core_type<tc>} {
    %c0 = arith.constant 0 : index
    %c0_0 = arith.constant 0 : index
    %0 = vector.load %arg0[%c0, %c0_0] : memref<624x196xf32, #tpu.memory_space<vmem>>, vector<624x196xf32>
    %cst = arith.constant 0.000000e+00 : f32
    %1 = vector.broadcast %cst : f32 to vector<624x196xf32>
    %2 = arith.maximumf %0, %1 : vector<624x196xf32>
    %c0_1 = arith.constant 0 : index
    %c0_2 = arith.constant 0 : index
    %3 = vector.load %arg1[%c0_1, %c0_2] : memref<624x9xf32, #tpu.memory_space<vmem>>, vector<624x9xf32>
    %cst_3 = arith.constant 0.000000e+00 : f32
    %4 = vector.broadcast %cst_3 : f32 to vector<624x14xf32>
    %5 = vector.extract_strided_slice %2 {offsets = [0, 0], sizes = [624, 182], strides = [1, 1]} : vector<624x196xf32> to vector<624x182xf32>
    %6 = tpu.concatenate %4, %5 in 1 : vector<624x14xf32>, vector<624x182xf32> -> vector<624x196xf32>
    %7 = vector.extract_strided_slice %2 {offsets = [0, 14], sizes = [624, 182], strides = [1, 1]} : vector<624x196xf32> to vector<624x182xf32>
    %8 = tpu.concatenate %7, %4 in 1 : vector<624x182xf32>, vector<624x14xf32> -> vector<624x196xf32>
    %9 = vector.extract_strided_slice %3 {offsets = [0, 0], sizes = [624, 1], strides = [1, 1]} : vector<624x9xf32> to vector<624x1xf32>
    %10 = vector.broadcast %9 : vector<624x1xf32> to vector<624x196xf32>
    %11 = arith.mulf %10, %6 : vector<624x196xf32>
    %12 = vector.extract_strided_slice %3 {offsets = [0, 3], sizes = [624, 1], strides = [1, 1]} : vector<624x9xf32> to vector<624x1xf32>
    %13 = vector.broadcast %12 : vector<624x1xf32> to vector<624x196xf32>
    %14 = arith.mulf %13, %2 : vector<624x196xf32>
    %15 = arith.addf %11, %14 : vector<624x196xf32>
    %16 = vector.extract_strided_slice %3 {offsets = [0, 6], sizes = [624, 1], strides = [1, 1]} : vector<624x9xf32> to vector<624x1xf32>
    %17 = vector.broadcast %16 : vector<624x1xf32> to vector<624x196xf32>
    %18 = arith.mulf %17, %8 : vector<624x196xf32>
    %19 = arith.addf %15, %18 : vector<624x196xf32>
    %20 = vector.extract_strided_slice %3 {offsets = [0, 1], sizes = [624, 1], strides = [1, 1]} : vector<624x9xf32> to vector<624x1xf32>
    %21 = vector.broadcast %20 : vector<624x1xf32> to vector<624x196xf32>
    %22 = arith.mulf %21, %6 : vector<624x196xf32>
    %23 = vector.extract_strided_slice %3 {offsets = [0, 4], sizes = [624, 1], strides = [1, 1]} : vector<624x9xf32> to vector<624x1xf32>
    %24 = vector.broadcast %23 : vector<624x1xf32> to vector<624x196xf32>
    %25 = arith.mulf %24, %2 : vector<624x196xf32>
    %26 = arith.addf %22, %25 : vector<624x196xf32>
    %27 = vector.extract_strided_slice %3 {offsets = [0, 7], sizes = [624, 1], strides = [1, 1]} : vector<624x9xf32> to vector<624x1xf32>
    %28 = vector.broadcast %27 : vector<624x1xf32> to vector<624x196xf32>
    %29 = arith.mulf %28, %8 : vector<624x196xf32>
    %30 = arith.addf %26, %29 : vector<624x196xf32>
    %31 = vector.extract_strided_slice %3 {offsets = [0, 2], sizes = [624, 1], strides = [1, 1]} : vector<624x9xf32> to vector<624x1xf32>
    %32 = vector.broadcast %31 : vector<624x1xf32> to vector<624x196xf32>
    %33 = arith.mulf %32, %6 : vector<624x196xf32>
    %34 = vector.extract_strided_slice %3 {offsets = [0, 5], sizes = [624, 1], strides = [1, 1]} : vector<624x9xf32> to vector<624x1xf32>
    %35 = vector.broadcast %34 : vector<624x1xf32> to vector<624x196xf32>
    %36 = arith.mulf %35, %2 : vector<624x196xf32>
    %37 = arith.addf %33, %36 : vector<624x196xf32>
    %38 = vector.extract_strided_slice %3 {offsets = [0, 8], sizes = [624, 1], strides = [1, 1]} : vector<624x9xf32> to vector<624x1xf32>
    %39 = vector.broadcast %38 : vector<624x1xf32> to vector<624x196xf32>
    %40 = arith.mulf %39, %8 : vector<624x196xf32>
    %41 = arith.addf %37, %40 : vector<624x196xf32>
    %cst_4 = arith.constant 0.000000e+00 : f32
    %42 = vector.broadcast %cst_4 : f32 to vector<624x1xf32>
    %43 = vector.extract_strided_slice %19 {offsets = [0, 0], sizes = [624, 195], strides = [1, 1]} : vector<624x196xf32> to vector<624x195xf32>
    %44 = tpu.concatenate %42, %43 in 1 : vector<624x1xf32>, vector<624x195xf32> -> vector<624x196xf32>
    %c0_5 = arith.constant 0 : index
    %c0_6 = arith.constant 0 : index
    %45 = vector.load %arg5[%c0_5, %c0_6] : memref<1x196xf32, #tpu.memory_space<vmem>>, vector<1x196xf32>
    %46 = vector.broadcast %45 : vector<1x196xf32> to vector<624x196xf32>
    %47 = arith.mulf %44, %46 : vector<624x196xf32>
    %48 = vector.extract_strided_slice %41 {offsets = [0, 1], sizes = [624, 195], strides = [1, 1]} : vector<624x196xf32> to vector<624x195xf32>
    %49 = tpu.concatenate %48, %42 in 1 : vector<624x195xf32>, vector<624x1xf32> -> vector<624x196xf32>
    %c0_7 = arith.constant 0 : index
    %c0_8 = arith.constant 0 : index
    %50 = vector.load %arg6[%c0_7, %c0_8] : memref<1x196xf32, #tpu.memory_space<vmem>>, vector<1x196xf32>
    %51 = vector.broadcast %50 : vector<1x196xf32> to vector<624x196xf32>
    %52 = arith.mulf %49, %51 : vector<624x196xf32>
    %53 = arith.addf %47, %30 : vector<624x196xf32>
    %54 = arith.addf %53, %52 : vector<624x196xf32>
    %cst_9 = arith.constant dense<0.000000e+00> : vector<624xf32>
    %55 = vector.multi_reduction <add>, %54, %cst_9 [1] : vector<624x196xf32> to vector<624xf32>
    %56 = vector.shape_cast %55 : vector<624xf32> to vector<624x1xf32>
    %cst_10 = arith.constant 0.00510204071 : f32
    %57 = vector.broadcast %cst_10 : f32 to vector<624x1xf32>
    %58 = arith.mulf %56, %57 : vector<624x1xf32>
    %59 = arith.mulf %54, %54 : vector<624x196xf32>
    %cst_11 = arith.constant dense<0.000000e+00> : vector<624xf32>
    %60 = vector.multi_reduction <add>, %59, %cst_11 [1] : vector<624x196xf32> to vector<624xf32>
    %61 = vector.shape_cast %60 : vector<624xf32> to vector<624x1xf32>
    %cst_12 = arith.constant 0.00510204071 : f32
    %62 = vector.broadcast %cst_12 : f32 to vector<624x1xf32>
    %63 = arith.mulf %61, %62 : vector<624x1xf32>
    %64 = arith.mulf %58, %58 : vector<624x1xf32>
    %65 = arith.subf %63, %64 : vector<624x1xf32>
    %cst_13 = arith.constant 0.000000e+00 : f32
    %66 = vector.broadcast %cst_13 : f32 to vector<624x1xf32>
    %67 = arith.maximumf %65, %66 : vector<624x1xf32>
    %c0_14 = arith.constant 0 : index
    %c0_15 = arith.constant 0 : index
    %68 = vector.load %arg2[%c0_14, %c0_15] : memref<624x1xf32, #tpu.memory_space<vmem>>, vector<624x1xf32>
    %cst_16 = arith.constant 9.99999974E-6 : f32
    %69 = vector.broadcast %cst_16 : f32 to vector<624x1xf32>
    %70 = arith.addf %67, %69 : vector<624x1xf32>
    %71 = math.rsqrt %70 : vector<624x1xf32>
    %72 = arith.mulf %68, %71 : vector<624x1xf32>
    %c0_17 = arith.constant 0 : index
    %c0_18 = arith.constant 0 : index
    %73 = vector.load %arg3[%c0_17, %c0_18] : memref<624x1xf32, #tpu.memory_space<vmem>>, vector<624x1xf32>
    %74 = arith.mulf %58, %72 : vector<624x1xf32>
    %75 = arith.subf %73, %74 : vector<624x1xf32>
    %76 = vector.broadcast %72 : vector<624x1xf32> to vector<624x196xf32>
    %77 = arith.mulf %54, %76 : vector<624x196xf32>
    %78 = vector.broadcast %75 : vector<624x1xf32> to vector<624x196xf32>
    %79 = arith.addf %77, %78 : vector<624x196xf32>
    %cst_19 = arith.constant 0.000000e+00 : f32
    %80 = vector.broadcast %cst_19 : f32 to vector<624x196xf32>
    %81 = arith.maximumf %79, %80 : vector<624x196xf32>
    %c0_20 = arith.constant 0 : index
    %c0_21 = arith.constant 0 : index
    %82 = vector.load %arg4[%c0_20, %c0_21] : memref<128x624xf32, #tpu.memory_space<vmem>>, vector<128x624xf32>
    %cst_22 = arith.constant dense<0.000000e+00> : vector<128x196xf32>
    %83 = tpu.matmul %82, %81, %cst_22 {dimension_numbers = #tpu.dot_dimension_numbers<[1], [0], [0], [1], [0, 0, 1, 1], [], []>} : vector<128x624xf32>, vector<624x196xf32>, vector<128x196xf32> -> vector<128x196xf32>
    %c0_23 = arith.constant 0 : index
    %c0_24 = arith.constant 0 : index
    %84 = vector.load %arg7[%c0_23, %c0_24] : memref<128x196xf32, #tpu.memory_space<vmem>>, vector<128x196xf32>
    tpu.vector_store %arg7[%c0_23, %c0_24], %83 {strides = array<i32>} : memref<128x196xf32, #tpu.memory_space<vmem>>, vector<128x196xf32>,
    return
  }
}

</mosaic_0001>

<llo_original>
// kernel: fused_forward.1
$region0: #{fused_forward.1}
  #allocation0 [shape = 'u32[]', space=smem, size = 0x4, offset = 0x4, fixed_abs, tag = 'smem constant byte address 0x4 - core index']
  #allocation1 [shape = 'u32[144,128]{1,0:T(1,128)}', space=vmem, size = 0x12000, scoped, tag = 'internal scratch']
  %s0 = inlined_call_operand.vmem [shape: f32[624,196], index: 0, kind: input, shape index: {}]
  %s1 = inlined_call_operand.vmem [shape: f32[624,9], index: 1, kind: input, shape index: {}]
  %s2 = inlined_call_operand.vmem [shape: f32[624,1], index: 2, kind: input, shape index: {}]
  %s3 = inlined_call_operand.vmem [shape: f32[624,1], index: 3, kind: input, shape index: {}]
  %s4 = inlined_call_operand.vmem [shape: f32[128,624], index: 4, kind: input, shape index: {}]
  %s5 = inlined_call_operand.vmem [shape: f32[1,196], index: 5, kind: input, shape index: {}]
  %s6 = inlined_call_operand.vmem [shape: f32[1,196], index: 6, kind: input, shape index: {}]
  %s7 = inlined_call_operand.vmem [shape: f32[128,196], index: 7, kind: output, shape index: {}]
  %s8 = sld [smem:[#allocation0]]
  $region38: #{fused_forward.1} parent=0
    _
  %s10 = ssub.s32 1, %s8
  %s11 = scalar_select 0, %s10, %s8
  // Predicated region
  $region2: #{fused_forward.1} parent=0 // pred_check
    _
  $region3: #{fused_forward.1} parent=0 // pred_check_branch
    %13 = sbr.rel (0) target = $region5
  $region4: #{fused_forward.1} parent=0 // pred_region
    _
  $region5: #{fused_forward.1} parent=0 // pred_fallthru
    _
  // Predicated region
  $region6: #{fused_forward.1} parent=0 // pred_check
    _
  $region7: #{fused_forward.1} parent=0 // pred_check_branch
    %15 = sbr.rel (0) target = $region9
  $region8: #{fused_forward.1} parent=0 // pred_region
    _
  $region9: #{fused_forward.1} parent=0 // pred_fallthru
    _
  // Predicated region
  $region10: #{fused_forward.1} parent=0 // pred_check
    _
  $region11: #{fused_forward.1} parent=0 // pred_check_branch
    %17 = sbr.rel (0) target = $region13
  $region12: #{fused_forward.1} parent=0 // pred_region
    _
  $region13: #{fused_forward.1} parent=0 // pred_fallthru
    _
  // Predicated region
  $region14: #{fused_forward.1} parent=0 // pred_check
    _
  $region15: #{fused_forward.1} parent=0 // pred_check_branch
    %19 = sbr.rel (0) target = $region17
  $region16: #{fused_forward.1} parent=0 // pred_region
    _
  $region17: #{fused_forward.1} parent=0 // pred_fallthru
    _
  // Predicated region
  $region18: #{fused_forward.1} parent=0 // pred_check
    _
  $region19: #{fused_forward.1} parent=0 // pred_check_branch
    %21 = sbr.rel (0) target = $region21
  $region20: #{fused_forward.1} parent=0 // pred_region
    _
  $region21: #{fused_forward.1} parent=0 // pred_fallthru
    _
  // Predicated region
  $region22: #{fused_forward.1} parent=0 // pred_check
    _
  $region23: #{fused_forward.1} parent=0 // pred_check_branch
    %23 = sbr.rel (0) target = $region25
  $region24: #{fused_forward.1} parent=0 // pred_region
    _
  $region25: #{fused_forward.1} parent=0 // pred_fallthru
    _
  // Predicated region
  $region26: #{fused_forward.1} parent=0 // pred_check
    _
  $region27: #{fused_forward.1} parent=0 // pred_check_branch
    %25 = sbr.rel (0) target = $region29
  $region28: #{fused_forward.1} parent=0 // pred_region
    _
  $region29: #{fused_forward.1} parent=0 // pred_fallthru
    _
  %v26 = vld [vmem:[%s0] sm:$0xff]
  %v27 = vld [vmem:[%s0 + $0x8] sm:$0xff]
  %v28 = vld [vmem:[%s0 + $0x10] sm:$0xff]
  %v29 = vld [vmem:[%s0 + $0x18] sm:$0xff]
  %v30 = vld [vmem:[%s0 + $0x20] sm:$0xff]
  %v31 = vld [vmem:[%s0 + $0x28] sm:$0xff]
  %v32 = vld [vmem:[%s0 + $0x30] sm:$0xff]
  %v33 = vld [vmem:[%s0 + $0x38] sm:$0xff]
  %v34 = vld [vmem:[%s0 + $0x40] sm:$0xff]
  %v35 = vld [vmem:[%s0 + $0x48] sm:$0xff]
  %v36 = vld [vmem:[%s0 + $0x50] sm:$0xff]
  %v37 = vld [vmem:[%s0 + $0x58] sm:$0xff]
  %v38 = vld [vmem:[%s0 + $0x60] sm:$0xff]
  %v39 = vld [vmem:[%s0 + $0x68] sm:$0xff]
  %v40 = vld [vmem:[%s0 + $0x70] sm:$0xff]
  %v41 = vld [vmem:[%s0 + $0x78] sm:$0xff]
  %v42 = vld [vmem:[%s0 + $0x80] sm:$0xff]
  %v43 = vld [vmem:[%s0 + $0x88] sm:$0xff]
  %v44 = vld [vmem:[%s0 + $0x90] sm:$0xff]
  %v45 = vld [vmem:[%s0 + $0x98] sm:$0xff]
  %v46 = vld [vmem:[%s0 + $0xa0] sm:$0xff]
  %v47 = vld [vmem:[%s0 + $0xa8] sm:$0xff]
  %v48 = vld [vmem:[%s0 + $0xb0] sm:$0xff]
  %v49 = vld [vmem:[%s0 + $0xb8] sm:$0xff]
  %v50 = vld [vmem:[%s0 + $0xc0] sm:$0xff]
  %v51 = vld [vmem:[%s0 + $0xc8] sm:$0xff]
  %v52 = vld [vmem:[%s0 + $0xd0] sm:$0xff]
  %v53 = vld [vmem:[%s0 + $0xd8] sm:$0xff]
  %v54 = vld [vmem:[%s0 + $0xe0] sm:$0xff]
  %v55 = vld [vmem:[%s0 + $0xe8] sm:$0xff]
  %v56 = vld [vmem:[%s0 + $0xf0] sm:$0xff]
  %v57 = vld [vmem:[%s0 + $0xf8] sm:$0xff]
  %v58 = vld [vmem:[%s0 + $0x100] sm:$0xff]
  %v59 = vld [vmem:[%s0 + $0x108] sm:$0xff]
  %v60 = vld [vmem:[%s0 + $0x110] sm:$0xff]
  %v61 = vld [vmem:[%s0 + $0x118] sm:$0xff]
  %v62 = vld [vmem:[%s0 + $0x120] sm:$0xff]
  %v63 = vld [vmem:[%s0 + $0x128] sm:$0xff]
  %v64 = vld [vmem:[%s0 + $0x130] sm:$0xff]
  %v65 = vld [vmem:[%s0 + $0x138] sm:$0xff]
  %v66 = vld [vmem:[%s0 + $0x140] sm:$0xff]
  %v67 = vld [vmem:[%s0 + $0x148] sm:$0xff]
  %v68 = vld [vmem:[%s0 + $0x150] sm:$0xff]
  %v69 = vld [vmem:[%s0 + $0x158] sm:$0xff]
  %v70 = vld [vmem:[%s0 + $0x160] sm:$0xff]
  %v71 = vld [vmem:[%s0 + $0x168] sm:$0xff]
  %v72 = vld [vmem:[%s0 + $0x170] sm:$0xff]
  %v73 = vld [vmem:[%s0 + $0x178] sm:$0xff]
  %v74 = vld [vmem:[%s0 + $0x180] sm:$0xff]
  %v75 = vld [vmem:[%s0 + $0x188] sm:$0xff]
  %v76 = vld [vmem:[%s0 + $0x190] sm:$0xff]
  %v77 = vld [vmem:[%s0 + $0x198] sm:$0xff]
  %v78 = vld [vmem:[%s0 + $0x1a0] sm:$0xff]
  %v79 = vld [vmem:[%s0 + $0x1a8] sm:$0xff]
  %v80 = vld [vmem:[%s0 + $0x1b0] sm:$0xff]
  %v81 = vld [vmem:[%s0 + $0x1b8] sm:$0xff]
  %v82 = vld [vmem:[%s0 + $0x1c0] sm:$0xff]
  %v83 = vld [vmem:[%s0 + $0x1c8] sm:$0xff]
  %v84 = vld [vmem:[%s0 + $0x1d0] sm:$0xff]
  %v85 = vld [vmem:[%s0 + $0x1d8] sm:$0xff]
  %v86 = vld [vmem:[%s0 + $0x1e0] sm:$0xff]
  %v87 = vld [vmem:[%s0 + $0x1e8] sm:$0xff]
  %v88 = vld [vmem:[%s0 + $0x1f0] sm:$0xff]
  %v89 = vld [vmem:[%s0 + $0x1f8] sm:$0xff]
  %v90 = vld [vmem:[%s0 + $0x200] sm:$0xff]
  %v91 = vld [vmem:[%s0 + $0x208] sm:$0xff]
  %v92 = vld [vmem:[%s0 + $0x210] sm:$0xff]
  %v93 = vld [vmem:[%s0 + $0x218] sm:$0xff]
  %v94 = vld [vmem:[%s0 + $0x220] sm:$0xff]
  %v95 = vld [vmem:[%s0 + $0x228] sm:$0xff]
  %v96 = vld [vmem:[%s0 + $0x230] sm:$0xff]
  %v97 = vld [vmem:[%s0 + $0x238] sm:$0xff]
  %v98 = vld [vmem:[%s0 + $0x240] sm:$0xff]
  %v99 = vld [vmem:[%s0 + $0x248] sm:$0xff]
  %v100 = vld [vmem:[%s0 + $0x250] sm:$0xff]
  %v101 = vld [vmem:[%s0 + $0x258] sm:$0xff]
  %v102 = vld [vmem:[%s0 + $0x260] sm:$0xff]
  %v103 = vld [vmem:[%s0 + $0x268] sm:$0xff]
  %v104 = vld [vmem:[%s0 + $0x270] sm:$0xff]
  %v105 = vld [vmem:[%s0 + $0x278] sm:$0xff]
  %v106 = vld [vmem:[%s0 + $0x280] sm:$0xff]
  %v107 = vld [vmem:[%s0 + $0x288] sm:$0xff]
  %v108 = vld [vmem:[%s0 + $0x290] sm:$0xff]
  %v109 = vld [vmem:[%s0 + $0x298] sm:$0xff]
  %v110 = vld [vmem:[%s0 + $0x2a0] sm:$0xff]
  %v111 = vld [vmem:[%s0 + $0x2a8] sm:$0xff]
  %v112 = vld [vmem:[%s0 + $0x2b0] sm:$0xff]
  %v113 = vld [vmem:[%s0 + $0x2b8] sm:$0xff]
  %v114 = vld [vmem:[%s0 + $0x2c0] sm:$0xff]
  %v115 = vld [vmem:[%s0 + $0x2c8] sm:$0xff]
  %v116 = vld [vmem:[%s0 + $0x2d0] sm:$0xff]
  %v117 = vld [vmem:[%s0 + $0x2d8] sm:$0xff]
  %v118 = vld [vmem:[%s0 + $0x2e0] sm:$0xff]
  %v119 = vld [vmem:[%s0 + $0x2e8] sm:$0xff]
  %v120 = vld [vmem:[%s0 + $0x2f0] sm:$0xff]
  %v121 = vld [vmem:[%s0 + $0x2f8] sm:$0xff]
  %v122 = vld [vmem:[%s0 + $0x300] sm:$0xff]
  %v123 = vld [vmem:[%s0 + $0x308] sm:$0xff]
  %v124 = vld [vmem:[%s0 + $0x310] sm:$0xff]
  %v125 = vld [vmem:[%s0 + $0x318] sm:$0xff]
  %v126 = vld [vmem:[%s0 + $0x320] sm:$0xff]
  %v127 = vld [vmem:[%s0 + $0x328] sm:$0xff]
  %v128 = vld [vmem:[%s0 + $0x330] sm:$0xff]
  %v129 = vld [vmem:[%s0 + $0x338] sm:$0xff]
  %v130 = vld [vmem:[%s0 + $0x340] sm:$0xff]
  %v131 = vld [vmem:[%s0 + $0x348] sm:$0xff]
  %v132 = vld [vmem:[%s0 + $0x350] sm:$0xff]
  %v133 = vld [vmem:[%s0 + $0x358] sm:$0xff]
  %v134 = vld [vmem:[%s0 + $0x360] sm:$0xff]
  %v135 = vld [vmem:[%s0 + $0x368] sm:$0xff]
  %v136 = vld [vmem:[%s0 + $0x370] sm:$0xff]
  %v137 = vld [vmem:[%s0 + $0x378] sm:$0xff]
  %v138 = vld [vmem:[%s0 + $0x380] sm:$0xff]
  %v139 = vld [vmem:[%s0 + $0x388] sm:$0xff]
  %v140 = vld [vmem:[%s0 + $0x390] sm:$0xff]
  %v141 = vld [vmem:[%s0 + $0x398] sm:$0xff]
  %v142 = vld [vmem:[%s0 + $0x3a0] sm:$0xff]
  %v143 = vld [vmem:[%s0 + $0x3a8] sm:$0xff]
  %v144 = vld [vmem:[%s0 + $0x3b0] sm:$0xff]
  %v145 = vld [vmem:[%s0 + $0x3b8] sm:$0xff]
  %v146 = vld [vmem:[%s0 + $0x3c0] sm:$0xff]
  %v147 = vld [vmem:[%s0 + $0x3c8] sm:$0xff]
  %v148 = vld [vmem:[%s0 + $0x3d0] sm:$0xff]
  %v149 = vld [vmem:[%s0 + $0x3d8] sm:$0xff]
  %v150 = vld [vmem:[%s0 + $0x3e0] sm:$0xff]
  %v151 = vld [vmem:[%s0 + $0x3e8] sm:$0xff]
  %v152 = vld [vmem:[%s0 + $0x3f0] sm:$0xff]
  %v153 = vld [vmem:[%s0 + $0x3f8] sm:$0xff]
  %v154 = vld [vmem:[%s0 + $0x400] sm:$0xff]
  %v155 = vld [vmem:[%s0 + $0x408] sm:$0xff]
  %v156 = vld [vmem:[%s0 + $0x410] sm:$0xff]
  %v157 = vld [vmem:[%s0 + $0x418] sm:$0xff]
  %v158 = vld [vmem:[%s0 + $0x420] sm:$0xff]
  %v159 = vld [vmem:[%s0 + $0x428] sm:$0xff]
  %v160 = vld [vmem:[%s0 + $0x430] sm:$0xff]
  %v161 = vld [vmem:[%s0 + $0x438] sm:$0xff]
  %v162 = vld [vmem:[%s0 + $0x440] sm:$0xff]
  %v163 = vld [vmem:[%s0 + $0x448] sm:$0xff]
  %v164 = vld [vmem:[%s0 + $0x450] sm:$0xff]
  %v165 = vld [vmem:[%s0 + $0x458] sm:$0xff]
  %v166 = vld [vmem:[%s0 + $0x460] sm:$0xff]
  %v167 = vld [vmem:[%s0 + $0x468] sm:$0xff]
  %v168 = vld [vmem:[%s0 + $0x470] sm:$0xff]
  %v169 = vld [vmem:[%s0 + $0x478] sm:$0xff]
  %v170 = vld [vmem:[%s0 + $0x480] sm:$0xff]
  %v171 = vld [vmem:[%s0 + $0x488] sm:$0xff]
  %v172 = vld [vmem:[%s0 + $0x490] sm:$0xff]
  %v173 = vld [vmem:[%s0 + $0x498] sm:$0xff]
  %v174 = vld [vmem:[%s0 + $0x4a0] sm:$0xff]
  %v175 = vld [vmem:[%s0 + $0x4a8] sm:$0xff]
  %v176 = vld [vmem:[%s0 + $0x4b0] sm:$0xff]
  %v177 = vld [vmem:[%s0 + $0x4b8] sm:$0xff]
  %v178 = vld [vmem:[%s0 + $0x4c0] sm:$0xff]
  %v179 = vld [vmem:[%s0 + $0x4c8] sm:$0xff]
  %v180 = vld [vmem:[%s0 + $0x4d0] sm:$0xff]
  %v181 = vld [vmem:[%s0 + $0x4d8] sm:$0xff]
  %v182 = vmax.f32 %v26, 0.0
  %v183 = vmax.f32 %v27, 0.0
  %v184 = vmax.f32 %v28, 0.0
  %v185 = vmax.f32 %v29, 0.0
  %v186 = vmax.f32 %v30, 0.0
  %v187 = vmax.f32 %v31, 0.0
  %v188 = vmax.f32 %v32, 0.0
  %v189 = vmax.f32 %v33, 0.0
  %v190 = vmax.f32 %v34, 0.0
  %v191 = vmax.f32 %v35, 0.0
  %v192 = vmax.f32 %v36, 0.0
  %v193 = vmax.f32 %v37, 0.0
  %v194 = vmax.f32 %v38, 0.0
  %v195 = vmax.f32 %v39, 0.0
  %v196 = vmax.f32 %v40, 0.0
  %v197 = vmax.f32 %v41, 0.0
  %v198 = vmax.f32 %v42, 0.0
  %v199 = vmax.f32 %v43, 0.0
  %v200 = vmax.f32 %v44, 0.0
  %v201 = vmax.f32 %v45, 0.0
  %v202 = vmax.f32 %v46, 0.0
  %v203 = vmax.f32 %v47, 0.0
  %v204 = vmax.f32 %v48, 0.0
  %v205 = vmax.f32 %v49, 0.0
  %v206 = vmax.f32 %v50, 0.0
  %v207 = vmax.f32 %v51, 0.0
  %v208 = vmax.f32 %v52, 0.0
  %v209 = vmax.f32 %v53, 0.0
  %v210 = vmax.f32 %v54, 0.0
  %v211 = vmax.f32 %v55, 0.0
  %v212 = vmax.f32 %v56, 0.0
  %v213 = vmax.f32 %v57, 0.0
  %v214 = vmax.f32 %v58, 0.0
  %v215 = vmax.f32 %v59, 0.0
  %v216 = vmax.f32 %v60, 0.0
  %v217 = vmax.f32 %v61, 0.0
  %v218 = vmax.f32 %v62, 0.0
  %v219 = vmax.f32 %v63, 0.0
  %v220 = vmax.f32 %v64, 0.0
  %v221 = vmax.f32 %v65, 0.0
  %v222 = vmax.f32 %v66, 0.0
  %v223 = vmax.f32 %v67, 0.0
  %v224 = vmax.f32 %v68, 0.0
  %v225 = vmax.f32 %v69, 0.0
  %v226 = vmax.f32 %v70, 0.0
  %v227 = vmax.f32 %v71, 0.0
  %v228 = vmax.f32 %v72, 0.0
  %v229 = vmax.f32 %v73, 0.0
  %v230 = vmax.f32 %v74, 0.0
  %v231 = vmax.f32 %v75, 0.0
  %v232 = vmax.f32 %v76, 0.0
  %v233 = vmax.f32 %v77, 0.0
  %v234 = vmax.f32 %v78, 0.0
  %v235 = vmax.f32 %v79, 0.0
  %v236 = vmax.f32 %v80, 0.0
  %v237 = vmax.f32 %v81, 0.0
  %v238 = vmax.f32 %v82, 0.0
  %v239 = vmax.f32 %v83, 0.0
  %v240 = vmax.f32 %v84, 0.0
  %v241 = vmax.f32 %v85, 0.0
  %v242 = vmax.f32 %v86, 0.0
  %v243 = vmax.f32 %v87, 0.0
  %v244 = vmax.f32 %v88, 0.0
  %v245 = vmax.f32 %v89, 0.0
  %v246 = vmax.f32 %v90, 0.0
  %v247 = vmax.f32 %v91, 0.0
  %v248 = vmax.f32 %v92, 0.0
  %v249 = vmax.f32 %v93, 0.0
  %v250 = vmax.f32 %v94, 0.0
  %v251 = vmax.f32 %v95, 0.0
  %v252 = vmax.f32 %v96, 0.0
  %v253 = vmax.f32 %v97, 0.0
  %v254 = vmax.f32 %v98, 0.0
  %v255 = vmax.f32 %v99, 0.0
  %v256 = vmax.f32 %v100, 0.0
  %v257 = vmax.f32 %v101, 0.0
  %v258 = vmax.f32 %v102, 0.0
  %v259 = vmax.f32 %v103, 0.0
  %v260 = vmax.f32 %v104, 0.0
  %v261 = vmax.f32 %v105, 0.0
  %v262 = vmax.f32 %v106, 0.0
  %v263 = vmax.f32 %v107, 0.0
  %v264 = vmax.f32 %v108, 0.0
  %v265 = vmax.f32 %v109, 0.0
  %v266 = vmax.f32 %v110, 0.0
  %v267 = vmax.f32 %v111, 0.0
  %v268 = vmax.f32 %v112, 0.0
  %v269 = vmax.f32 %v113, 0.0
  %v270 = vmax.f32 %v114, 0.0
  %v271 = vmax.f32 %v115, 0.0
  %v272 = vmax.f32 %v116, 0.0
  %v273 = vmax.f32 %v117, 0.0
  %v274 = vmax.f32 %v118, 0.0
  %v275 = vmax.f32 %v119, 0.0
  %v276 = vmax.f32 %v120, 0.0
  %v277 = vmax.f32 %v121, 0.0
  %v278 = vmax.f32 %v122, 0.0
  %v279 = vmax.f32 %v123, 0.0
  %v280 = vmax.f32 %v124, 0.0
  %v281 = vmax.f32 %v125, 0.0
  %v282 = vmax.f32 %v126, 0.0
  %v283 = vmax.f32 %v127, 0.0
  %v284 = vmax.f32 %v128, 0.0
  %v285 = vmax.f32 %v129, 0.0
  %v286 = vmax.f32 %v130, 0.0
  %v287 = vmax.f32 %v131, 0.0
  %v288 = vmax.f32 %v132, 0.0
  %v289 = vmax.f32 %v133, 0.0
  %v290 = vmax.f32 %v134, 0.0
  %v291 = vmax.f32 %v135, 0.0
  %v292 = vmax.f32 %v136, 0.0
  %v293 = vmax.f32 %v137, 0.0
  %v294 = vmax.f32 %v138, 0.0
  %v295 = vmax.f32 %v139, 0.0
  %v296 = vmax.f32 %v140, 0.0
  %v297 = vmax.f32 %v141, 0.0
  %v298 = vmax.f32 %v142, 0.0
  %v299 = vmax.f32 %v143, 0.0
  %v300 = vmax.f32 %v144, 0.0
  %v301 = vmax.f32 %v145, 0.0
  %v302 = vmax.f32 %v146, 0.0
  %v303 = vmax.f32 %v147, 0.0
  %v304 = vmax.f32 %v148, 0.0
  %v305 = vmax.f32 %v149, 0.0
  %v306 = vmax.f32 %v150, 0.0
  %v307 = vmax.f32 %v151, 0.0
  %v308 = vmax.f32 %v152, 0.0
  %v309 = vmax.f32 %v153, 0.0
  %v310 = vmax.f32 %v154, 0.0
  %v311 = vmax.f32 %v155, 0.0
  %v312 = vmax.f32 %v156, 0.0
  %v313 = vmax.f32 %v157, 0.0
  %v314 = vmax.f32 %v158, 0.0
  %v315 = vmax.f32 %v159, 0.0
  %v316 = vmax.f32 %v160, 0.0
  %v317 = vmax.f32 %v161, 0.0
  %v318 = vmax.f32 %v162, 0.0
  %v319 = vmax.f32 %v163, 0.0
  %v320 = vmax.f32 %v164, 0.0
  %v321 = vmax.f32 %v165, 0.0
  %v322 = vmax.f32 %v166, 0.0
  %v323 = vmax.f32 %v167, 0.0
  %v324 = vmax.f32 %v168, 0.0
  %v325 = vmax.f32 %v169, 0.0
  %v326 = vmax.f32 %v170, 0.0
  %v327 = vmax.f32 %v171, 0.0
  %v328 = vmax.f32 %v172, 0.0
  %v329 = vmax.f32 %v173, 0.0
  %v330 = vmax.f32 %v174, 0.0
  %v331 = vmax.f32 %v175, 0.0
  %v332 = vmax.f32 %v176, 0.0
  %v333 = vmax.f32 %v177, 0.0
  %v334 = vmax.f32 %v178, 0.0
  %v335 = vmax.f32 %v179, 0.0
  %v336 = vmax.f32 %v180, 0.0
  %v337 = vmax.f32 %v181, 0.0
  %v338 = vld [vmem:[%s1] sm:$0xff]
  %v339 = vld [vmem:[%s1 + $0x8] sm:$0xff]
  %v340 = vld [vmem:[%s1 + $0x10] sm:$0xff]
  %v341 = vld [vmem:[%s1 + $0x18] sm:$0xff]
  %v342 = vld [vmem:[%s1 + $0x20] sm:$0xff]
  %v343 = vld [vmem:[%s1 + $0x28] sm:$0xff]
  %v344 = vld [vmem:[%s1 + $0x30] sm:$0xff]
  %v345 = vld [vmem:[%s1 + $0x38] sm:$0xff]
  %v346 = vld [vmem:[%s1 + $0x40] sm:$0xff]
  %v347 = vld [vmem:[%s1 + $0x48] sm:$0xff]
  %v348 = vld [vmem:[%s1 + $0x50] sm:$0xff]
  %v349 = vld [vmem:[%s1 + $0x58] sm:$0xff]
  %v350 = vld [vmem:[%s1 + $0x60] sm:$0xff]
  %v351 = vld [vmem:[%s1 + $0x68] sm:$0xff]
  %v352 = vld [vmem:[%s1 + $0x70] sm:$0xff]
  %v353 = vld [vmem:[%s1 + $0x78] sm:$0xff]
  %v354 = vld [vmem:[%s1 + $0x80] sm:$0xff]
  %v355 = vld [vmem:[%s1 + $0x88] sm:$0xff]
  %v356 = vld [vmem:[%s1 + $0x90] sm:$0xff]
  %v357 = vld [vmem:[%s1 + $0x98] sm:$0xff]
  %v358 = vld [vmem:[%s1 + $0xa0] sm:$0xff]
  %v359 = vld [vmem:[%s1 + $0xa8] sm:$0xff]
  %v360 = vld [vmem:[%s1 + $0xb0] sm:$0xff]
  %v361 = vld [vmem:[%s1 + $0xb8] sm:$0xff]
  %v362 = vld [vmem:[%s1 + $0xc0] sm:$0xff]
  %v363 = vld [vmem:[%s1 + $0xc8] sm:$0xff]
  %v364 = vld [vmem:[%s1 + $0xd0] sm:$0xff]
  %v365 = vld [vmem:[%s1 + $0xd8] sm:$0xff]
  %v366 = vld [vmem:[%s1 + $0xe0] sm:$0xff]
  %v367 = vld [vmem:[%s1 + $0xe8] sm:$0xff]
  %v368 = vld [vmem:[%s1 + $0xf0] sm:$0xff]
  %v369 = vld [vmem:[%s1 + $0xf8] sm:$0xff]
  %v370 = vld [vmem:[%s1 + $0x100] sm:$0xff]
  %v371 = vld [vmem:[%s1 + $0x108] sm:$0xff]
  %v372 = vld [vmem:[%s1 + $0x110] sm:$0xff]
  %v373 = vld [vmem:[%s1 + $0x118] sm:$0xff]
  %v374 = vld [vmem:[%s1 + $0x120] sm:$0xff]
  %v375 = vld [vmem:[%s1 + $0x128] sm:$0xff]
  %v376 = vld [vmem:[%s1 + $0x130] sm:$0xff]
  %v377 = vld [vmem:[%s1 + $0x138] sm:$0xff]
  %v378 = vld [vmem:[%s1 + $0x140] sm:$0xff]
  %v379 = vld [vmem:[%s1 + $0x148] sm:$0xff]
  %v380 = vld [vmem:[%s1 + $0x150] sm:$0xff]
  %v381 = vld [vmem:[%s1 + $0x158] sm:$0xff]
  %v382 = vld [vmem:[%s1 + $0x160] sm:$0xff]
  %v383 = vld [vmem:[%s1 + $0x168] sm:$0xff]
  %v384 = vld [vmem:[%s1 + $0x170] sm:$0xff]
  %v385 = vld [vmem:[%s1 + $0x178] sm:$0xff]
  %v386 = vld [vmem:[%s1 + $0x180] sm:$0xff]
  %v387 = vld [vmem:[%s1 + $0x188] sm:$0xff]
  %v388 = vld [vmem:[%s1 + $0x190] sm:$0xff]
  %v389 = vld [vmem:[%s1 + $0x198] sm:$0xff]
  %v390 = vld [vmem:[%s1 + $0x1a0] sm:$0xff]
  %v391 = vld [vmem:[%s1 + $0x1a8] sm:$0xff]
  %v392 = vld [vmem:[%s1 + $0x1b0] sm:$0xff]
  %v393 = vld [vmem:[%s1 + $0x1b8] sm:$0xff]
  %v394 = vld [vmem:[%s1 + $0x1c0] sm:$0xff]
  %v395 = vld [vmem:[%s1 + $0x1c8] sm:$0xff]
  %v396 = vld [vmem:[%s1 + $0x1d0] sm:$0xff]
  %v397 = vld [vmem:[%s1 + $0x1d8] sm:$0xff]
  %v398 = vld [vmem:[%s1 + $0x1e0] sm:$0xff]
  %v399 = vld [vmem:[%s1 + $0x1e8] sm:$0xff]
  %v400 = vld [vmem:[%s1 + $0x1f0] sm:$0xff]
  %v401 = vld [vmem:[%s1 + $0x1f8] sm:$0xff]
  %v402 = vld [vmem:[%s1 + $0x200] sm:$0xff]
  %v403 = vld [vmem:[%s1 + $0x208] sm:$0xff]
  %v404 = vld [vmem:[%s1 + $0x210] sm:$0xff]
  %v405 = vld [vmem:[%s1 + $0x218] sm:$0xff]
  %v406 = vld [vmem:[%s1 + $0x220] sm:$0xff]
  %v407 = vld [vmem:[%s1 + $0x228] sm:$0xff]
  %v408 = vld [vmem:[%s1 + $0x230] sm:$0xff]
  %v409 = vld [vmem:[%s1 + $0x238] sm:$0xff]
  %v410 = vld [vmem:[%s1 + $0x240] sm:$0xff]
  %v411 = vld [vmem:[%s1 + $0x248] sm:$0xff]
  %v412 = vld [vmem:[%s1 + $0x250] sm:$0xff]
  %v413 = vld [vmem:[%s1 + $0x258] sm:$0xff]
  %v414 = vld [vmem:[%s1 + $0x260] sm:$0xff]
  %v415 = vld [vmem:[%s1 + $0x268] sm:$0xff]
  %572 = vrot.lane.b32.xlu0 %v182, 14
  %v573 = vpop.permute.xlu0 %572
  %574 = vrot.lane.b32.xlu0 %v183, 14
  %v575 = vpop.permute.xlu0 %574
  %576 = vrot.lane.b32.xlu0 %v184, 14
  %v577 = vpop.permute.xlu0 %576
  %578 = vrot.lane.b32.xlu0 %v185, 14
  %v579 = vpop.permute.xlu0 %578
  %580 = vrot.lane.b32.xlu0 %v186, 14
  %v581 = vpop.permute.xlu0 %580
  %582 = vrot.lane.b32.xlu0 %v187, 14
  %v583 = vpop.permute.xlu0 %582
  %584 = vrot.lane.b32.xlu0 %v188, 14
  %v585 = vpop.permute.xlu0 %584
  %586 = vrot.lane.b32.xlu0 %v189, 14
  %v587 = vpop.permute.xlu0 %586
  %588 = vrot.lane.b32.xlu0 %v190, 14
  %v589 = vpop.permute.xlu0 %588
  %590 = vrot.lane.b32.xlu0 %v191, 14
  %v591 = vpop.permute.xlu0 %590
  %592 = vrot.lane.b32.xlu0 %v192, 14
  %v593 = vpop.permute.xlu0 %592
  %594 = vrot.lane.b32.xlu0 %v193, 14
  %v595 = vpop.permute.xlu0 %594
  %596 = vrot.lane.b32.xlu0 %v194, 14
  %v597 = vpop.permute.xlu0 %596
  %598 = vrot.lane.b32.xlu0 %v195, 14
  %v599 = vpop.permute.xlu0 %598
  %600 = vrot.lane.b32.xlu0 %v196, 14
  %v601 = vpop.permute.xlu0 %600
  %602 = vrot.lane.b32.xlu0 %v197, 14
  %v603 = vpop.permute.xlu0 %602
  %604 = vrot.lane.b32.xlu0 %v198, 14
  %v605 = vpop.permute.xlu0 %604
  %606 = vrot.lane.b32.xlu0 %v199, 14
  %v607 = vpop.permute.xlu0 %606
  %608 = vrot.lane.b32.xlu0 %v200, 14
  %v609 = vpop.permute.xlu0 %608
  %610 = vrot.lane.b32.xlu0 %v201, 14
  %v611 = vpop.permute.xlu0 %610
  %612 = vrot.lane.b32.xlu0 %v202, 14
  %v613 = vpop.permute.xlu0 %612
  %614 = vrot.lane.b32.xlu0 %v203, 14
  %v615 = vpop.permute.xlu0 %614
  %616 = vrot.lane.b32.xlu0 %v204, 14
  %v617 = vpop.permute.xlu0 %616
  %618 = vrot.lane.b32.xlu0 %v205, 14
  %v619 = vpop.permute.xlu0 %618
  %620 = vrot.lane.b32.xlu0 %v206, 14
  %v621 = vpop.permute.xlu0 %620
  %622 = vrot.lane.b32.xlu0 %v207, 14
  %v623 = vpop.permute.xlu0 %622
  %624 = vrot.lane.b32.xlu0 %v208, 14
  %v625 = vpop.permute.xlu0 %624
  %626 = vrot.lane.b32.xlu0 %v209, 14
  %v627 = vpop.permute.xlu0 %626
  %628 = vrot.lane.b32.xlu0 %v210, 14
  %v629 = vpop.permute.xlu0 %628
  %630 = vrot.lane.b32.xlu0 %v211, 14
  %v631 = vpop.permute.xlu0 %630
  %632 = vrot.lane.b32.xlu0 %v212, 14
  %v633 = vpop.permute.xlu0 %632
  %634 = vrot.lane.b32.xlu0 %v213, 14
  %v635 = vpop.permute.xlu0 %634
  %636 = vrot.lane.b32.xlu0 %v214, 14
  %v637 = vpop.permute.xlu0 %636
  %638 = vrot.lane.b32.xlu0 %v215, 14
  %v639 = vpop.permute.xlu0 %638
  %640 = vrot.lane.b32.xlu0 %v216, 14
  %v641 = vpop.permute.xlu0 %640
  %642 = vrot.lane.b32.xlu0 %v217, 14
  %v643 = vpop.permute.xlu0 %642
  %644 = vrot.lane.b32.xlu0 %v218, 14
  %v645 = vpop.permute.xlu0 %644
  %646 = vrot.lane.b32.xlu0 %v219, 14
  %v647 = vpop.permute.xlu0 %646
  %648 = vrot.lane.b32.xlu0 %v220, 14
  %v649 = vpop.permute.xlu0 %648
  %650 = vrot.lane.b32.xlu0 %v221, 14
  %v651 = vpop.permute.xlu0 %650
  %652 = vrot.lane.b32.xlu0 %v222, 14
  %v653 = vpop.permute.xlu0 %652
  %654 = vrot.lane.b32.xlu0 %v223, 14
  %v655 = vpop.permute.xlu0 %654
  %656 = vrot.lane.b32.xlu0 %v224, 14
  %v657 = vpop.permute.xlu0 %656
  %658 = vrot.lane.b32.xlu0 %v225, 14
  %v659 = vpop.permute.xlu0 %658
  %660 = vrot.lane.b32.xlu0 %v226, 14
  %v661 = vpop.permute.xlu0 %660
  %662 = vrot.lane.b32.xlu0 %v227, 14
  %v663 = vpop.permute.xlu0 %662
  %664 = vrot.lane.b32.xlu0 %v228, 14
  %v665 = vpop.permute.xlu0 %664
  %666 = vrot.lane.b32.xlu0 %v229, 14
  %v667 = vpop.permute.xlu0 %666
  %668 = vrot.lane.b32.xlu0 %v230, 14
  %v669 = vpop.permute.xlu0 %668
  %670 = vrot.lane.b32.xlu0 %v231, 14
  %v671 = vpop.permute.xlu0 %670
  %672 = vrot.lane.b32.xlu0 %v232, 14
  %v673 = vpop.permute.xlu0 %672
  %674 = vrot.lane.b32.xlu0 %v233, 14
  %v675 = vpop.permute.xlu0 %674
  %676 = vrot.lane.b32.xlu0 %v234, 14
  %v677 = vpop.permute.xlu0 %676
  %678 = vrot.lane.b32.xlu0 %v235, 14
  %v679 = vpop.permute.xlu0 %678
  %680 = vrot.lane.b32.xlu0 %v236, 14
  %v681 = vpop.permute.xlu0 %680
  %682 = vrot.lane.b32.xlu0 %v237, 14
  %v683 = vpop.permute.xlu0 %682
  %684 = vrot.lane.b32.xlu0 %v238, 14
  %v685 = vpop.permute.xlu0 %684
  %686 = vrot.lane.b32.xlu0 %v239, 14
  %v687 = vpop.permute.xlu0 %686
  %688 = vrot.lane.b32.xlu0 %v240, 14
  %v689 = vpop.permute.xlu0 %688
  %690 = vrot.lane.b32.xlu0 %v241, 14
  %v691 = vpop.permute.xlu0 %690
  %692 = vrot.lane.b32.xlu0 %v242, 14
  %v693 = vpop.permute.xlu0 %692
  %694 = vrot.lane.b32.xlu0 %v243, 14
  %v695 = vpop.permute.xlu0 %694
  %696 = vrot.lane.b32.xlu0 %v244, 14
  %v697 = vpop.permute.xlu0 %696
  %698 = vrot.lane.b32.xlu0 %v245, 14
  %v699 = vpop.permute.xlu0 %698
  %700 = vrot.lane.b32.xlu0 %v246, 14
  %v701 = vpop.permute.xlu0 %700
  %702 = vrot.lane.b32.xlu0 %v247, 14
  %v703 = vpop.permute.xlu0 %702
  %704 = vrot.lane.b32.xlu0 %v248, 14
  %v705 = vpop.permute.xlu0 %704
  %706 = vrot.lane.b32.xlu0 %v249, 14
  %v707 = vpop.permute.xlu0 %706
  %708 = vrot.lane.b32.xlu0 %v250, 14
  %v709 = vpop.permute.xlu0 %708
  %710 = vrot.lane.b32.xlu0 %v251, 14
  %v711 = vpop.permute.xlu0 %710
  %712 = vrot.lane.b32.xlu0 %v252, 14
  %v713 = vpop.permute.xlu0 %712
  %714 = vrot.lane.b32.xlu0 %v253, 14
  %v715 = vpop.permute.xlu0 %714
  %716 = vrot.lane.b32.xlu0 %v254, 14
  %v717 = vpop.permute.xlu0 %716
  %718 = vrot.lane.b32.xlu0 %v255, 14
  %v719 = vpop.permute.xlu0 %718
  %720 = vrot.lane.b32.xlu0 %v256, 14
  %v721 = vpop.permute.xlu0 %720
  %722 = vrot.lane.b32.xlu0 %v257, 14
  %v723 = vpop.permute.xlu0 %722
  %724 = vrot.lane.b32.xlu0 %v258, 14
  %v725 = vpop.permute.xlu0 %724
  %726 = vrot.lane.b32.xlu0 %v259, 14
  %v727 = vpop.permute.xlu0 %726
  %728 = vrot.lane.b32.xlu0 %v260, 14
  %v729 = vpop.permute.xlu0 %728
  %730 = vrot.lane.b32.xlu0 %v261, 14
  %v731 = vpop.permute.xlu0 %730
  %732 = vrot.lane.b32.xlu0 %v262, 14
  %v733 = vpop.permute.xlu0 %732
  %734 = vrot.lane.b32.xlu0 %v263, 14
  %v735 = vpop.permute.xlu0 %734
  %736 = vrot.lane.b32.xlu0 %v264, 14
  %v737 = vpop.permute.xlu0 %736
  %738 = vrot.lane.b32.xlu0 %v265, 14
  %v739 = vpop.permute.xlu0 %738
  %740 = vrot.lane.b32.xlu0 %v266, 14
  %v741 = vpop.permute.xlu0 %740
  %742 = vrot.lane.b32.xlu0 %v267, 14
  %v743 = vpop.permute.xlu0 %742
  %744 = vrot.lane.b32.xlu0 %v268, 14
  %v745 = vpop.permute.xlu0 %744
  %746 = vrot.lane.b32.xlu0 %v269, 14
  %v747 = vpop.permute.xlu0 %746
  %748 = vrot.lane.b32.xlu0 %v270, 14
  %v749 = vpop.permute.xlu0 %748
  %750 = vrot.lane.b32.xlu0 %v271, 14
  %v751 = vpop.permute.xlu0 %750
  %752 = vrot.lane.b32.xlu0 %v272, 14
  %v753 = vpop.permute.xlu0 %752
  %754 = vrot.lane.b32.xlu0 %v273, 14
  %v755 = vpop.permute.xlu0 %754
  %756 = vrot.lane.b32.xlu0 %v274, 14
  %v757 = vpop.permute.xlu0 %756
  %758 = vrot.lane.b32.xlu0 %v275, 14
  %v759 = vpop.permute.xlu0 %758
  %760 = vrot.lane.b32.xlu0 %v276, 14
  %v761 = vpop.permute.xlu0 %760
  %762 = vrot.lane.b32.xlu0 %v277, 14
  %v763 = vpop.permute.xlu0 %762
  %764 = vrot.lane.b32.xlu0 %v278, 14
  %v765 = vpop.permute.xlu0 %764
  %766 = vrot.lane.b32.xlu0 %v279, 14
  %v767 = vpop.permute.xlu0 %766
  %768 = vrot.lane.b32.xlu0 %v280, 14
  %v769 = vpop.permute.xlu0 %768
  %770 = vrot.lane.b32.xlu0 %v281, 14
  %v771 = vpop.permute.xlu0 %770
  %772 = vrot.lane.b32.xlu0 %v282, 14
  %v773 = vpop.permute.xlu0 %772
  %774 = vrot.lane.b32.xlu0 %v283, 14
  %v775 = vpop.permute.xlu0 %774
  %776 = vrot.lane.b32.xlu0 %v284, 14
  %v777 = vpop.permute.xlu0 %776
  %778 = vrot.lane.b32.xlu0 %v285, 14
  %v779 = vpop.permute.xlu0 %778
  %780 = vrot.lane.b32.xlu0 %v286, 14
  %v781 = vpop.permute.xlu0 %780
  %782 = vrot.lane.b32.xlu0 %v287, 14
  %v783 = vpop.permute.xlu0 %782
  %784 = vrot.lane.b32.xlu0 %v288, 14
  %v785 = vpop.permute.xlu0 %784
  %786 = vrot.lane.b32.xlu0 %v289, 14
  %v787 = vpop.permute.xlu0 %786
  %788 = vrot.lane.b32.xlu0 %v290, 14
  %v789 = vpop.permute.xlu0 %788
  %790 = vrot.lane.b32.xlu0 %v291, 14
  %v791 = vpop.permute.xlu0 %790
  %792 = vrot.lane.b32.xlu0 %v292, 14
  %v793 = vpop.permute.xlu0 %792
  %794 = vrot.lane.b32.xlu0 %v293, 14
  %v795 = vpop.permute.xlu0 %794
  %796 = vrot.lane.b32.xlu0 %v294, 14
  %v797 = vpop.permute.xlu0 %796
  %798 = vrot.lane.b32.xlu0 %v295, 14
  %v799 = vpop.permute.xlu0 %798
  %800 = vrot.lane.b32.xlu0 %v296, 14
  %v801 = vpop.permute.xlu0 %800
  %802 = vrot.lane.b32.xlu0 %v297, 14
  %v803 = vpop.permute.xlu0 %802
  %804 = vrot.lane.b32.xlu0 %v298, 14
  %v805 = vpop.permute.xlu0 %804
  %806 = vrot.lane.b32.xlu0 %v299, 14
  %v807 = vpop.permute.xlu0 %806
  %808 = vrot.lane.b32.xlu0 %v300, 14
  %v809 = vpop.permute.xlu0 %808
  %810 = vrot.lane.b32.xlu0 %v301, 14
  %v811 = vpop.permute.xlu0 %810
  %812 = vrot.lane.b32.xlu0 %v302, 14
  %v813 = vpop.permute.xlu0 %812
  %814 = vrot.lane.b32.xlu0 %v303, 14
  %v815 = vpop.permute.xlu0 %814
  %816 = vrot.lane.b32.xlu0 %v304, 14
  %v817 = vpop.permute.xlu0 %816
  %818 = vrot.lane.b32.xlu0 %v305, 14
  %v819 = vpop.permute.xlu0 %818
  %820 = vrot.lane.b32.xlu0 %v306, 14
  %v821 = vpop.permute.xlu0 %820
  %822 = vrot.lane.b32.xlu0 %v307, 14
  %v823 = vpop.permute.xlu0 %822
  %824 = vrot.lane.b32.xlu0 %v308, 14
  %v825 = vpop.permute.xlu0 %824
  %826 = vrot.lane.b32.xlu0 %v309, 14
  %v827 = vpop.permute.xlu0 %826
  %828 = vrot.lane.b32.xlu0 %v310, 14
  %v829 = vpop.permute.xlu0 %828
  %830 = vrot.lane.b32.xlu0 %v311, 14
  %v831 = vpop.permute.xlu0 %830
  %832 = vrot.lane.b32.xlu0 %v312, 14
  %v833 = vpop.permute.xlu0 %832
  %834 = vrot.lane.b32.xlu0 %v313, 14
  %v835 = vpop.permute.xlu0 %834
  %836 = vrot.lane.b32.xlu0 %v314, 14
  %v837 = vpop.permute.xlu0 %836
  %838 = vrot.lane.b32.xlu0 %v315, 14
  %v839 = vpop.permute.xlu0 %838
  %840 = vrot.lane.b32.xlu0 %v316, 14
  %v841 = vpop.permute.xlu0 %840
  %842 = vrot.lane.b32.xlu0 %v317, 14
  %v843 = vpop.permute.xlu0 %842
  %844 = vrot.lane.b32.xlu0 %v318, 14
  %v845 = vpop.permute.xlu0 %844
  %846 = vrot.lane.b32.xlu0 %v319, 14
  %v847 = vpop.permute.xlu0 %846
  %848 = vrot.lane.b32.xlu0 %v320, 14
  %v849 = vpop.permute.xlu0 %848
  %850 = vrot.lane.b32.xlu0 %v321, 14
  %v851 = vpop.permute.xlu0 %850
  %852 = vrot.lane.b32.xlu0 %v322, 14
  %v853 = vpop.permute.xlu0 %852
  %854 = vrot.lane.b32.xlu0 %v323, 14
  %v855 = vpop.permute.xlu0 %854
  %856 = vrot.lane.b32.xlu0 %v324, 14
  %v857 = vpop.permute.xlu0 %856
  %858 = vrot.lane.b32.xlu0 %v325, 14
  %v859 = vpop.permute.xlu0 %858
  %860 = vrot.lane.b32.xlu0 %v326, 14
  %v861 = vpop.permute.xlu0 %860
  %862 = vrot.lane.b32.xlu0 %v327, 14
  %v863 = vpop.permute.xlu0 %862
  %864 = vrot.lane.b32.xlu0 %v328, 14
  %v865 = vpop.permute.xlu0 %864
  %866 = vrot.lane.b32.xlu0 %v329, 14
  %v867 = vpop.permute.xlu0 %866
  %868 = vrot.lane.b32.xlu0 %v330, 14
  %v869 = vpop.permute.xlu0 %868
  %870 = vrot.lane.b32.xlu0 %v331, 14
  %v871 = vpop.permute.xlu0 %870
  %872 = vrot.lane.b32.xlu0 %v332, 14
  %v873 = vpop.permute.xlu0 %872
  %874 = vrot.lane.b32.xlu0 %v333, 14
  %v875 = vpop.permute.xlu0 %874
  %876 = vrot.lane.b32.xlu0 %v334, 14
  %v877 = vpop.permute.xlu0 %876
  %878 = vrot.lane.b32.xlu0 %v335, 14
  %v879 = vpop.permute.xlu0 %878
  %880 = vrot.lane.b32.xlu0 %v336, 14
  %v881 = vpop.permute.xlu0 %880
  %882 = vrot.lane.b32.xlu0 %v337, 14
  %v883 = vpop.permute.xlu0 %882
  %vm884 = vcmask 113664
  %v885 = vsel %vm884, %v573, %v575
  %v886 = vsel %vm884, %v577, %v579
  %v887 = vsel %vm884, %v581, %v583
  %v888 = vsel %vm884, %v585, %v587
  %v889 = vsel %vm884, %v589, %v591
  %v890 = vsel %vm884, %v593, %v595
  %v891 = vsel %vm884, %v597, %v599
  %v892 = vsel %vm884, %v601, %v603
  %v893 = vsel %vm884, %v605, %v607
  %v894 = vsel %vm884, %v609, %v611
  %v895 = vsel %vm884, %v613, %v615
  %v896 = vsel %vm884, %v617, %v619
  %v897 = vsel %vm884, %v621, %v623
  %v898 = vsel %vm884, %v625, %v627
  %v899 = vsel %vm884, %v629, %v631
  %v900 = vsel %vm884, %v633, %v635
  %v901 = vsel %vm884, %v637, %v639
  %v902 = vsel %vm884, %v641, %v643
  %v903 = vsel %vm884, %v645, %v647
  %v904 = vsel %vm884, %v649, %v651
  %v905 = vsel %vm884, %v653, %v655
  %v906 = vsel %vm884, %v657, %v659
  %v907 = vsel %vm884, %v661, %v663
  %v908 = vsel %vm884, %v665, %v667
  %v909 = vsel %vm884, %v669, %v671
  %v910 = vsel %vm884, %v673, %v675
  %v911 = vsel %vm884, %v677, %v679
  %v912 = vsel %vm884, %v681, %v683
  %v913 = vsel %vm884, %v685, %v687
  %v914 = vsel %vm884, %v689, %v691
  %v915 = vsel %vm884, %v693, %v695
  %v916 = vsel %vm884, %v697, %v699
  %v917 = vsel %vm884, %v701, %v703
  %v918 = vsel %vm884, %v705, %v707
  %v919 = vsel %vm884, %v709, %v711
  %v920 = vsel %vm884, %v713, %v715
  %v921 = vsel %vm884, %v717, %v719
  %v922 = vsel %vm884, %v721, %v723
  %v923 = vsel %vm884, %v725, %v727
  %v924 = vsel %vm884, %v729, %v731
  %v925 = vsel %vm884, %v733, %v735
  %v926 = vsel %vm884, %v737, %v739
  %v927 = vsel %vm884, %v741, %v743
  %v928 = vsel %vm884, %v745, %v747
  %v929 = vsel %vm884, %v749, %v751
  %v930 = vsel %vm884, %v753, %v755
  %v931 = vsel %vm884, %v757, %v759
  %v932 = vsel %vm884, %v761, %v763
  %v933 = vsel %vm884, %v765, %v767
  %v934 = vsel %vm884, %v769, %v771
  %v935 = vsel %vm884, %v773, %v775
  %v936 = vsel %vm884, %v777, %v779
  %v937 = vsel %vm884, %v781, %v783
  %v938 = vsel %vm884, %v785, %v787
  %v939 = vsel %vm884, %v789, %v791
  %v940 = vsel %vm884, %v793, %v795
  %v941 = vsel %vm884, %v797, %v799
  %v942 = vsel %vm884, %v801, %v803
  %v943 = vsel %vm884, %v805, %v807
  %v944 = vsel %vm884, %v809, %v811
  %v945 = vsel %vm884, %v813, %v815
  %v946 = vsel %vm884, %v817, %v819
  %v947 = vsel %vm884, %v821, %v823
  %v948 = vsel %vm884, %v825, %v827
  %v949 = vsel %vm884, %v829, %v831
  %v950 = vsel %vm884, %v833, %v835
  %v951 = vsel %vm884, %v837, %v839
  %v952 = vsel %vm884, %v841, %v843
  %v953 = vsel %vm884, %v845, %v847
  %v954 = vsel %vm884, %v849, %v851
  %v955 = vsel %vm884, %v853, %v855
  %v956 = vsel %vm884, %v857, %v859
  %v957 = vsel %vm884, %v861, %v863
  %v958 = vsel %vm884, %v865, %v867
  %v959 = vsel %vm884, %v869, %v871
  %v960 = vsel %vm884, %v873, %v875
  %v961 = vsel %vm884, %v877, %v879
  %v962 = vsel %vm884, %v881, %v883
  %v1119 = vsel %vm884, 0.0, %v573
  %v1120 = vsel %vm884, 0.0, %v577
  %v1121 = vsel %vm884, 0.0, %v581
  %v1122 = vsel %vm884, 0.0, %v585
  %v1123 = vsel %vm884, 0.0, %v589
  %v1124 = vsel %vm884, 0.0, %v593
  %v1125 = vsel %vm884, 0.0, %v597
  %v1126 = vsel %vm884, 0.0, %v601
  %v1127 = vsel %vm884, 0.0, %v605
  %v1128 = vsel %vm884, 0.0, %v609
  %v1129 = vsel %vm884, 0.0, %v613
  %v1130 = vsel %vm884, 0.0, %v617
  %v1131 = vsel %vm884, 0.0, %v621
  %v1132 = vsel %vm884, 0.0, %v625
  %v1133 = vsel %vm884, 0.0, %v629
  %v1134 = vsel %vm884, 0.0, %v633
  %v1135 = vsel %vm884, 0.0, %v637
  %v1136 = vsel %vm884, 0.0, %v641
  %v1137 = vsel %vm884, 0.0, %v645
  %v1138 = vsel %vm884, 0.0, %v649
  %v1139 = vsel %vm884, 0.0, %v653
  %v1140 = vsel %vm884, 0.0, %v657
  %v1141 = vsel %vm884, 0.0, %v661
  %v1142 = vsel %vm884, 0.0, %v665
  %v1143 = vsel %vm884, 0.0, %v669
  %v1144 = vsel %vm884, 0.0, %v673
  %v1145 = vsel %vm884, 0.0, %v677
  %v1146 = vsel %vm884, 0.0, %v681
  %v1147 = vsel %vm884, 0.0, %v685
  %v1148 = vsel %vm884, 0.0, %v689
  %v1149 = vsel %vm884, 0.0, %v693
  %v1150 = vsel %vm884, 0.0, %v697
  %v1151 = vsel %vm884, 0.0, %v701
  %v1152 = vsel %vm884, 0.0, %v705
  %v1153 = vsel %vm884, 0.0, %v709
  %v1154 = vsel %vm884, 0.0, %v713
  %v1155 = vsel %vm884, 0.0, %v717
  %v1156 = vsel %vm884, 0.0, %v721
  %v1157 = vsel %vm884, 0.0, %v725
  %v1158 = vsel %vm884, 0.0, %v729
  %v1159 = vsel %vm884, 0.0, %v733
  %v1160 = vsel %vm884, 0.0, %v737
  %v1161 = vsel %vm884, 0.0, %v741
  %v1162 = vsel %vm884, 0.0, %v745
  %v1163 = vsel %vm884, 0.0, %v749
  %v1164 = vsel %vm884, 0.0, %v753
  %v1165 = vsel %vm884, 0.0, %v757
  %v1166 = vsel %vm884, 0.0, %v761
  %v1167 = vsel %vm884, 0.0, %v765
  %v1168 = vsel %vm884, 0.0, %v769
  %v1169 = vsel %vm884, 0.0, %v773
  %v1170 = vsel %vm884, 0.0, %v777
  %v1171 = vsel %vm884, 0.0, %v781
  %v1172 = vsel %vm884, 0.0, %v785
  %v1173 = vsel %vm884, 0.0, %v789
  %v1174 = vsel %vm884, 0.0, %v793
  %v1175 = vsel %vm884, 0.0, %v797
  %v1176 = vsel %vm884, 0.0, %v801
  %v1177 = vsel %vm884, 0.0, %v805
  %v1178 = vsel %vm884, 0.0, %v809
  %v1179 = vsel %vm884, 0.0, %v813
  %v1180 = vsel %vm884, 0.0, %v817
  %v1181 = vsel %vm884, 0.0, %v821
  %v1182 = vsel %vm884, 0.0, %v825
  %v1183 = vsel %vm884, 0.0, %v829
  %v1184 = vsel %vm884, 0.0, %v833
  %v1185 = vsel %vm884, 0.0, %v837
  %v1186 = vsel %vm884, 0.0, %v841
  %v1187 = vsel %vm884, 0.0, %v845
  %v1188 = vsel %vm884, 0.0, %v849
  %v1189 = vsel %vm884, 0.0, %v853
  %v1190 = vsel %vm884, 0.0, %v857
  %v1191 = vsel %vm884, 0.0, %v861
  %v1192 = vsel %vm884, 0.0, %v865
  %v1193 = vsel %vm884, 0.0, %v869
  %v1194 = vsel %vm884, 0.0, %v873
  %v1195 = vsel %vm884, 0.0, %v877
  %v1196 = vsel %vm884, 0.0, %v881
  %1197 = vrot.lane.b32.xlu0 %v182, 114
  %v1198 = vpop.permute.xlu0 %1197
  %1199 = vrot.lane.b32.xlu0 %v183, 114
  %v1200 = vpop.permute.xlu0 %1199
  %1201 = vrot.lane.b32.xlu0 %v184, 114
  %v1202 = vpop.permute.xlu0 %1201
  %1203 = vrot.lane.b32.xlu0 %v185, 114
  %v1204 = vpop.permute.xlu0 %1203
  %1205 = vrot.lane.b32.xlu0 %v186, 114
  %v1206 = vpop.permute.xlu0 %1205
  %1207 = vrot.lane.b32.xlu0 %v187, 114
  %v1208 = vpop.permute.xlu0 %1207
  %1209 = vrot.lane.b32.xlu0 %v188, 114
  %v1210 = vpop.permute.xlu0 %1209
  %1211 = vrot.lane.b32.xlu0 %v189, 114
  %v1212 = vpop.permute.xlu0 %1211
  %1213 = vrot.lane.b32.xlu0 %v190, 114
  %v1214 = vpop.permute.xlu0 %1213
  %1215 = vrot.lane.b32.xlu0 %v191, 114
  %v1216 = vpop.permute.xlu0 %1215
  %1217 = vrot.lane.b32.xlu0 %v192, 114
  %v1218 = vpop.permute.xlu0 %1217
  %1219 = vrot.lane.b32.xlu0 %v193, 114
  %v1220 = vpop.permute.xlu0 %1219
  %1221 = vrot.lane.b32.xlu0 %v194, 114
  %v1222 = vpop.permute.xlu0 %1221
  %1223 = vrot.lane.b32.xlu0 %v195, 114
  %v1224 = vpop.permute.xlu0 %1223
  %1225 = vrot.lane.b32.xlu0 %v196, 114
  %v1226 = vpop.permute.xlu0 %1225
  %1227 = vrot.lane.b32.xlu0 %v197, 114
  %v1228 = vpop.permute.xlu0 %1227
  %1229 = vrot.lane.b32.xlu0 %v198, 114
  %v1230 = vpop.permute.xlu0 %1229
  %1231 = vrot.lane.b32.xlu0 %v199, 114
  %v1232 = vpop.permute.xlu0 %1231
  %1233 = vrot.lane.b32.xlu0 %v200, 114
  %v1234 = vpop.permute.xlu0 %1233
  %1235 = vrot.lane.b32.xlu0 %v201, 114
  %v1236 = vpop.permute.xlu0 %1235
  %1237 = vrot.lane.b32.xlu0 %v202, 114
  %v1238 = vpop.permute.xlu0 %1237
  %1239 = vrot.lane.b32.xlu0 %v203, 114
  %v1240 = vpop.permute.xlu0 %1239
  %1241 = vrot.lane.b32.xlu0 %v204, 114
  %v1242 = vpop.permute.xlu0 %1241
  %1243 = vrot.lane.b32.xlu0 %v205, 114
  %v1244 = vpop.permute.xlu0 %1243
  %1245 = vrot.lane.b32.xlu0 %v206, 114
  %v1246 = vpop.permute.xlu0 %1245
  %1247 = vrot.lane.b32.xlu0 %v207, 114
  %v1248 = vpop.permute.xlu0 %1247
  %1249 = vrot.lane.b32.xlu0 %v208, 114
  %v1250 = vpop.permute.xlu0 %1249
  %1251 = vrot.lane.b32.xlu0 %v209, 114
  %v1252 = vpop.permute.xlu0 %1251
  %1253 = vrot.lane.b32.xlu0 %v210, 114
  %v1254 = vpop.permute.xlu0 %1253
  %1255 = vrot.lane.b32.xlu0 %v211, 114
  %v1256 = vpop.permute.xlu0 %1255
  %1257 = vrot.lane.b32.xlu0 %v212, 114
  %v1258 = vpop.permute.xlu0 %1257
  %1259 = vrot.lane.b32.xlu0 %v213, 114
  %v1260 = vpop.permute.xlu0 %1259
  %1261 = vrot.lane.b32.xlu0 %v214, 114
  %v1262 = vpop.permute.xlu0 %1261
  %1263 = vrot.lane.b32.xlu0 %v215, 114
  %v1264 = vpop.permute.xlu0 %1263
  %1265 = vrot.lane.b32.xlu0 %v216, 114
  %v1266 = vpop.permute.xlu0 %1265
  %1267 = vrot.lane.b32.xlu0 %v217, 114
  %v1268 = vpop.permute.xlu0 %1267
  %1269 = vrot.lane.b32.xlu0 %v218, 114
  %v1270 = vpop.permute.xlu0 %1269
  %1271 = vrot.lane.b32.xlu0 %v219, 114
  %v1272 = vpop.permute.xlu0 %1271
  %1273 = vrot.lane.b32.xlu0 %v220, 114
  %v1274 = vpop.permute.xlu0 %1273
  %1275 = vrot.lane.b32.xlu0 %v221, 114
  %v1276 = vpop.permute.xlu0 %1275
  %1277 = vrot.lane.b32.xlu0 %v222, 114
  %v1278 = vpop.permute.xlu0 %1277
  %1279 = vrot.lane.b32.xlu0 %v223, 114
  %v1280 = vpop.permute.xlu0 %1279
  %1281 = vrot.lane.b32.xlu0 %v224, 114
  %v1282 = vpop.permute.xlu0 %1281
  %1283 = vrot.lane.b32.xlu0 %v225, 114
  %v1284 = vpop.permute.xlu0 %1283
  %1285 = vrot.lane.b32.xlu0 %v226, 114
  %v1286 = vpop.permute.xlu0 %1285
  %1287 = vrot.lane.b32.xlu0 %v227, 114
  %v1288 = vpop.permute.xlu0 %1287
  %1289 = vrot.lane.b32.xlu0 %v228, 114
  %v1290 = vpop.permute.xlu0 %1289
  %1291 = vrot.lane.b32.xlu0 %v229, 114
  %v1292 = vpop.permute.xlu0 %1291
  %1293 = vrot.lane.b32.xlu0 %v230, 114
  %v1294 = vpop.permute.xlu0 %1293
  %1295 = vrot.lane.b32.xlu0 %v231, 114
  %v1296 = vpop.permute.xlu0 %1295
  %1297 = vrot.lane.b32.xlu0 %v232, 114
  %v1298 = vpop.permute.xlu0 %1297
  %1299 = vrot.lane.b32.xlu0 %v233, 114
  %v1300 = vpop.permute.xlu0 %1299
  %1301 = vrot.lane.b32.xlu0 %v234, 114
  %v1302 = vpop.permute.xlu0 %1301
  %1303 = vrot.lane.b32.xlu0 %v235, 114
  %v1304 = vpop.permute.xlu0 %1303
  %1305 = vrot.lane.b32.xlu0 %v236, 114
  %v1306 = vpop.permute.xlu0 %1305
  %1307 = vrot.lane.b32.xlu0 %v237, 114
  %v1308 = vpop.permute.xlu0 %1307
  %1309 = vrot.lane.b32.xlu0 %v238, 114
  %v1310 = vpop.permute.xlu0 %1309
  %1311 = vrot.lane.b32.xlu0 %v239, 114
  %v1312 = vpop.permute.xlu0 %1311
  %1313 = vrot.lane.b32.xlu0 %v240, 114
  %v1314 = vpop.permute.xlu0 %1313
  %1315 = vrot.lane.b32.xlu0 %v241, 114
  %v1316 = vpop.permute.xlu0 %1315
  %1317 = vrot.lane.b32.xlu0 %v242, 114
  %v1318 = vpop.permute.xlu0 %1317
  %1319 = vrot.lane.b32.xlu0 %v243, 114
  %v1320 = vpop.permute.xlu0 %1319
  %1321 = vrot.lane.b32.xlu0 %v244, 114
  %v1322 = vpop.permute.xlu0 %1321
  %1323 = vrot.lane.b32.xlu0 %v245, 114
  %v1324 = vpop.permute.xlu0 %1323
  %1325 = vrot.lane.b32.xlu0 %v246, 114
  %v1326 = vpop.permute.xlu0 %1325
  %1327 = vrot.lane.b32.xlu0 %v247, 114
  %v1328 = vpop.permute.xlu0 %1327
  %1329 = vrot.lane.b32.xlu0 %v248, 114
  %v1330 = vpop.permute.xlu0 %1329
  %1331 = vrot.lane.b32.xlu0 %v249, 114
  %v1332 = vpop.permute.xlu0 %1331
  %1333 = vrot.lane.b32.xlu0 %v250, 114
  %v1334 = vpop.permute.xlu0 %1333
  %1335 = vrot.lane.b32.xlu0 %v251, 114
  %v1336 = vpop.permute.xlu0 %1335
  %1337 = vrot.lane.b32.xlu0 %v252, 114
  %v1338 = vpop.permute.xlu0 %1337
  %1339 = vrot.lane.b32.xlu0 %v253, 114
  %v1340 = vpop.permute.xlu0 %1339
  %1341 = vrot.lane.b32.xlu0 %v254, 114
  %v1342 = vpop.permute.xlu0 %1341
  %1343 = vrot.lane.b32.xlu0 %v255, 114
  %v1344 = vpop.permute.xlu0 %1343
  %1345 = vrot.lane.b32.xlu0 %v256, 114
  %v1346 = vpop.permute.xlu0 %1345
  %1347 = vrot.lane.b32.xlu0 %v257, 114
  %v1348 = vpop.permute.xlu0 %1347
  %1349 = vrot.lane.b32.xlu0 %v258, 114
  %v1350 = vpop.permute.xlu0 %1349
  %1351 = vrot.lane.b32.xlu0 %v259, 114
  %v1352 = vpop.permute.xlu0 %1351
  %1353 = vrot.lane.b32.xlu0 %v260, 114
  %v1354 = vpop.permute.xlu0 %1353
  %1355 = vrot.lane.b32.xlu0 %v261, 114
  %v1356 = vpop.permute.xlu0 %1355
  %1357 = vrot.lane.b32.xlu0 %v262, 114
  %v1358 = vpop.permute.xlu0 %1357
  %1359 = vrot.lane.b32.xlu0 %v263, 114
  %v1360 = vpop.permute.xlu0 %1359
  %1361 = vrot.lane.b32.xlu0 %v264, 114
  %v1362 = vpop.permute.xlu0 %1361
  %1363 = vrot.lane.b32.xlu0 %v265, 114
  %v1364 = vpop.permute.xlu0 %1363
  %1365 = vrot.lane.b32.xlu0 %v266, 114
  %v1366 = vpop.permute.xlu0 %1365
  %1367 = vrot.lane.b32.xlu0 %v267, 114
  %v1368 = vpop.permute.xlu0 %1367
  %1369 = vrot.lane.b32.xlu0 %v268, 114
  %v1370 = vpop.permute.xlu0 %1369
  %1371 = vrot.lane.b32.xlu0 %v269, 114
  %v1372 = vpop.permute.xlu0 %1371
  %1373 = vrot.lane.b32.xlu0 %v270, 114
  %v1374 = vpop.permute.xlu0 %1373
  %1375 = vrot.lane.b32.xlu0 %v271, 114
  %v1376 = vpop.permute.xlu0 %1375
  %1377 = vrot.lane.b32.xlu0 %v272, 114
  %v1378 = vpop.permute.xlu0 %1377
  %1379 = vrot.lane.b32.xlu0 %v273, 114
  %v1380 = vpop.permute.xlu0 %1379
  %1381 = vrot.lane.b32.xlu0 %v274, 114
  %v1382 = vpop.permute.xlu0 %1381
  %1383 = vrot.lane.b32.xlu0 %v275, 114
  %v1384 = vpop.permute.xlu0 %1383
  %1385 = vrot.lane.b32.xlu0 %v276, 114
  %v1386 = vpop.permute.xlu0 %1385
  %1387 = vrot.lane.b32.xlu0 %v277, 114
  %v1388 = vpop.permute.xlu0 %1387
  %1389 = vrot.lane.b32.xlu0 %v278, 114
  %v1390 = vpop.permute.xlu0 %1389
  %1391 = vrot.lane.b32.xlu0 %v279, 114
  %v1392 = vpop.permute.xlu0 %1391
  %1393 = vrot.lane.b32.xlu0 %v280, 114
  %v1394 = vpop.permute.xlu0 %1393
  %1395 = vrot.lane.b32.xlu0 %v281, 114
  %v1396 = vpop.permute.xlu0 %1395
  %1397 = vrot.lane.b32.xlu0 %v282, 114
  %v1398 = vpop.permute.xlu0 %1397
  %1399 = vrot.lane.b32.xlu0 %v283, 114
  %v1400 = vpop.permute.xlu0 %1399
  %1401 = vrot.lane.b32.xlu0 %v284, 114
  %v1402 = vpop.permute.xlu0 %1401
  %1403 = vrot.lane.b32.xlu0 %v285, 114
  %v1404 = vpop.permute.xlu0 %1403
  %1405 = vrot.lane.b32.xlu0 %v286, 114
  %v1406 = vpop.permute.xlu0 %1405
  %1407 = vrot.lane.b32.xlu0 %v287, 114
  %v1408 = vpop.permute.xlu0 %1407
  %1409 = vrot.lane.b32.xlu0 %v288, 114
  %v1410 = vpop.permute.xlu0 %1409
  %1411 = vrot.lane.b32.xlu0 %v289, 114
  %v1412 = vpop.permute.xlu0 %1411
  %1413 = vrot.lane.b32.xlu0 %v290, 114
  %v1414 = vpop.permute.xlu0 %1413
  %1415 = vrot.lane.b32.xlu0 %v291, 114
  %v1416 = vpop.permute.xlu0 %1415
  %1417 = vrot.lane.b32.xlu0 %v292, 114
  %v1418 = vpop.permute.xlu0 %1417
  %1419 = vrot.lane.b32.xlu0 %v293, 114
  %v1420 = vpop.permute.xlu0 %1419
  %1421 = vrot.lane.b32.xlu0 %v294, 114
  %v1422 = vpop.permute.xlu0 %1421
  %1423 = vrot.lane.b32.xlu0 %v295, 114
  %v1424 = vpop.permute.xlu0 %1423
  %1425 = vrot.lane.b32.xlu0 %v296, 114
  %v1426 = vpop.permute.xlu0 %1425
  %1427 = vrot.lane.b32.xlu0 %v297, 114
  %v1428 = vpop.permute.xlu0 %1427
  %1429 = vrot.lane.b32.xlu0 %v298, 114
  %v1430 = vpop.permute.xlu0 %1429
  %1431 = vrot.lane.b32.xlu0 %v299, 114
  %v1432 = vpop.permute.xlu0 %1431
  %1433 = vrot.lane.b32.xlu0 %v300, 114
  %v1434 = vpop.permute.xlu0 %1433
  %1435 = vrot.lane.b32.xlu0 %v301, 114
  %v1436 = vpop.permute.xlu0 %1435
  %1437 = vrot.lane.b32.xlu0 %v302, 114
  %v1438 = vpop.permute.xlu0 %1437
  %1439 = vrot.lane.b32.xlu0 %v303, 114
  %v1440 = vpop.permute.xlu0 %1439
  %1441 = vrot.lane.b32.xlu0 %v304, 114
  %v1442 = vpop.permute.xlu0 %1441
  %1443 = vrot.lane.b32.xlu0 %v305, 114
  %v1444 = vpop.permute.xlu0 %1443
  %1445 = vrot.lane.b32.xlu0 %v306, 114
  %v1446 = vpop.permute.xlu0 %1445
  %1447 = vrot.lane.b32.xlu0 %v307, 114
  %v1448 = vpop.permute.xlu0 %1447
  %1449 = vrot.lane.b32.xlu0 %v308, 114
  %v1450 = vpop.permute.xlu0 %1449
  %1451 = vrot.lane.b32.xlu0 %v309, 114
  %v1452 = vpop.permute.xlu0 %1451
  %1453 = vrot.lane.b32.xlu0 %v310, 114
  %v1454 = vpop.permute.xlu0 %1453
  %1455 = vrot.lane.b32.xlu0 %v311, 114
  %v1456 = vpop.permute.xlu0 %1455
  %1457 = vrot.lane.b32.xlu0 %v312, 114
  %v1458 = vpop.permute.xlu0 %1457
  %1459 = vrot.lane.b32.xlu0 %v313, 114
  %v1460 = vpop.permute.xlu0 %1459
  %1461 = vrot.lane.b32.xlu0 %v314, 114
  %v1462 = vpop.permute.xlu0 %1461
  %1463 = vrot.lane.b32.xlu0 %v315, 114
  %v1464 = vpop.permute.xlu0 %1463
  %1465 = vrot.lane.b32.xlu0 %v316, 114
  %v1466 = vpop.permute.xlu0 %1465
  %1467 = vrot.lane.b32.xlu0 %v317, 114
  %v1468 = vpop.permute.xlu0 %1467
  %1469 = vrot.lane.b32.xlu0 %v318, 114
  %v1470 = vpop.permute.xlu0 %1469
  %1471 = vrot.lane.b32.xlu0 %v319, 114
  %v1472 = vpop.permute.xlu0 %1471
  %1473 = vrot.lane.b32.xlu0 %v320, 114
  %v1474 = vpop.permute.xlu0 %1473
  %1475 = vrot.lane.b32.xlu0 %v321, 114
  %v1476 = vpop.permute.xlu0 %1475
  %1477 = vrot.lane.b32.xlu0 %v322, 114
  %v1478 = vpop.permute.xlu0 %1477
  %1479 = vrot.lane.b32.xlu0 %v323, 114
  %v1480 = vpop.permute.xlu0 %1479
  %1481 = vrot.lane.b32.xlu0 %v324, 114
  %v1482 = vpop.permute.xlu0 %1481
  %1483 = vrot.lane.b32.xlu0 %v325, 114
  %v1484 = vpop.permute.xlu0 %1483
  %1485 = vrot.lane.b32.xlu0 %v326, 114
  %v1486 = vpop.permute.xlu0 %1485
  %1487 = vrot.lane.b32.xlu0 %v327, 114
  %v1488 = vpop.permute.xlu0 %1487
  %1489 = vrot.lane.b32.xlu0 %v328, 114
  %v1490 = vpop.permute.xlu0 %1489
  %1491 = vrot.lane.b32.xlu0 %v329, 114
  %v1492 = vpop.permute.xlu0 %1491
  %1493 = vrot.lane.b32.xlu0 %v330, 114
  %v1494 = vpop.permute.xlu0 %1493
  %1495 = vrot.lane.b32.xlu0 %v331, 114
  %v1496 = vpop.permute.xlu0 %1495
  %1497 = vrot.lane.b32.xlu0 %v332, 114
  %v1498 = vpop.permute.xlu0 %1497
  %1499 = vrot.lane.b32.xlu0 %v333, 114
  %v1500 = vpop.permute.xlu0 %1499
  %1501 = vrot.lane.b32.xlu0 %v334, 114
  %v1502 = vpop.permute.xlu0 %1501
  %1503 = vrot.lane.b32.xlu0 %v335, 114
  %v1504 = vpop.permute.xlu0 %1503
  %1505 = vrot.lane.b32.xlu0 %v336, 114
  %v1506 = vpop.permute.xlu0 %1505
  %1507 = vrot.lane.b32.xlu0 %v337, 114
  %v1508 = vpop.permute.xlu0 %1507
  %vm1509 = vcmask 932864
  %v1510 = vsel %vm1509, %v1198, %v1200
  %v1511 = vsel %vm1509, %v1202, %v1204
  %v1512 = vsel %vm1509, %v1206, %v1208
  %v1513 = vsel %vm1509, %v1210, %v1212
  %v1514 = vsel %vm1509, %v1214, %v1216
  %v1515 = vsel %vm1509, %v1218, %v1220
  %v1516 = vsel %vm1509, %v1222, %v1224
  %v1517 = vsel %vm1509, %v1226, %v1228
  %v1518 = vsel %vm1509, %v1230, %v1232
  %v1519 = vsel %vm1509, %v1234, %v1236
  %v1520 = vsel %vm1509, %v1238, %v1240
  %v1521 = vsel %vm1509, %v1242, %v1244
  %v1522 = vsel %vm1509, %v1246, %v1248
  %v1523 = vsel %vm1509, %v1250, %v1252
  %v1524 = vsel %vm1509, %v1254, %v1256
  %v1525 = vsel %vm1509, %v1258, %v1260
  %v1526 = vsel %vm1509, %v1262, %v1264
  %v1527 = vsel %vm1509, %v1266, %v1268
  %v1528 = vsel %vm1509, %v1270, %v1272
  %v1529 = vsel %vm1509, %v1274, %v1276
  %v1530 = vsel %vm1509, %v1278, %v1280
  %v1531 = vsel %vm1509, %v1282, %v1284
  %v1532 = vsel %vm1509, %v1286, %v1288
  %v1533 = vsel %vm1509, %v1290, %v1292
  %v1534 = vsel %vm1509, %v1294, %v1296
  %v1535 = vsel %vm1509, %v1298, %v1300
  %v1536 = vsel %vm1509, %v1302, %v1304
  %v1537 = vsel %vm1509, %v1306, %v1308
  %v1538 = vsel %vm1509, %v1310, %v1312
  %v1539 = vsel %vm1509, %v1314, %v1316
  %v1540 = vsel %vm1509, %v1318, %v1320
  %v1541 = vsel %vm1509, %v1322, %v1324
  %v1542 = vsel %vm1509, %v1326, %v1328
  %v1543 = vsel %vm1509, %v1330, %v1332
  %v1544 = vsel %vm1509, %v1334, %v1336
  %v1545 = vsel %vm1509, %v1338, %v1340
  %v1546 = vsel %vm1509, %v1342, %v1344
  %v1547 = vsel %vm1509, %v1346, %v1348
  %v1548 = vsel %vm1509, %v1350, %v1352
  %v1549 = vsel %vm1509, %v1354, %v1356
  %v1550 = vsel %vm1509, %v1358, %v1360
  %v1551 = vsel %vm1509, %v1362, %v1364
  %v1552 = vsel %vm1509, %v1366, %v1368
  %v1553 = vsel %vm1509, %v1370, %v1372
  %v1554 = vsel %vm1509, %v1374, %v1376
  %v1555 = vsel %vm1509, %v1378, %v1380
  %v1556 = vsel %vm1509, %v1382, %v1384
  %v1557 = vsel %vm1509, %v1386, %v1388
  %v1558 = vsel %vm1509, %v1390, %v1392
  %v1559 = vsel %vm1509, %v1394, %v1396
  %v1560 = vsel %vm1509, %v1398, %v1400
  %v1561 = vsel %vm1509, %v1402, %v1404
  %v1562 = vsel %vm1509, %v1406, %v1408
  %v1563 = vsel %vm1509, %v1410, %v1412
  %v1564 = vsel %vm1509, %v1414, %v1416
  %v1565 = vsel %vm1509, %v1418, %v1420
  %v1566 = vsel %vm1509, %v1422, %v1424
  %v1567 = vsel %vm1509, %v1426, %v1428
  %v1568 = vsel %vm1509, %v1430, %v1432
  %v1569 = vsel %vm1509, %v1434, %v1436
  %v1570 = vsel %vm1509, %v1438, %v1440
  %v1571 = vsel %vm1509, %v1442, %v1444
  %v1572 = vsel %vm1509, %v1446, %v1448
  %v1573 = vsel %vm1509, %v1450, %v1452
  %v1574 = vsel %vm1509, %v1454, %v1456
  %v1575 = vsel %vm1509, %v1458, %v1460
  %v1576 = vsel %vm1509, %v1462, %v1464
  %v1577 = vsel %vm1509, %v1466, %v1468
  %v1578 = vsel %vm1509, %v1470, %v1472
  %v1579 = vsel %vm1509, %v1474, %v1476
  %v1580 = vsel %vm1509, %v1478, %v1480
  %v1581 = vsel %vm1509, %v1482, %v1484
  %v1582 = vsel %vm1509, %v1486, %v1488
  %v1583 = vsel %vm1509, %v1490, %v1492
  %v1584 = vsel %vm1509, %v1494, %v1496
  %v1585 = vsel %vm1509, %v1498, %v1500
  %v1586 = vsel %vm1509, %v1502, %v1504
  %v1587 = vsel %vm1509, %v1506, %v1508
  %vm1744 = vcmask 441344
  %v1745 = vsel %vm1744, %v1200, 0.0
  %v1746 = vsel %vm1744, %v1204, 0.0
  %v1747 = vsel %vm1744, %v1208, 0.0
  %v1748 = vsel %vm1744, %v1212, 0.0
  %v1749 = vsel %vm1744, %v1216, 0.0
  %v1750 = vsel %vm1744, %v1220, 0.0
  %v1751 = vsel %vm1744, %v1224, 0.0
  %v1752 = vsel %vm1744, %v1228, 0.0
  %v1753 = vsel %vm1744, %v1232, 0.0
  %v1754 = vsel %vm1744, %v1236, 0.0
  %v1755 = vsel %vm1744, %v1240, 0.0
  %v1756 = vsel %vm1744, %v1244, 0.0
  %v1757 = vsel %vm1744, %v1248, 0.0
  %v1758 = vsel %vm1744, %v1252, 0.0
  %v1759 = vsel %vm1744, %v1256, 0.0
  %v1760 = vsel %vm1744, %v1260, 0.0
  %v1761 = vsel %vm1744, %v1264, 0.0
  %v1762 = vsel %vm1744, %v1268, 0.0
  %v1763 = vsel %vm1744, %v1272, 0.0
  %v1764 = vsel %vm1744, %v1276, 0.0
  %v1765 = vsel %vm1744, %v1280, 0.0
  %v1766 = vsel %vm1744, %v1284, 0.0
  %v1767 = vsel %vm1744, %v1288, 0.0
  %v1768 = vsel %vm1744, %v1292, 0.0
  %v1769 = vsel %vm1744, %v1296, 0.0
  %v1770 = vsel %vm1744, %v1300, 0.0
  %v1771 = vsel %vm1744, %v1304, 0.0
  %v1772 = vsel %vm1744, %v1308, 0.0
  %v1773 = vsel %vm1744, %v1312, 0.0
  %v1774 = vsel %vm1744, %v1316, 0.0
  %v1775 = vsel %vm1744, %v1320, 0.0
  %v1776 = vsel %vm1744, %v1324, 0.0
  %v1777 = vsel %vm1744, %v1328, 0.0
  %v1778 = vsel %vm1744, %v1332, 0.0
  %v1779 = vsel %vm1744, %v1336, 0.0
  %v1780 = vsel %vm1744, %v1340, 0.0
  %v1781 = vsel %vm1744, %v1344, 0.0
  %v1782 = vsel %vm1744, %v1348, 0.0
  %v1783 = vsel %vm1744, %v1352, 0.0
  %v1784 = vsel %vm1744, %v1356, 0.0
  %v1785 = vsel %vm1744, %v1360, 0.0
  %v1786 = vsel %vm1744, %v1364, 0.0
  %v1787 = vsel %vm1744, %v1368, 0.0
  %v1788 = vsel %vm1744, %v1372, 0.0
  %v1789 = vsel %vm1744, %v1376, 0.0
  %v1790 = vsel %vm1744, %v1380, 0.0
  %v1791 = vsel %vm1744, %v1384, 0.0
  %v1792 = vsel %vm1744, %v1388, 0.0
  %v1793 = vsel %vm1744, %v1392, 0.0
  %v1794 = vsel %vm1744, %v1396, 0.0
  %v1795 = vsel %vm1744, %v1400, 0.0
  %v1796 = vsel %vm1744, %v1404, 0.0
  %v1797 = vsel %vm1744, %v1408, 0.0
  %v1798 = vsel %vm1744, %v1412, 0.0
  %v1799 = vsel %vm1744, %v1416, 0.0
  %v1800 = vsel %vm1744, %v1420, 0.0
  %v1801 = vsel %vm1744, %v1424, 0.0
  %v1802 = vsel %vm1744, %v1428, 0.0
  %v1803 = vsel %vm1744, %v1432, 0.0
  %v1804 = vsel %vm1744, %v1436, 0.0
  %v1805 = vsel %vm1744, %v1440, 0.0
  %v1806 = vsel %vm1744, %v1444, 0.0
  %v1807 = vsel %vm1744, %v1448, 0.0
  %v1808 = vsel %vm1744, %v1452, 0.0
  %v1809 = vsel %vm1744, %v1456, 0.0
  %v1810 = vsel %vm1744, %v1460, 0.0
  %v1811 = vsel %vm1744, %v1464, 0.0
  %v1812 = vsel %vm1744, %v1468, 0.0
  %v1813 = vsel %vm1744, %v1472, 0.0
  %v1814 = vsel %vm1744, %v1476, 0.0
  %v1815 = vsel %vm1744, %v1480, 0.0
  %v1816 = vsel %vm1744, %v1484, 0.0
  %v1817 = vsel %vm1744, %v1488, 0.0
  %v1818 = vsel %vm1744, %v1492, 0.0
  %v1819 = vsel %vm1744, %v1496, 0.0
  %v1820 = vsel %vm1744, %v1500, 0.0
  %v1821 = vsel %vm1744, %v1504, 0.0
  %v1822 = vsel %vm1744, %v1508, 0.0
  %1824 = vset.pattern.permute.xlu0 0
  %1825 = vperm.xlu0 %1824, %v338
  %v1826 = vpop.permute.xlu0 %1825
  %1829 = vset.pattern.permute.xlu0 0
  %1830 = vperm.xlu0 %1829, %v339
  %v1831 = vpop.permute.xlu0 %1830
  %1834 = vset.pattern.permute.xlu0 0
  %1835 = vperm.xlu0 %1834, %v340
  %v1836 = vpop.permute.xlu0 %1835
  %1839 = vset.pattern.permute.xlu0 0
  %1840 = vperm.xlu0 %1839, %v341
  %v1841 = vpop.permute.xlu0 %1840
  %1844 = vset.pattern.permute.xlu0 0
  %1845 = vperm.xlu0 %1844, %v342
  %v1846 = vpop.permute.xlu0 %1845
  %1849 = vset.pattern.permute.xlu0 0
  %1850 = vperm.xlu0 %1849, %v343
  %v1851 = vpop.permute.xlu0 %1850
  %1854 = vset.pattern.permute.xlu0 0
  %1855 = vperm.xlu0 %1854, %v344
  %v1856 = vpop.permute.xlu0 %1855
  %1859 = vset.pattern.permute.xlu0 0
  %1860 = vperm.xlu0 %1859, %v345
  %v1861 = vpop.permute.xlu0 %1860
  %1864 = vset.pattern.permute.xlu0 0
  %1865 = vperm.xlu0 %1864, %v346
  %v1866 = vpop.permute.xlu0 %1865
  %1869 = vset.pattern.permute.xlu0 0
  %1870 = vperm.xlu0 %1869, %v347
  %v1871 = vpop.permute.xlu0 %1870
  %1874 = vset.pattern.permute.xlu0 0
  %1875 = vperm.xlu0 %1874, %v348
  %v1876 = vpop.permute.xlu0 %1875
  %1879 = vset.pattern.permute.xlu0 0
  %1880 = vperm.xlu0 %1879, %v349
  %v1881 = vpop.permute.xlu0 %1880
  %1884 = vset.pattern.permute.xlu0 0
  %1885 = vperm.xlu0 %1884, %v350
  %v1886 = vpop.permute.xlu0 %1885
  %1889 = vset.pattern.permute.xlu0 0
  %1890 = vperm.xlu0 %1889, %v351
  %v1891 = vpop.permute.xlu0 %1890
  %1894 = vset.pattern.permute.xlu0 0
  %1895 = vperm.xlu0 %1894, %v352
  %v1896 = vpop.permute.xlu0 %1895
  %1899 = vset.pattern.permute.xlu0 0
  %1900 = vperm.xlu0 %1899, %v353
  %v1901 = vpop.permute.xlu0 %1900
  %1904 = vset.pattern.permute.xlu0 0
  %1905 = vperm.xlu0 %1904, %v354
  %v1906 = vpop.permute.xlu0 %1905
  %1909 = vset.pattern.permute.xlu0 0
  %1910 = vperm.xlu0 %1909, %v355
  %v1911 = vpop.permute.xlu0 %1910
  %1914 = vset.pattern.permute.xlu0 0
  %1915 = vperm.xlu0 %1914, %v356
  %v1916 = vpop.permute.xlu0 %1915
  %1919 = vset.pattern.permute.xlu0 0
  %1920 = vperm.xlu0 %1919, %v357
  %v1921 = vpop.permute.xlu0 %1920
  %1924 = vset.pattern.permute.xlu0 0
  %1925 = vperm.xlu0 %1924, %v358
  %v1926 = vpop.permute.xlu0 %1925
  %1929 = vset.pattern.permute.xlu0 0
  %1930 = vperm.xlu0 %1929, %v359
  %v1931 = vpop.permute.xlu0 %1930
  %1934 = vset.pattern.permute.xlu0 0
  %1935 = vperm.xlu0 %1934, %v360
  %v1936 = vpop.permute.xlu0 %1935
  %1939 = vset.pattern.permute.xlu0 0
  %1940 = vperm.xlu0 %1939, %v361
  %v1941 = vpop.permute.xlu0 %1940
  %1944 = vset.pattern.permute.xlu0 0
  %1945 = vperm.xlu0 %1944, %v362
  %v1946 = vpop.permute.xlu0 %1945
  %1949 = vset.pattern.permute.xlu0 0
  %1950 = vperm.xlu0 %1949, %v363
  %v1951 = vpop.permute.xlu0 %1950
  %1954 = vset.pattern.permute.xlu0 0
  %1955 = vperm.xlu0 %1954, %v364
  %v1956 = vpop.permute.xlu0 %1955
  %1959 = vset.pattern.permute.xlu0 0
  %1960 = vperm.xlu0 %1959, %v365
  %v1961 = vpop.permute.xlu0 %1960
  %1964 = vset.pattern.permute.xlu0 0
  %1965 = vperm.xlu0 %1964, %v366
  %v1966 = vpop.permute.xlu0 %1965
  %1969 = vset.pattern.permute.xlu0 0
  %1970 = vperm.xlu0 %1969, %v367
  %v1971 = vpop.permute.xlu0 %1970
  %1974 = vset.pattern.permute.xlu0 0
  %1975 = vperm.xlu0 %1974, %v368
  %v1976 = vpop.permute.xlu0 %1975
  %1979 = vset.pattern.permute.xlu0 0
  %1980 = vperm.xlu0 %1979, %v369
  %v1981 = vpop.permute.xlu0 %1980
  %1984 = vset.pattern.permute.xlu0 0
  %1985 = vperm.xlu0 %1984, %v370
  %v1986 = vpop.permute.xlu0 %1985
  %1989 = vset.pattern.permute.xlu0 0
  %1990 = vperm.xlu0 %1989, %v371
  %v1991 = vpop.permute.xlu0 %1990
  %1994 = vset.pattern.permute.xlu0 0
  %1995 = vperm.xlu0 %1994, %v372
  %v1996 = vpop.permute.xlu0 %1995
  %1999 = vset.pattern.permute.xlu0 0
  %2000 = vperm.xlu0 %1999, %v373
  %v2001 = vpop.permute.xlu0 %2000
  %2004 = vset.pattern.permute.xlu0 0
  %2005 = vperm.xlu0 %2004, %v374
  %v2006 = vpop.permute.xlu0 %2005
  %2009 = vset.pattern.permute.xlu0 0
  %2010 = vperm.xlu0 %2009, %v375
  %v2011 = vpop.permute.xlu0 %2010
  %2014 = vset.pattern.permute.xlu0 0
  %2015 = vperm.xlu0 %2014, %v376
  %v2016 = vpop.permute.xlu0 %2015
  %2019 = vset.pattern.permute.xlu0 0
  %2020 = vperm.xlu0 %2019, %v377
  %v2021 = vpop.permute.xlu0 %2020
  %2024 = vset.pattern.permute.xlu0 0
  %2025 = vperm.xlu0 %2024, %v378
  %v2026 = vpop.permute.xlu0 %2025
  %2029 = vset.pattern.permute.xlu0 0
  %2030 = vperm.xlu0 %2029, %v379
  %v2031 = vpop.permute.xlu0 %2030
  %2034 = vset.pattern.permute.xlu0 0
  %2035 = vperm.xlu0 %2034, %v380
  %v2036 = vpop.permute.xlu0 %2035
  %2039 = vset.pattern.permute.xlu0 0
  %2040 = vperm.xlu0 %2039, %v381
  %v2041 = vpop.permute.xlu0 %2040
  %2044 = vset.pattern.permute.xlu0 0
  %2045 = vperm.xlu0 %2044, %v382
  %v2046 = vpop.permute.xlu0 %2045
  %2049 = vset.pattern.permute.xlu0 0
  %2050 = vperm.xlu0 %2049, %v383
  %v2051 = vpop.permute.xlu0 %2050
  %2054 = vset.pattern.permute.xlu0 0
  %2055 = vperm.xlu0 %2054, %v384
  %v2056 = vpop.permute.xlu0 %2055
  %2059 = vset.pattern.permute.xlu0 0
  %2060 = vperm.xlu0 %2059, %v385
  %v2061 = vpop.permute.xlu0 %2060
  %2064 = vset.pattern.permute.xlu0 0
  %2065 = vperm.xlu0 %2064, %v386
  %v2066 = vpop.permute.xlu0 %2065
  %2069 = vset.pattern.permute.xlu0 0
  %2070 = vperm.xlu0 %2069, %v387
  %v2071 = vpop.permute.xlu0 %2070
  %2074 = vset.pattern.permute.xlu0 0
  %2075 = vperm.xlu0 %2074, %v388
  %v2076 = vpop.permute.xlu0 %2075
  %2079 = vset.pattern.permute.xlu0 0
  %2080 = vperm.xlu0 %2079, %v389
  %v2081 = vpop.permute.xlu0 %2080
  %2084 = vset.pattern.permute.xlu0 0
  %2085 = vperm.xlu0 %2084, %v390
  %v2086 = vpop.permute.xlu0 %2085
  %2089 = vset.pattern.permute.xlu0 0
  %2090 = vperm.xlu0 %2089, %v391
  %v2091 = vpop.permute.xlu0 %2090
  %2094 = vset.pattern.permute.xlu0 0
  %2095 = vperm.xlu0 %2094, %v392
  %v2096 = vpop.permute.xlu0 %2095
  %2099 = vset.pattern.permute.xlu0 0
  %2100 = vperm.xlu0 %2099, %v393
  %v2101 = vpop.permute.xlu0 %2100
  %2104 = vset.pattern.permute.xlu0 0
  %2105 = vperm.xlu0 %2104, %v394
  %v2106 = vpop.permute.xlu0 %2105
  %2109 = vset.pattern.permute.xlu0 0
  %2110 = vperm.xlu0 %2109, %v395
  %v2111 = vpop.permute.xlu0 %2110
  %2114 = vset.pattern.permute.xlu0 0
  %2115 = vperm.xlu0 %2114, %v396
  %v2116 = vpop.permute.xlu0 %2115
  %2119 = vset.pattern.permute.xlu0 0
  %2120 = vperm.xlu0 %2119, %v397
  %v2121 = vpop.permute.xlu0 %2120
  %2124 = vset.pattern.permute.xlu0 0
  %2125 = vperm.xlu0 %2124, %v398
  %v2126 = vpop.permute.xlu0 %2125
  %2129 = vset.pattern.permute.xlu0 0
  %2130 = vperm.xlu0 %2129, %v399
  %v2131 = vpop.permute.xlu0 %2130
  %2134 = vset.pattern.permute.xlu0 0
  %2135 = vperm.xlu0 %2134, %v400
  %v2136 = vpop.permute.xlu0 %2135
  %2139 = vset.pattern.permute.xlu0 0
  %2140 = vperm.xlu0 %2139, %v401
  %v2141 = vpop.permute.xlu0 %2140
  %2144 = vset.pattern.permute.xlu0 0
  %2145 = vperm.xlu0 %2144, %v402
  %v2146 = vpop.permute.xlu0 %2145
  %2149 = vset.pattern.permute.xlu0 0
  %2150 = vperm.xlu0 %2149, %v403
  %v2151 = vpop.permute.xlu0 %2150
  %2154 = vset.pattern.permute.xlu0 0
  %2155 = vperm.xlu0 %2154, %v404
  %v2156 = vpop.permute.xlu0 %2155
  %2159 = vset.pattern.permute.xlu0 0
  %2160 = vperm.xlu0 %2159, %v405
  %v2161 = vpop.permute.xlu0 %2160
  %2164 = vset.pattern.permute.xlu0 0
  %2165 = vperm.xlu0 %2164, %v406
  %v2166 = vpop.permute.xlu0 %2165
  %2169 = vset.pattern.permute.xlu0 0
  %2170 = vperm.xlu0 %2169, %v407
  %v2171 = vpop.permute.xlu0 %2170
  %2174 = vset.pattern.permute.xlu0 0
  %2175 = vperm.xlu0 %2174, %v408
  %v2176 = vpop.permute.xlu0 %2175
  %2179 = vset.pattern.permute.xlu0 0
  %2180 = vperm.xlu0 %2179, %v409
  %v2181 = vpop.permute.xlu0 %2180
  %2184 = vset.pattern.permute.xlu0 0
  %2185 = vperm.xlu0 %2184, %v410
  %v2186 = vpop.permute.xlu0 %2185
  %2189 = vset.pattern.permute.xlu0 0
  %2190 = vperm.xlu0 %2189, %v411
  %v2191 = vpop.permute.xlu0 %2190
  %2194 = vset.pattern.permute.xlu0 0
  %2195 = vperm.xlu0 %2194, %v412
  %v2196 = vpop.permute.xlu0 %2195
  %2199 = vset.pattern.permute.xlu0 0
  %2200 = vperm.xlu0 %2199, %v413
  %v2201 = vpop.permute.xlu0 %2200
  %2204 = vset.pattern.permute.xlu0 0
  %2205 = vperm.xlu0 %2204, %v414
  %v2206 = vpop.permute.xlu0 %2205
  %2209 = vset.pattern.permute.xlu0 0
  %2210 = vperm.xlu0 %2209, %v415
  %v2211 = vpop.permute.xlu0 %2210
  %v2213 = vmul.f32 %v1826, %v1119
  %v2214 = vmul.f32 %v1826, %v885
  %v2215 = vmul.f32 %v1831, %v1120
  %v2216 = vmul.f32 %v1831, %v886
  %v2217 = vmul.f32 %v1836, %v1121
  %v2218 = vmul.f32 %v1836, %v887
  %v2219 = vmul.f32 %v1841, %v1122
  %v2220 = vmul.f32 %v1841, %v888
  %v2221 = vmul.f32 %v1846, %v1123
  %v2222 = vmul.f32 %v1846, %v889
  %v2223 = vmul.f32 %v1851, %v1124
  %v2224 = vmul.f32 %v1851, %v890
  %v2225 = vmul.f32 %v1856, %v1125
  %v2226 = vmul.f32 %v1856, %v891
  %v2227 = vmul.f32 %v1861, %v1126
  %v2228 = vmul.f32 %v1861, %v892
  %v2229 = vmul.f32 %v1866, %v1127
  %v2230 = vmul.f32 %v1866, %v893
  %v2231 = vmul.f32 %v1871, %v1128
  %v2232 = vmul.f32 %v1871, %v894
  %v2233 = vmul.f32 %v1876, %v1129
  %v2234 = vmul.f32 %v1876, %v895
  %v2235 = vmul.f32 %v1881, %v1130
  %v2236 = vmul.f32 %v1881, %v896
  %v2237 = vmul.f32 %v1886, %v1131
  %v2238 = vmul.f32 %v1886, %v897
  %v2239 = vmul.f32 %v1891, %v1132
  %v2240 = vmul.f32 %v1891, %v898
  %v2241 = vmul.f32 %v1896, %v1133
  %v2242 = vmul.f32 %v1896, %v899
  %v2243 = vmul.f32 %v1901, %v1134
  %v2244 = vmul.f32 %v1901, %v900
  %v2245 = vmul.f32 %v1906, %v1135
  %v2246 = vmul.f32 %v1906, %v901
  %v2247 = vmul.f32 %v1911, %v1136
  %v2248 = vmul.f32 %v1911, %v902
  %v2249 = vmul.f32 %v1916, %v1137
  %v2250 = vmul.f32 %v1916, %v903
  %v2251 = vmul.f32 %v1921, %v1138
  %v2252 = vmul.f32 %v1921, %v904
  %v2253 = vmul.f32 %v1926, %v1139
  %v2254 = vmul.f32 %v1926, %v905
  %v2255 = vmul.f32 %v1931, %v1140
  %v2256 = vmul.f32 %v1931, %v906
  %v2257 = vmul.f32 %v1936, %v1141
  %v2258 = vmul.f32 %v1936, %v907
  %v2259 = vmul.f32 %v1941, %v1142
  %v2260 = vmul.f32 %v1941, %v908
  %v2261 = vmul.f32 %v1946, %v1143
  %v2262 = vmul.f32 %v1946, %v909
  %v2263 = vmul.f32 %v1951, %v1144
  %v2264 = vmul.f32 %v1951, %v910
  %v2265 = vmul.f32 %v1956, %v1145
  %v2266 = vmul.f32 %v1956, %v911
  %v2267 = vmul.f32 %v1961, %v1146
  %v2268 = vmul.f32 %v1961, %v912
  %v2269 = vmul.f32 %v1966, %v1147
  %v2270 = vmul.f32 %v1966, %v913
  %v2271 = vmul.f32 %v1971, %v1148
  %v2272 = vmul.f32 %v1971, %v914
  %v2273 = vmul.f32 %v1976, %v1149
  %v2274 = vmul.f32 %v1976, %v915
  %v2275 = vmul.f32 %v1981, %v1150
  %v2276 = vmul.f32 %v1981, %v916
  %v2277 = vmul.f32 %v1986, %v1151
  %v2278 = vmul.f32 %v1986, %v917
  %v2279 = vmul.f32 %v1991, %v1152
  %v2280 = vmul.f32 %v1991, %v918
  %v2281 = vmul.f32 %v1996, %v1153
  %v2282 = vmul.f32 %v1996, %v919
  %v2283 = vmul.f32 %v2001, %v1154
  %v2284 = vmul.f32 %v2001, %v920
  %v2285 = vmul.f32 %v2006, %v1155
  %v2286 = vmul.f32 %v2006, %v921
  %v2287 = vmul.f32 %v2011, %v1156
  %v2288 = vmul.f32 %v2011, %v922
  %v2289 = vmul.f32 %v2016, %v1157
  %v2290 = vmul.f32 %v2016, %v923
  %v2291 = vmul.f32 %v2021, %v1158
  %v2292 = vmul.f32 %v2021, %v924
  %v2293 = vmul.f32 %v2026, %v1159
  %v2294 = vmul.f32 %v2026, %v925
  %v2295 = vmul.f32 %v2031, %v1160
  %v2296 = vmul.f32 %v2031, %v926
  %v2297 = vmul.f32 %v2036, %v1161
  %v2298 = vmul.f32 %v2036, %v927
  %v2299 = vmul.f32 %v2041, %v1162
  %v2300 = vmul.f32 %v2041, %v928
  %v2301 = vmul.f32 %v2046, %v1163
  %v2302 = vmul.f32 %v2046, %v929
  %v2303 = vmul.f32 %v2051, %v1164
  %v2304 = vmul.f32 %v2051, %v930
  %v2305 = vmul.f32 %v2056, %v1165
  %v2306 = vmul.f32 %v2056, %v931
  %v2307 = vmul.f32 %v2061, %v1166
  %v2308 = vmul.f32 %v2061, %v932
  %v2309 = vmul.f32 %v2066, %v1167
  %v2310 = vmul.f32 %v2066, %v933
  %v2311 = vmul.f32 %v2071, %v1168
  %v2312 = vmul.f32 %v2071, %v934
  %v2313 = vmul.f32 %v2076, %v1169
  %v2314 = vmul.f32 %v2076, %v935
  %v2315 = vmul.f32 %v2081, %v1170
  %v2316 = vmul.f32 %v2081, %v936
  %v2317 = vmul.f32 %v2086, %v1171
  %v2318 = vmul.f32 %v2086, %v937
  %v2319 = vmul.f32 %v2091, %v1172
  %v2320 = vmul.f32 %v2091, %v938
  %v2321 = vmul.f32 %v2096, %v1173
  %v2322 = vmul.f32 %v2096, %v939
  %v2323 = vmul.f32 %v2101, %v1174
  %v2324 = vmul.f32 %v2101, %v940
  %v2325 = vmul.f32 %v2106, %v1175
  %v2326 = vmul.f32 %v2106, %v941
  %v2327 = vmul.f32 %v2111, %v1176
  %v2328 = vmul.f32 %v2111, %v942
  %v2329 = vmul.f32 %v2116, %v1177
  %v2330 = vmul.f32 %v2116, %v943
  %v2331 = vmul.f32 %v2121, %v1178
  %v2332 = vmul.f32 %v2121, %v944
  %v2333 = vmul.f32 %v2126, %v1179
  %v2334 = vmul.f32 %v2126, %v945
  %v2335 = vmul.f32 %v2131, %v1180
  %v2336 = vmul.f32 %v2131, %v946
  %v2337 = vmul.f32 %v2136, %v1181
  %v2338 = vmul.f32 %v2136, %v947
  %v2339 = vmul.f32 %v2141, %v1182
  %v2340 = vmul.f32 %v2141, %v948
  %v2341 = vmul.f32 %v2146, %v1183
  %v2342 = vmul.f32 %v2146, %v949
  %v2343 = vmul.f32 %v2151, %v1184
  %v2344 = vmul.f32 %v2151, %v950
  %v2345 = vmul.f32 %v2156, %v1185
  %v2346 = vmul.f32 %v2156, %v951
  %v2347 = vmul.f32 %v2161, %v1186
  %v2348 = vmul.f32 %v2161, %v952
  %v2349 = vmul.f32 %v2166, %v1187
  %v2350 = vmul.f32 %v2166, %v953
  %v2351 = vmul.f32 %v2171, %v1188
  %v2352 = vmul.f32 %v2171, %v954
  %v2353 = vmul.f32 %v2176, %v1189
  %v2354 = vmul.f32 %v2176, %v955
  %v2355 = vmul.f32 %v2181, %v1190
  %v2356 = vmul.f32 %v2181, %v956
  %v2357 = vmul.f32 %v2186, %v1191
  %v2358 = vmul.f32 %v2186, %v957
  %v2359 = vmul.f32 %v2191, %v1192
  %v2360 = vmul.f32 %v2191, %v958
  %v2361 = vmul.f32 %v2196, %v1193
  %v2362 = vmul.f32 %v2196, %v959
  %v2363 = vmul.f32 %v2201, %v1194
  %v2364 = vmul.f32 %v2201, %v960
  %v2365 = vmul.f32 %v2206, %v1195
  %v2366 = vmul.f32 %v2206, %v961
  %v2367 = vmul.f32 %v2211, %v1196
  %v2368 = vmul.f32 %v2211, %v962
  %2369 = vset.pattern.permute.xlu0 3
  %2370 = vperm.xlu0 %2369, %v338
  %v2371 = vpop.permute.xlu0 %2370
  %2373 = vset.pattern.permute.xlu0 3
  %2374 = vperm.xlu0 %2373, %v339
  %v2375 = vpop.permute.xlu0 %2374
  %2377 = vset.pattern.permute.xlu0 3
  %2378 = vperm.xlu0 %2377, %v340
  %v2379 = vpop.permute.xlu0 %2378
  %2381 = vset.pattern.permute.xlu0 3
  %2382 = vperm.xlu0 %2381, %v341
  %v2383 = vpop.permute.xlu0 %2382
  %2385 = vset.pattern.permute.xlu0 3
  %2386 = vperm.xlu0 %2385, %v342
  %v2387 = vpop.permute.xlu0 %2386
  %2389 = vset.pattern.permute.xlu0 3
  %2390 = vperm.xlu0 %2389, %v343
  %v2391 = vpop.permute.xlu0 %2390
  %2393 = vset.pattern.permute.xlu0 3
  %2394 = vperm.xlu0 %2393, %v344
  %v2395 = vpop.permute.xlu0 %2394
  %2397 = vset.pattern.permute.xlu0 3
  %2398 = vperm.xlu0 %2397, %v345
  %v2399 = vpop.permute.xlu0 %2398
  %2401 = vset.pattern.permute.xlu0 3
  %2402 = vperm.xlu0 %2401, %v346
  %v2403 = vpop.permute.xlu0 %2402
  %2405 = vset.pattern.permute.xlu0 3
  %2406 = vperm.xlu0 %2405, %v347
  %v2407 = vpop.permute.xlu0 %2406
  %2409 = vset.pattern.permute.xlu0 3
  %2410 = vperm.xlu0 %2409, %v348
  %v2411 = vpop.permute.xlu0 %2410
  %2413 = vset.pattern.permute.xlu0 3
  %2414 = vperm.xlu0 %2413, %v349
  %v2415 = vpop.permute.xlu0 %2414
  %2417 = vset.pattern.permute.xlu0 3
  %2418 = vperm.xlu0 %2417, %v350
  %v2419 = vpop.permute.xlu0 %2418
  %2421 = vset.pattern.permute.xlu0 3
  %2422 = vperm.xlu0 %2421, %v351
  %v2423 = vpop.permute.xlu0 %2422
  %2425 = vset.pattern.permute.xlu0 3
  %2426 = vperm.xlu0 %2425, %v352
  %v2427 = vpop.permute.xlu0 %2426
  %2429 = vset.pattern.permute.xlu0 3
  %2430 = vperm.xlu0 %2429, %v353
  %v2431 = vpop.permute.xlu0 %2430
  %2433 = vset.pattern.permute.xlu0 3
  %2434 = vperm.xlu0 %2433, %v354
  %v2435 = vpop.permute.xlu0 %2434
  %2437 = vset.pattern.permute.xlu0 3
  %2438 = vperm.xlu0 %2437, %v355
  %v2439 = vpop.permute.xlu0 %2438
  %2441 = vset.pattern.permute.xlu0 3
  %2442 = vperm.xlu0 %2441, %v356
  %v2443 = vpop.permute.xlu0 %2442
  %2445 = vset.pattern.permute.xlu0 3
  %2446 = vperm.xlu0 %2445, %v357
  %v2447 = vpop.permute.xlu0 %2446
  %2449 = vset.pattern.permute.xlu0 3
  %2450 = vperm.xlu0 %2449, %v358
  %v2451 = vpop.permute.xlu0 %2450
  %2453 = vset.pattern.permute.xlu0 3
  %2454 = vperm.xlu0 %2453, %v359
  %v2455 = vpop.permute.xlu0 %2454
  %2457 = vset.pattern.permute.xlu0 3
  %2458 = vperm.xlu0 %2457, %v360
  %v2459 = vpop.permute.xlu0 %2458
  %2461 = vset.pattern.permute.xlu0 3
  %2462 = vperm.xlu0 %2461, %v361
  %v2463 = vpop.permute.xlu0 %2462
  %2465 = vset.pattern.permute.xlu0 3
  %2466 = vperm.xlu0 %2465, %v362
  %v2467 = vpop.permute.xlu0 %2466
  %2469 = vset.pattern.permute.xlu0 3
  %2470 = vperm.xlu0 %2469, %v363
  %v2471 = vpop.permute.xlu0 %2470
  %2473 = vset.pattern.permute.xlu0 3
  %2474 = vperm.xlu0 %2473, %v364
  %v2475 = vpop.permute.xlu0 %2474
  %2477 = vset.pattern.permute.xlu0 3
  %2478 = vperm.xlu0 %2477, %v365
  %v2479 = vpop.permute.xlu0 %2478
  %2481 = vset.pattern.permute.xlu0 3
  %2482 = vperm.xlu0 %2481, %v366
  %v2483 = vpop.permute.xlu0 %2482
  %2485 = vset.pattern.permute.xlu0 3
  %2486 = vperm.xlu0 %2485, %v367
  %v2487 = vpop.permute.xlu0 %2486
  %2489 = vset.pattern.permute.xlu0 3
  %2490 = vperm.xlu0 %2489, %v368
  %v2491 = vpop.permute.xlu0 %2490
  %2493 = vset.pattern.permute.xlu0 3
  %2494 = vperm.xlu0 %2493, %v369
  %v2495 = vpop.permute.xlu0 %2494
  %2497 = vset.pattern.permute.xlu0 3
  %2498 = vperm.xlu0 %2497, %v370
  %v2499 = vpop.permute.xlu0 %2498
  %2501 = vset.pattern.permute.xlu0 3
  %2502 = vperm.xlu0 %2501, %v371
  %v2503 = vpop.permute.xlu0 %2502
  %2505 = vset.pattern.permute.xlu0 3
  %2506 = vperm.xlu0 %2505, %v372
  %v2507 = vpop.permute.xlu0 %2506
  %2509 = vset.pattern.permute.xlu0 3
  %2510 = vperm.xlu0 %2509, %v373
  %v2511 = vpop.permute.xlu0 %2510
  %2513 = vset.pattern.permute.xlu0 3
  %2514 = vperm.xlu0 %2513, %v374
  %v2515 = vpop.permute.xlu0 %2514
  %2517 = vset.pattern.permute.xlu0 3
  %2518 = vperm.xlu0 %2517, %v375
  %v2519 = vpop.permute.xlu0 %2518
  %2521 = vset.pattern.permute.xlu0 3
  %2522 = vperm.xlu0 %2521, %v376
  %v2523 = vpop.permute.xlu0 %2522
  %2525 = vset.pattern.permute.xlu0 3
  %2526 = vperm.xlu0 %2525, %v377
  %v2527 = vpop.permute.xlu0 %2526
  %2529 = vset.pattern.permute.xlu0 3
  %2530 = vperm.xlu0 %2529, %v378
  %v2531 = vpop.permute.xlu0 %2530
  %2533 = vset.pattern.permute.xlu0 3
  %2534 = vperm.xlu0 %2533, %v379
  %v2535 = vpop.permute.xlu0 %2534
  %2537 = vset.pattern.permute.xlu0 3
  %2538 = vperm.xlu0 %2537, %v380
  %v2539 = vpop.permute.xlu0 %2538
  %2541 = vset.pattern.permute.xlu0 3
  %2542 = vperm.xlu0 %2541, %v381
  %v2543 = vpop.permute.xlu0 %2542
  %2545 = vset.pattern.permute.xlu0 3
  %2546 = vperm.xlu0 %2545, %v382
  %v2547 = vpop.permute.xlu0 %2546
  %2549 = vset.pattern.permute.xlu0 3
  %2550 = vperm.xlu0 %2549, %v383
  %v2551 = vpop.permute.xlu0 %2550
  %2553 = vset.pattern.permute.xlu0 3
  %2554 = vperm.xlu0 %2553, %v384
  %v2555 = vpop.permute.xlu0 %2554
  %2557 = vset.pattern.permute.xlu0 3
  %2558 = vperm.xlu0 %2557, %v385
  %v2559 = vpop.permute.xlu0 %2558
  %2561 = vset.pattern.permute.xlu0 3
  %2562 = vperm.xlu0 %2561, %v386
  %v2563 = vpop.permute.xlu0 %2562
  %2565 = vset.pattern.permute.xlu0 3
  %2566 = vperm.xlu0 %2565, %v387
  %v2567 = vpop.permute.xlu0 %2566
  %2569 = vset.pattern.permute.xlu0 3
  %2570 = vperm.xlu0 %2569, %v388
  %v2571 = vpop.permute.xlu0 %2570
  %2573 = vset.pattern.permute.xlu0 3
  %2574 = vperm.xlu0 %2573, %v389
  %v2575 = vpop.permute.xlu0 %2574
  %2577 = vset.pattern.permute.xlu0 3
  %2578 = vperm.xlu0 %2577, %v390
  %v2579 = vpop.permute.xlu0 %2578
  %2581 = vset.pattern.permute.xlu0 3
  %2582 = vperm.xlu0 %2581, %v391
  %v2583 = vpop.permute.xlu0 %2582
  %2585 = vset.pattern.permute.xlu0 3
  %2586 = vperm.xlu0 %2585, %v392
  %v2587 = vpop.permute.xlu0 %2586
  %2589 = vset.pattern.permute.xlu0 3
  %2590 = vperm.xlu0 %2589, %v393
  %v2591 = vpop.permute.xlu0 %2590
  %2593 = vset.pattern.permute.xlu0 3
  %2594 = vperm.xlu0 %2593, %v394
  %v2595 = vpop.permute.xlu0 %2594
  %2597 = vset.pattern.permute.xlu0 3
  %2598 = vperm.xlu0 %2597, %v395
  %v2599 = vpop.permute.xlu0 %2598
  %2601 = vset.pattern.permute.xlu0 3
  %2602 = vperm.xlu0 %2601, %v396
  %v2603 = vpop.permute.xlu0 %2602
  %2605 = vset.pattern.permute.xlu0 3
  %2606 = vperm.xlu0 %2605, %v397
  %v2607 = vpop.permute.xlu0 %2606
  %2609 = vset.pattern.permute.xlu0 3
  %2610 = vperm.xlu0 %2609, %v398
  %v2611 = vpop.permute.xlu0 %2610
  %2613 = vset.pattern.permute.xlu0 3
  %2614 = vperm.xlu0 %2613, %v399
  %v2615 = vpop.permute.xlu0 %2614
  %2617 = vset.pattern.permute.xlu0 3
  %2618 = vperm.xlu0 %2617, %v400
  %v2619 = vpop.permute.xlu0 %2618
  %2621 = vset.pattern.permute.xlu0 3
  %2622 = vperm.xlu0 %2621, %v401
  %v2623 = vpop.permute.xlu0 %2622
  %2625 = vset.pattern.permute.xlu0 3
  %2626 = vperm.xlu0 %2625, %v402
  %v2627 = vpop.permute.xlu0 %2626
  %2629 = vset.pattern.permute.xlu0 3
  %2630 = vperm.xlu0 %2629, %v403
  %v2631 = vpop.permute.xlu0 %2630
  %2633 = vset.pattern.permute.xlu0 3
  %2634 = vperm.xlu0 %2633, %v404
  %v2635 = vpop.permute.xlu0 %2634
  %2637 = vset.pattern.permute.xlu0 3
  %2638 = vperm.xlu0 %2637, %v405
  %v2639 = vpop.permute.xlu0 %2638
  %2641 = vset.pattern.permute.xlu0 3
  %2642 = vperm.xlu0 %2641, %v406
  %v2643 = vpop.permute.xlu0 %2642
  %2645 = vset.pattern.permute.xlu0 3
  %2646 = vperm.xlu0 %2645, %v407
  %v2647 = vpop.permute.xlu0 %2646
  %2649 = vset.pattern.permute.xlu0 3
  %2650 = vperm.xlu0 %2649, %v408
  %v2651 = vpop.permute.xlu0 %2650
  %2653 = vset.pattern.permute.xlu0 3
  %2654 = vperm.xlu0 %2653, %v409
  %v2655 = vpop.permute.xlu0 %2654
  %2657 = vset.pattern.permute.xlu0 3
  %2658 = vperm.xlu0 %2657, %v410
  %v2659 = vpop.permute.xlu0 %2658
  %2661 = vset.pattern.permute.xlu0 3
  %2662 = vperm.xlu0 %2661, %v411
  %v2663 = vpop.permute.xlu0 %2662
  %2665 = vset.pattern.permute.xlu0 3
  %2666 = vperm.xlu0 %2665, %v412
  %v2667 = vpop.permute.xlu0 %2666
  %2669 = vset.pattern.permute.xlu0 3
  %2670 = vperm.xlu0 %2669, %v413
  %v2671 = vpop.permute.xlu0 %2670
  %2673 = vset.pattern.permute.xlu0 3
  %2674 = vperm.xlu0 %2673, %v414
  %v2675 = vpop.permute.xlu0 %2674
  %2677 = vset.pattern.permute.xlu0 3
  %2678 = vperm.xlu0 %2677, %v415
  %v2679 = vpop.permute.xlu0 %2678
  %v2681 = vmul.f32 %v2371, %v182
  %v2682 = vmul.f32 %v2371, %v183
  %v2683 = vmul.f32 %v2375, %v184
  %v2684 = vmul.f32 %v2375, %v185
  %v2685 = vmul.f32 %v2379, %v186
  %v2686 = vmul.f32 %v2379, %v187
  %v2687 = vmul.f32 %v2383, %v188
  %v2688 = vmul.f32 %v2383, %v189
  %v2689 = vmul.f32 %v2387, %v190
  %v2690 = vmul.f32 %v2387, %v191
  %v2691 = vmul.f32 %v2391, %v192
  %v2692 = vmul.f32 %v2391, %v193
  %v2693 = vmul.f32 %v2395, %v194
  %v2694 = vmul.f32 %v2395, %v195
  %v2695 = vmul.f32 %v2399, %v196
  %v2696 = vmul.f32 %v2399, %v197
  %v2697 = vmul.f32 %v2403, %v198
  %v2698 = vmul.f32 %v2403, %v199
  %v2699 = vmul.f32 %v2407, %v200
  %v2700 = vmul.f32 %v2407, %v201
  %v2701 = vmul.f32 %v2411, %v202
  %v2702 = vmul.f32 %v2411, %v203
  %v2703 = vmul.f32 %v2415, %v204
  %v2704 = vmul.f32 %v2415, %v205
  %v2705 = vmul.f32 %v2419, %v206
  %v2706 = vmul.f32 %v2419, %v207
  %v2707 = vmul.f32 %v2423, %v208
  %v2708 = vmul.f32 %v2423, %v209
  %v2709 = vmul.f32 %v2427, %v210
  %v2710 = vmul.f32 %v2427, %v211
  %v2711 = vmul.f32 %v2431, %v212
  %v2712 = vmul.f32 %v2431, %v213
  %v2713 = vmul.f32 %v2435, %v214
  %v2714 = vmul.f32 %v2435, %v215
  %v2715 = vmul.f32 %v2439, %v216
  %v2716 = vmul.f32 %v2439, %v217
  %v2717 = vmul.f32 %v2443, %v218
  %v2718 = vmul.f32 %v2443, %v219
  %v2719 = vmul.f32 %v2447, %v220
  %v2720 = vmul.f32 %v2447, %v221
  %v2721 = vmul.f32 %v2451, %v222
  %v2722 = vmul.f32 %v2451, %v223
  %v2723 = vmul.f32 %v2455, %v224
  %v2724 = vmul.f32 %v2455, %v225
  %v2725 = vmul.f32 %v2459, %v226
  %v2726 = vmul.f32 %v2459, %v227
  %v2727 = vmul.f32 %v2463, %v228
  %v2728 = vmul.f32 %v2463, %v229
  %v2729 = vmul.f32 %v2467, %v230
  %v2730 = vmul.f32 %v2467, %v231
  %v2731 = vmul.f32 %v2471, %v232
  %v2732 = vmul.f32 %v2471, %v233
  %v2733 = vmul.f32 %v2475, %v234
  %v2734 = vmul.f32 %v2475, %v235
  %v2735 = vmul.f32 %v2479, %v236
  %v2736 = vmul.f32 %v2479, %v237
  %v2737 = vmul.f32 %v2483, %v238
  %v2738 = vmul.f32 %v2483, %v239
  %v2739 = vmul.f32 %v2487, %v240
  %v2740 = vmul.f32 %v2487, %v241
  %v2741 = vmul.f32 %v2491, %v242
  %v2742 = vmul.f32 %v2491, %v243
  %v2743 = vmul.f32 %v2495, %v244
  %v2744 = vmul.f32 %v2495, %v245
  %v2745 = vmul.f32 %v2499, %v246
  %v2746 = vmul.f32 %v2499, %v247
  %v2747 = vmul.f32 %v2503, %v248
  %v2748 = vmul.f32 %v2503, %v249
  %v2749 = vmul.f32 %v2507, %v250
  %v2750 = vmul.f32 %v2507, %v251
  %v2751 = vmul.f32 %v2511, %v252
  %v2752 = vmul.f32 %v2511, %v253
  %v2753 = vmul.f32 %v2515, %v254
  %v2754 = vmul.f32 %v2515, %v255
  %v2755 = vmul.f32 %v2519, %v256
  %v2756 = vmul.f32 %v2519, %v257
  %v2757 = vmul.f32 %v2523, %v258
  %v2758 = vmul.f32 %v2523, %v259
  %v2759 = vmul.f32 %v2527, %v260
  %v2760 = vmul.f32 %v2527, %v261
  %v2761 = vmul.f32 %v2531, %v262
  %v2762 = vmul.f32 %v2531, %v263
  %v2763 = vmul.f32 %v2535, %v264
  %v2764 = vmul.f32 %v2535, %v265
  %v2765 = vmul.f32 %v2539, %v266
  %v2766 = vmul.f32 %v2539, %v267
  %v2767 = vmul.f32 %v2543, %v268
  %v2768 = vmul.f32 %v2543, %v269
  %v2769 = vmul.f32 %v2547, %v270
  %v2770 = vmul.f32 %v2547, %v271
  %v2771 = vmul.f32 %v2551, %v272
  %v2772 = vmul.f32 %v2551, %v273
  %v2773 = vmul.f32 %v2555, %v274
  %v2774 = vmul.f32 %v2555, %v275
  %v2775 = vmul.f32 %v2559, %v276
  %v2776 = vmul.f32 %v2559, %v277
  %v2777 = vmul.f32 %v2563, %v278
  %v2778 = vmul.f32 %v2563, %v279
  %v2779 = vmul.f32 %v2567, %v280
  %v2780 = vmul.f32 %v2567, %v281
  %v2781 = vmul.f32 %v2571, %v282
  %v2782 = vmul.f32 %v2571, %v283
  %v2783 = vmul.f32 %v2575, %v284
  %v2784 = vmul.f32 %v2575, %v285
  %v2785 = vmul.f32 %v2579, %v286
  %v2786 = vmul.f32 %v2579, %v287
  %v2787 = vmul.f32 %v2583, %v288
  %v2788 = vmul.f32 %v2583, %v289
  %v2789 = vmul.f32 %v2587, %v290
  %v2790 = vmul.f32 %v2587, %v291
  %v2791 = vmul.f32 %v2591, %v292
  %v2792 = vmul.f32 %v2591, %v293
  %v2793 = vmul.f32 %v2595, %v294
  %v2794 = vmul.f32 %v2595, %v295
  %v2795 = vmul.f32 %v2599, %v296
  %v2796 = vmul.f32 %v2599, %v297
  %v2797 = vmul.f32 %v2603, %v298
  %v2798 = vmul.f32 %v2603, %v299
  %v2799 = vmul.f32 %v2607, %v300
  %v2800 = vmul.f32 %v2607, %v301
  %v2801 = vmul.f32 %v2611, %v302
  %v2802 = vmul.f32 %v2611, %v303
  %v2803 = vmul.f32 %v2615, %v304
  %v2804 = vmul.f32 %v2615, %v305
  %v2805 = vmul.f32 %v2619, %v306
  %v2806 = vmul.f32 %v2619, %v307
  %v2807 = vmul.f32 %v2623, %v308
  %v2808 = vmul.f32 %v2623, %v309
  %v2809 = vmul.f32 %v2627, %v310
  %v2810 = vmul.f32 %v2627, %v311
  %v2811 = vmul.f32 %v2631, %v312
  %v2812 = vmul.f32 %v2631, %v313
  %v2813 = vmul.f32 %v2635, %v314
  %v2814 = vmul.f32 %v2635, %v315
  %v2815 = vmul.f32 %v2639, %v316
  %v2816 = vmul.f32 %v2639, %v317
  %v2817 = vmul.f32 %v2643, %v318
  %v2818 = vmul.f32 %v2643, %v319
  %v2819 = vmul.f32 %v2647, %v320
  %v2820 = vmul.f32 %v2647, %v321
  %v2821 = vmul.f32 %v2651, %v322
  %v2822 = vmul.f32 %v2651, %v323
  %v2823 = vmul.f32 %v2655, %v324
  %v2824 = vmul.f32 %v2655, %v325
  %v2825 = vmul.f32 %v2659, %v326
  %v2826 = vmul.f32 %v2659, %v327
  %v2827 = vmul.f32 %v2663, %v328
  %v2828 = vmul.f32 %v2663, %v329
  %v2829 = vmul.f32 %v2667, %v330
  %v2830 = vmul.f32 %v2667, %v331
  %v2831 = vmul.f32 %v2671, %v332
  %v2832 = vmul.f32 %v2671, %v333
  %v2833 = vmul.f32 %v2675, %v334
  %v2834 = vmul.f32 %v2675, %v335
  %v2835 = vmul.f32 %v2679, %v336
  %v2836 = vmul.f32 %v2679, %v337
  %v2837 = vadd.f32 %v2213, %v2681
  %v2838 = vadd.f32 %v2214, %v2682
  %v2839 = vadd.f32 %v2215, %v2683
  %v2840 = vadd.f32 %v2216, %v2684
  %v2841 = vadd.f32 %v2217, %v2685
  %v2842 = vadd.f32 %v2218, %v2686
  %v2843 = vadd.f32 %v2219, %v2687
  %v2844 = vadd.f32 %v2220, %v2688
  %v2845 = vadd.f32 %v2221, %v2689
  %v2846 = vadd.f32 %v2222, %v2690
  %v2847 = vadd.f32 %v2223, %v2691
  %v2848 = vadd.f32 %v2224, %v2692
  %v2849 = vadd.f32 %v2225, %v2693
  %v2850 = vadd.f32 %v2226, %v2694
  %v2851 = vadd.f32 %v2227, %v2695
  %v2852 = vadd.f32 %v2228, %v2696
  %v2853 = vadd.f32 %v2229, %v2697
  %v2854 = vadd.f32 %v2230, %v2698
  %v2855 = vadd.f32 %v2231, %v2699
  %v2856 = vadd.f32 %v2232, %v2700
  %v2857 = vadd.f32 %v2233, %v2701
  %v2858 = vadd.f32 %v2234, %v2702
  %v2859 = vadd.f32 %v2235, %v2703
  %v2860 = vadd.f32 %v2236, %v2704
  %v2861 = vadd.f32 %v2237, %v2705
  %v2862 = vadd.f32 %v2238, %v2706
  %v2863 = vadd.f32 %v2239, %v2707
  %v2864 = vadd.f32 %v2240, %v2708
  %v2865 = vadd.f32 %v2241, %v2709
  %v2866 = vadd.f32 %v2242, %v2710
  %v2867 = vadd.f32 %v2243, %v2711
  %v2868 = vadd.f32 %v2244, %v2712
  %v2869 = vadd.f32 %v2245, %v2713
  %v2870 = vadd.f32 %v2246, %v2714
  %v2871 = vadd.f32 %v2247, %v2715
  %v2872 = vadd.f32 %v2248, %v2716
  %v2873 = vadd.f32 %v2249, %v2717
  %v2874 = vadd.f32 %v2250, %v2718
  %v2875 = vadd.f32 %v2251, %v2719
  %v2876 = vadd.f32 %v2252, %v2720
  %v2877 = vadd.f32 %v2253, %v2721
  %v2878 = vadd.f32 %v2254, %v2722
  %v2879 = vadd.f32 %v2255, %v2723
  %v2880 = vadd.f32 %v2256, %v2724
  %v2881 = vadd.f32 %v2257, %v2725
  %v2882 = vadd.f32 %v2258, %v2726
  %v2883 = vadd.f32 %v2259, %v2727
  %v2884 = vadd.f32 %v2260, %v2728
  %v2885 = vadd.f32 %v2261, %v2729
  %v2886 = vadd.f32 %v2262, %v2730
  %v2887 = vadd.f32 %v2263, %v2731
  %v2888 = vadd.f32 %v2264, %v2732
  %v2889 = vadd.f32 %v2265, %v2733
  %v2890 = vadd.f32 %v2266, %v2734
  %v2891 = vadd.f32 %v2267, %v2735
  %v2892 = vadd.f32 %v2268, %v2736
  %v2893 = vadd.f32 %v2269, %v2737
  %v2894 = vadd.f32 %v2270, %v2738
  %v2895 = vadd.f32 %v2271, %v2739
  %v2896 = vadd.f32 %v2272, %v2740
  %v2897 = vadd.f32 %v2273, %v2741
  %v2898 = vadd.f32 %v2274, %v2742
  %v2899 = vadd.f32 %v2275, %v2743
  %v2900 = vadd.f32 %v2276, %v2744
  %v2901 = vadd.f32 %v2277, %v2745
  %v2902 = vadd.f32 %v2278, %v2746
  %v2903 = vadd.f32 %v2279, %v2747
  %v2904 = vadd.f32 %v2280, %v2748
  %v2905 = vadd.f32 %v2281, %v2749
  %v2906 = vadd.f32 %v2282, %v2750
  %v2907 = vadd.f32 %v2283, %v2751
  %v2908 = vadd.f32 %v2284, %v2752
  %v2909 = vadd.f32 %v2285, %v2753
  %v2910 = vadd.f32 %v2286, %v2754
  %v2911 = vadd.f32 %v2287, %v2755
  %v2912 = vadd.f32 %v2288, %v2756
  %v2913 = vadd.f32 %v2289, %v2757
  %v2914 = vadd.f32 %v2290, %v2758
  %v2915 = vadd.f32 %v2291, %v2759
  %v2916 = vadd.f32 %v2292, %v2760
  %v2917 = vadd.f32 %v2293, %v2761
  %v2918 = vadd.f32 %v2294, %v2762
  %v2919 = vadd.f32 %v2295, %v2763
  %v2920 = vadd.f32 %v2296, %v2764
  %v2921 = vadd.f32 %v2297, %v2765
  %v2922 = vadd.f32 %v2298, %v2766
  %v2923 = vadd.f32 %v2299, %v2767
  %v2924 = vadd.f32 %v2300, %v2768
  %v2925 = vadd.f32 %v2301, %v2769
  %v2926 = vadd.f32 %v2302, %v2770
  %v2927 = vadd.f32 %v2303, %v2771
  %v2928 = vadd.f32 %v2304, %v2772
  %v2929 = vadd.f32 %v2305, %v2773
  %v2930 = vadd.f32 %v2306, %v2774
  %v2931 = vadd.f32 %v2307, %v2775
  %v2932 = vadd.f32 %v2308, %v2776
  %v2933 = vadd.f32 %v2309, %v2777
  %v2934 = vadd.f32 %v2310, %v2778
  %v2935 = vadd.f32 %v2311, %v2779
  %v2936 = vadd.f32 %v2312, %v2780
  %v2937 = vadd.f32 %v2313, %v2781
  %v2938 = vadd.f32 %v2314, %v2782
  %v2939 = vadd.f32 %v2315, %v2783
  %v2940 = vadd.f32 %v2316, %v2784
  %v2941 = vadd.f32 %v2317, %v2785
  %v2942 = vadd.f32 %v2318, %v2786
  %v2943 = vadd.f32 %v2319, %v2787
  %v2944 = vadd.f32 %v2320, %v2788
  %v2945 = vadd.f32 %v2321, %v2789
  %v2946 = vadd.f32 %v2322, %v2790
  %v2947 = vadd.f32 %v2323, %v2791
  %v2948 = vadd.f32 %v2324, %v2792
  %v2949 = vadd.f32 %v2325, %v2793
  %v2950 = vadd.f32 %v2326, %v2794
  %v2951 = vadd.f32 %v2327, %v2795
  %v2952 = vadd.f32 %v2328, %v2796
  %v2953 = vadd.f32 %v2329, %v2797
  %v2954 = vadd.f32 %v2330, %v2798
  %v2955 = vadd.f32 %v2331, %v2799
  %v2956 = vadd.f32 %v2332, %v2800
  %v2957 = vadd.f32 %v2333, %v2801
  %v2958 = vadd.f32 %v2334, %v2802
  %v2959 = vadd.f32 %v2335, %v2803
  %v2960 = vadd.f32 %v2336, %v2804
  %v2961 = vadd.f32 %v2337, %v2805
  %v2962 = vadd.f32 %v2338, %v2806
  %v2963 = vadd.f32 %v2339, %v2807
  %v2964 = vadd.f32 %v2340, %v2808
  %v2965 = vadd.f32 %v2341, %v2809
  %v2966 = vadd.f32 %v2342, %v2810
  %v2967 = vadd.f32 %v2343, %v2811
  %v2968 = vadd.f32 %v2344, %v2812
  %v2969 = vadd.f32 %v2345, %v2813
  %v2970 = vadd.f32 %v2346, %v2814
  %v2971 = vadd.f32 %v2347, %v2815
  %v2972 = vadd.f32 %v2348, %v2816
  %v2973 = vadd.f32 %v2349, %v2817
  %v2974 = vadd.f32 %v2350, %v2818
  %v2975 = vadd.f32 %v2351, %v2819
  %v2976 = vadd.f32 %v2352, %v2820
  %v2977 = vadd.f32 %v2353, %v2821
  %v2978 = vadd.f32 %v2354, %v2822
  %v2979 = vadd.f32 %v2355, %v2823
  %v2980 = vadd.f32 %v2356, %v2824
  %v2981 = vadd.f32 %v2357, %v2825
  %v2982 = vadd.f32 %v2358, %v2826
  %v2983 = vadd.f32 %v2359, %v2827
  %v2984 = vadd.f32 %v2360, %v2828
  %v2985 = vadd.f32 %v2361, %v2829
  %v2986 = vadd.f32 %v2362, %v2830
  %v2987 = vadd.f32 %v2363, %v2831
  %v2988 = vadd.f32 %v2364, %v2832
  %v2989 = vadd.f32 %v2365, %v2833
  %v2990 = vadd.f32 %v2366, %v2834
  %v2991 = vadd.f32 %v2367, %v2835
  %v2992 = vadd.f32 %v2368, %v2836
  %2993 = vset.pattern.permute.xlu0 6
  %2994 = vperm.xlu0 %2993, %v338
  %v2995 = vpop.permute.xlu0 %2994
  %2997 = vset.pattern.permute.xlu0 6
  %2998 = vperm.xlu0 %2997, %v339
  %v2999 = vpop.permute.xlu0 %2998
  %3001 = vset.pattern.permute.xlu0 6
  %3002 = vperm.xlu0 %3001, %v340
  %v3003 = vpop.permute.xlu0 %3002
  %3005 = vset.pattern.permute.xlu0 6
  %3006 = vperm.xlu0 %3005, %v341
  %v3007 = vpop.permute.xlu0 %3006
  %3009 = vset.pattern.permute.xlu0 6
  %3010 = vperm.xlu0 %3009, %v342
  %v3011 = vpop.permute.xlu0 %3010
  %3013 = vset.pattern.permute.xlu0 6
  %3014 = vperm.xlu0 %3013, %v343
  %v3015 = vpop.permute.xlu0 %3014
  %3017 = vset.pattern.permute.xlu0 6
  %3018 = vperm.xlu0 %3017, %v344
  %v3019 = vpop.permute.xlu0 %3018
  %3021 = vset.pattern.permute.xlu0 6
  %3022 = vperm.xlu0 %3021, %v345
  %v3023 = vpop.permute.xlu0 %3022
  %3025 = vset.pattern.permute.xlu0 6
  %3026 = vperm.xlu0 %3025, %v346
  %v3027 = vpop.permute.xlu0 %3026
  %3029 = vset.pattern.permute.xlu0 6
  %3030 = vperm.xlu0 %3029, %v347
  %v3031 = vpop.permute.xlu0 %3030
  %3033 = vset.pattern.permute.xlu0 6
  %3034 = vperm.xlu0 %3033, %v348
  %v3035 = vpop.permute.xlu0 %3034
  %3037 = vset.pattern.permute.xlu0 6
  %3038 = vperm.xlu0 %3037, %v349
  %v3039 = vpop.permute.xlu0 %3038
  %3041 = vset.pattern.permute.xlu0 6
  %3042 = vperm.xlu0 %3041, %v350
  %v3043 = vpop.permute.xlu0 %3042
  %3045 = vset.pattern.permute.xlu0 6
  %3046 = vperm.xlu0 %3045, %v351
  %v3047 = vpop.permute.xlu0 %3046
  %3049 = vset.pattern.permute.xlu0 6
  %3050 = vperm.xlu0 %3049, %v352
  %v3051 = vpop.permute.xlu0 %3050
  %3053 = vset.pattern.permute.xlu0 6
  %3054 = vperm.xlu0 %3053, %v353
  %v3055 = vpop.permute.xlu0 %3054
  %3057 = vset.pattern.permute.xlu0 6
  %3058 = vperm.xlu0 %3057, %v354
  %v3059 = vpop.permute.xlu0 %3058
  %3061 = vset.pattern.permute.xlu0 6
  %3062 = vperm.xlu0 %3061, %v355
  %v3063 = vpop.permute.xlu0 %3062
  %3065 = vset.pattern.permute.xlu0 6
  %3066 = vperm.xlu0 %3065, %v356
  %v3067 = vpop.permute.xlu0 %3066
  %3069 = vset.pattern.permute.xlu0 6
  %3070 = vperm.xlu0 %3069, %v357
  %v3071 = vpop.permute.xlu0 %3070
  %3073 = vset.pattern.permute.xlu0 6
  %3074 = vperm.xlu0 %3073, %v358
  %v3075 = vpop.permute.xlu0 %3074
  %3077 = vset.pattern.permute.xlu0 6
  %3078 = vperm.xlu0 %3077, %v359
  %v3079 = vpop.permute.xlu0 %3078
  %3081 = vset.pattern.permute.xlu0 6
  %3082 = vperm.xlu0 %3081, %v360
  %v3083 = vpop.permute.xlu0 %3082
  %3085 = vset.pattern.permute.xlu0 6
  %3086 = vperm.xlu0 %3085, %v361
  %v3087 = vpop.permute.xlu0 %3086
  %3089 = vset.pattern.permute.xlu0 6
  %3090 = vperm.xlu0 %3089, %v362
  %v3091 = vpop.permute.xlu0 %3090
  %3093 = vset.pattern.permute.xlu0 6
  %3094 = vperm.xlu0 %3093, %v363
  %v3095 = vpop.permute.xlu0 %3094
  %3097 = vset.pattern.permute.xlu0 6
  %3098 = vperm.xlu0 %3097, %v364
  %v3099 = vpop.permute.xlu0 %3098
  %3101 = vset.pattern.permute.xlu0 6
  %3102 = vperm.xlu0 %3101, %v365
  %v3103 = vpop.permute.xlu0 %3102
  %3105 = vset.pattern.permute.xlu0 6
  %3106 = vperm.xlu0 %3105, %v366
  %v3107 = vpop.permute.xlu0 %3106
  %3109 = vset.pattern.permute.xlu0 6
  %3110 = vperm.xlu0 %3109, %v367
  %v3111 = vpop.permute.xlu0 %3110
  %3113 = vset.pattern.permute.xlu0 6
  %3114 = vperm.xlu0 %3113, %v368
  %v3115 = vpop.permute.xlu0 %3114
  %3117 = vset.pattern.permute.xlu0 6
  %3118 = vperm.xlu0 %3117, %v369
  %v3119 = vpop.permute.xlu0 %3118
  %3121 = vset.pattern.permute.xlu0 6
  %3122 = vperm.xlu0 %3121, %v370
  %v3123 = vpop.permute.xlu0 %3122
  %3125 = vset.pattern.permute.xlu0 6
  %3126 = vperm.xlu0 %3125, %v371
  %v3127 = vpop.permute.xlu0 %3126
  %3129 = vset.pattern.permute.xlu0 6
  %3130 = vperm.xlu0 %3129, %v372
  %v3131 = vpop.permute.xlu0 %3130
  %3133 = vset.pattern.permute.xlu0 6
  %3134 = vperm.xlu0 %3133, %v373
  %v3135 = vpop.permute.xlu0 %3134
  %3137 = vset.pattern.permute.xlu0 6
  %3138 = vperm.xlu0 %3137, %v374
  %v3139 = vpop.permute.xlu0 %3138
  %3141 = vset.pattern.permute.xlu0 6
  %3142 = vperm.xlu0 %3141, %v375
  %v3143 = vpop.permute.xlu0 %3142
  %3145 = vset.pattern.permute.xlu0 6
  %3146 = vperm.xlu0 %3145, %v376
  %v3147 = vpop.permute.xlu0 %3146
  %3149 = vset.pattern.permute.xlu0 6
  %3150 = vperm.xlu0 %3149, %v377
  %v3151 = vpop.permute.xlu0 %3150
  %3153 = vset.pattern.permute.xlu0 6
  %3154 = vperm.xlu0 %3153, %v378
  %v3155 = vpop.permute.xlu0 %3154
  %3157 = vset.pattern.permute.xlu0 6
  %3158 = vperm.xlu0 %3157, %v379
  %v3159 = vpop.permute.xlu0 %3158
  %3161 = vset.pattern.permute.xlu0 6
  %3162 = vperm.xlu0 %3161, %v380
  %v3163 = vpop.permute.xlu0 %3162
  %3165 = vset.pattern.permute.xlu0 6
  %3166 = vperm.xlu0 %3165, %v381
  %v3167 = vpop.permute.xlu0 %3166
  %3169 = vset.pattern.permute.xlu0 6
  %3170 = vperm.xlu0 %3169, %v382
  %v3171 = vpop.permute.xlu0 %3170
  %3173 = vset.pattern.permute.xlu0 6
  %3174 = vperm.xlu0 %3173, %v383
  %v3175 = vpop.permute.xlu0 %3174
  %3177 = vset.pattern.permute.xlu0 6
  %3178 = vperm.xlu0 %3177, %v384
  %v3179 = vpop.permute.xlu0 %3178
  %3181 = vset.pattern.permute.xlu0 6
  %3182 = vperm.xlu0 %3181, %v385
  %v3183 = vpop.permute.xlu0 %3182
  %3185 = vset.pattern.permute.xlu0 6
  %3186 = vperm.xlu0 %3185, %v386
  %v3187 = vpop.permute.xlu0 %3186
  %3189 = vset.pattern.permute.xlu0 6
  %3190 = vperm.xlu0 %3189, %v387
  %v3191 = vpop.permute.xlu0 %3190
  %3193 = vset.pattern.permute.xlu0 6
  %3194 = vperm.xlu0 %3193, %v388
  %v3195 = vpop.permute.xlu0 %3194
  %3197 = vset.pattern.permute.xlu0 6
  %3198 = vperm.xlu0 %3197, %v389
  %v3199 = vpop.permute.xlu0 %3198
  %3201 = vset.pattern.permute.xlu0 6
  %3202 = vperm.xlu0 %3201, %v390
  %v3203 = vpop.permute.xlu0 %3202
  %3205 = vset.pattern.permute.xlu0 6
  %3206 = vperm.xlu0 %3205, %v391
  %v3207 = vpop.permute.xlu0 %3206
  %3209 = vset.pattern.permute.xlu0 6
  %3210 = vperm.xlu0 %3209, %v392
  %v3211 = vpop.permute.xlu0 %3210
  %3213 = vset.pattern.permute.xlu0 6
  %3214 = vperm.xlu0 %3213, %v393
  %v3215 = vpop.permute.xlu0 %3214
  %3217 = vset.pattern.permute.xlu0 6
  %3218 = vperm.xlu0 %3217, %v394
  %v3219 = vpop.permute.xlu0 %3218
  %3221 = vset.pattern.permute.xlu0 6
  %3222 = vperm.xlu0 %3221, %v395
  %v3223 = vpop.permute.xlu0 %3222
  %3225 = vset.pattern.permute.xlu0 6
  %3226 = vperm.xlu0 %3225, %v396
  %v3227 = vpop.permute.xlu0 %3226
  %3229 = vset.pattern.permute.xlu0 6
  %3230 = vperm.xlu0 %3229, %v397
  %v3231 = vpop.permute.xlu0 %3230
  %3233 = vset.pattern.permute.xlu0 6
  %3234 = vperm.xlu0 %3233, %v398
  %v3235 = vpop.permute.xlu0 %3234
  %3237 = vset.pattern.permute.xlu0 6
  %3238 = vperm.xlu0 %3237, %v399
  %v3239 = vpop.permute.xlu0 %3238
  %3241 = vset.pattern.permute.xlu0 6
  %3242 = vperm.xlu0 %3241, %v400
  %v3243 = vpop.permute.xlu0 %3242
  %3245 = vset.pattern.permute.xlu0 6
  %3246 = vperm.xlu0 %3245, %v401
  %v3247 = vpop.permute.xlu0 %3246
  %3249 = vset.pattern.permute.xlu0 6
  %3250 = vperm.xlu0 %3249, %v402
  %v3251 = vpop.permute.xlu0 %3250
  %3253 = vset.pattern.permute.xlu0 6
  %3254 = vperm.xlu0 %3253, %v403
  %v3255 = vpop.permute.xlu0 %3254
  %3257 = vset.pattern.permute.xlu0 6
  %3258 = vperm.xlu0 %3257, %v404
  %v3259 = vpop.permute.xlu0 %3258
  %3261 = vset.pattern.permute.xlu0 6
  %3262 = vperm.xlu0 %3261, %v405
  %v3263 = vpop.permute.xlu0 %3262
  %3265 = vset.pattern.permute.xlu0 6
  %3266 = vperm.xlu0 %3265, %v406
  %v3267 = vpop.permute.xlu0 %3266
  %3269 = vset.pattern.permute.xlu0 6
  %3270 = vperm.xlu0 %3269, %v407
  %v3271 = vpop.permute.xlu0 %3270
  %3273 = vset.pattern.permute.xlu0 6
  %3274 = vperm.xlu0 %3273, %v408
  %v3275 = vpop.permute.xlu0 %3274
  %3277 = vset.pattern.permute.xlu0 6
  %3278 = vperm.xlu0 %3277, %v409
  %v3279 = vpop.permute.xlu0 %3278
  %3281 = vset.pattern.permute.xlu0 6
  %3282 = vperm.xlu0 %3281, %v410
  %v3283 = vpop.permute.xlu0 %3282
  %3285 = vset.pattern.permute.xlu0 6
  %3286 = vperm.xlu0 %3285, %v411
  %v3287 = vpop.permute.xlu0 %3286
  %3289 = vset.pattern.permute.xlu0 6
  %3290 = vperm.xlu0 %3289, %v412
  %v3291 = vpop.permute.xlu0 %3290
  %3293 = vset.pattern.permute.xlu0 6
  %3294 = vperm.xlu0 %3293, %v413
  %v3295 = vpop.permute.xlu0 %3294
  %3297 = vset.pattern.permute.xlu0 6
  %3298 = vperm.xlu0 %3297, %v414
  %v3299 = vpop.permute.xlu0 %3298
  %3301 = vset.pattern.permute.xlu0 6
  %3302 = vperm.xlu0 %3301, %v415
  %v3303 = vpop.permute.xlu0 %3302
  %v3305 = vmul.f32 %v2995, %v1510
  %v3306 = vmul.f32 %v2995, %v1745
  %v3307 = vmul.f32 %v2999, %v1511
  %v3308 = vmul.f32 %v2999, %v1746
  %v3309 = vmul.f32 %v3003, %v1512
  %v3310 = vmul.f32 %v3003, %v1747
  %v3311 = vmul.f32 %v3007, %v1513
  %v3312 = vmul.f32 %v3007, %v1748
  %v3313 = vmul.f32 %v3011, %v1514
  %v3314 = vmul.f32 %v3011, %v1749
  %v3315 = vmul.f32 %v3015, %v1515
  %v3316 = vmul.f32 %v3015, %v1750
  %v3317 = vmul.f32 %v3019, %v1516
  %v3318 = vmul.f32 %v3019, %v1751
  %v3319 = vmul.f32 %v3023, %v1517
  %v3320 = vmul.f32 %v3023, %v1752
  %v3321 = vmul.f32 %v3027, %v1518
  %v3322 = vmul.f32 %v3027, %v1753
  %v3323 = vmul.f32 %v3031, %v1519
  %v3324 = vmul.f32 %v3031, %v1754
  %v3325 = vmul.f32 %v3035, %v1520
  %v3326 = vmul.f32 %v3035, %v1755
  %v3327 = vmul.f32 %v3039, %v1521
  %v3328 = vmul.f32 %v3039, %v1756
  %v3329 = vmul.f32 %v3043, %v1522
  %v3330 = vmul.f32 %v3043, %v1757
  %v3331 = vmul.f32 %v3047, %v1523
  %v3332 = vmul.f32 %v3047, %v1758
  %v3333 = vmul.f32 %v3051, %v1524
  %v3334 = vmul.f32 %v3051, %v1759
  %v3335 = vmul.f32 %v3055, %v1525
  %v3336 = vmul.f32 %v3055, %v1760
  %v3337 = vmul.f32 %v3059, %v1526
  %v3338 = vmul.f32 %v3059, %v1761
  %v3339 = vmul.f32 %v3063, %v1527
  %v3340 = vmul.f32 %v3063, %v1762
  %v3341 = vmul.f32 %v3067, %v1528
  %v3342 = vmul.f32 %v3067, %v1763
  %v3343 = vmul.f32 %v3071, %v1529
  %v3344 = vmul.f32 %v3071, %v1764
  %v3345 = vmul.f32 %v3075, %v1530
  %v3346 = vmul.f32 %v3075, %v1765
  %v3347 = vmul.f32 %v3079, %v1531
  %v3348 = vmul.f32 %v3079, %v1766
  %v3349 = vmul.f32 %v3083, %v1532
  %v3350 = vmul.f32 %v3083, %v1767
  %v3351 = vmul.f32 %v3087, %v1533
  %v3352 = vmul.f32 %v3087, %v1768
  %v3353 = vmul.f32 %v3091, %v1534
  %v3354 = vmul.f32 %v3091, %v1769
  %v3355 = vmul.f32 %v3095, %v1535
  %v3356 = vmul.f32 %v3095, %v1770
  %v3357 = vmul.f32 %v3099, %v1536
  %v3358 = vmul.f32 %v3099, %v1771
  %v3359 = vmul.f32 %v3103, %v1537
  %v3360 = vmul.f32 %v3103, %v1772
  %v3361 = vmul.f32 %v3107, %v1538
  %v3362 = vmul.f32 %v3107, %v1773
  %v3363 = vmul.f32 %v3111, %v1539
  %v3364 = vmul.f32 %v3111, %v1774
  %v3365 = vmul.f32 %v3115, %v1540
  %v3366 = vmul.f32 %v3115, %v1775
  %v3367 = vmul.f32 %v3119, %v1541
  %v3368 = vmul.f32 %v3119, %v1776
  %v3369 = vmul.f32 %v3123, %v1542
  %v3370 = vmul.f32 %v3123, %v1777
  %v3371 = vmul.f32 %v3127, %v1543
  %v3372 = vmul.f32 %v3127, %v1778
  %v3373 = vmul.f32 %v3131, %v1544
  %v3374 = vmul.f32 %v3131, %v1779
  %v3375 = vmul.f32 %v3135, %v1545
  %v3376 = vmul.f32 %v3135, %v1780
  %v3377 = vmul.f32 %v3139, %v1546
  %v3378 = vmul.f32 %v3139, %v1781
  %v3379 = vmul.f32 %v3143, %v1547
  %v3380 = vmul.f32 %v3143, %v1782
  %v3381 = vmul.f32 %v3147, %v1548
  %v3382 = vmul.f32 %v3147, %v1783
  %v3383 = vmul.f32 %v3151, %v1549
  %v3384 = vmul.f32 %v3151, %v1784
  %v3385 = vmul.f32 %v3155, %v1550
  %v3386 = vmul.f32 %v3155, %v1785
  %v3387 = vmul.f32 %v3159, %v1551
  %v3388 = vmul.f32 %v3159, %v1786
  %v3389 = vmul.f32 %v3163, %v1552
  %v3390 = vmul.f32 %v3163, %v1787
  %v3391 = vmul.f32 %v3167, %v1553
  %v3392 = vmul.f32 %v3167, %v1788
  %v3393 = vmul.f32 %v3171, %v1554
  %v3394 = vmul.f32 %v3171, %v1789
  %v3395 = vmul.f32 %v3175, %v1555
  %v3396 = vmul.f32 %v3175, %v1790
  %v3397 = vmul.f32 %v3179, %v1556
  %v3398 = vmul.f32 %v3179, %v1791
  %v3399 = vmul.f32 %v3183, %v1557
  %v3400 = vmul.f32 %v3183, %v1792
  %v3401 = vmul.f32 %v3187, %v1558
  %v3402 = vmul.f32 %v3187, %v1793
  %v3403 = vmul.f32 %v3191, %v1559
  %v3404 = vmul.f32 %v3191, %v1794
  %v3405 = vmul.f32 %v3195, %v1560
  %v3406 = vmul.f32 %v3195, %v1795
  %v3407 = vmul.f32 %v3199, %v1561
  %v3408 = vmul.f32 %v3199, %v1796
  %v3409 = vmul.f32 %v3203, %v1562
  %v3410 = vmul.f32 %v3203, %v1797
  %v3411 = vmul.f32 %v3207, %v1563
  %v3412 = vmul.f32 %v3207, %v1798
  %v3413 = vmul.f32 %v3211, %v1564
  %v3414 = vmul.f32 %v3211, %v1799
  %v3415 = vmul.f32 %v3215, %v1565
  %v3416 = vmul.f32 %v3215, %v1800
  %v3417 = vmul.f32 %v3219, %v1566
  %v3418 = vmul.f32 %v3219, %v1801
  %v3419 = vmul.f32 %v3223, %v1567
  %v3420 = vmul.f32 %v3223, %v1802
  %v3421 = vmul.f32 %v3227, %v1568
  %v3422 = vmul.f32 %v3227, %v1803
  %v3423 = vmul.f32 %v3231, %v1569
  %v3424 = vmul.f32 %v3231, %v1804
  %v3425 = vmul.f32 %v3235, %v1570
  %v3426 = vmul.f32 %v3235, %v1805
  %v3427 = vmul.f32 %v3239, %v1571
  %v3428 = vmul.f32 %v3239, %v1806
  %v3429 = vmul.f32 %v3243, %v1572
  %v3430 = vmul.f32 %v3243, %v1807
  %v3431 = vmul.f32 %v3247, %v1573
  %v3432 = vmul.f32 %v3247, %v1808
  %v3433 = vmul.f32 %v3251, %v1574
  %v3434 = vmul.f32 %v3251, %v1809
  %v3435 = vmul.f32 %v3255, %v1575
  %v3436 = vmul.f32 %v3255, %v1810
  %v3437 = vmul.f32 %v3259, %v1576
  %v3438 = vmul.f32 %v3259, %v1811
  %v3439 = vmul.f32 %v3263, %v1577
  %v3440 = vmul.f32 %v3263, %v1812
  %v3441 = vmul.f32 %v3267, %v1578
  %v3442 = vmul.f32 %v3267, %v1813
  %v3443 = vmul.f32 %v3271, %v1579
  %v3444 = vmul.f32 %v3271, %v1814
  %v3445 = vmul.f32 %v3275, %v1580
  %v3446 = vmul.f32 %v3275, %v1815
  %v3447 = vmul.f32 %v3279, %v1581
  %v3448 = vmul.f32 %v3279, %v1816
  %v3449 = vmul.f32 %v3283, %v1582
  %v3450 = vmul.f32 %v3283, %v1817
  %v3451 = vmul.f32 %v3287, %v1583
  %v3452 = vmul.f32 %v3287, %v1818
  %v3453 = vmul.f32 %v3291, %v1584
  %v3454 = vmul.f32 %v3291, %v1819
  %v3455 = vmul.f32 %v3295, %v1585
  %v3456 = vmul.f32 %v3295, %v1820
  %v3457 = vmul.f32 %v3299, %v1586
  %v3458 = vmul.f32 %v3299, %v1821
  %v3459 = vmul.f32 %v3303, %v1587
  %v3460 = vmul.f32 %v3303, %v1822
  %v3461 = vadd.f32 %v2837, %v3305
  %v3462 = vadd.f32 %v2838, %v3306
  %v3463 = vadd.f32 %v2839, %v3307
  %v3464 = vadd.f32 %v2840, %v3308
  %v3465 = vadd.f32 %v2841, %v3309
  %v3466 = vadd.f32 %v2842, %v3310
  %v3467 = vadd.f32 %v2843, %v3311
  %v3468 = vadd.f32 %v2844, %v3312
  %v3469 = vadd.f32 %v2845, %v3313
  %v3470 = vadd.f32 %v2846, %v3314
  %v3471 = vadd.f32 %v2847, %v3315
  %v3472 = vadd.f32 %v2848, %v3316
  %v3473 = vadd.f32 %v2849, %v3317
  %v3474 = vadd.f32 %v2850, %v3318
  %v3475 = vadd.f32 %v2851, %v3319
  %v3476 = vadd.f32 %v2852, %v3320
  %v3477 = vadd.f32 %v2853, %v3321
  %v3478 = vadd.f32 %v2854, %v3322
  %v3479 = vadd.f32 %v2855, %v3323
  %v3480 = vadd.f32 %v2856, %v3324
  %v3481 = vadd.f32 %v2857, %v3325
  %v3482 = vadd.f32 %v2858, %v3326
  %v3483 = vadd.f32 %v2859, %v3327
  %v3484 = vadd.f32 %v2860, %v3328
  %v3485 = vadd.f32 %v2861, %v3329
  %v3486 = vadd.f32 %v2862, %v3330
  %v3487 = vadd.f32 %v2863, %v3331
  %v3488 = vadd.f32 %v2864, %v3332
  %v3489 = vadd.f32 %v2865, %v3333
  %v3490 = vadd.f32 %v2866, %v3334
  %v3491 = vadd.f32 %v2867, %v3335
  %v3492 = vadd.f32 %v2868, %v3336
  %v3493 = vadd.f32 %v2869, %v3337
  %v3494 = vadd.f32 %v2870, %v3338
  %v3495 = vadd.f32 %v2871, %v3339
  %v3496 = vadd.f32 %v2872, %v3340
  %v3497 = vadd.f32 %v2873, %v3341
  %v3498 = vadd.f32 %v2874, %v3342
  %v3499 = vadd.f32 %v2875, %v3343
  %v3500 = vadd.f32 %v2876, %v3344
  %v3501 = vadd.f32 %v2877, %v3345
  %v3502 = vadd.f32 %v2878, %v3346
  %v3503 = vadd.f32 %v2879, %v3347
  %v3504 = vadd.f32 %v2880, %v3348
  %v3505 = vadd.f32 %v2881, %v3349
  %v3506 = vadd.f32 %v2882, %v3350
  %v3507 = vadd.f32 %v2883, %v3351
  %v3508 = vadd.f32 %v2884, %v3352
  %v3509 = vadd.f32 %v2885, %v3353
  %v3510 = vadd.f32 %v2886, %v3354
  %v3511 = vadd.f32 %v2887, %v3355
  %v3512 = vadd.f32 %v2888, %v3356
  %v3513 = vadd.f32 %v2889, %v3357
  %v3514 = vadd.f32 %v2890, %v3358
  %v3515 = vadd.f32 %v2891, %v3359
  %v3516 = vadd.f32 %v2892, %v3360
  %v3517 = vadd.f32 %v2893, %v3361
  %v3518 = vadd.f32 %v2894, %v3362
  %v3519 = vadd.f32 %v2895, %v3363
  %v3520 = vadd.f32 %v2896, %v3364
  %v3521 = vadd.f32 %v2897, %v3365
  %v3522 = vadd.f32 %v2898, %v3366
  %v3523 = vadd.f32 %v2899, %v3367
  %v3524 = vadd.f32 %v2900, %v3368
  %v3525 = vadd.f32 %v2901, %v3369
  %v3526 = vadd.f32 %v2902, %v3370
  %v3527 = vadd.f32 %v2903, %v3371
  %v3528 = vadd.f32 %v2904, %v3372
  %v3529 = vadd.f32 %v2905, %v3373
  %v3530 = vadd.f32 %v2906, %v3374
  %v3531 = vadd.f32 %v2907, %v3375
  %v3532 = vadd.f32 %v2908, %v3376
  %v3533 = vadd.f32 %v2909, %v3377
  %v3534 = vadd.f32 %v2910, %v3378
  %v3535 = vadd.f32 %v2911, %v3379
  %v3536 = vadd.f32 %v2912, %v3380
  %v3537 = vadd.f32 %v2913, %v3381
  %v3538 = vadd.f32 %v2914, %v3382
  %v3539 = vadd.f32 %v2915, %v3383
  %v3540 = vadd.f32 %v2916, %v3384
  %v3541 = vadd.f32 %v2917, %v3385
  %v3542 = vadd.f32 %v2918, %v3386
  %v3543 = vadd.f32 %v2919, %v3387
  %v3544 = vadd.f32 %v2920, %v3388
  %v3545 = vadd.f32 %v2921, %v3389
  %v3546 = vadd.f32 %v2922, %v3390
  %v3547 = vadd.f32 %v2923, %v3391
  %v3548 = vadd.f32 %v2924, %v3392
  %v3549 = vadd.f32 %v2925, %v3393
  %v3550 = vadd.f32 %v2926, %v3394
  %v3551 = vadd.f32 %v2927, %v3395
  %v3552 = vadd.f32 %v2928, %v3396
  %v3553 = vadd.f32 %v2929, %v3397
  %v3554 = vadd.f32 %v2930, %v3398
  %v3555 = vadd.f32 %v2931, %v3399
  %v3556 = vadd.f32 %v2932, %v3400
  %v3557 = vadd.f32 %v2933, %v3401
  %v3558 = vadd.f32 %v2934, %v3402
  %v3559 = vadd.f32 %v2935, %v3403
  %v3560 = vadd.f32 %v2936, %v3404
  %v3561 = vadd.f32 %v2937, %v3405
  %v3562 = vadd.f32 %v2938, %v3406
  %v3563 = vadd.f32 %v2939, %v3407
  %v3564 = vadd.f32 %v2940, %v3408
  %v3565 = vadd.f32 %v2941, %v3409
  %v3566 = vadd.f32 %v2942, %v3410
  %v3567 = vadd.f32 %v2943, %v3411
  %v3568 = vadd.f32 %v2944, %v3412
  %v3569 = vadd.f32 %v2945, %v3413
  %v3570 = vadd.f32 %v2946, %v3414
  %v3571 = vadd.f32 %v2947, %v3415
  %v3572 = vadd.f32 %v2948, %v3416
  %v3573 = vadd.f32 %v2949, %v3417
  %v3574 = vadd.f32 %v2950, %v3418
  %v3575 = vadd.f32 %v2951, %v3419
  %v3576 = vadd.f32 %v2952, %v3420
  %v3577 = vadd.f32 %v2953, %v3421
  %v3578 = vadd.f32 %v2954, %v3422
  %v3579 = vadd.f32 %v2955, %v3423
  %v3580 = vadd.f32 %v2956, %v3424
  %v3581 = vadd.f32 %v2957, %v3425
  %v3582 = vadd.f32 %v2958, %v3426
  %v3583 = vadd.f32 %v2959, %v3427
  %v3584 = vadd.f32 %v2960, %v3428
  %v3585 = vadd.f32 %v2961, %v3429
  %v3586 = vadd.f32 %v2962, %v3430
  %v3587 = vadd.f32 %v2963, %v3431
  %v3588 = vadd.f32 %v2964, %v3432
  %v3589 = vadd.f32 %v2965, %v3433
  %v3590 = vadd.f32 %v2966, %v3434
  %v3591 = vadd.f32 %v2967, %v3435
  %v3592 = vadd.f32 %v2968, %v3436
  %v3593 = vadd.f32 %v2969, %v3437
  %v3594 = vadd.f32 %v2970, %v3438
  %v3595 = vadd.f32 %v2971, %v3439
  %v3596 = vadd.f32 %v2972, %v3440
  %v3597 = vadd.f32 %v2973, %v3441
  %v3598 = vadd.f32 %v2974, %v3442
  %v3599 = vadd.f32 %v2975, %v3443
  %v3600 = vadd.f32 %v2976, %v3444
  %v3601 = vadd.f32 %v2977, %v3445
  %v3602 = vadd.f32 %v2978, %v3446
  %v3603 = vadd.f32 %v2979, %v3447
  %v3604 = vadd.f32 %v2980, %v3448
  %v3605 = vadd.f32 %v2981, %v3449
  %v3606 = vadd.f32 %v2982, %v3450
  %v3607 = vadd.f32 %v2983, %v3451
  %v3608 = vadd.f32 %v2984, %v3452
  %v3609 = vadd.f32 %v2985, %v3453
  %v3610 = vadd.f32 %v2986, %v3454
  %v3611 = vadd.f32 %v2987, %v3455
  %v3612 = vadd.f32 %v2988, %v3456
  %v3613 = vadd.f32 %v2989, %v3457
  %v3614 = vadd.f32 %v2990, %v3458
  %v3615 = vadd.f32 %v2991, %v3459
  %v3616 = vadd.f32 %v2992, %v3460
  %3617 = vset.pattern.permute.xlu0 1
  %3618 = vperm.xlu0 %3617, %v338
  %v3619 = vpop.permute.xlu0 %3618
  %3621 = vset.pattern.permute.xlu0 1
  %3622 = vperm.xlu0 %3621, %v339
  %v3623 = vpop.permute.xlu0 %3622
  %3625 = vset.pattern.permute.xlu0 1
  %3626 = vperm.xlu0 %3625, %v340
  %v3627 = vpop.permute.xlu0 %3626
  %3629 = vset.pattern.permute.xlu0 1
  %3630 = vperm.xlu0 %3629, %v341
  %v3631 = vpop.permute.xlu0 %3630
  %3633 = vset.pattern.permute.xlu0 1
  %3634 = vperm.xlu0 %3633, %v342
  %v3635 = vpop.permute.xlu0 %3634
  %3637 = vset.pattern.permute.xlu0 1
  %3638 = vperm.xlu0 %3637, %v343
  %v3639 = vpop.permute.xlu0 %3638
  %3641 = vset.pattern.permute.xlu0 1
  %3642 = vperm.xlu0 %3641, %v344
  %v3643 = vpop.permute.xlu0 %3642
  %3645 = vset.pattern.permute.xlu0 1
  %3646 = vperm.xlu0 %3645, %v345
  %v3647 = vpop.permute.xlu0 %3646
  %3649 = vset.pattern.permute.xlu0 1
  %3650 = vperm.xlu0 %3649, %v346
  %v3651 = vpop.permute.xlu0 %3650
  %3653 = vset.pattern.permute.xlu0 1
  %3654 = vperm.xlu0 %3653, %v347
  %v3655 = vpop.permute.xlu0 %3654
  %3657 = vset.pattern.permute.xlu0 1
  %3658 = vperm.xlu0 %3657, %v348
  %v3659 = vpop.permute.xlu0 %3658
  %3661 = vset.pattern.permute.xlu0 1
  %3662 = vperm.xlu0 %3661, %v349
  %v3663 = vpop.permute.xlu0 %3662
  %3665 = vset.pattern.permute.xlu0 1
  %3666 = vperm.xlu0 %3665, %v350
  %v3667 = vpop.permute.xlu0 %3666
  %3669 = vset.pattern.permute.xlu0 1
  %3670 = vperm.xlu0 %3669, %v351
  %v3671 = vpop.permute.xlu0 %3670
  %3673 = vset.pattern.permute.xlu0 1
  %3674 = vperm.xlu0 %3673, %v352
  %v3675 = vpop.permute.xlu0 %3674
  %3677 = vset.pattern.permute.xlu0 1
  %3678 = vperm.xlu0 %3677, %v353
  %v3679 = vpop.permute.xlu0 %3678
  %3681 = vset.pattern.permute.xlu0 1
  %3682 = vperm.xlu0 %3681, %v354
  %v3683 = vpop.permute.xlu0 %3682
  %3685 = vset.pattern.permute.xlu0 1
  %3686 = vperm.xlu0 %3685, %v355
  %v3687 = vpop.permute.xlu0 %3686
  %3689 = vset.pattern.permute.xlu0 1
  %3690 = vperm.xlu0 %3689, %v356
  %v3691 = vpop.permute.xlu0 %3690
  %3693 = vset.pattern.permute.xlu0 1
  %3694 = vperm.xlu0 %3693, %v357
  %v3695 = vpop.permute.xlu0 %3694
  %3697 = vset.pattern.permute.xlu0 1
  %3698 = vperm.xlu0 %3697, %v358
  %v3699 = vpop.permute.xlu0 %3698
  %3701 = vset.pattern.permute.xlu0 1
  %3702 = vperm.xlu0 %3701, %v359
  %v3703 = vpop.permute.xlu0 %3702
  %3705 = vset.pattern.permute.xlu0 1
  %3706 = vperm.xlu0 %3705, %v360
  %v3707 = vpop.permute.xlu0 %3706
  %3709 = vset.pattern.permute.xlu0 1
  %3710 = vperm.xlu0 %3709, %v361
  %v3711 = vpop.permute.xlu0 %3710
  %3713 = vset.pattern.permute.xlu0 1
  %3714 = vperm.xlu0 %3713, %v362
  %v3715 = vpop.permute.xlu0 %3714
  %3717 = vset.pattern.permute.xlu0 1
  %3718 = vperm.xlu0 %3717, %v363
  %v3719 = vpop.permute.xlu0 %3718
  %3721 = vset.pattern.permute.xlu0 1
  %3722 = vperm.xlu0 %3721, %v364
  %v3723 = vpop.permute.xlu0 %3722
  %3725 = vset.pattern.permute.xlu0 1
  %3726 = vperm.xlu0 %3725, %v365
  %v3727 = vpop.permute.xlu0 %3726
  %3729 = vset.pattern.permute.xlu0 1
  %3730 = vperm.xlu0 %3729, %v366
  %v3731 = vpop.permute.xlu0 %3730
  %3733 = vset.pattern.permute.xlu0 1
  %3734 = vperm.xlu0 %3733, %v367
  %v3735 = vpop.permute.xlu0 %3734
  %3737 = vset.pattern.permute.xlu0 1
  %3738 = vperm.xlu0 %3737, %v368
  %v3739 = vpop.permute.xlu0 %3738
  %3741 = vset.pattern.permute.xlu0 1
  %3742 = vperm.xlu0 %3741, %v369
  %v3743 = vpop.permute.xlu0 %3742
  %3745 = vset.pattern.permute.xlu0 1
  %3746 = vperm.xlu0 %3745, %v370
  %v3747 = vpop.permute.xlu0 %3746
  %3749 = vset.pattern.permute.xlu0 1
  %3750 = vperm.xlu0 %3749, %v371
  %v3751 = vpop.permute.xlu0 %3750
  %3753 = vset.pattern.permute.xlu0 1
  %3754 = vperm.xlu0 %3753, %v372
  %v3755 = vpop.permute.xlu0 %3754
  %3757 = vset.pattern.permute.xlu0 1
  %3758 = vperm.xlu0 %3757, %v373
  %v3759 = vpop.permute.xlu0 %3758
  %3761 = vset.pattern.permute.xlu0 1
  %3762 = vperm.xlu0 %3761, %v374
  %v3763 = vpop.permute.xlu0 %3762
  %3765 = vset.pattern.permute.xlu0 1
  %3766 = vperm.xlu0 %3765, %v375
  %v3767 = vpop.permute.xlu0 %3766
  %3769 = vset.pattern.permute.xlu0 1
  %3770 = vperm.xlu0 %3769, %v376
  %v3771 = vpop.permute.xlu0 %3770
  %3773 = vset.pattern.permute.xlu0 1
  %3774 = vperm.xlu0 %3773, %v377
  %v3775 = vpop.permute.xlu0 %3774
  %3777 = vset.pattern.permute.xlu0 1
  %3778 = vperm.xlu0 %3777, %v378
  %v3779 = vpop.permute.xlu0 %3778
  %3781 = vset.pattern.permute.xlu0 1
  %3782 = vperm.xlu0 %3781, %v379
  %v3783 = vpop.permute.xlu0 %3782
  %3785 = vset.pattern.permute.xlu0 1
  %3786 = vperm.xlu0 %3785, %v380
  %v3787 = vpop.permute.xlu0 %3786
  %3789 = vset.pattern.permute.xlu0 1
  %3790 = vperm.xlu0 %3789, %v381
  %v3791 = vpop.permute.xlu0 %3790
  %3793 = vset.pattern.permute.xlu0 1
  %3794 = vperm.xlu0 %3793, %v382
  %v3795 = vpop.permute.xlu0 %3794
  %3797 = vset.pattern.permute.xlu0 1
  %3798 = vperm.xlu0 %3797, %v383
  %v3799 = vpop.permute.xlu0 %3798
  %3801 = vset.pattern.permute.xlu0 1
  %3802 = vperm.xlu0 %3801, %v384
  %v3803 = vpop.permute.xlu0 %3802
  %3805 = vset.pattern.permute.xlu0 1
  %3806 = vperm.xlu0 %3805, %v385
  %v3807 = vpop.permute.xlu0 %3806
  %3809 = vset.pattern.permute.xlu0 1
  %3810 = vperm.xlu0 %3809, %v386
  %v3811 = vpop.permute.xlu0 %3810
  %3813 = vset.pattern.permute.xlu0 1
  %3814 = vperm.xlu0 %3813, %v387
  %v3815 = vpop.permute.xlu0 %3814
  %3817 = vset.pattern.permute.xlu0 1
  %3818 = vperm.xlu0 %3817, %v388
  %v3819 = vpop.permute.xlu0 %3818
  %3821 = vset.pattern.permute.xlu0 1
  %3822 = vperm.xlu0 %3821, %v389
  %v3823 = vpop.permute.xlu0 %3822
  %3825 = vset.pattern.permute.xlu0 1
  %3826 = vperm.xlu0 %3825, %v390
  %v3827 = vpop.permute.xlu0 %3826
  %3829 = vset.pattern.permute.xlu0 1
  %3830 = vperm.xlu0 %3829, %v391
  %v3831 = vpop.permute.xlu0 %3830
  %3833 = vset.pattern.permute.xlu0 1
  %3834 = vperm.xlu0 %3833, %v392
  %v3835 = vpop.permute.xlu0 %3834
  %3837 = vset.pattern.permute.xlu0 1
  %3838 = vperm.xlu0 %3837, %v393
  %v3839 = vpop.permute.xlu0 %3838
  %3841 = vset.pattern.permute.xlu0 1
  %3842 = vperm.xlu0 %3841, %v394
  %v3843 = vpop.permute.xlu0 %3842
  %3845 = vset.pattern.permute.xlu0 1
  %3846 = vperm.xlu0 %3845, %v395
  %v3847 = vpop.permute.xlu0 %3846
  %3849 = vset.pattern.permute.xlu0 1
  %3850 = vperm.xlu0 %3849, %v396
  %v3851 = vpop.permute.xlu0 %3850
  %3853 = vset.pattern.permute.xlu0 1
  %3854 = vperm.xlu0 %3853, %v397
  %v3855 = vpop.permute.xlu0 %3854
  %3857 = vset.pattern.permute.xlu0 1
  %3858 = vperm.xlu0 %3857, %v398
  %v3859 = vpop.permute.xlu0 %3858
  %3861 = vset.pattern.permute.xlu0 1
  %3862 = vperm.xlu0 %3861, %v399
  %v3863 = vpop.permute.xlu0 %3862
  %3865 = vset.pattern.permute.xlu0 1
  %3866 = vperm.xlu0 %3865, %v400
  %v3867 = vpop.permute.xlu0 %3866
  %3869 = vset.pattern.permute.xlu0 1
  %3870 = vperm.xlu0 %3869, %v401
  %v3871 = vpop.permute.xlu0 %3870
  %3873 = vset.pattern.permute.xlu0 1
  %3874 = vperm.xlu0 %3873, %v402
  %v3875 = vpop.permute.xlu0 %3874
  %3877 = vset.pattern.permute.xlu0 1
  %3878 = vperm.xlu0 %3877, %v403
  %v3879 = vpop.permute.xlu0 %3878
  %3881 = vset.pattern.permute.xlu0 1
  %3882 = vperm.xlu0 %3881, %v404
  %v3883 = vpop.permute.xlu0 %3882
  %3885 = vset.pattern.permute.xlu0 1
  %3886 = vperm.xlu0 %3885, %v405
  %v3887 = vpop.permute.xlu0 %3886
  %3889 = vset.pattern.permute.xlu0 1
  %3890 = vperm.xlu0 %3889, %v406
  %v3891 = vpop.permute.xlu0 %3890
  %3893 = vset.pattern.permute.xlu0 1
  %3894 = vperm.xlu0 %3893, %v407
  %v3895 = vpop.permute.xlu0 %3894
  %3897 = vset.pattern.permute.xlu0 1
  %3898 = vperm.xlu0 %3897, %v408
  %v3899 = vpop.permute.xlu0 %3898
  %3901 = vset.pattern.permute.xlu0 1
  %3902 = vperm.xlu0 %3901, %v409
  %v3903 = vpop.permute.xlu0 %3902
  %3905 = vset.pattern.permute.xlu0 1
  %3906 = vperm.xlu0 %3905, %v410
  %v3907 = vpop.permute.xlu0 %3906
  %3909 = vset.pattern.permute.xlu0 1
  %3910 = vperm.xlu0 %3909, %v411
  %v3911 = vpop.permute.xlu0 %3910
  %3913 = vset.pattern.permute.xlu0 1
  %3914 = vperm.xlu0 %3913, %v412
  %v3915 = vpop.permute.xlu0 %3914
  %3917 = vset.pattern.permute.xlu0 1
  %3918 = vperm.xlu0 %3917, %v413
  %v3919 = vpop.permute.xlu0 %3918
  %3921 = vset.pattern.permute.xlu0 1
  %3922 = vperm.xlu0 %3921, %v414
  %v3923 = vpop.permute.xlu0 %3922
  %3925 = vset.pattern.permute.xlu0 1
  %3926 = vperm.xlu0 %3925, %v415
  %v3927 = vpop.permute.xlu0 %3926
  %v3929 = vmul.f32 %v3619, %v1119
  %v3930 = vmul.f32 %v3619, %v885
  %v3931 = vmul.f32 %v3623, %v1120
  %v3932 = vmul.f32 %v3623, %v886
  %v3933 = vmul.f32 %v3627, %v1121
  %v3934 = vmul.f32 %v3627, %v887
  %v3935 = vmul.f32 %v3631, %v1122
  %v3936 = vmul.f32 %v3631, %v888
  %v3937 = vmul.f32 %v3635, %v1123
  %v3938 = vmul.f32 %v3635, %v889
  %v3939 = vmul.f32 %v3639, %v1124
  %v3940 = vmul.f32 %v3639, %v890
  %v3941 = vmul.f32 %v3643, %v1125
  %v3942 = vmul.f32 %v3643, %v891
  %v3943 = vmul.f32 %v3647, %v1126
  %v3944 = vmul.f32 %v3647, %v892
  %v3945 = vmul.f32 %v3651, %v1127
  %v3946 = vmul.f32 %v3651, %v893
  %v3947 = vmul.f32 %v3655, %v1128
  %v3948 = vmul.f32 %v3655, %v894
  %v3949 = vmul.f32 %v3659, %v1129
  %v3950 = vmul.f32 %v3659, %v895
  %v3951 = vmul.f32 %v3663, %v1130
  %v3952 = vmul.f32 %v3663, %v896
  %v3953 = vmul.f32 %v3667, %v1131
  %v3954 = vmul.f32 %v3667, %v897
  %v3955 = vmul.f32 %v3671, %v1132
  %v3956 = vmul.f32 %v3671, %v898
  %v3957 = vmul.f32 %v3675, %v1133
  %v3958 = vmul.f32 %v3675, %v899
  %v3959 = vmul.f32 %v3679, %v1134
  %v3960 = vmul.f32 %v3679, %v900
  %v3961 = vmul.f32 %v3683, %v1135
  %v3962 = vmul.f32 %v3683, %v901
  %v3963 = vmul.f32 %v3687, %v1136
  %v3964 = vmul.f32 %v3687, %v902
  %v3965 = vmul.f32 %v3691, %v1137
  %v3966 = vmul.f32 %v3691, %v903
  %v3967 = vmul.f32 %v3695, %v1138
  %v3968 = vmul.f32 %v3695, %v904
  %v3969 = vmul.f32 %v3699, %v1139
  %v3970 = vmul.f32 %v3699, %v905
  %v3971 = vmul.f32 %v3703, %v1140
  %v3972 = vmul.f32 %v3703, %v906
  %v3973 = vmul.f32 %v3707, %v1141
  %v3974 = vmul.f32 %v3707, %v907
  %v3975 = vmul.f32 %v3711, %v1142
  %v3976 = vmul.f32 %v3711, %v908
  %v3977 = vmul.f32 %v3715, %v1143
  %v3978 = vmul.f32 %v3715, %v909
  %v3979 = vmul.f32 %v3719, %v1144
  %v3980 = vmul.f32 %v3719, %v910
  %v3981 = vmul.f32 %v3723, %v1145
  %v3982 = vmul.f32 %v3723, %v911
  %v3983 = vmul.f32 %v3727, %v1146
  %v3984 = vmul.f32 %v3727, %v912
  %v3985 = vmul.f32 %v3731, %v1147
  %v3986 = vmul.f32 %v3731, %v913
  %v3987 = vmul.f32 %v3735, %v1148
  %v3988 = vmul.f32 %v3735, %v914
  %v3989 = vmul.f32 %v3739, %v1149
  %v3990 = vmul.f32 %v3739, %v915
  %v3991 = vmul.f32 %v3743, %v1150
  %v3992 = vmul.f32 %v3743, %v916
  %v3993 = vmul.f32 %v3747, %v1151
  %v3994 = vmul.f32 %v3747, %v917
  %v3995 = vmul.f32 %v3751, %v1152
  %v3996 = vmul.f32 %v3751, %v918
  %v3997 = vmul.f32 %v3755, %v1153
  %v3998 = vmul.f32 %v3755, %v919
  %v3999 = vmul.f32 %v3759, %v1154
  %v4000 = vmul.f32 %v3759, %v920
  %v4001 = vmul.f32 %v3763, %v1155
  %v4002 = vmul.f32 %v3763, %v921
  %v4003 = vmul.f32 %v3767, %v1156
  %v4004 = vmul.f32 %v3767, %v922
  %v4005 = vmul.f32 %v3771, %v1157
  %v4006 = vmul.f32 %v3771, %v923
  %v4007 = vmul.f32 %v3775, %v1158
  %v4008 = vmul.f32 %v3775, %v924
  %v4009 = vmul.f32 %v3779, %v1159
  %v4010 = vmul.f32 %v3779, %v925
  %v4011 = vmul.f32 %v3783, %v1160
  %v4012 = vmul.f32 %v3783, %v926
  %v4013 = vmul.f32 %v3787, %v1161
  %v4014 = vmul.f32 %v3787, %v927
  %v4015 = vmul.f32 %v3791, %v1162
  %v4016 = vmul.f32 %v3791, %v928
  %v4017 = vmul.f32 %v3795, %v1163
  %v4018 = vmul.f32 %v3795, %v929
  %v4019 = vmul.f32 %v3799, %v1164
  %v4020 = vmul.f32 %v3799, %v930
  %v4021 = vmul.f32 %v3803, %v1165
  %v4022 = vmul.f32 %v3803, %v931
  %v4023 = vmul.f32 %v3807, %v1166
  %v4024 = vmul.f32 %v3807, %v932
  %v4025 = vmul.f32 %v3811, %v1167
  %v4026 = vmul.f32 %v3811, %v933
  %v4027 = vmul.f32 %v3815, %v1168
  %v4028 = vmul.f32 %v3815, %v934
  %v4029 = vmul.f32 %v3819, %v1169
  %v4030 = vmul.f32 %v3819, %v935
  %v4031 = vmul.f32 %v3823, %v1170
  %v4032 = vmul.f32 %v3823, %v936
  %v4033 = vmul.f32 %v3827, %v1171
  %v4034 = vmul.f32 %v3827, %v937
  %v4035 = vmul.f32 %v3831, %v1172
  %v4036 = vmul.f32 %v3831, %v938
  %v4037 = vmul.f32 %v3835, %v1173
  %v4038 = vmul.f32 %v3835, %v939
  %v4039 = vmul.f32 %v3839, %v1174
  %v4040 = vmul.f32 %v3839, %v940
  %v4041 = vmul.f32 %v3843, %v1175
  %v4042 = vmul.f32 %v3843, %v941
  %v4043 = vmul.f32 %v3847, %v1176
  %v4044 = vmul.f32 %v3847, %v942
  %v4045 = vmul.f32 %v3851, %v1177
  %v4046 = vmul.f32 %v3851, %v943
  %v4047 = vmul.f32 %v3855, %v1178
  %v4048 = vmul.f32 %v3855, %v944
  %v4049 = vmul.f32 %v3859, %v1179
  %v4050 = vmul.f32 %v3859, %v945
  %v4051 = vmul.f32 %v3863, %v1180
  %v4052 = vmul.f32 %v3863, %v946
  %v4053 = vmul.f32 %v3867, %v1181
  %v4054 = vmul.f32 %v3867, %v947
  %v4055 = vmul.f32 %v3871, %v1182
  %v4056 = vmul.f32 %v3871, %v948
  %v4057 = vmul.f32 %v3875, %v1183
  %v4058 = vmul.f32 %v3875, %v949
  %v4059 = vmul.f32 %v3879, %v1184
  %v4060 = vmul.f32 %v3879, %v950
  %v4061 = vmul.f32 %v3883, %v1185
  %v4062 = vmul.f32 %v3883, %v951
  %v4063 = vmul.f32 %v3887, %v1186
  %v4064 = vmul.f32 %v3887, %v952
  %v4065 = vmul.f32 %v3891, %v1187
  %v4066 = vmul.f32 %v3891, %v953
  %v4067 = vmul.f32 %v3895, %v1188
  %v4068 = vmul.f32 %v3895, %v954
  %v4069 = vmul.f32 %v3899, %v1189
  %v4070 = vmul.f32 %v3899, %v955
  %v4071 = vmul.f32 %v3903, %v1190
  %v4072 = vmul.f32 %v3903, %v956
  %v4073 = vmul.f32 %v3907, %v1191
  %v4074 = vmul.f32 %v3907, %v957
  %v4075 = vmul.f32 %v3911, %v1192
  %v4076 = vmul.f32 %v3911, %v958
  %v4077 = vmul.f32 %v3915, %v1193
  %v4078 = vmul.f32 %v3915, %v959
  %v4079 = vmul.f32 %v3919, %v1194
  %v4080 = vmul.f32 %v3919, %v960
  %v4081 = vmul.f32 %v3923, %v1195
  %v4082 = vmul.f32 %v3923, %v961
  %v4083 = vmul.f32 %v3927, %v1196
  %v4084 = vmul.f32 %v3927, %v962
  %4085 = vset.pattern.permute.xlu0 4
  %4086 = vperm.xlu0 %4085, %v338
  %v4087 = vpop.permute.xlu0 %4086
  %4089 = vset.pattern.permute.xlu0 4
  %4090 = vperm.xlu0 %4089, %v339
  %v4091 = vpop.permute.xlu0 %4090
  %4093 = vset.pattern.permute.xlu0 4
  %4094 = vperm.xlu0 %4093, %v340
  %v4095 = vpop.permute.xlu0 %4094
  %4097 = vset.pattern.permute.xlu0 4
  %4098 = vperm.xlu0 %4097, %v341
  %v4099 = vpop.permute.xlu0 %4098
  %4101 = vset.pattern.permute.xlu0 4
  %4102 = vperm.xlu0 %4101, %v342
  %v4103 = vpop.permute.xlu0 %4102
  %4105 = vset.pattern.permute.xlu0 4
  %4106 = vperm.xlu0 %4105, %v343
  %v4107 = vpop.permute.xlu0 %4106
  %4109 = vset.pattern.permute.xlu0 4
  %4110 = vperm.xlu0 %4109, %v344
  %v4111 = vpop.permute.xlu0 %4110
  %4113 = vset.pattern.permute.xlu0 4
  %4114 = vperm.xlu0 %4113, %v345
  %v4115 = vpop.permute.xlu0 %4114
  %4117 = vset.pattern.permute.xlu0 4
  %4118 = vperm.xlu0 %4117, %v346
  %v4119 = vpop.permute.xlu0 %4118
  %4121 = vset.pattern.permute.xlu0 4
  %4122 = vperm.xlu0 %4121, %v347
  %v4123 = vpop.permute.xlu0 %4122
  %4125 = vset.pattern.permute.xlu0 4
  %4126 = vperm.xlu0 %4125, %v348
  %v4127 = vpop.permute.xlu0 %4126
  %4129 = vset.pattern.permute.xlu0 4
  %4130 = vperm.xlu0 %4129, %v349
  %v4131 = vpop.permute.xlu0 %4130
  %4133 = vset.pattern.permute.xlu0 4
  %4134 = vperm.xlu0 %4133, %v350
  %v4135 = vpop.permute.xlu0 %4134
  %4137 = vset.pattern.permute.xlu0 4
  %4138 = vperm.xlu0 %4137, %v351
  %v4139 = vpop.permute.xlu0 %4138
  %4141 = vset.pattern.permute.xlu0 4
  %4142 = vperm.xlu0 %4141, %v352
  %v4143 = vpop.permute.xlu0 %4142
  %4145 = vset.pattern.permute.xlu0 4
  %4146 = vperm.xlu0 %4145, %v353
  %v4147 = vpop.permute.xlu0 %4146
  %4149 = vset.pattern.permute.xlu0 4
  %4150 = vperm.xlu0 %4149, %v354
  %v4151 = vpop.permute.xlu0 %4150
  %4153 = vset.pattern.permute.xlu0 4
  %4154 = vperm.xlu0 %4153, %v355
  %v4155 = vpop.permute.xlu0 %4154
  %4157 = vset.pattern.permute.xlu0 4
  %4158 = vperm.xlu0 %4157, %v356
  %v4159 = vpop.permute.xlu0 %4158
  %4161 = vset.pattern.permute.xlu0 4
  %4162 = vperm.xlu0 %4161, %v357
  %v4163 = vpop.permute.xlu0 %4162
  %4165 = vset.pattern.permute.xlu0 4
  %4166 = vperm.xlu0 %4165, %v358
  %v4167 = vpop.permute.xlu0 %4166
  %4169 = vset.pattern.permute.xlu0 4
  %4170 = vperm.xlu0 %4169, %v359
  %v4171 = vpop.permute.xlu0 %4170
  %4173 = vset.pattern.permute.xlu0 4
  %4174 = vperm.xlu0 %4173, %v360
  %v4175 = vpop.permute.xlu0 %4174
  %4177 = vset.pattern.permute.xlu0 4
  %4178 = vperm.xlu0 %4177, %v361
  %v4179 = vpop.permute.xlu0 %4178
  %4181 = vset.pattern.permute.xlu0 4
  %4182 = vperm.xlu0 %4181, %v362
  %v4183 = vpop.permute.xlu0 %4182
  %4185 = vset.pattern.permute.xlu0 4
  %4186 = vperm.xlu0 %4185, %v363
  %v4187 = vpop.permute.xlu0 %4186
  %4189 = vset.pattern.permute.xlu0 4
  %4190 = vperm.xlu0 %4189, %v364
  %v4191 = vpop.permute.xlu0 %4190
  %4193 = vset.pattern.permute.xlu0 4
  %4194 = vperm.xlu0 %4193, %v365
  %v4195 = vpop.permute.xlu0 %4194
  %4197 = vset.pattern.permute.xlu0 4
  %4198 = vperm.xlu0 %4197, %v366
  %v4199 = vpop.permute.xlu0 %4198
  %4201 = vset.pattern.permute.xlu0 4
  %4202 = vperm.xlu0 %4201, %v367
  %v4203 = vpop.permute.xlu0 %4202
  %4205 = vset.pattern.permute.xlu0 4
  %4206 = vperm.xlu0 %4205, %v368
  %v4207 = vpop.permute.xlu0 %4206
  %4209 = vset.pattern.permute.xlu0 4
  %4210 = vperm.xlu0 %4209, %v369
  %v4211 = vpop.permute.xlu0 %4210
  %4213 = vset.pattern.permute.xlu0 4
  %4214 = vperm.xlu0 %4213, %v370
  %v4215 = vpop.permute.xlu0 %4214
  %4217 = vset.pattern.permute.xlu0 4
  %4218 = vperm.xlu0 %4217, %v371
  %v4219 = vpop.permute.xlu0 %4218
  %4221 = vset.pattern.permute.xlu0 4
  %4222 = vperm.xlu0 %4221, %v372
  %v4223 = vpop.permute.xlu0 %4222
  %4225 = vset.pattern.permute.xlu0 4
  %4226 = vperm.xlu0 %4225, %v373
  %v4227 = vpop.permute.xlu0 %4226
  %4229 = vset.pattern.permute.xlu0 4
  %4230 = vperm.xlu0 %4229, %v374
  %v4231 = vpop.permute.xlu0 %4230
  %4233 = vset.pattern.permute.xlu0 4
  %4234 = vperm.xlu0 %4233, %v375
  %v4235 = vpop.permute.xlu0 %4234
  %4237 = vset.pattern.permute.xlu0 4
  %4238 = vperm.xlu0 %4237, %v376
  %v4239 = vpop.permute.xlu0 %4238
  %4241 = vset.pattern.permute.xlu0 4
  %4242 = vperm.xlu0 %4241, %v377
  %v4243 = vpop.permute.xlu0 %4242
  %4245 = vset.pattern.permute.xlu0 4
  %4246 = vperm.xlu0 %4245, %v378
  %v4247 = vpop.permute.xlu0 %4246
  %4249 = vset.pattern.permute.xlu0 4
  %4250 = vperm.xlu0 %4249, %v379
  %v4251 = vpop.permute.xlu0 %4250
  %4253 = vset.pattern.permute.xlu0 4
  %4254 = vperm.xlu0 %4253, %v380
  %v4255 = vpop.permute.xlu0 %4254
  %4257 = vset.pattern.permute.xlu0 4
  %4258 = vperm.xlu0 %4257, %v381
  %v4259 = vpop.permute.xlu0 %4258
  %4261 = vset.pattern.permute.xlu0 4
  %4262 = vperm.xlu0 %4261, %v382
  %v4263 = vpop.permute.xlu0 %4262
  %4265 = vset.pattern.permute.xlu0 4
  %4266 = vperm.xlu0 %4265, %v383
  %v4267 = vpop.permute.xlu0 %4266
  %4269 = vset.pattern.permute.xlu0 4
  %4270 = vperm.xlu0 %4269, %v384
  %v4271 = vpop.permute.xlu0 %4270
  %4273 = vset.pattern.permute.xlu0 4
  %4274 = vperm.xlu0 %4273, %v385
  %v4275 = vpop.permute.xlu0 %4274
  %4277 = vset.pattern.permute.xlu0 4
  %4278 = vperm.xlu0 %4277, %v386
  %v4279 = vpop.permute.xlu0 %4278
  %4281 = vset.pattern.permute.xlu0 4
  %4282 = vperm.xlu0 %4281, %v387
  %v4283 = vpop.permute.xlu0 %4282
  %4285 = vset.pattern.permute.xlu0 4
  %4286 = vperm.xlu0 %4285, %v388
  %v4287 = vpop.permute.xlu0 %4286
  %4289 = vset.pattern.permute.xlu0 4
  %4290 = vperm.xlu0 %4289, %v389
  %v4291 = vpop.permute.xlu0 %4290
  %4293 = vset.pattern.permute.xlu0 4
  %4294 = vperm.xlu0 %4293, %v390
  %v4295 = vpop.permute.xlu0 %4294
  %4297 = vset.pattern.permute.xlu0 4
  %4298 = vperm.xlu0 %4297, %v391
  %v4299 = vpop.permute.xlu0 %4298
  %4301 = vset.pattern.permute.xlu0 4
  %4302 = vperm.xlu0 %4301, %v392
  %v4303 = vpop.permute.xlu0 %4302
  %4305 = vset.pattern.permute.xlu0 4
  %4306 = vperm.xlu0 %4305, %v393
  %v4307 = vpop.permute.xlu0 %4306
  %4309 = vset.pattern.permute.xlu0 4
  %4310 = vperm.xlu0 %4309, %v394
  %v4311 = vpop.permute.xlu0 %4310
  %4313 = vset.pattern.permute.xlu0 4
  %4314 = vperm.xlu0 %4313, %v395
  %v4315 = vpop.permute.xlu0 %4314
  %4317 = vset.pattern.permute.xlu0 4
  %4318 = vperm.xlu0 %4317, %v396
  %v4319 = vpop.permute.xlu0 %4318
  %4321 = vset.pattern.permute.xlu0 4
  %4322 = vperm.xlu0 %4321, %v397
  %v4323 = vpop.permute.xlu0 %4322
  %4325 = vset.pattern.permute.xlu0 4
  %4326 = vperm.xlu0 %4325, %v398
  %v4327 = vpop.permute.xlu0 %4326
  %4329 = vset.pattern.permute.xlu0 4
  %4330 = vperm.xlu0 %4329, %v399
  %v4331 = vpop.permute.xlu0 %4330
  %4333 = vset.pattern.permute.xlu0 4
  %4334 = vperm.xlu0 %4333, %v400
  %v4335 = vpop.permute.xlu0 %4334
  %4337 = vset.pattern.permute.xlu0 4
  %4338 = vperm.xlu0 %4337, %v401
  %v4339 = vpop.permute.xlu0 %4338
  %4341 = vset.pattern.permute.xlu0 4
  %4342 = vperm.xlu0 %4341, %v402
  %v4343 = vpop.permute.xlu0 %4342
  %4345 = vset.pattern.permute.xlu0 4
  %4346 = vperm.xlu0 %4345, %v403
  %v4347 = vpop.permute.xlu0 %4346
  %4349 = vset.pattern.permute.xlu0 4
  %4350 = vperm.xlu0 %4349, %v404
  %v4351 = vpop.permute.xlu0 %4350
  %4353 = vset.pattern.permute.xlu0 4
  %4354 = vperm.xlu0 %4353, %v405
  %v4355 = vpop.permute.xlu0 %4354
  %4357 = vset.pattern.permute.xlu0 4
  %4358 = vperm.xlu0 %4357, %v406
  %v4359 = vpop.permute.xlu0 %4358
  %4361 = vset.pattern.permute.xlu0 4
  %4362 = vperm.xlu0 %4361, %v407
  %v4363 = vpop.permute.xlu0 %4362
  %4365 = vset.pattern.permute.xlu0 4
  %4366 = vperm.xlu0 %4365, %v408
  %v4367 = vpop.permute.xlu0 %4366
  %4369 = vset.pattern.permute.xlu0 4
  %4370 = vperm.xlu0 %4369, %v409
  %v4371 = vpop.permute.xlu0 %4370
  %4373 = vset.pattern.permute.xlu0 4
  %4374 = vperm.xlu0 %4373, %v410
  %v4375 = vpop.permute.xlu0 %4374
  %4377 = vset.pattern.permute.xlu0 4
  %4378 = vperm.xlu0 %4377, %v411
  %v4379 = vpop.permute.xlu0 %4378
  %4381 = vset.pattern.permute.xlu0 4
  %4382 = vperm.xlu0 %4381, %v412
  %v4383 = vpop.permute.xlu0 %4382
  %4385 = vset.pattern.permute.xlu0 4
  %4386 = vperm.xlu0 %4385, %v413
  %v4387 = vpop.permute.xlu0 %4386
  %4389 = vset.pattern.permute.xlu0 4
  %4390 = vperm.xlu0 %4389, %v414
  %v4391 = vpop.permute.xlu0 %4390
  %4393 = vset.pattern.permute.xlu0 4
  %4394 = vperm.xlu0 %4393, %v415
  %v4395 = vpop.permute.xlu0 %4394
  %v4397 = vmul.f32 %v4087, %v182
  %v4398 = vmul.f32 %v4087, %v183
  %v4399 = vmul.f32 %v4091, %v184
  %v4400 = vmul.f32 %v4091, %v185
  %v4401 = vmul.f32 %v4095, %v186
  %v4402 = vmul.f32 %v4095, %v187
  %v4403 = vmul.f32 %v4099, %v188
  %v4404 = vmul.f32 %v4099, %v189
  %v4405 = vmul.f32 %v4103, %v190
  %v4406 = vmul.f32 %v4103, %v191
  %v4407 = vmul.f32 %v4107, %v192
  %v4408 = vmul.f32 %v4107, %v193
  %v4409 = vmul.f32 %v4111, %v194
  %v4410 = vmul.f32 %v4111, %v195
  %v4411 = vmul.f32 %v4115, %v196
  %v4412 = vmul.f32 %v4115, %v197
  %v4413 = vmul.f32 %v4119, %v198
  %v4414 = vmul.f32 %v4119, %v199
  %v4415 = vmul.f32 %v4123, %v200
  %v4416 = vmul.f32 %v4123, %v201
  %v4417 = vmul.f32 %v4127, %v202
  %v4418 = vmul.f32 %v4127, %v203
  %v4419 = vmul.f32 %v4131, %v204
  %v4420 = vmul.f32 %v4131, %v205
  %v4421 = vmul.f32 %v4135, %v206
  %v4422 = vmul.f32 %v4135, %v207
  %v4423 = vmul.f32 %v4139, %v208
  %v4424 = vmul.f32 %v4139, %v209
  %v4425 = vmul.f32 %v4143, %v210
  %v4426 = vmul.f32 %v4143, %v211
  %v4427 = vmul.f32 %v4147, %v212
  %v4428 = vmul.f32 %v4147, %v213
  %v4429 = vmul.f32 %v4151, %v214
  %v4430 = vmul.f32 %v4151, %v215
  %v4431 = vmul.f32 %v4155, %v216
  %v4432 = vmul.f32 %v4155, %v217
  %v4433 = vmul.f32 %v4159, %v218
  %v4434 = vmul.f32 %v4159, %v219
  %v4435 = vmul.f32 %v4163, %v220
  %v4436 = vmul.f32 %v4163, %v221
  %v4437 = vmul.f32 %v4167, %v222
  %v4438 = vmul.f32 %v4167, %v223
  %v4439 = vmul.f32 %v4171, %v224
  %v4440 = vmul.f32 %v4171, %v225
  %v4441 = vmul.f32 %v4175, %v226
  %v4442 = vmul.f32 %v4175, %v227
  %v4443 = vmul.f32 %v4179, %v228
  %v4444 = vmul.f32 %v4179, %v229
  %v4445 = vmul.f32 %v4183, %v230
  %v4446 = vmul.f32 %v4183, %v231
  %v4447 = vmul.f32 %v4187, %v232
  %v4448 = vmul.f32 %v4187, %v233
  %v4449 = vmul.f32 %v4191, %v234
  %v4450 = vmul.f32 %v4191, %v235
  %v4451 = vmul.f32 %v4195, %v236
  %v4452 = vmul.f32 %v4195, %v237
  %v4453 = vmul.f32 %v4199, %v238
  %v4454 = vmul.f32 %v4199, %v239
  %v4455 = vmul.f32 %v4203, %v240
  %v4456 = vmul.f32 %v4203, %v241
  %v4457 = vmul.f32 %v4207, %v242
  %v4458 = vmul.f32 %v4207, %v243
  %v4459 = vmul.f32 %v4211, %v244
  %v4460 = vmul.f32 %v4211, %v245
  %v4461 = vmul.f32 %v4215, %v246
  %v4462 = vmul.f32 %v4215, %v247
  %v4463 = vmul.f32 %v4219, %v248
  %v4464 = vmul.f32 %v4219, %v249
  %v4465 = vmul.f32 %v4223, %v250
  %v4466 = vmul.f32 %v4223, %v251
  %v4467 = vmul.f32 %v4227, %v252
  %v4468 = vmul.f32 %v4227, %v253
  %v4469 = vmul.f32 %v4231, %v254
  %v4470 = vmul.f32 %v4231, %v255
  %v4471 = vmul.f32 %v4235, %v256
  %v4472 = vmul.f32 %v4235, %v257
  %v4473 = vmul.f32 %v4239, %v258
  %v4474 = vmul.f32 %v4239, %v259
  %v4475 = vmul.f32 %v4243, %v260
  %v4476 = vmul.f32 %v4243, %v261
  %v4477 = vmul.f32 %v4247, %v262
  %v4478 = vmul.f32 %v4247, %v263
  %v4479 = vmul.f32 %v4251, %v264
  %v4480 = vmul.f32 %v4251, %v265
  %v4481 = vmul.f32 %v4255, %v266
  %v4482 = vmul.f32 %v4255, %v267
  %v4483 = vmul.f32 %v4259, %v268
  %v4484 = vmul.f32 %v4259, %v269
  %v4485 = vmul.f32 %v4263, %v270
  %v4486 = vmul.f32 %v4263, %v271
  %v4487 = vmul.f32 %v4267, %v272
  %v4488 = vmul.f32 %v4267, %v273
  %v4489 = vmul.f32 %v4271, %v274
  %v4490 = vmul.f32 %v4271, %v275
  %v4491 = vmul.f32 %v4275, %v276
  %v4492 = vmul.f32 %v4275, %v277
  %v4493 = vmul.f32 %v4279, %v278
  %v4494 = vmul.f32 %v4279, %v279
  %v4495 = vmul.f32 %v4283, %v280
  %v4496 = vmul.f32 %v4283, %v281
  %v4497 = vmul.f32 %v4287, %v282
  %v4498 = vmul.f32 %v4287, %v283
  %v4499 = vmul.f32 %v4291, %v284
  %v4500 = vmul.f32 %v4291, %v285
  %v4501 = vmul.f32 %v4295, %v286
  %v4502 = vmul.f32 %v4295, %v287
  %v4503 = vmul.f32 %v4299, %v288
  %v4504 = vmul.f32 %v4299, %v289
  %v4505 = vmul.f32 %v4303, %v290
  %v4506 = vmul.f32 %v4303, %v291
  %v4507 = vmul.f32 %v4307, %v292
  %v4508 = vmul.f32 %v4307, %v293
  %v4509 = vmul.f32 %v4311, %v294
  %v4510 = vmul.f32 %v4311, %v295
  %v4511 = vmul.f32 %v4315, %v296
  %v4512 = vmul.f32 %v4315, %v297
  %v4513 = vmul.f32 %v4319, %v298
  %v4514 = vmul.f32 %v4319, %v299
  %v4515 = vmul.f32 %v4323, %v300
  %v4516 = vmul.f32 %v4323, %v301
  %v4517 = vmul.f32 %v4327, %v302
  %v4518 = vmul.f32 %v4327, %v303
  %v4519 = vmul.f32 %v4331, %v304
  %v4520 = vmul.f32 %v4331, %v305
  %v4521 = vmul.f32 %v4335, %v306
  %v4522 = vmul.f32 %v4335, %v307
  %v4523 = vmul.f32 %v4339, %v308
  %v4524 = vmul.f32 %v4339, %v309
  %v4525 = vmul.f32 %v4343, %v310
  %v4526 = vmul.f32 %v4343, %v311
  %v4527 = vmul.f32 %v4347, %v312
  %v4528 = vmul.f32 %v4347, %v313
  %v4529 = vmul.f32 %v4351, %v314
  %v4530 = vmul.f32 %v4351, %v315
  %v4531 = vmul.f32 %v4355, %v316
  %v4532 = vmul.f32 %v4355, %v317
  %v4533 = vmul.f32 %v4359, %v318
  %v4534 = vmul.f32 %v4359, %v319
  %v4535 = vmul.f32 %v4363, %v320
  %v4536 = vmul.f32 %v4363, %v321
  %v4537 = vmul.f32 %v4367, %v322
  %v4538 = vmul.f32 %v4367, %v323
  %v4539 = vmul.f32 %v4371, %v324
  %v4540 = vmul.f32 %v4371, %v325
  %v4541 = vmul.f32 %v4375, %v326
  %v4542 = vmul.f32 %v4375, %v327
  %v4543 = vmul.f32 %v4379, %v328
  %v4544 = vmul.f32 %v4379, %v329
  %v4545 = vmul.f32 %v4383, %v330
  %v4546 = vmul.f32 %v4383, %v331
  %v4547 = vmul.f32 %v4387, %v332
  %v4548 = vmul.f32 %v4387, %v333
  %v4549 = vmul.f32 %v4391, %v334
  %v4550 = vmul.f32 %v4391, %v335
  %v4551 = vmul.f32 %v4395, %v336
  %v4552 = vmul.f32 %v4395, %v337
  %v4553 = vadd.f32 %v3929, %v4397
  %v4554 = vadd.f32 %v3930, %v4398
  %v4555 = vadd.f32 %v3931, %v4399
  %v4556 = vadd.f32 %v3932, %v4400
  %v4557 = vadd.f32 %v3933, %v4401
  %v4558 = vadd.f32 %v3934, %v4402
  %v4559 = vadd.f32 %v3935, %v4403
  %v4560 = vadd.f32 %v3936, %v4404
  %v4561 = vadd.f32 %v3937, %v4405
  %v4562 = vadd.f32 %v3938, %v4406
  %v4563 = vadd.f32 %v3939, %v4407
  %v4564 = vadd.f32 %v3940, %v4408
  %v4565 = vadd.f32 %v3941, %v4409
  %v4566 = vadd.f32 %v3942, %v4410
  %v4567 = vadd.f32 %v3943, %v4411
  %v4568 = vadd.f32 %v3944, %v4412
  %v4569 = vadd.f32 %v3945, %v4413
  %v4570 = vadd.f32 %v3946, %v4414
  %v4571 = vadd.f32 %v3947, %v4415
  %v4572 = vadd.f32 %v3948, %v4416
  %v4573 = vadd.f32 %v3949, %v4417
  %v4574 = vadd.f32 %v3950, %v4418
  %v4575 = vadd.f32 %v3951, %v4419
  %v4576 = vadd.f32 %v3952, %v4420
  %v4577 = vadd.f32 %v3953, %v4421
  %v4578 = vadd.f32 %v3954, %v4422
  %v4579 = vadd.f32 %v3955, %v4423
  %v4580 = vadd.f32 %v3956, %v4424
  %v4581 = vadd.f32 %v3957, %v4425
  %v4582 = vadd.f32 %v3958, %v4426
  %v4583 = vadd.f32 %v3959, %v4427
  %v4584 = vadd.f32 %v3960, %v4428
  %v4585 = vadd.f32 %v3961, %v4429
  %v4586 = vadd.f32 %v3962, %v4430
  %v4587 = vadd.f32 %v3963, %v4431
  %v4588 = vadd.f32 %v3964, %v4432
  %v4589 = vadd.f32 %v3965, %v4433
  %v4590 = vadd.f32 %v3966, %v4434
  %v4591 = vadd.f32 %v3967, %v4435
  %v4592 = vadd.f32 %v3968, %v4436
  %v4593 = vadd.f32 %v3969, %v4437
  %v4594 = vadd.f32 %v3970, %v4438
  %v4595 = vadd.f32 %v3971, %v4439
  %v4596 = vadd.f32 %v3972, %v4440
  %v4597 = vadd.f32 %v3973, %v4441
  %v4598 = vadd.f32 %v3974, %v4442
  %v4599 = vadd.f32 %v3975, %v4443
  %v4600 = vadd.f32 %v3976, %v4444
  %v4601 = vadd.f32 %v3977, %v4445
  %v4602 = vadd.f32 %v3978, %v4446
  %v4603 = vadd.f32 %v3979, %v4447
  %v4604 = vadd.f32 %v3980, %v4448
  %v4605 = vadd.f32 %v3981, %v4449
  %v4606 = vadd.f32 %v3982, %v4450
  %v4607 = vadd.f32 %v3983, %v4451
  %v4608 = vadd.f32 %v3984, %v4452
  %v4609 = vadd.f32 %v3985, %v4453
  %v4610 = vadd.f32 %v3986, %v4454
  %v4611 = vadd.f32 %v3987, %v4455
  %v4612 = vadd.f32 %v3988, %v4456
  %v4613 = vadd.f32 %v3989, %v4457
  %v4614 = vadd.f32 %v3990, %v4458
  %v4615 = vadd.f32 %v3991, %v4459
  %v4616 = vadd.f32 %v3992, %v4460
  %v4617 = vadd.f32 %v3993, %v4461
  %v4618 = vadd.f32 %v3994, %v4462
  %v4619 = vadd.f32 %v3995, %v4463
  %v4620 = vadd.f32 %v3996, %v4464
  %v4621 = vadd.f32 %v3997, %v4465
  %v4622 = vadd.f32 %v3998, %v4466
  %v4623 = vadd.f32 %v3999, %v4467
  %v4624 = vadd.f32 %v4000, %v4468
  %v4625 = vadd.f32 %v4001, %v4469
  %v4626 = vadd.f32 %v4002, %v4470
  %v4627 = vadd.f32 %v4003, %v4471
  %v4628 = vadd.f32 %v4004, %v4472
  %v4629 = vadd.f32 %v4005, %v4473
  %v4630 = vadd.f32 %v4006, %v4474
  %v4631 = vadd.f32 %v4007, %v4475
  %v4632 = vadd.f32 %v4008, %v4476
  %v4633 = vadd.f32 %v4009, %v4477
  %v4634 = vadd.f32 %v4010, %v4478
  %v4635 = vadd.f32 %v4011, %v4479
  %v4636 = vadd.f32 %v4012, %v4480
  %v4637 = vadd.f32 %v4013, %v4481
  %v4638 = vadd.f32 %v4014, %v4482
  %v4639 = vadd.f32 %v4015, %v4483
  %v4640 = vadd.f32 %v4016, %v4484
  %v4641 = vadd.f32 %v4017, %v4485
  %v4642 = vadd.f32 %v4018, %v4486
  %v4643 = vadd.f32 %v4019, %v4487
  %v4644 = vadd.f32 %v4020, %v4488
  %v4645 = vadd.f32 %v4021, %v4489
  %v4646 = vadd.f32 %v4022, %v4490
  %v4647 = vadd.f32 %v4023, %v4491
  %v4648 = vadd.f32 %v4024, %v4492
  %v4649 = vadd.f32 %v4025, %v4493
  %v4650 = vadd.f32 %v4026, %v4494
  %v4651 = vadd.f32 %v4027, %v4495
  %v4652 = vadd.f32 %v4028, %v4496
  %v4653 = vadd.f32 %v4029, %v4497
  %v4654 = vadd.f32 %v4030, %v4498
  %v4655 = vadd.f32 %v4031, %v4499
  %v4656 = vadd.f32 %v4032, %v4500
  %v4657 = vadd.f32 %v4033, %v4501
  %v4658 = vadd.f32 %v4034, %v4502
  %v4659 = vadd.f32 %v4035, %v4503
  %v4660 = vadd.f32 %v4036, %v4504
  %v4661 = vadd.f32 %v4037, %v4505
  %v4662 = vadd.f32 %v4038, %v4506
  %v4663 = vadd.f32 %v4039, %v4507
  %v4664 = vadd.f32 %v4040, %v4508
  %v4665 = vadd.f32 %v4041, %v4509
  %v4666 = vadd.f32 %v4042, %v4510
  %v4667 = vadd.f32 %v4043, %v4511
  %v4668 = vadd.f32 %v4044, %v4512
  %v4669 = vadd.f32 %v4045, %v4513
  %v4670 = vadd.f32 %v4046, %v4514
  %v4671 = vadd.f32 %v4047, %v4515
  %v4672 = vadd.f32 %v4048, %v4516
  %v4673 = vadd.f32 %v4049, %v4517
  %v4674 = vadd.f32 %v4050, %v4518
  %v4675 = vadd.f32 %v4051, %v4519
  %v4676 = vadd.f32 %v4052, %v4520
  %v4677 = vadd.f32 %v4053, %v4521
  %v4678 = vadd.f32 %v4054, %v4522
  %v4679 = vadd.f32 %v4055, %v4523
  %v4680 = vadd.f32 %v4056, %v4524
  %v4681 = vadd.f32 %v4057, %v4525
  %v4682 = vadd.f32 %v4058, %v4526
  %v4683 = vadd.f32 %v4059, %v4527
  %v4684 = vadd.f32 %v4060, %v4528
  %v4685 = vadd.f32 %v4061, %v4529
  %v4686 = vadd.f32 %v4062, %v4530
  %v4687 = vadd.f32 %v4063, %v4531
  %v4688 = vadd.f32 %v4064, %v4532
  %v4689 = vadd.f32 %v4065, %v4533
  %v4690 = vadd.f32 %v4066, %v4534
  %v4691 = vadd.f32 %v4067, %v4535
  %v4692 = vadd.f32 %v4068, %v4536
  %v4693 = vadd.f32 %v4069, %v4537
  %v4694 = vadd.f32 %v4070, %v4538
  %v4695 = vadd.f32 %v4071, %v4539
  %v4696 = vadd.f32 %v4072, %v4540
  %v4697 = vadd.f32 %v4073, %v4541
  %v4698 = vadd.f32 %v4074, %v4542
  %v4699 = vadd.f32 %v4075, %v4543
  %v4700 = vadd.f32 %v4076, %v4544
  %v4701 = vadd.f32 %v4077, %v4545
  %v4702 = vadd.f32 %v4078, %v4546
  %v4703 = vadd.f32 %v4079, %v4547
  %v4704 = vadd.f32 %v4080, %v4548
  %v4705 = vadd.f32 %v4081, %v4549
  %v4706 = vadd.f32 %v4082, %v4550
  %v4707 = vadd.f32 %v4083, %v4551
  %v4708 = vadd.f32 %v4084, %v4552
  %4709 = vset.pattern.permute.xlu0 7
  %4710 = vperm.xlu0 %4709, %v338
  %v4711 = vpop.permute.xlu0 %4710
  %4713 = vset.pattern.permute.xlu0 7
  %4714 = vperm.xlu0 %4713, %v339
  %v4715 = vpop.permute.xlu0 %4714
  %4717 = vset.pattern.permute.xlu0 7
  %4718 = vperm.xlu0 %4717, %v340
  %v4719 = vpop.permute.xlu0 %4718
  %4721 = vset.pattern.permute.xlu0 7
  %4722 = vperm.xlu0 %4721, %v341
  %v4723 = vpop.permute.xlu0 %4722
  %4725 = vset.pattern.permute.xlu0 7
  %4726 = vperm.xlu0 %4725, %v342
  %v4727 = vpop.permute.xlu0 %4726
  %4729 = vset.pattern.permute.xlu0 7
  %4730 = vperm.xlu0 %4729, %v343
  %v4731 = vpop.permute.xlu0 %4730
  %4733 = vset.pattern.permute.xlu0 7
  %4734 = vperm.xlu0 %4733, %v344
  %v4735 = vpop.permute.xlu0 %4734
  %4737 = vset.pattern.permute.xlu0 7
  %4738 = vperm.xlu0 %4737, %v345
  %v4739 = vpop.permute.xlu0 %4738
  %4741 = vset.pattern.permute.xlu0 7
  %4742 = vperm.xlu0 %4741, %v346
  %v4743 = vpop.permute.xlu0 %4742
  %4745 = vset.pattern.permute.xlu0 7
  %4746 = vperm.xlu0 %4745, %v347
  %v4747 = vpop.permute.xlu0 %4746
  %4749 = vset.pattern.permute.xlu0 7
  %4750 = vperm.xlu0 %4749, %v348
  %v4751 = vpop.permute.xlu0 %4750
  %4753 = vset.pattern.permute.xlu0 7
  %4754 = vperm.xlu0 %4753, %v349
  %v4755 = vpop.permute.xlu0 %4754
  %4757 = vset.pattern.permute.xlu0 7
  %4758 = vperm.xlu0 %4757, %v350
  %v4759 = vpop.permute.xlu0 %4758
  %4761 = vset.pattern.permute.xlu0 7
  %4762 = vperm.xlu0 %4761, %v351
  %v4763 = vpop.permute.xlu0 %4762
  %4765 = vset.pattern.permute.xlu0 7
  %4766 = vperm.xlu0 %4765, %v352
  %v4767 = vpop.permute.xlu0 %4766
  %4769 = vset.pattern.permute.xlu0 7
  %4770 = vperm.xlu0 %4769, %v353
  %v4771 = vpop.permute.xlu0 %4770
  %4773 = vset.pattern.permute.xlu0 7
  %4774 = vperm.xlu0 %4773, %v354
  %v4775 = vpop.permute.xlu0 %4774
  %4777 = vset.pattern.permute.xlu0 7
  %4778 = vperm.xlu0 %4777, %v355
  %v4779 = vpop.permute.xlu0 %4778
  %4781 = vset.pattern.permute.xlu0 7
  %4782 = vperm.xlu0 %4781, %v356
  %v4783 = vpop.permute.xlu0 %4782
  %4785 = vset.pattern.permute.xlu0 7
  %4786 = vperm.xlu0 %4785, %v357
  %v4787 = vpop.permute.xlu0 %4786
  %4789 = vset.pattern.permute.xlu0 7
  %4790 = vperm.xlu0 %4789, %v358
  %v4791 = vpop.permute.xlu0 %4790
  %4793 = vset.pattern.permute.xlu0 7
  %4794 = vperm.xlu0 %4793, %v359
  %v4795 = vpop.permute.xlu0 %4794
  %4797 = vset.pattern.permute.xlu0 7
  %4798 = vperm.xlu0 %4797, %v360
  %v4799 = vpop.permute.xlu0 %4798
  %4801 = vset.pattern.permute.xlu0 7
  %4802 = vperm.xlu0 %4801, %v361
  %v4803 = vpop.permute.xlu0 %4802
  %4805 = vset.pattern.permute.xlu0 7
  %4806 = vperm.xlu0 %4805, %v362
  %v4807 = vpop.permute.xlu0 %4806
  %4809 = vset.pattern.permute.xlu0 7
  %4810 = vperm.xlu0 %4809, %v363
  %v4811 = vpop.permute.xlu0 %4810
  %4813 = vset.pattern.permute.xlu0 7
  %4814 = vperm.xlu0 %4813, %v364
  %v4815 = vpop.permute.xlu0 %4814
  %4817 = vset.pattern.permute.xlu0 7
  %4818 = vperm.xlu0 %4817, %v365
  %v4819 = vpop.permute.xlu0 %4818
  %4821 = vset.pattern.permute.xlu0 7
  %4822 = vperm.xlu0 %4821, %v366
  %v4823 = vpop.permute.xlu0 %4822
  %4825 = vset.pattern.permute.xlu0 7
  %4826 = vperm.xlu0 %4825, %v367
  %v4827 = vpop.permute.xlu0 %4826
  %4829 = vset.pattern.permute.xlu0 7
  %4830 = vperm.xlu0 %4829, %v368
  %v4831 = vpop.permute.xlu0 %4830
  %4833 = vset.pattern.permute.xlu0 7
  %4834 = vperm.xlu0 %4833, %v369
  %v4835 = vpop.permute.xlu0 %4834
  %4837 = vset.pattern.permute.xlu0 7
  %4838 = vperm.xlu0 %4837, %v370
  %v4839 = vpop.permute.xlu0 %4838
  %4841 = vset.pattern.permute.xlu0 7
  %4842 = vperm.xlu0 %4841, %v371
  %v4843 = vpop.permute.xlu0 %4842
  %4845 = vset.pattern.permute.xlu0 7
  %4846 = vperm.xlu0 %4845, %v372
  %v4847 = vpop.permute.xlu0 %4846
  %4849 = vset.pattern.permute.xlu0 7
  %4850 = vperm.xlu0 %4849, %v373
  %v4851 = vpop.permute.xlu0 %4850
  %4853 = vset.pattern.permute.xlu0 7
  %4854 = vperm.xlu0 %4853, %v374
  %v4855 = vpop.permute.xlu0 %4854
  %4857 = vset.pattern.permute.xlu0 7
  %4858 = vperm.xlu0 %4857, %v375
  %v4859 = vpop.permute.xlu0 %4858
  %4861 = vset.pattern.permute.xlu0 7
  %4862 = vperm.xlu0 %4861, %v376
  %v4863 = vpop.permute.xlu0 %4862
  %4865 = vset.pattern.permute.xlu0 7
  %4866 = vperm.xlu0 %4865, %v377
  %v4867 = vpop.permute.xlu0 %4866
  %4869 = vset.pattern.permute.xlu0 7
  %4870 = vperm.xlu0 %4869, %v378
  %v4871 = vpop.permute.xlu0 %4870
  %4873 = vset.pattern.permute.xlu0 7
  %4874 = vperm.xlu0 %4873, %v379
  %v4875 = vpop.permute.xlu0 %4874
  %4877 = vset.pattern.permute.xlu0 7
  %4878 = vperm.xlu0 %4877, %v380
  %v4879 = vpop.permute.xlu0 %4878
  %4881 = vset.pattern.permute.xlu0 7
  %4882 = vperm.xlu0 %4881, %v381
  %v4883 = vpop.permute.xlu0 %4882
  %4885 = vset.pattern.permute.xlu0 7
  %4886 = vperm.xlu0 %4885, %v382
  %v4887 = vpop.permute.xlu0 %4886
  %4889 = vset.pattern.permute.xlu0 7
  %4890 = vperm.xlu0 %4889, %v383
  %v4891 = vpop.permute.xlu0 %4890
  %4893 = vset.pattern.permute.xlu0 7
  %4894 = vperm.xlu0 %4893, %v384
  %v4895 = vpop.permute.xlu0 %4894
  %4897 = vset.pattern.permute.xlu0 7
  %4898 = vperm.xlu0 %4897, %v385
  %v4899 = vpop.permute.xlu0 %4898
  %4901 = vset.pattern.permute.xlu0 7
  %4902 = vperm.xlu0 %4901, %v386
  %v4903 = vpop.permute.xlu0 %4902
  %4905 = vset.pattern.permute.xlu0 7
  %4906 = vperm.xlu0 %4905, %v387
  %v4907 = vpop.permute.xlu0 %4906
  %4909 = vset.pattern.permute.xlu0 7
  %4910 = vperm.xlu0 %4909, %v388
  %v4911 = vpop.permute.xlu0 %4910
  %4913 = vset.pattern.permute.xlu0 7
  %4914 = vperm.xlu0 %4913, %v389
  %v4915 = vpop.permute.xlu0 %4914
  %4917 = vset.pattern.permute.xlu0 7
  %4918 = vperm.xlu0 %4917, %v390
  %v4919 = vpop.permute.xlu0 %4918
  %4921 = vset.pattern.permute.xlu0 7
  %4922 = vperm.xlu0 %4921, %v391
  %v4923 = vpop.permute.xlu0 %4922
  %4925 = vset.pattern.permute.xlu0 7
  %4926 = vperm.xlu0 %4925, %v392
  %v4927 = vpop.permute.xlu0 %4926
  %4929 = vset.pattern.permute.xlu0 7
  %4930 = vperm.xlu0 %4929, %v393
  %v4931 = vpop.permute.xlu0 %4930
  %4933 = vset.pattern.permute.xlu0 7
  %4934 = vperm.xlu0 %4933, %v394
  %v4935 = vpop.permute.xlu0 %4934
  %4937 = vset.pattern.permute.xlu0 7
  %4938 = vperm.xlu0 %4937, %v395
  %v4939 = vpop.permute.xlu0 %4938
  %4941 = vset.pattern.permute.xlu0 7
  %4942 = vperm.xlu0 %4941, %v396
  %v4943 = vpop.permute.xlu0 %4942
  %4945 = vset.pattern.permute.xlu0 7
  %4946 = vperm.xlu0 %4945, %v397
  %v4947 = vpop.permute.xlu0 %4946
  %4949 = vset.pattern.permute.xlu0 7
  %4950 = vperm.xlu0 %4949, %v398
  %v4951 = vpop.permute.xlu0 %4950
  %4953 = vset.pattern.permute.xlu0 7
  %4954 = vperm.xlu0 %4953, %v399
  %v4955 = vpop.permute.xlu0 %4954
  %4957 = vset.pattern.permute.xlu0 7
  %4958 = vperm.xlu0 %4957, %v400
  %v4959 = vpop.permute.xlu0 %4958
  %4961 = vset.pattern.permute.xlu0 7
  %4962 = vperm.xlu0 %4961, %v401
  %v4963 = vpop.permute.xlu0 %4962
  %4965 = vset.pattern.permute.xlu0 7
  %4966 = vperm.xlu0 %4965, %v402
  %v4967 = vpop.permute.xlu0 %4966
  %4969 = vset.pattern.permute.xlu0 7
  %4970 = vperm.xlu0 %4969, %v403
  %v4971 = vpop.permute.xlu0 %4970
  %4973 = vset.pattern.permute.xlu0 7
  %4974 = vperm.xlu0 %4973, %v404
  %v4975 = vpop.permute.xlu0 %4974
  %4977 = vset.pattern.permute.xlu0 7
  %4978 = vperm.xlu0 %4977, %v405
  %v4979 = vpop.permute.xlu0 %4978
  %4981 = vset.pattern.permute.xlu0 7
  %4982 = vperm.xlu0 %4981, %v406
  %v4983 = vpop.permute.xlu0 %4982
  %4985 = vset.pattern.permute.xlu0 7
  %4986 = vperm.xlu0 %4985, %v407
  %v4987 = vpop.permute.xlu0 %4986
  %4989 = vset.pattern.permute.xlu0 7
  %4990 = vperm.xlu0 %4989, %v408
  %v4991 = vpop.permute.xlu0 %4990
  %4993 = vset.pattern.permute.xlu0 7
  %4994 = vperm.xlu0 %4993, %v409
  %v4995 = vpop.permute.xlu0 %4994
  %4997 = vset.pattern.permute.xlu0 7
  %4998 = vperm.xlu0 %4997, %v410
  %v4999 = vpop.permute.xlu0 %4998
  %5001 = vset.pattern.permute.xlu0 7
  %5002 = vperm.xlu0 %5001, %v411
  %v5003 = vpop.permute.xlu0 %5002
  %5005 = vset.pattern.permute.xlu0 7
  %5006 = vperm.xlu0 %5005, %v412
  %v5007 = vpop.permute.xlu0 %5006
  %5009 = vset.pattern.permute.xlu0 7
  %5010 = vperm.xlu0 %5009, %v413
  %v5011 = vpop.permute.xlu0 %5010
  %5013 = vset.pattern.permute.xlu0 7
  %5014 = vperm.xlu0 %5013, %v414
  %v5015 = vpop.permute.xlu0 %5014
  %5017 = vset.pattern.permute.xlu0 7
  %5018 = vperm.xlu0 %5017, %v415
  %v5019 = vpop.permute.xlu0 %5018
  %v5021 = vmul.f32 %v4711, %v1510
  %v5022 = vmul.f32 %v4711, %v1745
  %v5023 = vmul.f32 %v4715, %v1511
  %v5024 = vmul.f32 %v4715, %v1746
  %v5025 = vmul.f32 %v4719, %v1512
  %v5026 = vmul.f32 %v4719, %v1747
  %v5027 = vmul.f32 %v4723, %v1513
  %v5028 = vmul.f32 %v4723, %v1748
  %v5029 = vmul.f32 %v4727, %v1514
  %v5030 = vmul.f32 %v4727, %v1749
  %v5031 = vmul.f32 %v4731, %v1515
  %v5032 = vmul.f32 %v4731, %v1750
  %v5033 = vmul.f32 %v4735, %v1516
  %v5034 = vmul.f32 %v4735, %v1751
  %v5035 = vmul.f32 %v4739, %v1517
  %v5036 = vmul.f32 %v4739, %v1752
  %v5037 = vmul.f32 %v4743, %v1518
  %v5038 = vmul.f32 %v4743, %v1753
  %v5039 = vmul.f32 %v4747, %v1519
  %v5040 = vmul.f32 %v4747, %v1754
  %v5041 = vmul.f32 %v4751, %v1520
  %v5042 = vmul.f32 %v4751, %v1755
  %v5043 = vmul.f32 %v4755, %v1521
  %v5044 = vmul.f32 %v4755, %v1756
  %v5045 = vmul.f32 %v4759, %v1522
  %v5046 = vmul.f32 %v4759, %v1757
  %v5047 = vmul.f32 %v4763, %v1523
  %v5048 = vmul.f32 %v4763, %v1758
  %v5049 = vmul.f32 %v4767, %v1524
  %v5050 = vmul.f32 %v4767, %v1759
  %v5051 = vmul.f32 %v4771, %v1525
  %v5052 = vmul.f32 %v4771, %v1760
  %v5053 = vmul.f32 %v4775, %v1526
  %v5054 = vmul.f32 %v4775, %v1761
  %v5055 = vmul.f32 %v4779, %v1527
  %v5056 = vmul.f32 %v4779, %v1762
  %v5057 = vmul.f32 %v4783, %v1528
  %v5058 = vmul.f32 %v4783, %v1763
  %v5059 = vmul.f32 %v4787, %v1529
  %v5060 = vmul.f32 %v4787, %v1764
  %v5061 = vmul.f32 %v4791, %v1530
  %v5062 = vmul.f32 %v4791, %v1765
  %v5063 = vmul.f32 %v4795, %v1531
  %v5064 = vmul.f32 %v4795, %v1766
  %v5065 = vmul.f32 %v4799, %v1532
  %v5066 = vmul.f32 %v4799, %v1767
  %v5067 = vmul.f32 %v4803, %v1533
  %v5068 = vmul.f32 %v4803, %v1768
  %v5069 = vmul.f32 %v4807, %v1534
  %v5070 = vmul.f32 %v4807, %v1769
  %v5071 = vmul.f32 %v4811, %v1535
  %v5072 = vmul.f32 %v4811, %v1770
  %v5073 = vmul.f32 %v4815, %v1536
  %v5074 = vmul.f32 %v4815, %v1771
  %v5075 = vmul.f32 %v4819, %v1537
  %v5076 = vmul.f32 %v4819, %v1772
  %v5077 = vmul.f32 %v4823, %v1538
  %v5078 = vmul.f32 %v4823, %v1773
  %v5079 = vmul.f32 %v4827, %v1539
  %v5080 = vmul.f32 %v4827, %v1774
  %v5081 = vmul.f32 %v4831, %v1540
  %v5082 = vmul.f32 %v4831, %v1775
  %v5083 = vmul.f32 %v4835, %v1541
  %v5084 = vmul.f32 %v4835, %v1776
  %v5085 = vmul.f32 %v4839, %v1542
  %v5086 = vmul.f32 %v4839, %v1777
  %v5087 = vmul.f32 %v4843, %v1543
  %v5088 = vmul.f32 %v4843, %v1778
  %v5089 = vmul.f32 %v4847, %v1544
  %v5090 = vmul.f32 %v4847, %v1779
  %v5091 = vmul.f32 %v4851, %v1545
  %v5092 = vmul.f32 %v4851, %v1780
  %v5093 = vmul.f32 %v4855, %v1546
  %v5094 = vmul.f32 %v4855, %v1781
  %v5095 = vmul.f32 %v4859, %v1547
  %v5096 = vmul.f32 %v4859, %v1782
  %v5097 = vmul.f32 %v4863, %v1548
  %v5098 = vmul.f32 %v4863, %v1783
  %v5099 = vmul.f32 %v4867, %v1549
  %v5100 = vmul.f32 %v4867, %v1784
  %v5101 = vmul.f32 %v4871, %v1550
  %v5102 = vmul.f32 %v4871, %v1785
  %v5103 = vmul.f32 %v4875, %v1551
  %v5104 = vmul.f32 %v4875, %v1786
  %v5105 = vmul.f32 %v4879, %v1552
  %v5106 = vmul.f32 %v4879, %v1787
  %v5107 = vmul.f32 %v4883, %v1553
  %v5108 = vmul.f32 %v4883, %v1788
  %v5109 = vmul.f32 %v4887, %v1554
  %v5110 = vmul.f32 %v4887, %v1789
  %v5111 = vmul.f32 %v4891, %v1555
  %v5112 = vmul.f32 %v4891, %v1790
  %v5113 = vmul.f32 %v4895, %v1556
  %v5114 = vmul.f32 %v4895, %v1791
  %v5115 = vmul.f32 %v4899, %v1557
  %v5116 = vmul.f32 %v4899, %v1792
  %v5117 = vmul.f32 %v4903, %v1558
  %v5118 = vmul.f32 %v4903, %v1793
  %v5119 = vmul.f32 %v4907, %v1559
  %v5120 = vmul.f32 %v4907, %v1794
  %v5121 = vmul.f32 %v4911, %v1560
  %v5122 = vmul.f32 %v4911, %v1795
  %v5123 = vmul.f32 %v4915, %v1561
  %v5124 = vmul.f32 %v4915, %v1796
  %v5125 = vmul.f32 %v4919, %v1562
  %v5126 = vmul.f32 %v4919, %v1797
  %v5127 = vmul.f32 %v4923, %v1563
  %v5128 = vmul.f32 %v4923, %v1798
  %v5129 = vmul.f32 %v4927, %v1564
  %v5130 = vmul.f32 %v4927, %v1799
  %v5131 = vmul.f32 %v4931, %v1565
  %v5132 = vmul.f32 %v4931, %v1800
  %v5133 = vmul.f32 %v4935, %v1566
  %v5134 = vmul.f32 %v4935, %v1801
  %v5135 = vmul.f32 %v4939, %v1567
  %v5136 = vmul.f32 %v4939, %v1802
  %v5137 = vmul.f32 %v4943, %v1568
  %v5138 = vmul.f32 %v4943, %v1803
  %v5139 = vmul.f32 %v4947, %v1569
  %v5140 = vmul.f32 %v4947, %v1804
  %v5141 = vmul.f32 %v4951, %v1570
  %v5142 = vmul.f32 %v4951, %v1805
  %v5143 = vmul.f32 %v4955, %v1571
  %v5144 = vmul.f32 %v4955, %v1806
  %v5145 = vmul.f32 %v4959, %v1572
  %v5146 = vmul.f32 %v4959, %v1807
  %v5147 = vmul.f32 %v4963, %v1573
  %v5148 = vmul.f32 %v4963, %v1808
  %v5149 = vmul.f32 %v4967, %v1574
  %v5150 = vmul.f32 %v4967, %v1809
  %v5151 = vmul.f32 %v4971, %v1575
  %v5152 = vmul.f32 %v4971, %v1810
  %v5153 = vmul.f32 %v4975, %v1576
  %v5154 = vmul.f32 %v4975, %v1811
  %v5155 = vmul.f32 %v4979, %v1577
  %v5156 = vmul.f32 %v4979, %v1812
  %v5157 = vmul.f32 %v4983, %v1578
  %v5158 = vmul.f32 %v4983, %v1813
  %v5159 = vmul.f32 %v4987, %v1579
  %v5160 = vmul.f32 %v4987, %v1814
  %v5161 = vmul.f32 %v4991, %v1580
  %v5162 = vmul.f32 %v4991, %v1815
  %v5163 = vmul.f32 %v4995, %v1581
  %v5164 = vmul.f32 %v4995, %v1816
  %v5165 = vmul.f32 %v4999, %v1582
  %v5166 = vmul.f32 %v4999, %v1817
  %v5167 = vmul.f32 %v5003, %v1583
  %v5168 = vmul.f32 %v5003, %v1818
  %v5169 = vmul.f32 %v5007, %v1584
  %v5170 = vmul.f32 %v5007, %v1819
  %v5171 = vmul.f32 %v5011, %v1585
  %v5172 = vmul.f32 %v5011, %v1820
  %v5173 = vmul.f32 %v5015, %v1586
  %v5174 = vmul.f32 %v5015, %v1821
  %v5175 = vmul.f32 %v5019, %v1587
  %v5176 = vmul.f32 %v5019, %v1822
  %v5177 = vadd.f32 %v4553, %v5021
  %v5178 = vadd.f32 %v4554, %v5022
  %v5179 = vadd.f32 %v4555, %v5023
  %v5180 = vadd.f32 %v4556, %v5024
  %v5181 = vadd.f32 %v4557, %v5025
  %v5182 = vadd.f32 %v4558, %v5026
  %v5183 = vadd.f32 %v4559, %v5027
  %v5184 = vadd.f32 %v4560, %v5028
  %v5185 = vadd.f32 %v4561, %v5029
  %v5186 = vadd.f32 %v4562, %v5030
  %v5187 = vadd.f32 %v4563, %v5031
  %v5188 = vadd.f32 %v4564, %v5032
  %v5189 = vadd.f32 %v4565, %v5033
  %v5190 = vadd.f32 %v4566, %v5034
  %v5191 = vadd.f32 %v4567, %v5035
  %v5192 = vadd.f32 %v4568, %v5036
  %v5193 = vadd.f32 %v4569, %v5037
  %v5194 = vadd.f32 %v4570, %v5038
  %v5195 = vadd.f32 %v4571, %v5039
  %v5196 = vadd.f32 %v4572, %v5040
  %v5197 = vadd.f32 %v4573, %v5041
  %v5198 = vadd.f32 %v4574, %v5042
  %v5199 = vadd.f32 %v4575, %v5043
  %v5200 = vadd.f32 %v4576, %v5044
  %v5201 = vadd.f32 %v4577, %v5045
  %v5202 = vadd.f32 %v4578, %v5046
  %v5203 = vadd.f32 %v4579, %v5047
  %v5204 = vadd.f32 %v4580, %v5048
  %v5205 = vadd.f32 %v4581, %v5049
  %v5206 = vadd.f32 %v4582, %v5050
  %v5207 = vadd.f32 %v4583, %v5051
  %v5208 = vadd.f32 %v4584, %v5052
  %v5209 = vadd.f32 %v4585, %v5053
  %v5210 = vadd.f32 %v4586, %v5054
  %v5211 = vadd.f32 %v4587, %v5055
  %v5212 = vadd.f32 %v4588, %v5056
  %v5213 = vadd.f32 %v4589, %v5057
  %v5214 = vadd.f32 %v4590, %v5058
  %v5215 = vadd.f32 %v4591, %v5059
  %v5216 = vadd.f32 %v4592, %v5060
  %v5217 = vadd.f32 %v4593, %v5061
  %v5218 = vadd.f32 %v4594, %v5062
  %v5219 = vadd.f32 %v4595, %v5063
  %v5220 = vadd.f32 %v4596, %v5064
  %v5221 = vadd.f32 %v4597, %v5065
  %v5222 = vadd.f32 %v4598, %v5066
  %v5223 = vadd.f32 %v4599, %v5067
  %v5224 = vadd.f32 %v4600, %v5068
  %v5225 = vadd.f32 %v4601, %v5069
  %v5226 = vadd.f32 %v4602, %v5070
  %v5227 = vadd.f32 %v4603, %v5071
  %v5228 = vadd.f32 %v4604, %v5072
  %v5229 = vadd.f32 %v4605, %v5073
  %v5230 = vadd.f32 %v4606, %v5074
  %v5231 = vadd.f32 %v4607, %v5075
  %v5232 = vadd.f32 %v4608, %v5076
  %v5233 = vadd.f32 %v4609, %v5077
  %v5234 = vadd.f32 %v4610, %v5078
  %v5235 = vadd.f32 %v4611, %v5079
  %v5236 = vadd.f32 %v4612, %v5080
  %v5237 = vadd.f32 %v4613, %v5081
  %v5238 = vadd.f32 %v4614, %v5082
  %v5239 = vadd.f32 %v4615, %v5083
  %v5240 = vadd.f32 %v4616, %v5084
  %v5241 = vadd.f32 %v4617, %v5085
  %v5242 = vadd.f32 %v4618, %v5086
  %v5243 = vadd.f32 %v4619, %v5087
  %v5244 = vadd.f32 %v4620, %v5088
  %v5245 = vadd.f32 %v4621, %v5089
  %v5246 = vadd.f32 %v4622, %v5090
  %v5247 = vadd.f32 %v4623, %v5091
  %v5248 = vadd.f32 %v4624, %v5092
  %v5249 = vadd.f32 %v4625, %v5093
  %v5250 = vadd.f32 %v4626, %v5094
  %v5251 = vadd.f32 %v4627, %v5095
  %v5252 = vadd.f32 %v4628, %v5096
  %v5253 = vadd.f32 %v4629, %v5097
  %v5254 = vadd.f32 %v4630, %v5098
  %v5255 = vadd.f32 %v4631, %v5099
  %v5256 = vadd.f32 %v4632, %v5100
  %v5257 = vadd.f32 %v4633, %v5101
  %v5258 = vadd.f32 %v4634, %v5102
  %v5259 = vadd.f32 %v4635, %v5103
  %v5260 = vadd.f32 %v4636, %v5104
  %v5261 = vadd.f32 %v4637, %v5105
  %v5262 = vadd.f32 %v4638, %v5106
  %v5263 = vadd.f32 %v4639, %v5107
  %v5264 = vadd.f32 %v4640, %v5108
  %v5265 = vadd.f32 %v4641, %v5109
  %v5266 = vadd.f32 %v4642, %v5110
  %v5267 = vadd.f32 %v4643, %v5111
  %v5268 = vadd.f32 %v4644, %v5112
  %v5269 = vadd.f32 %v4645, %v5113
  %v5270 = vadd.f32 %v4646, %v5114
  %v5271 = vadd.f32 %v4647, %v5115
  %v5272 = vadd.f32 %v4648, %v5116
  %v5273 = vadd.f32 %v4649, %v5117
  %v5274 = vadd.f32 %v4650, %v5118
  %v5275 = vadd.f32 %v4651, %v5119
  %v5276 = vadd.f32 %v4652, %v5120
  %v5277 = vadd.f32 %v4653, %v5121
  %v5278 = vadd.f32 %v4654, %v5122
  %v5279 = vadd.f32 %v4655, %v5123
  %v5280 = vadd.f32 %v4656, %v5124
  %v5281 = vadd.f32 %v4657, %v5125
  %v5282 = vadd.f32 %v4658, %v5126
  %v5283 = vadd.f32 %v4659, %v5127
  %v5284 = vadd.f32 %v4660, %v5128
  %v5285 = vadd.f32 %v4661, %v5129
  %v5286 = vadd.f32 %v4662, %v5130
  %v5287 = vadd.f32 %v4663, %v5131
  %v5288 = vadd.f32 %v4664, %v5132
  %v5289 = vadd.f32 %v4665, %v5133
  %v5290 = vadd.f32 %v4666, %v5134
  %v5291 = vadd.f32 %v4667, %v5135
  %v5292 = vadd.f32 %v4668, %v5136
  %v5293 = vadd.f32 %v4669, %v5137
  %v5294 = vadd.f32 %v4670, %v5138
  %v5295 = vadd.f32 %v4671, %v5139
  %v5296 = vadd.f32 %v4672, %v5140
  %v5297 = vadd.f32 %v4673, %v5141
  %v5298 = vadd.f32 %v4674, %v5142
  %v5299 = vadd.f32 %v4675, %v5143
  %v5300 = vadd.f32 %v4676, %v5144
  %v5301 = vadd.f32 %v4677, %v5145
  %v5302 = vadd.f32 %v4678, %v5146
  %v5303 = vadd.f32 %v4679, %v5147
  %v5304 = vadd.f32 %v4680, %v5148
  %v5305 = vadd.f32 %v4681, %v5149
  %v5306 = vadd.f32 %v4682, %v5150
  %v5307 = vadd.f32 %v4683, %v5151
  %v5308 = vadd.f32 %v4684, %v5152
  %v5309 = vadd.f32 %v4685, %v5153
  %v5310 = vadd.f32 %v4686, %v5154
  %v5311 = vadd.f32 %v4687, %v5155
  %v5312 = vadd.f32 %v4688, %v5156
  %v5313 = vadd.f32 %v4689, %v5157
  %v5314 = vadd.f32 %v4690, %v5158
  %v5315 = vadd.f32 %v4691, %v5159
  %v5316 = vadd.f32 %v4692, %v5160
  %v5317 = vadd.f32 %v4693, %v5161
  %v5318 = vadd.f32 %v4694, %v5162
  %v5319 = vadd.f32 %v4695, %v5163
  %v5320 = vadd.f32 %v4696, %v5164
  %v5321 = vadd.f32 %v4697, %v5165
  %v5322 = vadd.f32 %v4698, %v5166
  %v5323 = vadd.f32 %v4699, %v5167
  %v5324 = vadd.f32 %v4700, %v5168
  %v5325 = vadd.f32 %v4701, %v5169
  %v5326 = vadd.f32 %v4702, %v5170
  %v5327 = vadd.f32 %v4703, %v5171
  %v5328 = vadd.f32 %v4704, %v5172
  %v5329 = vadd.f32 %v4705, %v5173
  %v5330 = vadd.f32 %v4706, %v5174
  %v5331 = vadd.f32 %v4707, %v5175
  %v5332 = vadd.f32 %v4708, %v5176
  %5333 = vset.pattern.permute.xlu0 2
  %5334 = vperm.xlu0 %5333, %v338
  %v5335 = vpop.permute.xlu0 %5334
  %5337 = vset.pattern.permute.xlu0 2
  %5338 = vperm.xlu0 %5337, %v339
  %v5339 = vpop.permute.xlu0 %5338
  %5341 = vset.pattern.permute.xlu0 2
  %5342 = vperm.xlu0 %5341, %v340
  %v5343 = vpop.permute.xlu0 %5342
  %5345 = vset.pattern.permute.xlu0 2
  %5346 = vperm.xlu0 %5345, %v341
  %v5347 = vpop.permute.xlu0 %5346
  %5349 = vset.pattern.permute.xlu0 2
  %5350 = vperm.xlu0 %5349, %v342
  %v5351 = vpop.permute.xlu0 %5350
  %5353 = vset.pattern.permute.xlu0 2
  %5354 = vperm.xlu0 %5353, %v343
  %v5355 = vpop.permute.xlu0 %5354
  %5357 = vset.pattern.permute.xlu0 2
  %5358 = vperm.xlu0 %5357, %v344
  %v5359 = vpop.permute.xlu0 %5358
  %5361 = vset.pattern.permute.xlu0 2
  %5362 = vperm.xlu0 %5361, %v345
  %v5363 = vpop.permute.xlu0 %5362
  %5365 = vset.pattern.permute.xlu0 2
  %5366 = vperm.xlu0 %5365, %v346
  %v5367 = vpop.permute.xlu0 %5366
  %5369 = vset.pattern.permute.xlu0 2
  %5370 = vperm.xlu0 %5369, %v347
  %v5371 = vpop.permute.xlu0 %5370
  %5373 = vset.pattern.permute.xlu0 2
  %5374 = vperm.xlu0 %5373, %v348
  %v5375 = vpop.permute.xlu0 %5374
  %5377 = vset.pattern.permute.xlu0 2
  %5378 = vperm.xlu0 %5377, %v349
  %v5379 = vpop.permute.xlu0 %5378
  %5381 = vset.pattern.permute.xlu0 2
  %5382 = vperm.xlu0 %5381, %v350
  %v5383 = vpop.permute.xlu0 %5382
  %5385 = vset.pattern.permute.xlu0 2
  %5386 = vperm.xlu0 %5385, %v351
  %v5387 = vpop.permute.xlu0 %5386
  %5389 = vset.pattern.permute.xlu0 2
  %5390 = vperm.xlu0 %5389, %v352
  %v5391 = vpop.permute.xlu0 %5390
  %5393 = vset.pattern.permute.xlu0 2
  %5394 = vperm.xlu0 %5393, %v353
  %v5395 = vpop.permute.xlu0 %5394
  %5397 = vset.pattern.permute.xlu0 2
  %5398 = vperm.xlu0 %5397, %v354
  %v5399 = vpop.permute.xlu0 %5398
  %5401 = vset.pattern.permute.xlu0 2
  %5402 = vperm.xlu0 %5401, %v355
  %v5403 = vpop.permute.xlu0 %5402
  %5405 = vset.pattern.permute.xlu0 2
  %5406 = vperm.xlu0 %5405, %v356
  %v5407 = vpop.permute.xlu0 %5406
  %5409 = vset.pattern.permute.xlu0 2
  %5410 = vperm.xlu0 %5409, %v357
  %v5411 = vpop.permute.xlu0 %5410
  %5413 = vset.pattern.permute.xlu0 2
  %5414 = vperm.xlu0 %5413, %v358
  %v5415 = vpop.permute.xlu0 %5414
  %5417 = vset.pattern.permute.xlu0 2
  %5418 = vperm.xlu0 %5417, %v359
  %v5419 = vpop.permute.xlu0 %5418
  %5421 = vset.pattern.permute.xlu0 2
  %5422 = vperm.xlu0 %5421, %v360
  %v5423 = vpop.permute.xlu0 %5422
  %5425 = vset.pattern.permute.xlu0 2
  %5426 = vperm.xlu0 %5425, %v361
  %v5427 = vpop.permute.xlu0 %5426
  %5429 = vset.pattern.permute.xlu0 2
  %5430 = vperm.xlu0 %5429, %v362
  %v5431 = vpop.permute.xlu0 %5430
  %5433 = vset.pattern.permute.xlu0 2
  %5434 = vperm.xlu0 %5433, %v363
  %v5435 = vpop.permute.xlu0 %5434
  %5437 = vset.pattern.permute.xlu0 2
  %5438 = vperm.xlu0 %5437, %v364
  %v5439 = vpop.permute.xlu0 %5438
  %5441 = vset.pattern.permute.xlu0 2
  %5442 = vperm.xlu0 %5441, %v365
  %v5443 = vpop.permute.xlu0 %5442
  %5445 = vset.pattern.permute.xlu0 2
  %5446 = vperm.xlu0 %5445, %v366
  %v5447 = vpop.permute.xlu0 %5446
  %5449 = vset.pattern.permute.xlu0 2
  %5450 = vperm.xlu0 %5449, %v367
  %v5451 = vpop.permute.xlu0 %5450
  %5453 = vset.pattern.permute.xlu0 2
  %5454 = vperm.xlu0 %5453, %v368
  %v5455 = vpop.permute.xlu0 %5454
  %5457 = vset.pattern.permute.xlu0 2
  %5458 = vperm.xlu0 %5457, %v369
  %v5459 = vpop.permute.xlu0 %5458
  %5461 = vset.pattern.permute.xlu0 2
  %5462 = vperm.xlu0 %5461, %v370
  %v5463 = vpop.permute.xlu0 %5462
  %5465 = vset.pattern.permute.xlu0 2
  %5466 = vperm.xlu0 %5465, %v371
  %v5467 = vpop.permute.xlu0 %5466
  %5469 = vset.pattern.permute.xlu0 2
  %5470 = vperm.xlu0 %5469, %v372
  %v5471 = vpop.permute.xlu0 %5470
  %5473 = vset.pattern.permute.xlu0 2
  %5474 = vperm.xlu0 %5473, %v373
  %v5475 = vpop.permute.xlu0 %5474
  %5477 = vset.pattern.permute.xlu0 2
  %5478 = vperm.xlu0 %5477, %v374
  %v5479 = vpop.permute.xlu0 %5478
  %5481 = vset.pattern.permute.xlu0 2
  %5482 = vperm.xlu0 %5481, %v375
  %v5483 = vpop.permute.xlu0 %5482
  %5485 = vset.pattern.permute.xlu0 2
  %5486 = vperm.xlu0 %5485, %v376
  %v5487 = vpop.permute.xlu0 %5486
  %5489 = vset.pattern.permute.xlu0 2
  %5490 = vperm.xlu0 %5489, %v377
  %v5491 = vpop.permute.xlu0 %5490
  %5493 = vset.pattern.permute.xlu0 2
  %5494 = vperm.xlu0 %5493, %v378
  %v5495 = vpop.permute.xlu0 %5494
  %5497 = vset.pattern.permute.xlu0 2
  %5498 = vperm.xlu0 %5497, %v379
  %v5499 = vpop.permute.xlu0 %5498
  %5501 = vset.pattern.permute.xlu0 2
  %5502 = vperm.xlu0 %5501, %v380
  %v5503 = vpop.permute.xlu0 %5502
  %5505 = vset.pattern.permute.xlu0 2
  %5506 = vperm.xlu0 %5505, %v381
  %v5507 = vpop.permute.xlu0 %5506
  %5509 = vset.pattern.permute.xlu0 2
  %5510 = vperm.xlu0 %5509, %v382
  %v5511 = vpop.permute.xlu0 %5510
  %5513 = vset.pattern.permute.xlu0 2
  %5514 = vperm.xlu0 %5513, %v383
  %v5515 = vpop.permute.xlu0 %5514
  %5517 = vset.pattern.permute.xlu0 2
  %5518 = vperm.xlu0 %5517, %v384
  %v5519 = vpop.permute.xlu0 %5518
  %5521 = vset.pattern.permute.xlu0 2
  %5522 = vperm.xlu0 %5521, %v385
  %v5523 = vpop.permute.xlu0 %5522
  %5525 = vset.pattern.permute.xlu0 2
  %5526 = vperm.xlu0 %5525, %v386
  %v5527 = vpop.permute.xlu0 %5526
  %5529 = vset.pattern.permute.xlu0 2
  %5530 = vperm.xlu0 %5529, %v387
  %v5531 = vpop.permute.xlu0 %5530
  %5533 = vset.pattern.permute.xlu0 2
  %5534 = vperm.xlu0 %5533, %v388
  %v5535 = vpop.permute.xlu0 %5534
  %5537 = vset.pattern.permute.xlu0 2
  %5538 = vperm.xlu0 %5537, %v389
  %v5539 = vpop.permute.xlu0 %5538
  %5541 = vset.pattern.permute.xlu0 2
  %5542 = vperm.xlu0 %5541, %v390
  %v5543 = vpop.permute.xlu0 %5542
  %5545 = vset.pattern.permute.xlu0 2
  %5546 = vperm.xlu0 %5545, %v391
  %v5547 = vpop.permute.xlu0 %5546
  %5549 = vset.pattern.permute.xlu0 2
  %5550 = vperm.xlu0 %5549, %v392
  %v5551 = vpop.permute.xlu0 %5550
  %5553 = vset.pattern.permute.xlu0 2
  %5554 = vperm.xlu0 %5553, %v393
  %v5555 = vpop.permute.xlu0 %5554
  %5557 = vset.pattern.permute.xlu0 2
  %5558 = vperm.xlu0 %5557, %v394
  %v5559 = vpop.permute.xlu0 %5558
  %5561 = vset.pattern.permute.xlu0 2
  %5562 = vperm.xlu0 %5561, %v395
  %v5563 = vpop.permute.xlu0 %5562
  %5565 = vset.pattern.permute.xlu0 2
  %5566 = vperm.xlu0 %5565, %v396
  %v5567 = vpop.permute.xlu0 %5566
  %5569 = vset.pattern.permute.xlu0 2
  %5570 = vperm.xlu0 %5569, %v397
  %v5571 = vpop.permute.xlu0 %5570
  %5573 = vset.pattern.permute.xlu0 2
  %5574 = vperm.xlu0 %5573, %v398
  %v5575 = vpop.permute.xlu0 %5574
  %5577 = vset.pattern.permute.xlu0 2
  %5578 = vperm.xlu0 %5577, %v399
  %v5579 = vpop.permute.xlu0 %5578
  %5581 = vset.pattern.permute.xlu0 2
  %5582 = vperm.xlu0 %5581, %v400
  %v5583 = vpop.permute.xlu0 %5582
  %5585 = vset.pattern.permute.xlu0 2
  %5586 = vperm.xlu0 %5585, %v401
  %v5587 = vpop.permute.xlu0 %5586
  %5589 = vset.pattern.permute.xlu0 2
  %5590 = vperm.xlu0 %5589, %v402
  %v5591 = vpop.permute.xlu0 %5590
  %5593 = vset.pattern.permute.xlu0 2
  %5594 = vperm.xlu0 %5593, %v403
  %v5595 = vpop.permute.xlu0 %5594
  %5597 = vset.pattern.permute.xlu0 2
  %5598 = vperm.xlu0 %5597, %v404
  %v5599 = vpop.permute.xlu0 %5598
  %5601 = vset.pattern.permute.xlu0 2
  %5602 = vperm.xlu0 %5601, %v405
  %v5603 = vpop.permute.xlu0 %5602
  %5605 = vset.pattern.permute.xlu0 2
  %5606 = vperm.xlu0 %5605, %v406
  %v5607 = vpop.permute.xlu0 %5606
  %5609 = vset.pattern.permute.xlu0 2
  %5610 = vperm.xlu0 %5609, %v407
  %v5611 = vpop.permute.xlu0 %5610
  %5613 = vset.pattern.permute.xlu0 2
  %5614 = vperm.xlu0 %5613, %v408
  %v5615 = vpop.permute.xlu0 %5614
  %5617 = vset.pattern.permute.xlu0 2
  %5618 = vperm.xlu0 %5617, %v409
  %v5619 = vpop.permute.xlu0 %5618
  %5621 = vset.pattern.permute.xlu0 2
  %5622 = vperm.xlu0 %5621, %v410
  %v5623 = vpop.permute.xlu0 %5622
  %5625 = vset.pattern.permute.xlu0 2
  %5626 = vperm.xlu0 %5625, %v411
  %v5627 = vpop.permute.xlu0 %5626
  %5629 = vset.pattern.permute.xlu0 2
  %5630 = vperm.xlu0 %5629, %v412
  %v5631 = vpop.permute.xlu0 %5630
  %5633 = vset.pattern.permute.xlu0 2
  %5634 = vperm.xlu0 %5633, %v413
  %v5635 = vpop.permute.xlu0 %5634
  %5637 = vset.pattern.permute.xlu0 2
  %5638 = vperm.xlu0 %5637, %v414
  %v5639 = vpop.permute.xlu0 %5638
  %5641 = vset.pattern.permute.xlu0 2
  %5642 = vperm.xlu0 %5641, %v415
  %v5643 = vpop.permute.xlu0 %5642
  %v5645 = vmul.f32 %v5335, %v1119
  %v5646 = vmul.f32 %v5335, %v885
  %v5647 = vmul.f32 %v5339, %v1120
  %v5648 = vmul.f32 %v5339, %v886
  %v5649 = vmul.f32 %v5343, %v1121
  %v5650 = vmul.f32 %v5343, %v887
  %v5651 = vmul.f32 %v5347, %v1122
  %v5652 = vmul.f32 %v5347, %v888
  %v5653 = vmul.f32 %v5351, %v1123
  %v5654 = vmul.f32 %v5351, %v889
  %v5655 = vmul.f32 %v5355, %v1124
  %v5656 = vmul.f32 %v5355, %v890
  %v5657 = vmul.f32 %v5359, %v1125
  %v5658 = vmul.f32 %v5359, %v891
  %v5659 = vmul.f32 %v5363, %v1126
  %v5660 = vmul.f32 %v5363, %v892
  %v5661 = vmul.f32 %v5367, %v1127
  %v5662 = vmul.f32 %v5367, %v893
  %v5663 = vmul.f32 %v5371, %v1128
  %v5664 = vmul.f32 %v5371, %v894
  %v5665 = vmul.f32 %v5375, %v1129
  %v5666 = vmul.f32 %v5375, %v895
  %v5667 = vmul.f32 %v5379, %v1130
  %v5668 = vmul.f32 %v5379, %v896
  %v5669 = vmul.f32 %v5383, %v1131
  %v5670 = vmul.f32 %v5383, %v897
  %v5671 = vmul.f32 %v5387, %v1132
  %v5672 = vmul.f32 %v5387, %v898
  %v5673 = vmul.f32 %v5391, %v1133
  %v5674 = vmul.f32 %v5391, %v899
  %v5675 = vmul.f32 %v5395, %v1134
  %v5676 = vmul.f32 %v5395, %v900
  %v5677 = vmul.f32 %v5399, %v1135
  %v5678 = vmul.f32 %v5399, %v901
  %v5679 = vmul.f32 %v5403, %v1136
  %v5680 = vmul.f32 %v5403, %v902
  %v5681 = vmul.f32 %v5407, %v1137
  %v5682 = vmul.f32 %v5407, %v903
  %v5683 = vmul.f32 %v5411, %v1138
  %v5684 = vmul.f32 %v5411, %v904
  %v5685 = vmul.f32 %v5415, %v1139
  %v5686 = vmul.f32 %v5415, %v905
  %v5687 = vmul.f32 %v5419, %v1140
  %v5688 = vmul.f32 %v5419, %v906
  %v5689 = vmul.f32 %v5423, %v1141
  %v5690 = vmul.f32 %v5423, %v907
  %v5691 = vmul.f32 %v5427, %v1142
  %v5692 = vmul.f32 %v5427, %v908
  %v5693 = vmul.f32 %v5431, %v1143
  %v5694 = vmul.f32 %v5431, %v909
  %v5695 = vmul.f32 %v5435, %v1144
  %v5696 = vmul.f32 %v5435, %v910
  %v5697 = vmul.f32 %v5439, %v1145
  %v5698 = vmul.f32 %v5439, %v911
  %v5699 = vmul.f32 %v5443, %v1146
  %v5700 = vmul.f32 %v5443, %v912
  %v5701 = vmul.f32 %v5447, %v1147
  %v5702 = vmul.f32 %v5447, %v913
  %v5703 = vmul.f32 %v5451, %v1148
  %v5704 = vmul.f32 %v5451, %v914
  %v5705 = vmul.f32 %v5455, %v1149
  %v5706 = vmul.f32 %v5455, %v915
  %v5707 = vmul.f32 %v5459, %v1150
  %v5708 = vmul.f32 %v5459, %v916
  %v5709 = vmul.f32 %v5463, %v1151
  %v5710 = vmul.f32 %v5463, %v917
  %v5711 = vmul.f32 %v5467, %v1152
  %v5712 = vmul.f32 %v5467, %v918
  %v5713 = vmul.f32 %v5471, %v1153
  %v5714 = vmul.f32 %v5471, %v919
  %v5715 = vmul.f32 %v5475, %v1154
  %v5716 = vmul.f32 %v5475, %v920
  %v5717 = vmul.f32 %v5479, %v1155
  %v5718 = vmul.f32 %v5479, %v921
  %v5719 = vmul.f32 %v5483, %v1156
  %v5720 = vmul.f32 %v5483, %v922
  %v5721 = vmul.f32 %v5487, %v1157
  %v5722 = vmul.f32 %v5487, %v923
  %v5723 = vmul.f32 %v5491, %v1158
  %v5724 = vmul.f32 %v5491, %v924
  %v5725 = vmul.f32 %v5495, %v1159
  %v5726 = vmul.f32 %v5495, %v925
  %v5727 = vmul.f32 %v5499, %v1160
  %v5728 = vmul.f32 %v5499, %v926
  %v5729 = vmul.f32 %v5503, %v1161
  %v5730 = vmul.f32 %v5503, %v927
  %v5731 = vmul.f32 %v5507, %v1162
  %v5732 = vmul.f32 %v5507, %v928
  %v5733 = vmul.f32 %v5511, %v1163
  %v5734 = vmul.f32 %v5511, %v929
  %v5735 = vmul.f32 %v5515, %v1164
  %v5736 = vmul.f32 %v5515, %v930
  %v5737 = vmul.f32 %v5519, %v1165
  %v5738 = vmul.f32 %v5519, %v931
  %v5739 = vmul.f32 %v5523, %v1166
  %v5740 = vmul.f32 %v5523, %v932
  %v5741 = vmul.f32 %v5527, %v1167
  %v5742 = vmul.f32 %v5527, %v933
  %v5743 = vmul.f32 %v5531, %v1168
  %v5744 = vmul.f32 %v5531, %v934
  %v5745 = vmul.f32 %v5535, %v1169
  %v5746 = vmul.f32 %v5535, %v935
  %v5747 = vmul.f32 %v5539, %v1170
  %v5748 = vmul.f32 %v5539, %v936
  %v5749 = vmul.f32 %v5543, %v1171
  %v5750 = vmul.f32 %v5543, %v937
  %v5751 = vmul.f32 %v5547, %v1172
  %v5752 = vmul.f32 %v5547, %v938
  %v5753 = vmul.f32 %v5551, %v1173
  %v5754 = vmul.f32 %v5551, %v939
  %v5755 = vmul.f32 %v5555, %v1174
  %v5756 = vmul.f32 %v5555, %v940
  %v5757 = vmul.f32 %v5559, %v1175
  %v5758 = vmul.f32 %v5559, %v941
  %v5759 = vmul.f32 %v5563, %v1176
  %v5760 = vmul.f32 %v5563, %v942
  %v5761 = vmul.f32 %v5567, %v1177
  %v5762 = vmul.f32 %v5567, %v943
  %v5763 = vmul.f32 %v5571, %v1178
  %v5764 = vmul.f32 %v5571, %v944
  %v5765 = vmul.f32 %v5575, %v1179
  %v5766 = vmul.f32 %v5575, %v945
  %v5767 = vmul.f32 %v5579, %v1180
  %v5768 = vmul.f32 %v5579, %v946
  %v5769 = vmul.f32 %v5583, %v1181
  %v5770 = vmul.f32 %v5583, %v947
  %v5771 = vmul.f32 %v5587, %v1182
  %v5772 = vmul.f32 %v5587, %v948
  %v5773 = vmul.f32 %v5591, %v1183
  %v5774 = vmul.f32 %v5591, %v949
  %v5775 = vmul.f32 %v5595, %v1184
  %v5776 = vmul.f32 %v5595, %v950
  %v5777 = vmul.f32 %v5599, %v1185
  %v5778 = vmul.f32 %v5599, %v951
  %v5779 = vmul.f32 %v5603, %v1186
  %v5780 = vmul.f32 %v5603, %v952
  %v5781 = vmul.f32 %v5607, %v1187
  %v5782 = vmul.f32 %v5607, %v953
  %v5783 = vmul.f32 %v5611, %v1188
  %v5784 = vmul.f32 %v5611, %v954
  %v5785 = vmul.f32 %v5615, %v1189
  %v5786 = vmul.f32 %v5615, %v955
  %v5787 = vmul.f32 %v5619, %v1190
  %v5788 = vmul.f32 %v5619, %v956
  %v5789 = vmul.f32 %v5623, %v1191
  %v5790 = vmul.f32 %v5623, %v957
  %v5791 = vmul.f32 %v5627, %v1192
  %v5792 = vmul.f32 %v5627, %v958
  %v5793 = vmul.f32 %v5631, %v1193
  %v5794 = vmul.f32 %v5631, %v959
  %v5795 = vmul.f32 %v5635, %v1194
  %v5796 = vmul.f32 %v5635, %v960
  %v5797 = vmul.f32 %v5639, %v1195
  %v5798 = vmul.f32 %v5639, %v961
  %v5799 = vmul.f32 %v5643, %v1196
  %v5800 = vmul.f32 %v5643, %v962
  %5801 = vset.pattern.permute.xlu0 5
  %5802 = vperm.xlu0 %5801, %v338
  %v5803 = vpop.permute.xlu0 %5802
  %5805 = vset.pattern.permute.xlu0 5
  %5806 = vperm.xlu0 %5805, %v339
  %v5807 = vpop.permute.xlu0 %5806
  %5809 = vset.pattern.permute.xlu0 5
  %5810 = vperm.xlu0 %5809, %v340
  %v5811 = vpop.permute.xlu0 %5810
  %5813 = vset.pattern.permute.xlu0 5
  %5814 = vperm.xlu0 %5813, %v341
  %v5815 = vpop.permute.xlu0 %5814
  %5817 = vset.pattern.permute.xlu0 5
  %5818 = vperm.xlu0 %5817, %v342
  %v5819 = vpop.permute.xlu0 %5818
  %5821 = vset.pattern.permute.xlu0 5
  %5822 = vperm.xlu0 %5821, %v343
  %v5823 = vpop.permute.xlu0 %5822
  %5825 = vset.pattern.permute.xlu0 5
  %5826 = vperm.xlu0 %5825, %v344
  %v5827 = vpop.permute.xlu0 %5826
  %5829 = vset.pattern.permute.xlu0 5
  %5830 = vperm.xlu0 %5829, %v345
  %v5831 = vpop.permute.xlu0 %5830
  %5833 = vset.pattern.permute.xlu0 5
  %5834 = vperm.xlu0 %5833, %v346
  %v5835 = vpop.permute.xlu0 %5834
  %5837 = vset.pattern.permute.xlu0 5
  %5838 = vperm.xlu0 %5837, %v347
  %v5839 = vpop.permute.xlu0 %5838
  %5841 = vset.pattern.permute.xlu0 5
  %5842 = vperm.xlu0 %5841, %v348
  %v5843 = vpop.permute.xlu0 %5842
  %5845 = vset.pattern.permute.xlu0 5
  %5846 = vperm.xlu0 %5845, %v349
  %v5847 = vpop.permute.xlu0 %5846
  %5849 = vset.pattern.permute.xlu0 5
  %5850 = vperm.xlu0 %5849, %v350
  %v5851 = vpop.permute.xlu0 %5850
  %5853 = vset.pattern.permute.xlu0 5
  %5854 = vperm.xlu0 %5853, %v351
  %v5855 = vpop.permute.xlu0 %5854
  %5857 = vset.pattern.permute.xlu0 5
  %5858 = vperm.xlu0 %5857, %v352
  %v5859 = vpop.permute.xlu0 %5858
  %5861 = vset.pattern.permute.xlu0 5
  %5862 = vperm.xlu0 %5861, %v353
  %v5863 = vpop.permute.xlu0 %5862
  %5865 = vset.pattern.permute.xlu0 5
  %5866 = vperm.xlu0 %5865, %v354
  %v5867 = vpop.permute.xlu0 %5866
  %5869 = vset.pattern.permute.xlu0 5
  %5870 = vperm.xlu0 %5869, %v355
  %v5871 = vpop.permute.xlu0 %5870
  %5873 = vset.pattern.permute.xlu0 5
  %5874 = vperm.xlu0 %5873, %v356
  %v5875 = vpop.permute.xlu0 %5874
  %5877 = vset.pattern.permute.xlu0 5
  %5878 = vperm.xlu0 %5877, %v357
  %v5879 = vpop.permute.xlu0 %5878
  %5881 = vset.pattern.permute.xlu0 5
  %5882 = vperm.xlu0 %5881, %v358
  %v5883 = vpop.permute.xlu0 %5882
  %5885 = vset.pattern.permute.xlu0 5
  %5886 = vperm.xlu0 %5885, %v359
  %v5887 = vpop.permute.xlu0 %5886
  %5889 = vset.pattern.permute.xlu0 5
  %5890 = vperm.xlu0 %5889, %v360
  %v5891 = vpop.permute.xlu0 %5890
  %5893 = vset.pattern.permute.xlu0 5
  %5894 = vperm.xlu0 %5893, %v361
  %v5895 = vpop.permute.xlu0 %5894
  %5897 = vset.pattern.permute.xlu0 5
  %5898 = vperm.xlu0 %5897, %v362
  %v5899 = vpop.permute.xlu0 %5898
  %5901 = vset.pattern.permute.xlu0 5
  %5902 = vperm.xlu0 %5901, %v363
  %v5903 = vpop.permute.xlu0 %5902
  %5905 = vset.pattern.permute.xlu0 5
  %5906 = vperm.xlu0 %5905, %v364
  %v5907 = vpop.permute.xlu0 %5906
  %5909 = vset.pattern.permute.xlu0 5
  %5910 = vperm.xlu0 %5909, %v365
  %v5911 = vpop.permute.xlu0 %5910
  %5913 = vset.pattern.permute.xlu0 5
  %5914 = vperm.xlu0 %5913, %v366
  %v5915 = vpop.permute.xlu0 %5914
  %5917 = vset.pattern.permute.xlu0 5
  %5918 = vperm.xlu0 %5917, %v367
  %v5919 = vpop.permute.xlu0 %5918
  %5921 = vset.pattern.permute.xlu0 5
  %5922 = vperm.xlu0 %5921, %v368
  %v5923 = vpop.permute.xlu0 %5922
  %5925 = vset.pattern.permute.xlu0 5
  %5926 = vperm.xlu0 %5925, %v369
  %v5927 = vpop.permute.xlu0 %5926
  %5929 = vset.pattern.permute.xlu0 5
  %5930 = vperm.xlu0 %5929, %v370
  %v5931 = vpop.permute.xlu0 %5930
  %5933 = vset.pattern.permute.xlu0 5
  %5934 = vperm.xlu0 %5933, %v371
  %v5935 = vpop.permute.xlu0 %5934
  %5937 = vset.pattern.permute.xlu0 5
  %5938 = vperm.xlu0 %5937, %v372
  %v5939 = vpop.permute.xlu0 %5938
  %5941 = vset.pattern.permute.xlu0 5
  %5942 = vperm.xlu0 %5941, %v373
  %v5943 = vpop.permute.xlu0 %5942
  %5945 = vset.pattern.permute.xlu0 5
  %5946 = vperm.xlu0 %5945, %v374
  %v5947 = vpop.permute.xlu0 %5946
  %5949 = vset.pattern.permute.xlu0 5
  %5950 = vperm.xlu0 %5949, %v375
  %v5951 = vpop.permute.xlu0 %5950
  %5953 = vset.pattern.permute.xlu0 5
  %5954 = vperm.xlu0 %5953, %v376
  %v5955 = vpop.permute.xlu0 %5954
  %5957 = vset.pattern.permute.xlu0 5
  %5958 = vperm.xlu0 %5957, %v377
  %v5959 = vpop.permute.xlu0 %5958
  %5961 = vset.pattern.permute.xlu0 5
  %5962 = vperm.xlu0 %5961, %v378
  %v5963 = vpop.permute.xlu0 %5962
  %5965 = vset.pattern.permute.xlu0 5
  %5966 = vperm.xlu0 %5965, %v379
  %v5967 = vpop.permute.xlu0 %5966
  %5969 = vset.pattern.permute.xlu0 5
  %5970 = vperm.xlu0 %5969, %v380
  %v5971 = vpop.permute.xlu0 %5970
  %5973 = vset.pattern.permute.xlu0 5
  %5974 = vperm.xlu0 %5973, %v381
  %v5975 = vpop.permute.xlu0 %5974
  %5977 = vset.pattern.permute.xlu0 5
  %5978 = vperm.xlu0 %5977, %v382
  %v5979 = vpop.permute.xlu0 %5978
  %5981 = vset.pattern.permute.xlu0 5
  %5982 = vperm.xlu0 %5981, %v383
  %v5983 = vpop.permute.xlu0 %5982
  %5985 = vset.pattern.permute.xlu0 5
  %5986 = vperm.xlu0 %5985, %v384
  %v5987 = vpop.permute.xlu0 %5986
  %5989 = vset.pattern.permute.xlu0 5
  %5990 = vperm.xlu0 %5989, %v385
  %v5991 = vpop.permute.xlu0 %5990
  %5993 = vset.pattern.permute.xlu0 5
  %5994 = vperm.xlu0 %5993, %v386
  %v5995 = vpop.permute.xlu0 %5994
  %5997 = vset.pattern.permute.xlu0 5
  %5998 = vperm.xlu0 %5997, %v387
  %v5999 = vpop.permute.xlu0 %5998
  %6001 = vset.pattern.permute.xlu0 5
  %6002 = vperm.xlu0 %6001, %v388
  %v6003 = vpop.permute.xlu0 %6002
  %6005 = vset.pattern.permute.xlu0 5
  %6006 = vperm.xlu0 %6005, %v389
  %v6007 = vpop.permute.xlu0 %6006
  %6009 = vset.pattern.permute.xlu0 5
  %6010 = vperm.xlu0 %6009, %v390
  %v6011 = vpop.permute.xlu0 %6010
  %6013 = vset.pattern.permute.xlu0 5
  %6014 = vperm.xlu0 %6013, %v391
  %v6015 = vpop.permute.xlu0 %6014
  %6017 = vset.pattern.permute.xlu0 5
  %6018 = vperm.xlu0 %6017, %v392
  %v6019 = vpop.permute.xlu0 %6018
  %6021 = vset.pattern.permute.xlu0 5
  %6022 = vperm.xlu0 %6021, %v393
  %v6023 = vpop.permute.xlu0 %6022
  %6025 = vset.pattern.permute.xlu0 5
  %6026 = vperm.xlu0 %6025, %v394
  %v6027 = vpop.permute.xlu0 %6026
  %6029 = vset.pattern.permute.xlu0 5
  %6030 = vperm.xlu0 %6029, %v395
  %v6031 = vpop.permute.xlu0 %6030
  %6033 = vset.pattern.permute.xlu0 5
  %6034 = vperm.xlu0 %6033, %v396
  %v6035 = vpop.permute.xlu0 %6034
  %6037 = vset.pattern.permute.xlu0 5
  %6038 = vperm.xlu0 %6037, %v397
  %v6039 = vpop.permute.xlu0 %6038
  %6041 = vset.pattern.permute.xlu0 5
  %6042 = vperm.xlu0 %6041, %v398
  %v6043 = vpop.permute.xlu0 %6042
  %6045 = vset.pattern.permute.xlu0 5
  %6046 = vperm.xlu0 %6045, %v399
  %v6047 = vpop.permute.xlu0 %6046
  %6049 = vset.pattern.permute.xlu0 5
  %6050 = vperm.xlu0 %6049, %v400
  %v6051 = vpop.permute.xlu0 %6050
  %6053 = vset.pattern.permute.xlu0 5
  %6054 = vperm.xlu0 %6053, %v401
  %v6055 = vpop.permute.xlu0 %6054
  %6057 = vset.pattern.permute.xlu0 5
  %6058 = vperm.xlu0 %6057, %v402
  %v6059 = vpop.permute.xlu0 %6058
  %6061 = vset.pattern.permute.xlu0 5
  %6062 = vperm.xlu0 %6061, %v403
  %v6063 = vpop.permute.xlu0 %6062
  %6065 = vset.pattern.permute.xlu0 5
  %6066 = vperm.xlu0 %6065, %v404
  %v6067 = vpop.permute.xlu0 %6066
  %6069 = vset.pattern.permute.xlu0 5
  %6070 = vperm.xlu0 %6069, %v405
  %v6071 = vpop.permute.xlu0 %6070
  %6073 = vset.pattern.permute.xlu0 5
  %6074 = vperm.xlu0 %6073, %v406
  %v6075 = vpop.permute.xlu0 %6074
  %6077 = vset.pattern.permute.xlu0 5
  %6078 = vperm.xlu0 %6077, %v407
  %v6079 = vpop.permute.xlu0 %6078
  %6081 = vset.pattern.permute.xlu0 5
  %6082 = vperm.xlu0 %6081, %v408
  %v6083 = vpop.permute.xlu0 %6082
  %6085 = vset.pattern.permute.xlu0 5
  %6086 = vperm.xlu0 %6085, %v409
  %v6087 = vpop.permute.xlu0 %6086
  %6089 = vset.pattern.permute.xlu0 5
  %6090 = vperm.xlu0 %6089, %v410
  %v6091 = vpop.permute.xlu0 %6090
  %6093 = vset.pattern.permute.xlu0 5
  %6094 = vperm.xlu0 %6093, %v411
  %v6095 = vpop.permute.xlu0 %6094
  %6097 = vset.pattern.permute.xlu0 5
  %6098 = vperm.xlu0 %6097, %v412
  %v6099 = vpop.permute.xlu0 %6098
  %6101 = vset.pattern.permute.xlu0 5
  %6102 = vperm.xlu0 %6101, %v413
  %v6103 = vpop.permute.xlu0 %6102
  %6105 = vset.pattern.permute.xlu0 5
  %6106 = vperm.xlu0 %6105, %v414
  %v6107 = vpop.permute.xlu0 %6106
  %6109 = vset.pattern.permute.xlu0 5
  %6110 = vperm.xlu0 %6109, %v415
  %v6111 = vpop.permute.xlu0 %6110
  %v6113 = vmul.f32 %v5803, %v182
  %v6114 = vmul.f32 %v5803, %v183
  %v6115 = vmul.f32 %v5807, %v184
  %v6116 = vmul.f32 %v5807, %v185
  %v6117 = vmul.f32 %v5811, %v186
  %v6118 = vmul.f32 %v5811, %v187
  %v6119 = vmul.f32 %v5815, %v188
  %v6120 = vmul.f32 %v5815, %v189
  %v6121 = vmul.f32 %v5819, %v190
  %v6122 = vmul.f32 %v5819, %v191
  %v6123 = vmul.f32 %v5823, %v192
  %v6124 = vmul.f32 %v5823, %v193
  %v6125 = vmul.f32 %v5827, %v194
  %v6126 = vmul.f32 %v5827, %v195
  %v6127 = vmul.f32 %v5831, %v196
  %v6128 = vmul.f32 %v5831, %v197
  %v6129 = vmul.f32 %v5835, %v198
  %v6130 = vmul.f32 %v5835, %v199
  %v6131 = vmul.f32 %v5839, %v200
  %v6132 = vmul.f32 %v5839, %v201
  %v6133 = vmul.f32 %v5843, %v202
  %v6134 = vmul.f32 %v5843, %v203
  %v6135 = vmul.f32 %v5847, %v204
  %v6136 = vmul.f32 %v5847, %v205
  %v6137 = vmul.f32 %v5851, %v206
  %v6138 = vmul.f32 %v5851, %v207
  %v6139 = vmul.f32 %v5855, %v208
  %v6140 = vmul.f32 %v5855, %v209
  %v6141 = vmul.f32 %v5859, %v210
  %v6142 = vmul.f32 %v5859, %v211
  %v6143 = vmul.f32 %v5863, %v212
  %v6144 = vmul.f32 %v5863, %v213
  %v6145 = vmul.f32 %v5867, %v214
  %v6146 = vmul.f32 %v5867, %v215
  %v6147 = vmul.f32 %v5871, %v216
  %v6148 = vmul.f32 %v5871, %v217
  %v6149 = vmul.f32 %v5875, %v218
  %v6150 = vmul.f32 %v5875, %v219
  %v6151 = vmul.f32 %v5879, %v220
  %v6152 = vmul.f32 %v5879, %v221
  %v6153 = vmul.f32 %v5883, %v222
  %v6154 = vmul.f32 %v5883, %v223
  %v6155 = vmul.f32 %v5887, %v224
  %v6156 = vmul.f32 %v5887, %v225
  %v6157 = vmul.f32 %v5891, %v226
  %v6158 = vmul.f32 %v5891, %v227
  %v6159 = vmul.f32 %v5895, %v228
  %v6160 = vmul.f32 %v5895, %v229
  %v6161 = vmul.f32 %v5899, %v230
  %v6162 = vmul.f32 %v5899, %v231
  %v6163 = vmul.f32 %v5903, %v232
  %v6164 = vmul.f32 %v5903, %v233
  %v6165 = vmul.f32 %v5907, %v234
  %v6166 = vmul.f32 %v5907, %v235
  %v6167 = vmul.f32 %v5911, %v236
  %v6168 = vmul.f32 %v5911, %v237
  %v6169 = vmul.f32 %v5915, %v238
  %v6170 = vmul.f32 %v5915, %v239
  %v6171 = vmul.f32 %v5919, %v240
  %v6172 = vmul.f32 %v5919, %v241
  %v6173 = vmul.f32 %v5923, %v242
  %v6174 = vmul.f32 %v5923, %v243
  %v6175 = vmul.f32 %v5927, %v244
  %v6176 = vmul.f32 %v5927, %v245
  %v6177 = vmul.f32 %v5931, %v246
  %v6178 = vmul.f32 %v5931, %v247
  %v6179 = vmul.f32 %v5935, %v248
  %v6180 = vmul.f32 %v5935, %v249
  %v6181 = vmul.f32 %v5939, %v250
  %v6182 = vmul.f32 %v5939, %v251
  %v6183 = vmul.f32 %v5943, %v252
  %v6184 = vmul.f32 %v5943, %v253
  %v6185 = vmul.f32 %v5947, %v254
  %v6186 = vmul.f32 %v5947, %v255
  %v6187 = vmul.f32 %v5951, %v256
  %v6188 = vmul.f32 %v5951, %v257
  %v6189 = vmul.f32 %v5955, %v258
  %v6190 = vmul.f32 %v5955, %v259
  %v6191 = vmul.f32 %v5959, %v260
  %v6192 = vmul.f32 %v5959, %v261
  %v6193 = vmul.f32 %v5963, %v262
  %v6194 = vmul.f32 %v5963, %v263
  %v6195 = vmul.f32 %v5967, %v264
  %v6196 = vmul.f32 %v5967, %v265
  %v6197 = vmul.f32 %v5971, %v266
  %v6198 = vmul.f32 %v5971, %v267
  %v6199 = vmul.f32 %v5975, %v268
  %v6200 = vmul.f32 %v5975, %v269
  %v6201 = vmul.f32 %v5979, %v270
  %v6202 = vmul.f32 %v5979, %v271
  %v6203 = vmul.f32 %v5983, %v272
  %v6204 = vmul.f32 %v5983, %v273
  %v6205 = vmul.f32 %v5987, %v274
  %v6206 = vmul.f32 %v5987, %v275
  %v6207 = vmul.f32 %v5991, %v276
  %v6208 = vmul.f32 %v5991, %v277
  %v6209 = vmul.f32 %v5995, %v278
  %v6210 = vmul.f32 %v5995, %v279
  %v6211 = vmul.f32 %v5999, %v280
  %v6212 = vmul.f32 %v5999, %v281
  %v6213 = vmul.f32 %v6003, %v282
  %v6214 = vmul.f32 %v6003, %v283
  %v6215 = vmul.f32 %v6007, %v284
  %v6216 = vmul.f32 %v6007, %v285
  %v6217 = vmul.f32 %v6011, %v286
  %v6218 = vmul.f32 %v6011, %v287
  %v6219 = vmul.f32 %v6015, %v288
  %v6220 = vmul.f32 %v6015, %v289
  %v6221 = vmul.f32 %v6019, %v290
  %v6222 = vmul.f32 %v6019, %v291
  %v6223 = vmul.f32 %v6023, %v292
  %v6224 = vmul.f32 %v6023, %v293
  %v6225 = vmul.f32 %v6027, %v294
  %v6226 = vmul.f32 %v6027, %v295
  %v6227 = vmul.f32 %v6031, %v296
  %v6228 = vmul.f32 %v6031, %v297
  %v6229 = vmul.f32 %v6035, %v298
  %v6230 = vmul.f32 %v6035, %v299
  %v6231 = vmul.f32 %v6039, %v300
  %v6232 = vmul.f32 %v6039, %v301
  %v6233 = vmul.f32 %v6043, %v302
  %v6234 = vmul.f32 %v6043, %v303
  %v6235 = vmul.f32 %v6047, %v304
  %v6236 = vmul.f32 %v6047, %v305
  %v6237 = vmul.f32 %v6051, %v306
  %v6238 = vmul.f32 %v6051, %v307
  %v6239 = vmul.f32 %v6055, %v308
  %v6240 = vmul.f32 %v6055, %v309
  %v6241 = vmul.f32 %v6059, %v310
  %v6242 = vmul.f32 %v6059, %v311
  %v6243 = vmul.f32 %v6063, %v312
  %v6244 = vmul.f32 %v6063, %v313
  %v6245 = vmul.f32 %v6067, %v314
  %v6246 = vmul.f32 %v6067, %v315
  %v6247 = vmul.f32 %v6071, %v316
  %v6248 = vmul.f32 %v6071, %v317
  %v6249 = vmul.f32 %v6075, %v318
  %v6250 = vmul.f32 %v6075, %v319
  %v6251 = vmul.f32 %v6079, %v320
  %v6252 = vmul.f32 %v6079, %v321
  %v6253 = vmul.f32 %v6083, %v322
  %v6254 = vmul.f32 %v6083, %v323
  %v6255 = vmul.f32 %v6087, %v324
  %v6256 = vmul.f32 %v6087, %v325
  %v6257 = vmul.f32 %v6091, %v326
  %v6258 = vmul.f32 %v6091, %v327
  %v6259 = vmul.f32 %v6095, %v328
  %v6260 = vmul.f32 %v6095, %v329
  %v6261 = vmul.f32 %v6099, %v330
  %v6262 = vmul.f32 %v6099, %v331
  %v6263 = vmul.f32 %v6103, %v332
  %v6264 = vmul.f32 %v6103, %v333
  %v6265 = vmul.f32 %v6107, %v334
  %v6266 = vmul.f32 %v6107, %v335
  %v6267 = vmul.f32 %v6111, %v336
  %v6268 = vmul.f32 %v6111, %v337
  %v6269 = vadd.f32 %v5645, %v6113
  %v6270 = vadd.f32 %v5646, %v6114
  %v6271 = vadd.f32 %v5647, %v6115
  %v6272 = vadd.f32 %v5648, %v6116
  %v6273 = vadd.f32 %v5649, %v6117
  %v6274 = vadd.f32 %v5650, %v6118
  %v6275 = vadd.f32 %v5651, %v6119
  %v6276 = vadd.f32 %v5652, %v6120
  %v6277 = vadd.f32 %v5653, %v6121
  %v6278 = vadd.f32 %v5654, %v6122
  %v6279 = vadd.f32 %v5655, %v6123
  %v6280 = vadd.f32 %v5656, %v6124
  %v6281 = vadd.f32 %v5657, %v6125
  %v6282 = vadd.f32 %v5658, %v6126
  %v6283 = vadd.f32 %v5659, %v6127
  %v6284 = vadd.f32 %v5660, %v6128
  %v6285 = vadd.f32 %v5661, %v6129
  %v6286 = vadd.f32 %v5662, %v6130
  %v6287 = vadd.f32 %v5663, %v6131
  %v6288 = vadd.f32 %v5664, %v6132
  %v6289 = vadd.f32 %v5665, %v6133
  %v6290 = vadd.f32 %v5666, %v6134
  %v6291 = vadd.f32 %v5667, %v6135
  %v6292 = vadd.f32 %v5668, %v6136
  %v6293 = vadd.f32 %v5669, %v6137
  %v6294 = vadd.f32 %v5670, %v6138
  %v6295 = vadd.f32 %v5671, %v6139
  %v6296 = vadd.f32 %v5672, %v6140
  %v6297 = vadd.f32 %v5673, %v6141
  %v6298 = vadd.f32 %v5674, %v6142
  %v6299 = vadd.f32 %v5675, %v6143
  %v6300 = vadd.f32 %v5676, %v6144
  %v6301 = vadd.f32 %v5677, %v6145
  %v6302 = vadd.f32 %v5678, %v6146
  %v6303 = vadd.f32 %v5679, %v6147
  %v6304 = vadd.f32 %v5680, %v6148
  %v6305 = vadd.f32 %v5681, %v6149
  %v6306 = vadd.f32 %v5682, %v6150
  %v6307 = vadd.f32 %v5683, %v6151
  %v6308 = vadd.f32 %v5684, %v6152
  %v6309 = vadd.f32 %v5685, %v6153
  %v6310 = vadd.f32 %v5686, %v6154
  %v6311 = vadd.f32 %v5687, %v6155
  %v6312 = vadd.f32 %v5688, %v6156
  %v6313 = vadd.f32 %v5689, %v6157
  %v6314 = vadd.f32 %v5690, %v6158
  %v6315 = vadd.f32 %v5691, %v6159
  %v6316 = vadd.f32 %v5692, %v6160
  %v6317 = vadd.f32 %v5693, %v6161
  %v6318 = vadd.f32 %v5694, %v6162
  %v6319 = vadd.f32 %v5695, %v6163
  %v6320 = vadd.f32 %v5696, %v6164
  %v6321 = vadd.f32 %v5697, %v6165
  %v6322 = vadd.f32 %v5698, %v6166
  %v6323 = vadd.f32 %v5699, %v6167
  %v6324 = vadd.f32 %v5700, %v6168
  %v6325 = vadd.f32 %v5701, %v6169
  %v6326 = vadd.f32 %v5702, %v6170
  %v6327 = vadd.f32 %v5703, %v6171
  %v6328 = vadd.f32 %v5704, %v6172
  %v6329 = vadd.f32 %v5705, %v6173
  %v6330 = vadd.f32 %v5706, %v6174
  %v6331 = vadd.f32 %v5707, %v6175
  %v6332 = vadd.f32 %v5708, %v6176
  %v6333 = vadd.f32 %v5709, %v6177
  %v6334 = vadd.f32 %v5710, %v6178
  %v6335 = vadd.f32 %v5711, %v6179
  %v6336 = vadd.f32 %v5712, %v6180
  %v6337 = vadd.f32 %v5713, %v6181
  %v6338 = vadd.f32 %v5714, %v6182
  %v6339 = vadd.f32 %v5715, %v6183
  %v6340 = vadd.f32 %v5716, %v6184
  %v6341 = vadd.f32 %v5717, %v6185
  %v6342 = vadd.f32 %v5718, %v6186
  %v6343 = vadd.f32 %v5719, %v6187
  %v6344 = vadd.f32 %v5720, %v6188
  %v6345 = vadd.f32 %v5721, %v6189
  %v6346 = vadd.f32 %v5722, %v6190
  %v6347 = vadd.f32 %v5723, %v6191
  %v6348 = vadd.f32 %v5724, %v6192
  %v6349 = vadd.f32 %v5725, %v6193
  %v6350 = vadd.f32 %v5726, %v6194
  %v6351 = vadd.f32 %v5727, %v6195
  %v6352 = vadd.f32 %v5728, %v6196
  %v6353 = vadd.f32 %v5729, %v6197
  %v6354 = vadd.f32 %v5730, %v6198
  %v6355 = vadd.f32 %v5731, %v6199
  %v6356 = vadd.f32 %v5732, %v6200
  %v6357 = vadd.f32 %v5733, %v6201
  %v6358 = vadd.f32 %v5734, %v6202
  %v6359 = vadd.f32 %v5735, %v6203
  %v6360 = vadd.f32 %v5736, %v6204
  %v6361 = vadd.f32 %v5737, %v6205
  %v6362 = vadd.f32 %v5738, %v6206
  %v6363 = vadd.f32 %v5739, %v6207
  %v6364 = vadd.f32 %v5740, %v6208
  %v6365 = vadd.f32 %v5741, %v6209
  %v6366 = vadd.f32 %v5742, %v6210
  %v6367 = vadd.f32 %v5743, %v6211
  %v6368 = vadd.f32 %v5744, %v6212
  %v6369 = vadd.f32 %v5745, %v6213
  %v6370 = vadd.f32 %v5746, %v6214
  %v6371 = vadd.f32 %v5747, %v6215
  %v6372 = vadd.f32 %v5748, %v6216
  %v6373 = vadd.f32 %v5749, %v6217
  %v6374 = vadd.f32 %v5750, %v6218
  %v6375 = vadd.f32 %v5751, %v6219
  %v6376 = vadd.f32 %v5752, %v6220
  %v6377 = vadd.f32 %v5753, %v6221
  %v6378 = vadd.f32 %v5754, %v6222
  %v6379 = vadd.f32 %v5755, %v6223
  %v6380 = vadd.f32 %v5756, %v6224
  %v6381 = vadd.f32 %v5757, %v6225
  %v6382 = vadd.f32 %v5758, %v6226
  %v6383 = vadd.f32 %v5759, %v6227
  %v6384 = vadd.f32 %v5760, %v6228
  %v6385 = vadd.f32 %v5761, %v6229
  %v6386 = vadd.f32 %v5762, %v6230
  %v6387 = vadd.f32 %v5763, %v6231
  %v6388 = vadd.f32 %v5764, %v6232
  %v6389 = vadd.f32 %v5765, %v6233
  %v6390 = vadd.f32 %v5766, %v6234
  %v6391 = vadd.f32 %v5767, %v6235
  %v6392 = vadd.f32 %v5768, %v6236
  %v6393 = vadd.f32 %v5769, %v6237
  %v6394 = vadd.f32 %v5770, %v6238
  %v6395 = vadd.f32 %v5771, %v6239
  %v6396 = vadd.f32 %v5772, %v6240
  %v6397 = vadd.f32 %v5773, %v6241
  %v6398 = vadd.f32 %v5774, %v6242
  %v6399 = vadd.f32 %v5775, %v6243
  %v6400 = vadd.f32 %v5776, %v6244
  %v6401 = vadd.f32 %v5777, %v6245
  %v6402 = vadd.f32 %v5778, %v6246
  %v6403 = vadd.f32 %v5779, %v6247
  %v6404 = vadd.f32 %v5780, %v6248
  %v6405 = vadd.f32 %v5781, %v6249
  %v6406 = vadd.f32 %v5782, %v6250
  %v6407 = vadd.f32 %v5783, %v6251
  %v6408 = vadd.f32 %v5784, %v6252
  %v6409 = vadd.f32 %v5785, %v6253
  %v6410 = vadd.f32 %v5786, %v6254
  %v6411 = vadd.f32 %v5787, %v6255
  %v6412 = vadd.f32 %v5788, %v6256
  %v6413 = vadd.f32 %v5789, %v6257
  %v6414 = vadd.f32 %v5790, %v6258
  %v6415 = vadd.f32 %v5791, %v6259
  %v6416 = vadd.f32 %v5792, %v6260
  %v6417 = vadd.f32 %v5793, %v6261
  %v6418 = vadd.f32 %v5794, %v6262
  %v6419 = vadd.f32 %v5795, %v6263
  %v6420 = vadd.f32 %v5796, %v6264
  %v6421 = vadd.f32 %v5797, %v6265
  %v6422 = vadd.f32 %v5798, %v6266
  %v6423 = vadd.f32 %v5799, %v6267
  %v6424 = vadd.f32 %v5800, %v6268
  %6425 = vset.pattern.permute.xlu0 8
  %6426 = vperm.xlu0 %6425, %v338
  %v6427 = vpop.permute.xlu0 %6426
  %6429 = vset.pattern.permute.xlu0 8
  %6430 = vperm.xlu0 %6429, %v339
  %v6431 = vpop.permute.xlu0 %6430
  %6433 = vset.pattern.permute.xlu0 8
  %6434 = vperm.xlu0 %6433, %v340
  %v6435 = vpop.permute.xlu0 %6434
  %6437 = vset.pattern.permute.xlu0 8
  %6438 = vperm.xlu0 %6437, %v341
  %v6439 = vpop.permute.xlu0 %6438
  %6441 = vset.pattern.permute.xlu0 8
  %6442 = vperm.xlu0 %6441, %v342
  %v6443 = vpop.permute.xlu0 %6442
  %6445 = vset.pattern.permute.xlu0 8
  %6446 = vperm.xlu0 %6445, %v343
  %v6447 = vpop.permute.xlu0 %6446
  %6449 = vset.pattern.permute.xlu0 8
  %6450 = vperm.xlu0 %6449, %v344
  %v6451 = vpop.permute.xlu0 %6450
  %6453 = vset.pattern.permute.xlu0 8
  %6454 = vperm.xlu0 %6453, %v345
  %v6455 = vpop.permute.xlu0 %6454
  %6457 = vset.pattern.permute.xlu0 8
  %6458 = vperm.xlu0 %6457, %v346
  %v6459 = vpop.permute.xlu0 %6458
  %6461 = vset.pattern.permute.xlu0 8
  %6462 = vperm.xlu0 %6461, %v347
  %v6463 = vpop.permute.xlu0 %6462
  %6465 = vset.pattern.permute.xlu0 8
  %6466 = vperm.xlu0 %6465, %v348
  %v6467 = vpop.permute.xlu0 %6466
  %6469 = vset.pattern.permute.xlu0 8
  %6470 = vperm.xlu0 %6469, %v349
  %v6471 = vpop.permute.xlu0 %6470
  %6473 = vset.pattern.permute.xlu0 8
  %6474 = vperm.xlu0 %6473, %v350
  %v6475 = vpop.permute.xlu0 %6474
  %6477 = vset.pattern.permute.xlu0 8
  %6478 = vperm.xlu0 %6477, %v351
  %v6479 = vpop.permute.xlu0 %6478
  %6481 = vset.pattern.permute.xlu0 8
  %6482 = vperm.xlu0 %6481, %v352
  %v6483 = vpop.permute.xlu0 %6482
  %6485 = vset.pattern.permute.xlu0 8
  %6486 = vperm.xlu0 %6485, %v353
  %v6487 = vpop.permute.xlu0 %6486
  %6489 = vset.pattern.permute.xlu0 8
  %6490 = vperm.xlu0 %6489, %v354
  %v6491 = vpop.permute.xlu0 %6490
  %6493 = vset.pattern.permute.xlu0 8
  %6494 = vperm.xlu0 %6493, %v355
  %v6495 = vpop.permute.xlu0 %6494
  %6497 = vset.pattern.permute.xlu0 8
  %6498 = vperm.xlu0 %6497, %v356
  %v6499 = vpop.permute.xlu0 %6498
  %6501 = vset.pattern.permute.xlu0 8
  %6502 = vperm.xlu0 %6501, %v357
  %v6503 = vpop.permute.xlu0 %6502
  %6505 = vset.pattern.permute.xlu0 8
  %6506 = vperm.xlu0 %6505, %v358
  %v6507 = vpop.permute.xlu0 %6506
  %6509 = vset.pattern.permute.xlu0 8
  %6510 = vperm.xlu0 %6509, %v359
  %v6511 = vpop.permute.xlu0 %6510
  %6513 = vset.pattern.permute.xlu0 8
  %6514 = vperm.xlu0 %6513, %v360
  %v6515 = vpop.permute.xlu0 %6514
  %6517 = vset.pattern.permute.xlu0 8
  %6518 = vperm.xlu0 %6517, %v361
  %v6519 = vpop.permute.xlu0 %6518
  %6521 = vset.pattern.permute.xlu0 8
  %6522 = vperm.xlu0 %6521, %v362
  %v6523 = vpop.permute.xlu0 %6522
  %6525 = vset.pattern.permute.xlu0 8
  %6526 = vperm.xlu0 %6525, %v363
  %v6527 = vpop.permute.xlu0 %6526
  %6529 = vset.pattern.permute.xlu0 8
  %6530 = vperm.xlu0 %6529, %v364
  %v6531 = vpop.permute.xlu0 %6530
  %6533 = vset.pattern.permute.xlu0 8
  %6534 = vperm.xlu0 %6533, %v365
  %v6535 = vpop.permute.xlu0 %6534
  %6537 = vset.pattern.permute.xlu0 8
  %6538 = vperm.xlu0 %6537, %v366
  %v6539 = vpop.permute.xlu0 %6538
  %6541 = vset.pattern.permute.xlu0 8
  %6542 = vperm.xlu0 %6541, %v367
  %v6543 = vpop.permute.xlu0 %6542
  %6545 = vset.pattern.permute.xlu0 8
  %6546 = vperm.xlu0 %6545, %v368
  %v6547 = vpop.permute.xlu0 %6546
  %6549 = vset.pattern.permute.xlu0 8
  %6550 = vperm.xlu0 %6549, %v369
  %v6551 = vpop.permute.xlu0 %6550
  %6553 = vset.pattern.permute.xlu0 8
  %6554 = vperm.xlu0 %6553, %v370
  %v6555 = vpop.permute.xlu0 %6554
  %6557 = vset.pattern.permute.xlu0 8
  %6558 = vperm.xlu0 %6557, %v371
  %v6559 = vpop.permute.xlu0 %6558
  %6561 = vset.pattern.permute.xlu0 8
  %6562 = vperm.xlu0 %6561, %v372
  %v6563 = vpop.permute.xlu0 %6562
  %6565 = vset.pattern.permute.xlu0 8
  %6566 = vperm.xlu0 %6565, %v373
  %v6567 = vpop.permute.xlu0 %6566
  %6569 = vset.pattern.permute.xlu0 8
  %6570 = vperm.xlu0 %6569, %v374
  %v6571 = vpop.permute.xlu0 %6570
  %6573 = vset.pattern.permute.xlu0 8
  %6574 = vperm.xlu0 %6573, %v375
  %v6575 = vpop.permute.xlu0 %6574
  %6577 = vset.pattern.permute.xlu0 8
  %6578 = vperm.xlu0 %6577, %v376
  %v6579 = vpop.permute.xlu0 %6578
  %6581 = vset.pattern.permute.xlu0 8
  %6582 = vperm.xlu0 %6581, %v377
  %v6583 = vpop.permute.xlu0 %6582
  %6585 = vset.pattern.permute.xlu0 8
  %6586 = vperm.xlu0 %6585, %v378
  %v6587 = vpop.permute.xlu0 %6586
  %6589 = vset.pattern.permute.xlu0 8
  %6590 = vperm.xlu0 %6589, %v379
  %v6591 = vpop.permute.xlu0 %6590
  %6593 = vset.pattern.permute.xlu0 8
  %6594 = vperm.xlu0 %6593, %v380
  %v6595 = vpop.permute.xlu0 %6594
  %6597 = vset.pattern.permute.xlu0 8
  %6598 = vperm.xlu0 %6597, %v381
  %v6599 = vpop.permute.xlu0 %6598
  %6601 = vset.pattern.permute.xlu0 8
  %6602 = vperm.xlu0 %6601, %v382
  %v6603 = vpop.permute.xlu0 %6602
  %6605 = vset.pattern.permute.xlu0 8
  %6606 = vperm.xlu0 %6605, %v383
  %v6607 = vpop.permute.xlu0 %6606
  %6609 = vset.pattern.permute.xlu0 8
  %6610 = vperm.xlu0 %6609, %v384
  %v6611 = vpop.permute.xlu0 %6610
  %6613 = vset.pattern.permute.xlu0 8
  %6614 = vperm.xlu0 %6613, %v385
  %v6615 = vpop.permute.xlu0 %6614
  %6617 = vset.pattern.permute.xlu0 8
  %6618 = vperm.xlu0 %6617, %v386
  %v6619 = vpop.permute.xlu0 %6618
  %6621 = vset.pattern.permute.xlu0 8
  %6622 = vperm.xlu0 %6621, %v387
  %v6623 = vpop.permute.xlu0 %6622
  %6625 = vset.pattern.permute.xlu0 8
  %6626 = vperm.xlu0 %6625, %v388
  %v6627 = vpop.permute.xlu0 %6626
  %6629 = vset.pattern.permute.xlu0 8
  %6630 = vperm.xlu0 %6629, %v389
  %v6631 = vpop.permute.xlu0 %6630
  %6633 = vset.pattern.permute.xlu0 8
  %6634 = vperm.xlu0 %6633, %v390
  %v6635 = vpop.permute.xlu0 %6634
  %6637 = vset.pattern.permute.xlu0 8
  %6638 = vperm.xlu0 %6637, %v391
  %v6639 = vpop.permute.xlu0 %6638
  %6641 = vset.pattern.permute.xlu0 8
  %6642 = vperm.xlu0 %6641, %v392
  %v6643 = vpop.permute.xlu0 %6642
  %6645 = vset.pattern.permute.xlu0 8
  %6646 = vperm.xlu0 %6645, %v393
  %v6647 = vpop.permute.xlu0 %6646
  %6649 = vset.pattern.permute.xlu0 8
  %6650 = vperm.xlu0 %6649, %v394
  %v6651 = vpop.permute.xlu0 %6650
  %6653 = vset.pattern.permute.xlu0 8
  %6654 = vperm.xlu0 %6653, %v395
  %v6655 = vpop.permute.xlu0 %6654
  %6657 = vset.pattern.permute.xlu0 8
  %6658 = vperm.xlu0 %6657, %v396
  %v6659 = vpop.permute.xlu0 %6658
  %6661 = vset.pattern.permute.xlu0 8
  %6662 = vperm.xlu0 %6661, %v397
  %v6663 = vpop.permute.xlu0 %6662
  %6665 = vset.pattern.permute.xlu0 8
  %6666 = vperm.xlu0 %6665, %v398
  %v6667 = vpop.permute.xlu0 %6666
  %6669 = vset.pattern.permute.xlu0 8
  %6670 = vperm.xlu0 %6669, %v399
  %v6671 = vpop.permute.xlu0 %6670
  %6673 = vset.pattern.permute.xlu0 8
  %6674 = vperm.xlu0 %6673, %v400
  %v6675 = vpop.permute.xlu0 %6674
  %6677 = vset.pattern.permute.xlu0 8
  %6678 = vperm.xlu0 %6677, %v401
  %v6679 = vpop.permute.xlu0 %6678
  %6681 = vset.pattern.permute.xlu0 8
  %6682 = vperm.xlu0 %6681, %v402
  %v6683 = vpop.permute.xlu0 %6682
  %6685 = vset.pattern.permute.xlu0 8
  %6686 = vperm.xlu0 %6685, %v403
  %v6687 = vpop.permute.xlu0 %6686
  %6689 = vset.pattern.permute.xlu0 8
  %6690 = vperm.xlu0 %6689, %v404
  %v6691 = vpop.permute.xlu0 %6690
  %6693 = vset.pattern.permute.xlu0 8
  %6694 = vperm.xlu0 %6693, %v405
  %v6695 = vpop.permute.xlu0 %6694
  %6697 = vset.pattern.permute.xlu0 8
  %6698 = vperm.xlu0 %6697, %v406
  %v6699 = vpop.permute.xlu0 %6698
  %6701 = vset.pattern.permute.xlu0 8
  %6702 = vperm.xlu0 %6701, %v407
  %v6703 = vpop.permute.xlu0 %6702
  %6705 = vset.pattern.permute.xlu0 8
  %6706 = vperm.xlu0 %6705, %v408
  %v6707 = vpop.permute.xlu0 %6706
  %6709 = vset.pattern.permute.xlu0 8
  %6710 = vperm.xlu0 %6709, %v409
  %v6711 = vpop.permute.xlu0 %6710
  %6713 = vset.pattern.permute.xlu0 8
  %6714 = vperm.xlu0 %6713, %v410
  %v6715 = vpop.permute.xlu0 %6714
  %6717 = vset.pattern.permute.xlu0 8
  %6718 = vperm.xlu0 %6717, %v411
  %v6719 = vpop.permute.xlu0 %6718
  %6721 = vset.pattern.permute.xlu0 8
  %6722 = vperm.xlu0 %6721, %v412
  %v6723 = vpop.permute.xlu0 %6722
  %6725 = vset.pattern.permute.xlu0 8
  %6726 = vperm.xlu0 %6725, %v413
  %v6727 = vpop.permute.xlu0 %6726
  %6729 = vset.pattern.permute.xlu0 8
  %6730 = vperm.xlu0 %6729, %v414
  %v6731 = vpop.permute.xlu0 %6730
  %6733 = vset.pattern.permute.xlu0 8
  %6734 = vperm.xlu0 %6733, %v415
  %v6735 = vpop.permute.xlu0 %6734
  %v6737 = vmul.f32 %v6427, %v1510
  %v6738 = vmul.f32 %v6427, %v1745
  %v6739 = vmul.f32 %v6431, %v1511
  %v6740 = vmul.f32 %v6431, %v1746
  %v6741 = vmul.f32 %v6435, %v1512
  %v6742 = vmul.f32 %v6435, %v1747
  %v6743 = vmul.f32 %v6439, %v1513
  %v6744 = vmul.f32 %v6439, %v1748
  %v6745 = vmul.f32 %v6443, %v1514
  %v6746 = vmul.f32 %v6443, %v1749
  %v6747 = vmul.f32 %v6447, %v1515
  %v6748 = vmul.f32 %v6447, %v1750
  %v6749 = vmul.f32 %v6451, %v1516
  %v6750 = vmul.f32 %v6451, %v1751
  %v6751 = vmul.f32 %v6455, %v1517
  %v6752 = vmul.f32 %v6455, %v1752
  %v6753 = vmul.f32 %v6459, %v1518
  %v6754 = vmul.f32 %v6459, %v1753
  %v6755 = vmul.f32 %v6463, %v1519
  %v6756 = vmul.f32 %v6463, %v1754
  %v6757 = vmul.f32 %v6467, %v1520
  %v6758 = vmul.f32 %v6467, %v1755
  %v6759 = vmul.f32 %v6471, %v1521
  %v6760 = vmul.f32 %v6471, %v1756
  %v6761 = vmul.f32 %v6475, %v1522
  %v6762 = vmul.f32 %v6475, %v1757
  %v6763 = vmul.f32 %v6479, %v1523
  %v6764 = vmul.f32 %v6479, %v1758
  %v6765 = vmul.f32 %v6483, %v1524
  %v6766 = vmul.f32 %v6483, %v1759
  %v6767 = vmul.f32 %v6487, %v1525
  %v6768 = vmul.f32 %v6487, %v1760
  %v6769 = vmul.f32 %v6491, %v1526
  %v6770 = vmul.f32 %v6491, %v1761
  %v6771 = vmul.f32 %v6495, %v1527
  %v6772 = vmul.f32 %v6495, %v1762
  %v6773 = vmul.f32 %v6499, %v1528
  %v6774 = vmul.f32 %v6499, %v1763
  %v6775 = vmul.f32 %v6503, %v1529
  %v6776 = vmul.f32 %v6503, %v1764
  %v6777 = vmul.f32 %v6507, %v1530
  %v6778 = vmul.f32 %v6507, %v1765
  %v6779 = vmul.f32 %v6511, %v1531
  %v6780 = vmul.f32 %v6511, %v1766
  %v6781 = vmul.f32 %v6515, %v1532
  %v6782 = vmul.f32 %v6515, %v1767
  %v6783 = vmul.f32 %v6519, %v1533
  %v6784 = vmul.f32 %v6519, %v1768
  %v6785 = vmul.f32 %v6523, %v1534
  %v6786 = vmul.f32 %v6523, %v1769
  %v6787 = vmul.f32 %v6527, %v1535
  %v6788 = vmul.f32 %v6527, %v1770
  %v6789 = vmul.f32 %v6531, %v1536
  %v6790 = vmul.f32 %v6531, %v1771
  %v6791 = vmul.f32 %v6535, %v1537
  %v6792 = vmul.f32 %v6535, %v1772
  %v6793 = vmul.f32 %v6539, %v1538
  %v6794 = vmul.f32 %v6539, %v1773
  %v6795 = vmul.f32 %v6543, %v1539
  %v6796 = vmul.f32 %v6543, %v1774
  %v6797 = vmul.f32 %v6547, %v1540
  %v6798 = vmul.f32 %v6547, %v1775
  %v6799 = vmul.f32 %v6551, %v1541
  %v6800 = vmul.f32 %v6551, %v1776
  %v6801 = vmul.f32 %v6555, %v1542
  %v6802 = vmul.f32 %v6555, %v1777
  %v6803 = vmul.f32 %v6559, %v1543
  %v6804 = vmul.f32 %v6559, %v1778
  %v6805 = vmul.f32 %v6563, %v1544
  %v6806 = vmul.f32 %v6563, %v1779
  %v6807 = vmul.f32 %v6567, %v1545
  %v6808 = vmul.f32 %v6567, %v1780
  %v6809 = vmul.f32 %v6571, %v1546
  %v6810 = vmul.f32 %v6571, %v1781
  %v6811 = vmul.f32 %v6575, %v1547
  %v6812 = vmul.f32 %v6575, %v1782
  %v6813 = vmul.f32 %v6579, %v1548
  %v6814 = vmul.f32 %v6579, %v1783
  %v6815 = vmul.f32 %v6583, %v1549
  %v6816 = vmul.f32 %v6583, %v1784
  %v6817 = vmul.f32 %v6587, %v1550
  %v6818 = vmul.f32 %v6587, %v1785
  %v6819 = vmul.f32 %v6591, %v1551
  %v6820 = vmul.f32 %v6591, %v1786
  %v6821 = vmul.f32 %v6595, %v1552
  %v6822 = vmul.f32 %v6595, %v1787
  %v6823 = vmul.f32 %v6599, %v1553
  %v6824 = vmul.f32 %v6599, %v1788
  %v6825 = vmul.f32 %v6603, %v1554
  %v6826 = vmul.f32 %v6603, %v1789
  %v6827 = vmul.f32 %v6607, %v1555
  %v6828 = vmul.f32 %v6607, %v1790
  %v6829 = vmul.f32 %v6611, %v1556
  %v6830 = vmul.f32 %v6611, %v1791
  %v6831 = vmul.f32 %v6615, %v1557
  %v6832 = vmul.f32 %v6615, %v1792
  %v6833 = vmul.f32 %v6619, %v1558
  %v6834 = vmul.f32 %v6619, %v1793
  %v6835 = vmul.f32 %v6623, %v1559
  %v6836 = vmul.f32 %v6623, %v1794
  %v6837 = vmul.f32 %v6627, %v1560
  %v6838 = vmul.f32 %v6627, %v1795
  %v6839 = vmul.f32 %v6631, %v1561
  %v6840 = vmul.f32 %v6631, %v1796
  %v6841 = vmul.f32 %v6635, %v1562
  %v6842 = vmul.f32 %v6635, %v1797
  %v6843 = vmul.f32 %v6639, %v1563
  %v6844 = vmul.f32 %v6639, %v1798
  %v6845 = vmul.f32 %v6643, %v1564
  %v6846 = vmul.f32 %v6643, %v1799
  %v6847 = vmul.f32 %v6647, %v1565
  %v6848 = vmul.f32 %v6647, %v1800
  %v6849 = vmul.f32 %v6651, %v1566
  %v6850 = vmul.f32 %v6651, %v1801
  %v6851 = vmul.f32 %v6655, %v1567
  %v6852 = vmul.f32 %v6655, %v1802
  %v6853 = vmul.f32 %v6659, %v1568
  %v6854 = vmul.f32 %v6659, %v1803
  %v6855 = vmul.f32 %v6663, %v1569
  %v6856 = vmul.f32 %v6663, %v1804
  %v6857 = vmul.f32 %v6667, %v1570
  %v6858 = vmul.f32 %v6667, %v1805
  %v6859 = vmul.f32 %v6671, %v1571
  %v6860 = vmul.f32 %v6671, %v1806
  %v6861 = vmul.f32 %v6675, %v1572
  %v6862 = vmul.f32 %v6675, %v1807
  %v6863 = vmul.f32 %v6679, %v1573
  %v6864 = vmul.f32 %v6679, %v1808
  %v6865 = vmul.f32 %v6683, %v1574
  %v6866 = vmul.f32 %v6683, %v1809
  %v6867 = vmul.f32 %v6687, %v1575
  %v6868 = vmul.f32 %v6687, %v1810
  %v6869 = vmul.f32 %v6691, %v1576
  %v6870 = vmul.f32 %v6691, %v1811
  %v6871 = vmul.f32 %v6695, %v1577
  %v6872 = vmul.f32 %v6695, %v1812
  %v6873 = vmul.f32 %v6699, %v1578
  %v6874 = vmul.f32 %v6699, %v1813
  %v6875 = vmul.f32 %v6703, %v1579
  %v6876 = vmul.f32 %v6703, %v1814
  %v6877 = vmul.f32 %v6707, %v1580
  %v6878 = vmul.f32 %v6707, %v1815
  %v6879 = vmul.f32 %v6711, %v1581
  %v6880 = vmul.f32 %v6711, %v1816
  %v6881 = vmul.f32 %v6715, %v1582
  %v6882 = vmul.f32 %v6715, %v1817
  %v6883 = vmul.f32 %v6719, %v1583
  %v6884 = vmul.f32 %v6719, %v1818
  %v6885 = vmul.f32 %v6723, %v1584
  %v6886 = vmul.f32 %v6723, %v1819
  %v6887 = vmul.f32 %v6727, %v1585
  %v6888 = vmul.f32 %v6727, %v1820
  %v6889 = vmul.f32 %v6731, %v1586
  %v6890 = vmul.f32 %v6731, %v1821
  %v6891 = vmul.f32 %v6735, %v1587
  %v6892 = vmul.f32 %v6735, %v1822
  %v6893 = vadd.f32 %v6269, %v6737
  %v6894 = vadd.f32 %v6270, %v6738
  %v6895 = vadd.f32 %v6271, %v6739
  %v6896 = vadd.f32 %v6272, %v6740
  %v6897 = vadd.f32 %v6273, %v6741
  %v6898 = vadd.f32 %v6274, %v6742
  %v6899 = vadd.f32 %v6275, %v6743
  %v6900 = vadd.f32 %v6276, %v6744
  %v6901 = vadd.f32 %v6277, %v6745
  %v6902 = vadd.f32 %v6278, %v6746
  %v6903 = vadd.f32 %v6279, %v6747
  %v6904 = vadd.f32 %v6280, %v6748
  %v6905 = vadd.f32 %v6281, %v6749
  %v6906 = vadd.f32 %v6282, %v6750
  %v6907 = vadd.f32 %v6283, %v6751
  %v6908 = vadd.f32 %v6284, %v6752
  %v6909 = vadd.f32 %v6285, %v6753
  %v6910 = vadd.f32 %v6286, %v6754
  %v6911 = vadd.f32 %v6287, %v6755
  %v6912 = vadd.f32 %v6288, %v6756
  %v6913 = vadd.f32 %v6289, %v6757
  %v6914 = vadd.f32 %v6290, %v6758
  %v6915 = vadd.f32 %v6291, %v6759
  %v6916 = vadd.f32 %v6292, %v6760
  %v6917 = vadd.f32 %v6293, %v6761
  %v6918 = vadd.f32 %v6294, %v6762
  %v6919 = vadd.f32 %v6295, %v6763
  %v6920 = vadd.f32 %v6296, %v6764
  %v6921 = vadd.f32 %v6297, %v6765
  %v6922 = vadd.f32 %v6298, %v6766
  %v6923 = vadd.f32 %v6299, %v6767
  %v6924 = vadd.f32 %v6300, %v6768
  %v6925 = vadd.f32 %v6301, %v6769
  %v6926 = vadd.f32 %v6302, %v6770
  %v6927 = vadd.f32 %v6303, %v6771
  %v6928 = vadd.f32 %v6304, %v6772
  %v6929 = vadd.f32 %v6305, %v6773
  %v6930 = vadd.f32 %v6306, %v6774
  %v6931 = vadd.f32 %v6307, %v6775
  %v6932 = vadd.f32 %v6308, %v6776
  %v6933 = vadd.f32 %v6309, %v6777
  %v6934 = vadd.f32 %v6310, %v6778
  %v6935 = vadd.f32 %v6311, %v6779
  %v6936 = vadd.f32 %v6312, %v6780
  %v6937 = vadd.f32 %v6313, %v6781
  %v6938 = vadd.f32 %v6314, %v6782
  %v6939 = vadd.f32 %v6315, %v6783
  %v6940 = vadd.f32 %v6316, %v6784
  %v6941 = vadd.f32 %v6317, %v6785
  %v6942 = vadd.f32 %v6318, %v6786
  %v6943 = vadd.f32 %v6319, %v6787
  %v6944 = vadd.f32 %v6320, %v6788
  %v6945 = vadd.f32 %v6321, %v6789
  %v6946 = vadd.f32 %v6322, %v6790
  %v6947 = vadd.f32 %v6323, %v6791
  %v6948 = vadd.f32 %v6324, %v6792
  %v6949 = vadd.f32 %v6325, %v6793
  %v6950 = vadd.f32 %v6326, %v6794
  %v6951 = vadd.f32 %v6327, %v6795
  %v6952 = vadd.f32 %v6328, %v6796
  %v6953 = vadd.f32 %v6329, %v6797
  %v6954 = vadd.f32 %v6330, %v6798
  %v6955 = vadd.f32 %v6331, %v6799
  %v6956 = vadd.f32 %v6332, %v6800
  %v6957 = vadd.f32 %v6333, %v6801
  %v6958 = vadd.f32 %v6334, %v6802
  %v6959 = vadd.f32 %v6335, %v6803
  %v6960 = vadd.f32 %v6336, %v6804
  %v6961 = vadd.f32 %v6337, %v6805
  %v6962 = vadd.f32 %v6338, %v6806
  %v6963 = vadd.f32 %v6339, %v6807
  %v6964 = vadd.f32 %v6340, %v6808
  %v6965 = vadd.f32 %v6341, %v6809
  %v6966 = vadd.f32 %v6342, %v6810
  %v6967 = vadd.f32 %v6343, %v6811
  %v6968 = vadd.f32 %v6344, %v6812
  %v6969 = vadd.f32 %v6345, %v6813
  %v6970 = vadd.f32 %v6346, %v6814
  %v6971 = vadd.f32 %v6347, %v6815
  %v6972 = vadd.f32 %v6348, %v6816
  %v6973 = vadd.f32 %v6349, %v6817
  %v6974 = vadd.f32 %v6350, %v6818
  %v6975 = vadd.f32 %v6351, %v6819
  %v6976 = vadd.f32 %v6352, %v6820
  %v6977 = vadd.f32 %v6353, %v6821
  %v6978 = vadd.f32 %v6354, %v6822
  %v6979 = vadd.f32 %v6355, %v6823
  %v6980 = vadd.f32 %v6356, %v6824
  %v6981 = vadd.f32 %v6357, %v6825
  %v6982 = vadd.f32 %v6358, %v6826
  %v6983 = vadd.f32 %v6359, %v6827
  %v6984 = vadd.f32 %v6360, %v6828
  %v6985 = vadd.f32 %v6361, %v6829
  %v6986 = vadd.f32 %v6362, %v6830
  %v6987 = vadd.f32 %v6363, %v6831
  %v6988 = vadd.f32 %v6364, %v6832
  %v6989 = vadd.f32 %v6365, %v6833
  %v6990 = vadd.f32 %v6366, %v6834
  %v6991 = vadd.f32 %v6367, %v6835
  %v6992 = vadd.f32 %v6368, %v6836
  %v6993 = vadd.f32 %v6369, %v6837
  %v6994 = vadd.f32 %v6370, %v6838
  %v6995 = vadd.f32 %v6371, %v6839
  %v6996 = vadd.f32 %v6372, %v6840
  %v6997 = vadd.f32 %v6373, %v6841
  %v6998 = vadd.f32 %v6374, %v6842
  %v6999 = vadd.f32 %v6375, %v6843
  %v7000 = vadd.f32 %v6376, %v6844
  %v7001 = vadd.f32 %v6377, %v6845
  %v7002 = vadd.f32 %v6378, %v6846
  %v7003 = vadd.f32 %v6379, %v6847
  %v7004 = vadd.f32 %v6380, %v6848
  %v7005 = vadd.f32 %v6381, %v6849
  %v7006 = vadd.f32 %v6382, %v6850
  %v7007 = vadd.f32 %v6383, %v6851
  %v7008 = vadd.f32 %v6384, %v6852
  %v7009 = vadd.f32 %v6385, %v6853
  %v7010 = vadd.f32 %v6386, %v6854
  %v7011 = vadd.f32 %v6387, %v6855
  %v7012 = vadd.f32 %v6388, %v6856
  %v7013 = vadd.f32 %v6389, %v6857
  %v7014 = vadd.f32 %v6390, %v6858
  %v7015 = vadd.f32 %v6391, %v6859
  %v7016 = vadd.f32 %v6392, %v6860
  %v7017 = vadd.f32 %v6393, %v6861
  %v7018 = vadd.f32 %v6394, %v6862
  %v7019 = vadd.f32 %v6395, %v6863
  %v7020 = vadd.f32 %v6396, %v6864
  %v7021 = vadd.f32 %v6397, %v6865
  %v7022 = vadd.f32 %v6398, %v6866
  %v7023 = vadd.f32 %v6399, %v6867
  %v7024 = vadd.f32 %v6400, %v6868
  %v7025 = vadd.f32 %v6401, %v6869
  %v7026 = vadd.f32 %v6402, %v6870
  %v7027 = vadd.f32 %v6403, %v6871
  %v7028 = vadd.f32 %v6404, %v6872
  %v7029 = vadd.f32 %v6405, %v6873
  %v7030 = vadd.f32 %v6406, %v6874
  %v7031 = vadd.f32 %v6407, %v6875
  %v7032 = vadd.f32 %v6408, %v6876
  %v7033 = vadd.f32 %v6409, %v6877
  %v7034 = vadd.f32 %v6410, %v6878
  %v7035 = vadd.f32 %v6411, %v6879
  %v7036 = vadd.f32 %v6412, %v6880
  %v7037 = vadd.f32 %v6413, %v6881
  %v7038 = vadd.f32 %v6414, %v6882
  %v7039 = vadd.f32 %v6415, %v6883
  %v7040 = vadd.f32 %v6416, %v6884
  %v7041 = vadd.f32 %v6417, %v6885
  %v7042 = vadd.f32 %v6418, %v6886
  %v7043 = vadd.f32 %v6419, %v6887
  %v7044 = vadd.f32 %v6420, %v6888
  %v7045 = vadd.f32 %v6421, %v6889
  %v7046 = vadd.f32 %v6422, %v6890
  %v7047 = vadd.f32 %v6423, %v6891
  %v7048 = vadd.f32 %v6424, %v6892
  %7205 = vrot.lane.b32.xlu0 %v3461, 1
  %v7206 = vpop.permute.xlu0 %7205
  %7207 = vrot.lane.b32.xlu0 %v3462, 1
  %v7208 = vpop.permute.xlu0 %7207
  %7209 = vrot.lane.b32.xlu0 %v3463, 1
  %v7210 = vpop.permute.xlu0 %7209
  %7211 = vrot.lane.b32.xlu0 %v3464, 1
  %v7212 = vpop.permute.xlu0 %7211
  %7213 = vrot.lane.b32.xlu0 %v3465, 1
  %v7214 = vpop.permute.xlu0 %7213
  %7215 = vrot.lane.b32.xlu0 %v3466, 1
  %v7216 = vpop.permute.xlu0 %7215
  %7217 = vrot.lane.b32.xlu0 %v3467, 1
  %v7218 = vpop.permute.xlu0 %7217
  %7219 = vrot.lane.b32.xlu0 %v3468, 1
  %v7220 = vpop.permute.xlu0 %7219
  %7221 = vrot.lane.b32.xlu0 %v3469, 1
  %v7222 = vpop.permute.xlu0 %7221
  %7223 = vrot.lane.b32.xlu0 %v3470, 1
  %v7224 = vpop.permute.xlu0 %7223
  %7225 = vrot.lane.b32.xlu0 %v3471, 1
  %v7226 = vpop.permute.xlu0 %7225
  %7227 = vrot.lane.b32.xlu0 %v3472, 1
  %v7228 = vpop.permute.xlu0 %7227
  %7229 = vrot.lane.b32.xlu0 %v3473, 1
  %v7230 = vpop.permute.xlu0 %7229
  %7231 = vrot.lane.b32.xlu0 %v3474, 1
  %v7232 = vpop.permute.xlu0 %7231
  %7233 = vrot.lane.b32.xlu0 %v3475, 1
  %v7234 = vpop.permute.xlu0 %7233
  %7235 = vrot.lane.b32.xlu0 %v3476, 1
  %v7236 = vpop.permute.xlu0 %7235
  %7237 = vrot.lane.b32.xlu0 %v3477, 1
  %v7238 = vpop.permute.xlu0 %7237
  %7239 = vrot.lane.b32.xlu0 %v3478, 1
  %v7240 = vpop.permute.xlu0 %7239
  %7241 = vrot.lane.b32.xlu0 %v3479, 1
  %v7242 = vpop.permute.xlu0 %7241
  %7243 = vrot.lane.b32.xlu0 %v3480, 1
  %v7244 = vpop.permute.xlu0 %7243
  %7245 = vrot.lane.b32.xlu0 %v3481, 1
  %v7246 = vpop.permute.xlu0 %7245
  %7247 = vrot.lane.b32.xlu0 %v3482, 1
  %v7248 = vpop.permute.xlu0 %7247
  %7249 = vrot.lane.b32.xlu0 %v3483, 1
  %v7250 = vpop.permute.xlu0 %7249
  %7251 = vrot.lane.b32.xlu0 %v3484, 1
  %v7252 = vpop.permute.xlu0 %7251
  %7253 = vrot.lane.b32.xlu0 %v3485, 1
  %v7254 = vpop.permute.xlu0 %7253
  %7255 = vrot.lane.b32.xlu0 %v3486, 1
  %v7256 = vpop.permute.xlu0 %7255
  %7257 = vrot.lane.b32.xlu0 %v3487, 1
  %v7258 = vpop.permute.xlu0 %7257
  %7259 = vrot.lane.b32.xlu0 %v3488, 1
  %v7260 = vpop.permute.xlu0 %7259
  %7261 = vrot.lane.b32.xlu0 %v3489, 1
  %v7262 = vpop.permute.xlu0 %7261
  %7263 = vrot.lane.b32.xlu0 %v3490, 1
  %v7264 = vpop.permute.xlu0 %7263
  %7265 = vrot.lane.b32.xlu0 %v3491, 1
  %v7266 = vpop.permute.xlu0 %7265
  %7267 = vrot.lane.b32.xlu0 %v3492, 1
  %v7268 = vpop.permute.xlu0 %7267
  %7269 = vrot.lane.b32.xlu0 %v3493, 1
  %v7270 = vpop.permute.xlu0 %7269
  %7271 = vrot.lane.b32.xlu0 %v3494, 1
  %v7272 = vpop.permute.xlu0 %7271
  %7273 = vrot.lane.b32.xlu0 %v3495, 1
  %v7274 = vpop.permute.xlu0 %7273
  %7275 = vrot.lane.b32.xlu0 %v3496, 1
  %v7276 = vpop.permute.xlu0 %7275
  %7277 = vrot.lane.b32.xlu0 %v3497, 1
  %v7278 = vpop.permute.xlu0 %7277
  %7279 = vrot.lane.b32.xlu0 %v3498, 1
  %v7280 = vpop.permute.xlu0 %7279
  %7281 = vrot.lane.b32.xlu0 %v3499, 1
  %v7282 = vpop.permute.xlu0 %7281
  %7283 = vrot.lane.b32.xlu0 %v3500, 1
  %v7284 = vpop.permute.xlu0 %7283
  %7285 = vrot.lane.b32.xlu0 %v3501, 1
  %v7286 = vpop.permute.xlu0 %7285
  %7287 = vrot.lane.b32.xlu0 %v3502, 1
  %v7288 = vpop.permute.xlu0 %7287
  %7289 = vrot.lane.b32.xlu0 %v3503, 1
  %v7290 = vpop.permute.xlu0 %7289
  %7291 = vrot.lane.b32.xlu0 %v3504, 1
  %v7292 = vpop.permute.xlu0 %7291
  %7293 = vrot.lane.b32.xlu0 %v3505, 1
  %v7294 = vpop.permute.xlu0 %7293
  %7295 = vrot.lane.b32.xlu0 %v3506, 1
  %v7296 = vpop.permute.xlu0 %7295
  %7297 = vrot.lane.b32.xlu0 %v3507, 1
  %v7298 = vpop.permute.xlu0 %7297
  %7299 = vrot.lane.b32.xlu0 %v3508, 1
  %v7300 = vpop.permute.xlu0 %7299
  %7301 = vrot.lane.b32.xlu0 %v3509, 1
  %v7302 = vpop.permute.xlu0 %7301
  %7303 = vrot.lane.b32.xlu0 %v3510, 1
  %v7304 = vpop.permute.xlu0 %7303
  %7305 = vrot.lane.b32.xlu0 %v3511, 1
  %v7306 = vpop.permute.xlu0 %7305
  %7307 = vrot.lane.b32.xlu0 %v3512, 1
  %v7308 = vpop.permute.xlu0 %7307
  %7309 = vrot.lane.b32.xlu0 %v3513, 1
  %v7310 = vpop.permute.xlu0 %7309
  %7311 = vrot.lane.b32.xlu0 %v3514, 1
  %v7312 = vpop.permute.xlu0 %7311
  %7313 = vrot.lane.b32.xlu0 %v3515, 1
  %v7314 = vpop.permute.xlu0 %7313
  %7315 = vrot.lane.b32.xlu0 %v3516, 1
  %v7316 = vpop.permute.xlu0 %7315
  %7317 = vrot.lane.b32.xlu0 %v3517, 1
  %v7318 = vpop.permute.xlu0 %7317
  %7319 = vrot.lane.b32.xlu0 %v3518, 1
  %v7320 = vpop.permute.xlu0 %7319
  %7321 = vrot.lane.b32.xlu0 %v3519, 1
  %v7322 = vpop.permute.xlu0 %7321
  %7323 = vrot.lane.b32.xlu0 %v3520, 1
  %v7324 = vpop.permute.xlu0 %7323
  %7325 = vrot.lane.b32.xlu0 %v3521, 1
  %v7326 = vpop.permute.xlu0 %7325
  %7327 = vrot.lane.b32.xlu0 %v3522, 1
  %v7328 = vpop.permute.xlu0 %7327
  %7329 = vrot.lane.b32.xlu0 %v3523, 1
  %v7330 = vpop.permute.xlu0 %7329
  %7331 = vrot.lane.b32.xlu0 %v3524, 1
  %v7332 = vpop.permute.xlu0 %7331
  %7333 = vrot.lane.b32.xlu0 %v3525, 1
  %v7334 = vpop.permute.xlu0 %7333
  %7335 = vrot.lane.b32.xlu0 %v3526, 1
  %v7336 = vpop.permute.xlu0 %7335
  %7337 = vrot.lane.b32.xlu0 %v3527, 1
  %v7338 = vpop.permute.xlu0 %7337
  %7339 = vrot.lane.b32.xlu0 %v3528, 1
  %v7340 = vpop.permute.xlu0 %7339
  %7341 = vrot.lane.b32.xlu0 %v3529, 1
  %v7342 = vpop.permute.xlu0 %7341
  %7343 = vrot.lane.b32.xlu0 %v3530, 1
  %v7344 = vpop.permute.xlu0 %7343
  %7345 = vrot.lane.b32.xlu0 %v3531, 1
  %v7346 = vpop.permute.xlu0 %7345
  %7347 = vrot.lane.b32.xlu0 %v3532, 1
  %v7348 = vpop.permute.xlu0 %7347
  %7349 = vrot.lane.b32.xlu0 %v3533, 1
  %v7350 = vpop.permute.xlu0 %7349
  %7351 = vrot.lane.b32.xlu0 %v3534, 1
  %v7352 = vpop.permute.xlu0 %7351
  %7353 = vrot.lane.b32.xlu0 %v3535, 1
  %v7354 = vpop.permute.xlu0 %7353
  %7355 = vrot.lane.b32.xlu0 %v3536, 1
  %v7356 = vpop.permute.xlu0 %7355
  %7357 = vrot.lane.b32.xlu0 %v3537, 1
  %v7358 = vpop.permute.xlu0 %7357
  %7359 = vrot.lane.b32.xlu0 %v3538, 1
  %v7360 = vpop.permute.xlu0 %7359
  %7361 = vrot.lane.b32.xlu0 %v3539, 1
  %v7362 = vpop.permute.xlu0 %7361
  %7363 = vrot.lane.b32.xlu0 %v3540, 1
  %v7364 = vpop.permute.xlu0 %7363
  %7365 = vrot.lane.b32.xlu0 %v3541, 1
  %v7366 = vpop.permute.xlu0 %7365
  %7367 = vrot.lane.b32.xlu0 %v3542, 1
  %v7368 = vpop.permute.xlu0 %7367
  %7369 = vrot.lane.b32.xlu0 %v3543, 1
  %v7370 = vpop.permute.xlu0 %7369
  %7371 = vrot.lane.b32.xlu0 %v3544, 1
  %v7372 = vpop.permute.xlu0 %7371
  %7373 = vrot.lane.b32.xlu0 %v3545, 1
  %v7374 = vpop.permute.xlu0 %7373
  %7375 = vrot.lane.b32.xlu0 %v3546, 1
  %v7376 = vpop.permute.xlu0 %7375
  %7377 = vrot.lane.b32.xlu0 %v3547, 1
  %v7378 = vpop.permute.xlu0 %7377
  %7379 = vrot.lane.b32.xlu0 %v3548, 1
  %v7380 = vpop.permute.xlu0 %7379
  %7381 = vrot.lane.b32.xlu0 %v3549, 1
  %v7382 = vpop.permute.xlu0 %7381
  %7383 = vrot.lane.b32.xlu0 %v3550, 1
  %v7384 = vpop.permute.xlu0 %7383
  %7385 = vrot.lane.b32.xlu0 %v3551, 1
  %v7386 = vpop.permute.xlu0 %7385
  %7387 = vrot.lane.b32.xlu0 %v3552, 1
  %v7388 = vpop.permute.xlu0 %7387
  %7389 = vrot.lane.b32.xlu0 %v3553, 1
  %v7390 = vpop.permute.xlu0 %7389
  %7391 = vrot.lane.b32.xlu0 %v3554, 1
  %v7392 = vpop.permute.xlu0 %7391
  %7393 = vrot.lane.b32.xlu0 %v3555, 1
  %v7394 = vpop.permute.xlu0 %7393
  %7395 = vrot.lane.b32.xlu0 %v3556, 1
  %v7396 = vpop.permute.xlu0 %7395
  %7397 = vrot.lane.b32.xlu0 %v3557, 1
  %v7398 = vpop.permute.xlu0 %7397
  %7399 = vrot.lane.b32.xlu0 %v3558, 1
  %v7400 = vpop.permute.xlu0 %7399
  %7401 = vrot.lane.b32.xlu0 %v3559, 1
  %v7402 = vpop.permute.xlu0 %7401
  %7403 = vrot.lane.b32.xlu0 %v3560, 1
  %v7404 = vpop.permute.xlu0 %7403
  %7405 = vrot.lane.b32.xlu0 %v3561, 1
  %v7406 = vpop.permute.xlu0 %7405
  %7407 = vrot.lane.b32.xlu0 %v3562, 1
  %v7408 = vpop.permute.xlu0 %7407
  %7409 = vrot.lane.b32.xlu0 %v3563, 1
  %v7410 = vpop.permute.xlu0 %7409
  %7411 = vrot.lane.b32.xlu0 %v3564, 1
  %v7412 = vpop.permute.xlu0 %7411
  %7413 = vrot.lane.b32.xlu0 %v3565, 1
  %v7414 = vpop.permute.xlu0 %7413
  %7415 = vrot.lane.b32.xlu0 %v3566, 1
  %v7416 = vpop.permute.xlu0 %7415
  %7417 = vrot.lane.b32.xlu0 %v3567, 1
  %v7418 = vpop.permute.xlu0 %7417
  %7419 = vrot.lane.b32.xlu0 %v3568, 1
  %v7420 = vpop.permute.xlu0 %7419
  %7421 = vrot.lane.b32.xlu0 %v3569, 1
  %v7422 = vpop.permute.xlu0 %7421
  %7423 = vrot.lane.b32.xlu0 %v3570, 1
  %v7424 = vpop.permute.xlu0 %7423
  %7425 = vrot.lane.b32.xlu0 %v3571, 1
  %v7426 = vpop.permute.xlu0 %7425
  %7427 = vrot.lane.b32.xlu0 %v3572, 1
  %v7428 = vpop.permute.xlu0 %7427
  %7429 = vrot.lane.b32.xlu0 %v3573, 1
  %v7430 = vpop.permute.xlu0 %7429
  %7431 = vrot.lane.b32.xlu0 %v3574, 1
  %v7432 = vpop.permute.xlu0 %7431
  %7433 = vrot.lane.b32.xlu0 %v3575, 1
  %v7434 = vpop.permute.xlu0 %7433
  %7435 = vrot.lane.b32.xlu0 %v3576, 1
  %v7436 = vpop.permute.xlu0 %7435
  %7437 = vrot.lane.b32.xlu0 %v3577, 1
  %v7438 = vpop.permute.xlu0 %7437
  %7439 = vrot.lane.b32.xlu0 %v3578, 1
  %v7440 = vpop.permute.xlu0 %7439
  %7441 = vrot.lane.b32.xlu0 %v3579, 1
  %v7442 = vpop.permute.xlu0 %7441
  %7443 = vrot.lane.b32.xlu0 %v3580, 1
  %v7444 = vpop.permute.xlu0 %7443
  %7445 = vrot.lane.b32.xlu0 %v3581, 1
  %v7446 = vpop.permute.xlu0 %7445
  %7447 = vrot.lane.b32.xlu0 %v3582, 1
  %v7448 = vpop.permute.xlu0 %7447
  %7449 = vrot.lane.b32.xlu0 %v3583, 1
  %v7450 = vpop.permute.xlu0 %7449
  %7451 = vrot.lane.b32.xlu0 %v3584, 1
  %v7452 = vpop.permute.xlu0 %7451
  %7453 = vrot.lane.b32.xlu0 %v3585, 1
  %v7454 = vpop.permute.xlu0 %7453
  %7455 = vrot.lane.b32.xlu0 %v3586, 1
  %v7456 = vpop.permute.xlu0 %7455
  %7457 = vrot.lane.b32.xlu0 %v3587, 1
  %v7458 = vpop.permute.xlu0 %7457
  %7459 = vrot.lane.b32.xlu0 %v3588, 1
  %v7460 = vpop.permute.xlu0 %7459
  %7461 = vrot.lane.b32.xlu0 %v3589, 1
  %v7462 = vpop.permute.xlu0 %7461
  %7463 = vrot.lane.b32.xlu0 %v3590, 1
  %v7464 = vpop.permute.xlu0 %7463
  %7465 = vrot.lane.b32.xlu0 %v3591, 1
  %v7466 = vpop.permute.xlu0 %7465
  %7467 = vrot.lane.b32.xlu0 %v3592, 1
  %v7468 = vpop.permute.xlu0 %7467
  %7469 = vrot.lane.b32.xlu0 %v3593, 1
  %v7470 = vpop.permute.xlu0 %7469
  %7471 = vrot.lane.b32.xlu0 %v3594, 1
  %v7472 = vpop.permute.xlu0 %7471
  %7473 = vrot.lane.b32.xlu0 %v3595, 1
  %v7474 = vpop.permute.xlu0 %7473
  %7475 = vrot.lane.b32.xlu0 %v3596, 1
  %v7476 = vpop.permute.xlu0 %7475
  %7477 = vrot.lane.b32.xlu0 %v3597, 1
  %v7478 = vpop.permute.xlu0 %7477
  %7479 = vrot.lane.b32.xlu0 %v3598, 1
  %v7480 = vpop.permute.xlu0 %7479
  %7481 = vrot.lane.b32.xlu0 %v3599, 1
  %v7482 = vpop.permute.xlu0 %7481
  %7483 = vrot.lane.b32.xlu0 %v3600, 1
  %v7484 = vpop.permute.xlu0 %7483
  %7485 = vrot.lane.b32.xlu0 %v3601, 1
  %v7486 = vpop.permute.xlu0 %7485
  %7487 = vrot.lane.b32.xlu0 %v3602, 1
  %v7488 = vpop.permute.xlu0 %7487
  %7489 = vrot.lane.b32.xlu0 %v3603, 1
  %v7490 = vpop.permute.xlu0 %7489
  %7491 = vrot.lane.b32.xlu0 %v3604, 1
  %v7492 = vpop.permute.xlu0 %7491
  %7493 = vrot.lane.b32.xlu0 %v3605, 1
  %v7494 = vpop.permute.xlu0 %7493
  %7495 = vrot.lane.b32.xlu0 %v3606, 1
  %v7496 = vpop.permute.xlu0 %7495
  %7497 = vrot.lane.b32.xlu0 %v3607, 1
  %v7498 = vpop.permute.xlu0 %7497
  %7499 = vrot.lane.b32.xlu0 %v3608, 1
  %v7500 = vpop.permute.xlu0 %7499
  %7501 = vrot.lane.b32.xlu0 %v3609, 1
  %v7502 = vpop.permute.xlu0 %7501
  %7503 = vrot.lane.b32.xlu0 %v3610, 1
  %v7504 = vpop.permute.xlu0 %7503
  %7505 = vrot.lane.b32.xlu0 %v3611, 1
  %v7506 = vpop.permute.xlu0 %7505
  %7507 = vrot.lane.b32.xlu0 %v3612, 1
  %v7508 = vpop.permute.xlu0 %7507
  %7509 = vrot.lane.b32.xlu0 %v3613, 1
  %v7510 = vpop.permute.xlu0 %7509
  %7511 = vrot.lane.b32.xlu0 %v3614, 1
  %v7512 = vpop.permute.xlu0 %7511
  %7513 = vrot.lane.b32.xlu0 %v3615, 1
  %v7514 = vpop.permute.xlu0 %7513
  %7515 = vrot.lane.b32.xlu0 %v3616, 1
  %v7516 = vpop.permute.xlu0 %7515
  %vm7517 = vcmask 7168
  %v7518 = vsel %vm7517, %v7206, %v7208
  %v7519 = vsel %vm7517, %v7210, %v7212
  %v7520 = vsel %vm7517, %v7214, %v7216
  %v7521 = vsel %vm7517, %v7218, %v7220
  %v7522 = vsel %vm7517, %v7222, %v7224
  %v7523 = vsel %vm7517, %v7226, %v7228
  %v7524 = vsel %vm7517, %v7230, %v7232
  %v7525 = vsel %vm7517, %v7234, %v7236
  %v7526 = vsel %vm7517, %v7238, %v7240
  %v7527 = vsel %vm7517, %v7242, %v7244
  %v7528 = vsel %vm7517, %v7246, %v7248
  %v7529 = vsel %vm7517, %v7250, %v7252
  %v7530 = vsel %vm7517, %v7254, %v7256
  %v7531 = vsel %vm7517, %v7258, %v7260
  %v7532 = vsel %vm7517, %v7262, %v7264
  %v7533 = vsel %vm7517, %v7266, %v7268
  %v7534 = vsel %vm7517, %v7270, %v7272
  %v7535 = vsel %vm7517, %v7274, %v7276
  %v7536 = vsel %vm7517, %v7278, %v7280
  %v7537 = vsel %vm7517, %v7282, %v7284
  %v7538 = vsel %vm7517, %v7286, %v7288
  %v7539 = vsel %vm7517, %v7290, %v7292
  %v7540 = vsel %vm7517, %v7294, %v7296
  %v7541 = vsel %vm7517, %v7298, %v7300
  %v7542 = vsel %vm7517, %v7302, %v7304
  %v7543 = vsel %vm7517, %v7306, %v7308
  %v7544 = vsel %vm7517, %v7310, %v7312
  %v7545 = vsel %vm7517, %v7314, %v7316
  %v7546 = vsel %vm7517, %v7318, %v7320
  %v7547 = vsel %vm7517, %v7322, %v7324
  %v7548 = vsel %vm7517, %v7326, %v7328
  %v7549 = vsel %vm7517, %v7330, %v7332
  %v7550 = vsel %vm7517, %v7334, %v7336
  %v7551 = vsel %vm7517, %v7338, %v7340
  %v7552 = vsel %vm7517, %v7342, %v7344
  %v7553 = vsel %vm7517, %v7346, %v7348
  %v7554 = vsel %vm7517, %v7350, %v7352
  %v7555 = vsel %vm7517, %v7354, %v7356
  %v7556 = vsel %vm7517, %v7358, %v7360
  %v7557 = vsel %vm7517, %v7362, %v7364
  %v7558 = vsel %vm7517, %v7366, %v7368
  %v7559 = vsel %vm7517, %v7370, %v7372
  %v7560 = vsel %vm7517, %v7374, %v7376
  %v7561 = vsel %vm7517, %v7378, %v7380
  %v7562 = vsel %vm7517, %v7382, %v7384
  %v7563 = vsel %vm7517, %v7386, %v7388
  %v7564 = vsel %vm7517, %v7390, %v7392
  %v7565 = vsel %vm7517, %v7394, %v7396
  %v7566 = vsel %vm7517, %v7398, %v7400
  %v7567 = vsel %vm7517, %v7402, %v7404
  %v7568 = vsel %vm7517, %v7406, %v7408
  %v7569 = vsel %vm7517, %v7410, %v7412
  %v7570 = vsel %vm7517, %v7414, %v7416
  %v7571 = vsel %vm7517, %v7418, %v7420
  %v7572 = vsel %vm7517, %v7422, %v7424
  %v7573 = vsel %vm7517, %v7426, %v7428
  %v7574 = vsel %vm7517, %v7430, %v7432
  %v7575 = vsel %vm7517, %v7434, %v7436
  %v7576 = vsel %vm7517, %v7438, %v7440
  %v7577 = vsel %vm7517, %v7442, %v7444
  %v7578 = vsel %vm7517, %v7446, %v7448
  %v7579 = vsel %vm7517, %v7450, %v7452
  %v7580 = vsel %vm7517, %v7454, %v7456
  %v7581 = vsel %vm7517, %v7458, %v7460
  %v7582 = vsel %vm7517, %v7462, %v7464
  %v7583 = vsel %vm7517, %v7466, %v7468
  %v7584 = vsel %vm7517, %v7470, %v7472
  %v7585 = vsel %vm7517, %v7474, %v7476
  %v7586 = vsel %vm7517, %v7478, %v7480
  %v7587 = vsel %vm7517, %v7482, %v7484
  %v7588 = vsel %vm7517, %v7486, %v7488
  %v7589 = vsel %vm7517, %v7490, %v7492
  %v7590 = vsel %vm7517, %v7494, %v7496
  %v7591 = vsel %vm7517, %v7498, %v7500
  %v7592 = vsel %vm7517, %v7502, %v7504
  %v7593 = vsel %vm7517, %v7506, %v7508
  %v7594 = vsel %vm7517, %v7510, %v7512
  %v7595 = vsel %vm7517, %v7514, %v7516
  %v7752 = vsel %vm7517, 0.0, %v7206
  %v7753 = vsel %vm7517, 0.0, %v7210
  %v7754 = vsel %vm7517, 0.0, %v7214
  %v7755 = vsel %vm7517, 0.0, %v7218
  %v7756 = vsel %vm7517, 0.0, %v7222
  %v7757 = vsel %vm7517, 0.0, %v7226
  %v7758 = vsel %vm7517, 0.0, %v7230
  %v7759 = vsel %vm7517, 0.0, %v7234
  %v7760 = vsel %vm7517, 0.0, %v7238
  %v7761 = vsel %vm7517, 0.0, %v7242
  %v7762 = vsel %vm7517, 0.0, %v7246
  %v7763 = vsel %vm7517, 0.0, %v7250
  %v7764 = vsel %vm7517, 0.0, %v7254
  %v7765 = vsel %vm7517, 0.0, %v7258
  %v7766 = vsel %vm7517, 0.0, %v7262
  %v7767 = vsel %vm7517, 0.0, %v7266
  %v7768 = vsel %vm7517, 0.0, %v7270
  %v7769 = vsel %vm7517, 0.0, %v7274
  %v7770 = vsel %vm7517, 0.0, %v7278
  %v7771 = vsel %vm7517, 0.0, %v7282
  %v7772 = vsel %vm7517, 0.0, %v7286
  %v7773 = vsel %vm7517, 0.0, %v7290
  %v7774 = vsel %vm7517, 0.0, %v7294
  %v7775 = vsel %vm7517, 0.0, %v7298
  %v7776 = vsel %vm7517, 0.0, %v7302
  %v7777 = vsel %vm7517, 0.0, %v7306
  %v7778 = vsel %vm7517, 0.0, %v7310
  %v7779 = vsel %vm7517, 0.0, %v7314
  %v7780 = vsel %vm7517, 0.0, %v7318
  %v7781 = vsel %vm7517, 0.0, %v7322
  %v7782 = vsel %vm7517, 0.0, %v7326
  %v7783 = vsel %vm7517, 0.0, %v7330
  %v7784 = vsel %vm7517, 0.0, %v7334
  %v7785 = vsel %vm7517, 0.0, %v7338
  %v7786 = vsel %vm7517, 0.0, %v7342
  %v7787 = vsel %vm7517, 0.0, %v7346
  %v7788 = vsel %vm7517, 0.0, %v7350
  %v7789 = vsel %vm7517, 0.0, %v7354
  %v7790 = vsel %vm7517, 0.0, %v7358
  %v7791 = vsel %vm7517, 0.0, %v7362
  %v7792 = vsel %vm7517, 0.0, %v7366
  %v7793 = vsel %vm7517, 0.0, %v7370
  %v7794 = vsel %vm7517, 0.0, %v7374
  %v7795 = vsel %vm7517, 0.0, %v7378
  %v7796 = vsel %vm7517, 0.0, %v7382
  %v7797 = vsel %vm7517, 0.0, %v7386
  %v7798 = vsel %vm7517, 0.0, %v7390
  %v7799 = vsel %vm7517, 0.0, %v7394
  %v7800 = vsel %vm7517, 0.0, %v7398
  %v7801 = vsel %vm7517, 0.0, %v7402
  %v7802 = vsel %vm7517, 0.0, %v7406
  %v7803 = vsel %vm7517, 0.0, %v7410
  %v7804 = vsel %vm7517, 0.0, %v7414
  %v7805 = vsel %vm7517, 0.0, %v7418
  %v7806 = vsel %vm7517, 0.0, %v7422
  %v7807 = vsel %vm7517, 0.0, %v7426
  %v7808 = vsel %vm7517, 0.0, %v7430
  %v7809 = vsel %vm7517, 0.0, %v7434
  %v7810 = vsel %vm7517, 0.0, %v7438
  %v7811 = vsel %vm7517, 0.0, %v7442
  %v7812 = vsel %vm7517, 0.0, %v7446
  %v7813 = vsel %vm7517, 0.0, %v7450
  %v7814 = vsel %vm7517, 0.0, %v7454
  %v7815 = vsel %vm7517, 0.0, %v7458
  %v7816 = vsel %vm7517, 0.0, %v7462
  %v7817 = vsel %vm7517, 0.0, %v7466
  %v7818 = vsel %vm7517, 0.0, %v7470
  %v7819 = vsel %vm7517, 0.0, %v7474
  %v7820 = vsel %vm7517, 0.0, %v7478
  %v7821 = vsel %vm7517, 0.0, %v7482
  %v7822 = vsel %vm7517, 0.0, %v7486
  %v7823 = vsel %vm7517, 0.0, %v7490
  %v7824 = vsel %vm7517, 0.0, %v7494
  %v7825 = vsel %vm7517, 0.0, %v7498
  %v7826 = vsel %vm7517, 0.0, %v7502
  %v7827 = vsel %vm7517, 0.0, %v7506
  %v7828 = vsel %vm7517, 0.0, %v7510
  %v7829 = vsel %vm7517, 0.0, %v7514
  %v7830 = vld [vmem:[%s5] sm:$0x3]
  %v7832 = vlaneseq
  %v7833 = vshrl.u32 %v7832, 7
  %v7834 = vsub.s32 0, %v7833
  %v7835 = vrot.slane %v7830, %v7834
  %v7836 = vlaneseq
  %v7837 = vshrl.u32 %v7836, 7
  %v7838 = vsub.s32 1, %v7837
  %v7839 = vrot.slane %v7830, %v7838
  %v7842 = vmul.f32 %v7752, %v7835
  %v7843 = vmul.f32 %v7518, %v7839
  %v7844 = vmul.f32 %v7753, %v7835
  %v7845 = vmul.f32 %v7519, %v7839
  %v7846 = vmul.f32 %v7754, %v7835
  %v7847 = vmul.f32 %v7520, %v7839
  %v7848 = vmul.f32 %v7755, %v7835
  %v7849 = vmul.f32 %v7521, %v7839
  %v7850 = vmul.f32 %v7756, %v7835
  %v7851 = vmul.f32 %v7522, %v7839
  %v7852 = vmul.f32 %v7757, %v7835
  %v7853 = vmul.f32 %v7523, %v7839
  %v7854 = vmul.f32 %v7758, %v7835
  %v7855 = vmul.f32 %v7524, %v7839
  %v7856 = vmul.f32 %v7759, %v7835
  %v7857 = vmul.f32 %v7525, %v7839
  %v7858 = vmul.f32 %v7760, %v7835
  %v7859 = vmul.f32 %v7526, %v7839
  %v7860 = vmul.f32 %v7761, %v7835
  %v7861 = vmul.f32 %v7527, %v7839
  %v7862 = vmul.f32 %v7762, %v7835
  %v7863 = vmul.f32 %v7528, %v7839
  %v7864 = vmul.f32 %v7763, %v7835
  %v7865 = vmul.f32 %v7529, %v7839
  %v7866 = vmul.f32 %v7764, %v7835
  %v7867 = vmul.f32 %v7530, %v7839
  %v7868 = vmul.f32 %v7765, %v7835
  %v7869 = vmul.f32 %v7531, %v7839
  %v7870 = vmul.f32 %v7766, %v7835
  %v7871 = vmul.f32 %v7532, %v7839
  %v7872 = vmul.f32 %v7767, %v7835
  %v7873 = vmul.f32 %v7533, %v7839
  %v7874 = vmul.f32 %v7768, %v7835
  %v7875 = vmul.f32 %v7534, %v7839
  %v7876 = vmul.f32 %v7769, %v7835
  %v7877 = vmul.f32 %v7535, %v7839
  %v7878 = vmul.f32 %v7770, %v7835
  %v7879 = vmul.f32 %v7536, %v7839
  %v7880 = vmul.f32 %v7771, %v7835
  %v7881 = vmul.f32 %v7537, %v7839
  %v7882 = vmul.f32 %v7772, %v7835
  %v7883 = vmul.f32 %v7538, %v7839
  %v7884 = vmul.f32 %v7773, %v7835
  %v7885 = vmul.f32 %v7539, %v7839
  %v7886 = vmul.f32 %v7774, %v7835
  %v7887 = vmul.f32 %v7540, %v7839
  %v7888 = vmul.f32 %v7775, %v7835
  %v7889 = vmul.f32 %v7541, %v7839
  %v7890 = vmul.f32 %v7776, %v7835
  %v7891 = vmul.f32 %v7542, %v7839
  %v7892 = vmul.f32 %v7777, %v7835
  %v7893 = vmul.f32 %v7543, %v7839
  %v7894 = vmul.f32 %v7778, %v7835
  %v7895 = vmul.f32 %v7544, %v7839
  %v7896 = vmul.f32 %v7779, %v7835
  %v7897 = vmul.f32 %v7545, %v7839
  %v7898 = vmul.f32 %v7780, %v7835
  %v7899 = vmul.f32 %v7546, %v7839
  %v7900 = vmul.f32 %v7781, %v7835
  %v7901 = vmul.f32 %v7547, %v7839
  %v7902 = vmul.f32 %v7782, %v7835
  %v7903 = vmul.f32 %v7548, %v7839
  %v7904 = vmul.f32 %v7783, %v7835
  %v7905 = vmul.f32 %v7549, %v7839
  %v7906 = vmul.f32 %v7784, %v7835
  %v7907 = vmul.f32 %v7550, %v7839
  %v7908 = vmul.f32 %v7785, %v7835
  %v7909 = vmul.f32 %v7551, %v7839
  %v7910 = vmul.f32 %v7786, %v7835
  %v7911 = vmul.f32 %v7552, %v7839
  %v7912 = vmul.f32 %v7787, %v7835
  %v7913 = vmul.f32 %v7553, %v7839
  %v7914 = vmul.f32 %v7788, %v7835
  %v7915 = vmul.f32 %v7554, %v7839
  %v7916 = vmul.f32 %v7789, %v7835
  %v7917 = vmul.f32 %v7555, %v7839
  %v7918 = vmul.f32 %v7790, %v7835
  %v7919 = vmul.f32 %v7556, %v7839
  %v7920 = vmul.f32 %v7791, %v7835
  %v7921 = vmul.f32 %v7557, %v7839
  %v7922 = vmul.f32 %v7792, %v7835
  %v7923 = vmul.f32 %v7558, %v7839
  %v7924 = vmul.f32 %v7793, %v7835
  %v7925 = vmul.f32 %v7559, %v7839
  %v7926 = vmul.f32 %v7794, %v7835
  %v7927 = vmul.f32 %v7560, %v7839
  %v7928 = vmul.f32 %v7795, %v7835
  %v7929 = vmul.f32 %v7561, %v7839
  %v7930 = vmul.f32 %v7796, %v7835
  %v7931 = vmul.f32 %v7562, %v7839
  %v7932 = vmul.f32 %v7797, %v7835
  %v7933 = vmul.f32 %v7563, %v7839
  %v7934 = vmul.f32 %v7798, %v7835
  %v7935 = vmul.f32 %v7564, %v7839
  %v7936 = vmul.f32 %v7799, %v7835
  %v7937 = vmul.f32 %v7565, %v7839
  %v7938 = vmul.f32 %v7800, %v7835
  %v7939 = vmul.f32 %v7566, %v7839
  %v7940 = vmul.f32 %v7801, %v7835
  %v7941 = vmul.f32 %v7567, %v7839
  %v7942 = vmul.f32 %v7802, %v7835
  %v7943 = vmul.f32 %v7568, %v7839
  %v7944 = vmul.f32 %v7803, %v7835
  %v7945 = vmul.f32 %v7569, %v7839
  %v7946 = vmul.f32 %v7804, %v7835
  %v7947 = vmul.f32 %v7570, %v7839
  %v7948 = vmul.f32 %v7805, %v7835
  %v7949 = vmul.f32 %v7571, %v7839
  %v7950 = vmul.f32 %v7806, %v7835
  %v7951 = vmul.f32 %v7572, %v7839
  %v7952 = vmul.f32 %v7807, %v7835
  %v7953 = vmul.f32 %v7573, %v7839
  %v7954 = vmul.f32 %v7808, %v7835
  %v7955 = vmul.f32 %v7574, %v7839
  %v7956 = vmul.f32 %v7809, %v7835
  %v7957 = vmul.f32 %v7575, %v7839
  %v7958 = vmul.f32 %v7810, %v7835
  %v7959 = vmul.f32 %v7576, %v7839
  %v7960 = vmul.f32 %v7811, %v7835
  %v7961 = vmul.f32 %v7577, %v7839
  %v7962 = vmul.f32 %v7812, %v7835
  %v7963 = vmul.f32 %v7578, %v7839
  %v7964 = vmul.f32 %v7813, %v7835
  %v7965 = vmul.f32 %v7579, %v7839
  %v7966 = vmul.f32 %v7814, %v7835
  %v7967 = vmul.f32 %v7580, %v7839
  %v7968 = vmul.f32 %v7815, %v7835
  %v7969 = vmul.f32 %v7581, %v7839
  %v7970 = vmul.f32 %v7816, %v7835
  %v7971 = vmul.f32 %v7582, %v7839
  %v7972 = vmul.f32 %v7817, %v7835
  %v7973 = vmul.f32 %v7583, %v7839
  %v7974 = vmul.f32 %v7818, %v7835
  %v7975 = vmul.f32 %v7584, %v7839
  %v7976 = vmul.f32 %v7819, %v7835
  %v7977 = vmul.f32 %v7585, %v7839
  %v7978 = vmul.f32 %v7820, %v7835
  %v7979 = vmul.f32 %v7586, %v7839
  %v7980 = vmul.f32 %v7821, %v7835
  %v7981 = vmul.f32 %v7587, %v7839
  %v7982 = vmul.f32 %v7822, %v7835
  %v7983 = vmul.f32 %v7588, %v7839
  %v7984 = vmul.f32 %v7823, %v7835
  %v7985 = vmul.f32 %v7589, %v7839
  %v7986 = vmul.f32 %v7824, %v7835
  %v7987 = vmul.f32 %v7590, %v7839
  %v7988 = vmul.f32 %v7825, %v7835
  %v7989 = vmul.f32 %v7591, %v7839
  %v7990 = vmul.f32 %v7826, %v7835
  %v7991 = vmul.f32 %v7592, %v7839
  %v7992 = vmul.f32 %v7827, %v7835
  %v7993 = vmul.f32 %v7593, %v7839
  %v7994 = vmul.f32 %v7828, %v7835
  %v7995 = vmul.f32 %v7594, %v7839
  %v7996 = vmul.f32 %v7829, %v7835
  %v7997 = vmul.f32 %v7595, %v7839
  %8154 = vrot.lane.b32.xlu0 %v6893, 127
  %v8155 = vpop.permute.xlu0 %8154
  %8156 = vrot.lane.b32.xlu0 %v6894, 127
  %v8157 = vpop.permute.xlu0 %8156
  %8158 = vrot.lane.b32.xlu0 %v6895, 127
  %v8159 = vpop.permute.xlu0 %8158
  %8160 = vrot.lane.b32.xlu0 %v6896, 127
  %v8161 = vpop.permute.xlu0 %8160
  %8162 = vrot.lane.b32.xlu0 %v6897, 127
  %v8163 = vpop.permute.xlu0 %8162
  %8164 = vrot.lane.b32.xlu0 %v6898, 127
  %v8165 = vpop.permute.xlu0 %8164
  %8166 = vrot.lane.b32.xlu0 %v6899, 127
  %v8167 = vpop.permute.xlu0 %8166
  %8168 = vrot.lane.b32.xlu0 %v6900, 127
  %v8169 = vpop.permute.xlu0 %8168
  %8170 = vrot.lane.b32.xlu0 %v6901, 127
  %v8171 = vpop.permute.xlu0 %8170
  %8172 = vrot.lane.b32.xlu0 %v6902, 127
  %v8173 = vpop.permute.xlu0 %8172
  %8174 = vrot.lane.b32.xlu0 %v6903, 127
  %v8175 = vpop.permute.xlu0 %8174
  %8176 = vrot.lane.b32.xlu0 %v6904, 127
  %v8177 = vpop.permute.xlu0 %8176
  %8178 = vrot.lane.b32.xlu0 %v6905, 127
  %v8179 = vpop.permute.xlu0 %8178
  %8180 = vrot.lane.b32.xlu0 %v6906, 127
  %v8181 = vpop.permute.xlu0 %8180
  %8182 = vrot.lane.b32.xlu0 %v6907, 127
  %v8183 = vpop.permute.xlu0 %8182
  %8184 = vrot.lane.b32.xlu0 %v6908, 127
  %v8185 = vpop.permute.xlu0 %8184
  %8186 = vrot.lane.b32.xlu0 %v6909, 127
  %v8187 = vpop.permute.xlu0 %8186
  %8188 = vrot.lane.b32.xlu0 %v6910, 127
  %v8189 = vpop.permute.xlu0 %8188
  %8190 = vrot.lane.b32.xlu0 %v6911, 127
  %v8191 = vpop.permute.xlu0 %8190
  %8192 = vrot.lane.b32.xlu0 %v6912, 127
  %v8193 = vpop.permute.xlu0 %8192
  %8194 = vrot.lane.b32.xlu0 %v6913, 127
  %v8195 = vpop.permute.xlu0 %8194
  %8196 = vrot.lane.b32.xlu0 %v6914, 127
  %v8197 = vpop.permute.xlu0 %8196
  %8198 = vrot.lane.b32.xlu0 %v6915, 127
  %v8199 = vpop.permute.xlu0 %8198
  %8200 = vrot.lane.b32.xlu0 %v6916, 127
  %v8201 = vpop.permute.xlu0 %8200
  %8202 = vrot.lane.b32.xlu0 %v6917, 127
  %v8203 = vpop.permute.xlu0 %8202
  %8204 = vrot.lane.b32.xlu0 %v6918, 127
  %v8205 = vpop.permute.xlu0 %8204
  %8206 = vrot.lane.b32.xlu0 %v6919, 127
  %v8207 = vpop.permute.xlu0 %8206
  %8208 = vrot.lane.b32.xlu0 %v6920, 127
  %v8209 = vpop.permute.xlu0 %8208
  %8210 = vrot.lane.b32.xlu0 %v6921, 127
  %v8211 = vpop.permute.xlu0 %8210
  %8212 = vrot.lane.b32.xlu0 %v6922, 127
  %v8213 = vpop.permute.xlu0 %8212
  %8214 = vrot.lane.b32.xlu0 %v6923, 127
  %v8215 = vpop.permute.xlu0 %8214
  %8216 = vrot.lane.b32.xlu0 %v6924, 127
  %v8217 = vpop.permute.xlu0 %8216
  %8218 = vrot.lane.b32.xlu0 %v6925, 127
  %v8219 = vpop.permute.xlu0 %8218
  %8220 = vrot.lane.b32.xlu0 %v6926, 127
  %v8221 = vpop.permute.xlu0 %8220
  %8222 = vrot.lane.b32.xlu0 %v6927, 127
  %v8223 = vpop.permute.xlu0 %8222
  %8224 = vrot.lane.b32.xlu0 %v6928, 127
  %v8225 = vpop.permute.xlu0 %8224
  %8226 = vrot.lane.b32.xlu0 %v6929, 127
  %v8227 = vpop.permute.xlu0 %8226
  %8228 = vrot.lane.b32.xlu0 %v6930, 127
  %v8229 = vpop.permute.xlu0 %8228
  %8230 = vrot.lane.b32.xlu0 %v6931, 127
  %v8231 = vpop.permute.xlu0 %8230
  %8232 = vrot.lane.b32.xlu0 %v6932, 127
  %v8233 = vpop.permute.xlu0 %8232
  %8234 = vrot.lane.b32.xlu0 %v6933, 127
  %v8235 = vpop.permute.xlu0 %8234
  %8236 = vrot.lane.b32.xlu0 %v6934, 127
  %v8237 = vpop.permute.xlu0 %8236
  %8238 = vrot.lane.b32.xlu0 %v6935, 127
  %v8239 = vpop.permute.xlu0 %8238
  %8240 = vrot.lane.b32.xlu0 %v6936, 127
  %v8241 = vpop.permute.xlu0 %8240
  %8242 = vrot.lane.b32.xlu0 %v6937, 127
  %v8243 = vpop.permute.xlu0 %8242
  %8244 = vrot.lane.b32.xlu0 %v6938, 127
  %v8245 = vpop.permute.xlu0 %8244
  %8246 = vrot.lane.b32.xlu0 %v6939, 127
  %v8247 = vpop.permute.xlu0 %8246
  %8248 = vrot.lane.b32.xlu0 %v6940, 127
  %v8249 = vpop.permute.xlu0 %8248
  %8250 = vrot.lane.b32.xlu0 %v6941, 127
  %v8251 = vpop.permute.xlu0 %8250
  %8252 = vrot.lane.b32.xlu0 %v6942, 127
  %v8253 = vpop.permute.xlu0 %8252
  %8254 = vrot.lane.b32.xlu0 %v6943, 127
  %v8255 = vpop.permute.xlu0 %8254
  %8256 = vrot.lane.b32.xlu0 %v6944, 127
  %v8257 = vpop.permute.xlu0 %8256
  %8258 = vrot.lane.b32.xlu0 %v6945, 127
  %v8259 = vpop.permute.xlu0 %8258
  %8260 = vrot.lane.b32.xlu0 %v6946, 127
  %v8261 = vpop.permute.xlu0 %8260
  %8262 = vrot.lane.b32.xlu0 %v6947, 127
  %v8263 = vpop.permute.xlu0 %8262
  %8264 = vrot.lane.b32.xlu0 %v6948, 127
  %v8265 = vpop.permute.xlu0 %8264
  %8266 = vrot.lane.b32.xlu0 %v6949, 127
  %v8267 = vpop.permute.xlu0 %8266
  %8268 = vrot.lane.b32.xlu0 %v6950, 127
  %v8269 = vpop.permute.xlu0 %8268
  %8270 = vrot.lane.b32.xlu0 %v6951, 127
  %v8271 = vpop.permute.xlu0 %8270
  %8272 = vrot.lane.b32.xlu0 %v6952, 127
  %v8273 = vpop.permute.xlu0 %8272
  %8274 = vrot.lane.b32.xlu0 %v6953, 127
  %v8275 = vpop.permute.xlu0 %8274
  %8276 = vrot.lane.b32.xlu0 %v6954, 127
  %v8277 = vpop.permute.xlu0 %8276
  %8278 = vrot.lane.b32.xlu0 %v6955, 127
  %v8279 = vpop.permute.xlu0 %8278
  %8280 = vrot.lane.b32.xlu0 %v6956, 127
  %v8281 = vpop.permute.xlu0 %8280
  %8282 = vrot.lane.b32.xlu0 %v6957, 127
  %v8283 = vpop.permute.xlu0 %8282
  %8284 = vrot.lane.b32.xlu0 %v6958, 127
  %v8285 = vpop.permute.xlu0 %8284
  %8286 = vrot.lane.b32.xlu0 %v6959, 127
  %v8287 = vpop.permute.xlu0 %8286
  %8288 = vrot.lane.b32.xlu0 %v6960, 127
  %v8289 = vpop.permute.xlu0 %8288
  %8290 = vrot.lane.b32.xlu0 %v6961, 127
  %v8291 = vpop.permute.xlu0 %8290
  %8292 = vrot.lane.b32.xlu0 %v6962, 127
  %v8293 = vpop.permute.xlu0 %8292
  %8294 = vrot.lane.b32.xlu0 %v6963, 127
  %v8295 = vpop.permute.xlu0 %8294
  %8296 = vrot.lane.b32.xlu0 %v6964, 127
  %v8297 = vpop.permute.xlu0 %8296
  %8298 = vrot.lane.b32.xlu0 %v6965, 127
  %v8299 = vpop.permute.xlu0 %8298
  %8300 = vrot.lane.b32.xlu0 %v6966, 127
  %v8301 = vpop.permute.xlu0 %8300
  %8302 = vrot.lane.b32.xlu0 %v6967, 127
  %v8303 = vpop.permute.xlu0 %8302
  %8304 = vrot.lane.b32.xlu0 %v6968, 127
  %v8305 = vpop.permute.xlu0 %8304
  %8306 = vrot.lane.b32.xlu0 %v6969, 127
  %v8307 = vpop.permute.xlu0 %8306
  %8308 = vrot.lane.b32.xlu0 %v6970, 127
  %v8309 = vpop.permute.xlu0 %8308
  %8310 = vrot.lane.b32.xlu0 %v6971, 127
  %v8311 = vpop.permute.xlu0 %8310
  %8312 = vrot.lane.b32.xlu0 %v6972, 127
  %v8313 = vpop.permute.xlu0 %8312
  %8314 = vrot.lane.b32.xlu0 %v6973, 127
  %v8315 = vpop.permute.xlu0 %8314
  %8316 = vrot.lane.b32.xlu0 %v6974, 127
  %v8317 = vpop.permute.xlu0 %8316
  %8318 = vrot.lane.b32.xlu0 %v6975, 127
  %v8319 = vpop.permute.xlu0 %8318
  %8320 = vrot.lane.b32.xlu0 %v6976, 127
  %v8321 = vpop.permute.xlu0 %8320
  %8322 = vrot.lane.b32.xlu0 %v6977, 127
  %v8323 = vpop.permute.xlu0 %8322
  %8324 = vrot.lane.b32.xlu0 %v6978, 127
  %v8325 = vpop.permute.xlu0 %8324
  %8326 = vrot.lane.b32.xlu0 %v6979, 127
  %v8327 = vpop.permute.xlu0 %8326
  %8328 = vrot.lane.b32.xlu0 %v6980, 127
  %v8329 = vpop.permute.xlu0 %8328
  %8330 = vrot.lane.b32.xlu0 %v6981, 127
  %v8331 = vpop.permute.xlu0 %8330
  %8332 = vrot.lane.b32.xlu0 %v6982, 127
  %v8333 = vpop.permute.xlu0 %8332
  %8334 = vrot.lane.b32.xlu0 %v6983, 127
  %v8335 = vpop.permute.xlu0 %8334
  %8336 = vrot.lane.b32.xlu0 %v6984, 127
  %v8337 = vpop.permute.xlu0 %8336
  %8338 = vrot.lane.b32.xlu0 %v6985, 127
  %v8339 = vpop.permute.xlu0 %8338
  %8340 = vrot.lane.b32.xlu0 %v6986, 127
  %v8341 = vpop.permute.xlu0 %8340
  %8342 = vrot.lane.b32.xlu0 %v6987, 127
  %v8343 = vpop.permute.xlu0 %8342
  %8344 = vrot.lane.b32.xlu0 %v6988, 127
  %v8345 = vpop.permute.xlu0 %8344
  %8346 = vrot.lane.b32.xlu0 %v6989, 127
  %v8347 = vpop.permute.xlu0 %8346
  %8348 = vrot.lane.b32.xlu0 %v6990, 127
  %v8349 = vpop.permute.xlu0 %8348
  %8350 = vrot.lane.b32.xlu0 %v6991, 127
  %v8351 = vpop.permute.xlu0 %8350
  %8352 = vrot.lane.b32.xlu0 %v6992, 127
  %v8353 = vpop.permute.xlu0 %8352
  %8354 = vrot.lane.b32.xlu0 %v6993, 127
  %v8355 = vpop.permute.xlu0 %8354
  %8356 = vrot.lane.b32.xlu0 %v6994, 127
  %v8357 = vpop.permute.xlu0 %8356
  %8358 = vrot.lane.b32.xlu0 %v6995, 127
  %v8359 = vpop.permute.xlu0 %8358
  %8360 = vrot.lane.b32.xlu0 %v6996, 127
  %v8361 = vpop.permute.xlu0 %8360
  %8362 = vrot.lane.b32.xlu0 %v6997, 127
  %v8363 = vpop.permute.xlu0 %8362
  %8364 = vrot.lane.b32.xlu0 %v6998, 127
  %v8365 = vpop.permute.xlu0 %8364
  %8366 = vrot.lane.b32.xlu0 %v6999, 127
  %v8367 = vpop.permute.xlu0 %8366
  %8368 = vrot.lane.b32.xlu0 %v7000, 127
  %v8369 = vpop.permute.xlu0 %8368
  %8370 = vrot.lane.b32.xlu0 %v7001, 127
  %v8371 = vpop.permute.xlu0 %8370
  %8372 = vrot.lane.b32.xlu0 %v7002, 127
  %v8373 = vpop.permute.xlu0 %8372
  %8374 = vrot.lane.b32.xlu0 %v7003, 127
  %v8375 = vpop.permute.xlu0 %8374
  %8376 = vrot.lane.b32.xlu0 %v7004, 127
  %v8377 = vpop.permute.xlu0 %8376
  %8378 = vrot.lane.b32.xlu0 %v7005, 127
  %v8379 = vpop.permute.xlu0 %8378
  %8380 = vrot.lane.b32.xlu0 %v7006, 127
  %v8381 = vpop.permute.xlu0 %8380
  %8382 = vrot.lane.b32.xlu0 %v7007, 127
  %v8383 = vpop.permute.xlu0 %8382
  %8384 = vrot.lane.b32.xlu0 %v7008, 127
  %v8385 = vpop.permute.xlu0 %8384
  %8386 = vrot.lane.b32.xlu0 %v7009, 127
  %v8387 = vpop.permute.xlu0 %8386
  %8388 = vrot.lane.b32.xlu0 %v7010, 127
  %v8389 = vpop.permute.xlu0 %8388
  %8390 = vrot.lane.b32.xlu0 %v7011, 127
  %v8391 = vpop.permute.xlu0 %8390
  %8392 = vrot.lane.b32.xlu0 %v7012, 127
  %v8393 = vpop.permute.xlu0 %8392
  %8394 = vrot.lane.b32.xlu0 %v7013, 127
  %v8395 = vpop.permute.xlu0 %8394
  %8396 = vrot.lane.b32.xlu0 %v7014, 127
  %v8397 = vpop.permute.xlu0 %8396
  %8398 = vrot.lane.b32.xlu0 %v7015, 127
  %v8399 = vpop.permute.xlu0 %8398
  %8400 = vrot.lane.b32.xlu0 %v7016, 127
  %v8401 = vpop.permute.xlu0 %8400
  %8402 = vrot.lane.b32.xlu0 %v7017, 127
  %v8403 = vpop.permute.xlu0 %8402
  %8404 = vrot.lane.b32.xlu0 %v7018, 127
  %v8405 = vpop.permute.xlu0 %8404
  %8406 = vrot.lane.b32.xlu0 %v7019, 127
  %v8407 = vpop.permute.xlu0 %8406
  %8408 = vrot.lane.b32.xlu0 %v7020, 127
  %v8409 = vpop.permute.xlu0 %8408
  %8410 = vrot.lane.b32.xlu0 %v7021, 127
  %v8411 = vpop.permute.xlu0 %8410
  %8412 = vrot.lane.b32.xlu0 %v7022, 127
  %v8413 = vpop.permute.xlu0 %8412
  %8414 = vrot.lane.b32.xlu0 %v7023, 127
  %v8415 = vpop.permute.xlu0 %8414
  %8416 = vrot.lane.b32.xlu0 %v7024, 127
  %v8417 = vpop.permute.xlu0 %8416
  %8418 = vrot.lane.b32.xlu0 %v7025, 127
  %v8419 = vpop.permute.xlu0 %8418
  %8420 = vrot.lane.b32.xlu0 %v7026, 127
  %v8421 = vpop.permute.xlu0 %8420
  %8422 = vrot.lane.b32.xlu0 %v7027, 127
  %v8423 = vpop.permute.xlu0 %8422
  %8424 = vrot.lane.b32.xlu0 %v7028, 127
  %v8425 = vpop.permute.xlu0 %8424
  %8426 = vrot.lane.b32.xlu0 %v7029, 127
  %v8427 = vpop.permute.xlu0 %8426
  %8428 = vrot.lane.b32.xlu0 %v7030, 127
  %v8429 = vpop.permute.xlu0 %8428
  %8430 = vrot.lane.b32.xlu0 %v7031, 127
  %v8431 = vpop.permute.xlu0 %8430
  %8432 = vrot.lane.b32.xlu0 %v7032, 127
  %v8433 = vpop.permute.xlu0 %8432
  %8434 = vrot.lane.b32.xlu0 %v7033, 127
  %v8435 = vpop.permute.xlu0 %8434
  %8436 = vrot.lane.b32.xlu0 %v7034, 127
  %v8437 = vpop.permute.xlu0 %8436
  %8438 = vrot.lane.b32.xlu0 %v7035, 127
  %v8439 = vpop.permute.xlu0 %8438
  %8440 = vrot.lane.b32.xlu0 %v7036, 127
  %v8441 = vpop.permute.xlu0 %8440
  %8442 = vrot.lane.b32.xlu0 %v7037, 127
  %v8443 = vpop.permute.xlu0 %8442
  %8444 = vrot.lane.b32.xlu0 %v7038, 127
  %v8445 = vpop.permute.xlu0 %8444
  %8446 = vrot.lane.b32.xlu0 %v7039, 127
  %v8447 = vpop.permute.xlu0 %8446
  %8448 = vrot.lane.b32.xlu0 %v7040, 127
  %v8449 = vpop.permute.xlu0 %8448
  %8450 = vrot.lane.b32.xlu0 %v7041, 127
  %v8451 = vpop.permute.xlu0 %8450
  %8452 = vrot.lane.b32.xlu0 %v7042, 127
  %v8453 = vpop.permute.xlu0 %8452
  %8454 = vrot.lane.b32.xlu0 %v7043, 127
  %v8455 = vpop.permute.xlu0 %8454
  %8456 = vrot.lane.b32.xlu0 %v7044, 127
  %v8457 = vpop.permute.xlu0 %8456
  %8458 = vrot.lane.b32.xlu0 %v7045, 127
  %v8459 = vpop.permute.xlu0 %8458
  %8460 = vrot.lane.b32.xlu0 %v7046, 127
  %v8461 = vpop.permute.xlu0 %8460
  %8462 = vrot.lane.b32.xlu0 %v7047, 127
  %v8463 = vpop.permute.xlu0 %8462
  %8464 = vrot.lane.b32.xlu0 %v7048, 127
  %v8465 = vpop.permute.xlu0 %8464
  %vm8466 = vcmask 1039360
  %v8467 = vsel %vm8466, %v8155, %v8157
  %v8468 = vsel %vm8466, %v8159, %v8161
  %v8469 = vsel %vm8466, %v8163, %v8165
  %v8470 = vsel %vm8466, %v8167, %v8169
  %v8471 = vsel %vm8466, %v8171, %v8173
  %v8472 = vsel %vm8466, %v8175, %v8177
  %v8473 = vsel %vm8466, %v8179, %v8181
  %v8474 = vsel %vm8466, %v8183, %v8185
  %v8475 = vsel %vm8466, %v8187, %v8189
  %v8476 = vsel %vm8466, %v8191, %v8193
  %v8477 = vsel %vm8466, %v8195, %v8197
  %v8478 = vsel %vm8466, %v8199, %v8201
  %v8479 = vsel %vm8466, %v8203, %v8205
  %v8480 = vsel %vm8466, %v8207, %v8209
  %v8481 = vsel %vm8466, %v8211, %v8213
  %v8482 = vsel %vm8466, %v8215, %v8217
  %v8483 = vsel %vm8466, %v8219, %v8221
  %v8484 = vsel %vm8466, %v8223, %v8225
  %v8485 = vsel %vm8466, %v8227, %v8229
  %v8486 = vsel %vm8466, %v8231, %v8233
  %v8487 = vsel %vm8466, %v8235, %v8237
  %v8488 = vsel %vm8466, %v8239, %v8241
  %v8489 = vsel %vm8466, %v8243, %v8245
  %v8490 = vsel %vm8466, %v8247, %v8249
  %v8491 = vsel %vm8466, %v8251, %v8253
  %v8492 = vsel %vm8466, %v8255, %v8257
  %v8493 = vsel %vm8466, %v8259, %v8261
  %v8494 = vsel %vm8466, %v8263, %v8265
  %v8495 = vsel %vm8466, %v8267, %v8269
  %v8496 = vsel %vm8466, %v8271, %v8273
  %v8497 = vsel %vm8466, %v8275, %v8277
  %v8498 = vsel %vm8466, %v8279, %v8281
  %v8499 = vsel %vm8466, %v8283, %v8285
  %v8500 = vsel %vm8466, %v8287, %v8289
  %v8501 = vsel %vm8466, %v8291, %v8293
  %v8502 = vsel %vm8466, %v8295, %v8297
  %v8503 = vsel %vm8466, %v8299, %v8301
  %v8504 = vsel %vm8466, %v8303, %v8305
  %v8505 = vsel %vm8466, %v8307, %v8309
  %v8506 = vsel %vm8466, %v8311, %v8313
  %v8507 = vsel %vm8466, %v8315, %v8317
  %v8508 = vsel %vm8466, %v8319, %v8321
  %v8509 = vsel %vm8466, %v8323, %v8325
  %v8510 = vsel %vm8466, %v8327, %v8329
  %v8511 = vsel %vm8466, %v8331, %v8333
  %v8512 = vsel %vm8466, %v8335, %v8337
  %v8513 = vsel %vm8466, %v8339, %v8341
  %v8514 = vsel %vm8466, %v8343, %v8345
  %v8515 = vsel %vm8466, %v8347, %v8349
  %v8516 = vsel %vm8466, %v8351, %v8353
  %v8517 = vsel %vm8466, %v8355, %v8357
  %v8518 = vsel %vm8466, %v8359, %v8361
  %v8519 = vsel %vm8466, %v8363, %v8365
  %v8520 = vsel %vm8466, %v8367, %v8369
  %v8521 = vsel %vm8466, %v8371, %v8373
  %v8522 = vsel %vm8466, %v8375, %v8377
  %v8523 = vsel %vm8466, %v8379, %v8381
  %v8524 = vsel %vm8466, %v8383, %v8385
  %v8525 = vsel %vm8466, %v8387, %v8389
  %v8526 = vsel %vm8466, %v8391, %v8393
  %v8527 = vsel %vm8466, %v8395, %v8397
  %v8528 = vsel %vm8466, %v8399, %v8401
  %v8529 = vsel %vm8466, %v8403, %v8405
  %v8530 = vsel %vm8466, %v8407, %v8409
  %v8531 = vsel %vm8466, %v8411, %v8413
  %v8532 = vsel %vm8466, %v8415, %v8417
  %v8533 = vsel %vm8466, %v8419, %v8421
  %v8534 = vsel %vm8466, %v8423, %v8425
  %v8535 = vsel %vm8466, %v8427, %v8429
  %v8536 = vsel %vm8466, %v8431, %v8433
  %v8537 = vsel %vm8466, %v8435, %v8437
  %v8538 = vsel %vm8466, %v8439, %v8441
  %v8539 = vsel %vm8466, %v8443, %v8445
  %v8540 = vsel %vm8466, %v8447, %v8449
  %v8541 = vsel %vm8466, %v8451, %v8453
  %v8542 = vsel %vm8466, %v8455, %v8457
  %v8543 = vsel %vm8466, %v8459, %v8461
  %v8544 = vsel %vm8466, %v8463, %v8465
  %vm8701 = vcmask 547840
  %v8702 = vsel %vm8701, %v8157, 0.0
  %v8703 = vsel %vm8701, %v8161, 0.0
  %v8704 = vsel %vm8701, %v8165, 0.0
  %v8705 = vsel %vm8701, %v8169, 0.0
  %v8706 = vsel %vm8701, %v8173, 0.0
  %v8707 = vsel %vm8701, %v8177, 0.0
  %v8708 = vsel %vm8701, %v8181, 0.0
  %v8709 = vsel %vm8701, %v8185, 0.0
  %v8710 = vsel %vm8701, %v8189, 0.0
  %v8711 = vsel %vm8701, %v8193, 0.0
  %v8712 = vsel %vm8701, %v8197, 0.0
  %v8713 = vsel %vm8701, %v8201, 0.0
  %v8714 = vsel %vm8701, %v8205, 0.0
  %v8715 = vsel %vm8701, %v8209, 0.0
  %v8716 = vsel %vm8701, %v8213, 0.0
  %v8717 = vsel %vm8701, %v8217, 0.0
  %v8718 = vsel %vm8701, %v8221, 0.0
  %v8719 = vsel %vm8701, %v8225, 0.0
  %v8720 = vsel %vm8701, %v8229, 0.0
  %v8721 = vsel %vm8701, %v8233, 0.0
  %v8722 = vsel %vm8701, %v8237, 0.0
  %v8723 = vsel %vm8701, %v8241, 0.0
  %v8724 = vsel %vm8701, %v8245, 0.0
  %v8725 = vsel %vm8701, %v8249, 0.0
  %v8726 = vsel %vm8701, %v8253, 0.0
  %v8727 = vsel %vm8701, %v8257, 0.0
  %v8728 = vsel %vm8701, %v8261, 0.0
  %v8729 = vsel %vm8701, %v8265, 0.0
  %v8730 = vsel %vm8701, %v8269, 0.0
  %v8731 = vsel %vm8701, %v8273, 0.0
  %v8732 = vsel %vm8701, %v8277, 0.0
  %v8733 = vsel %vm8701, %v8281, 0.0
  %v8734 = vsel %vm8701, %v8285, 0.0
  %v8735 = vsel %vm8701, %v8289, 0.0
  %v8736 = vsel %vm8701, %v8293, 0.0
  %v8737 = vsel %vm8701, %v8297, 0.0
  %v8738 = vsel %vm8701, %v8301, 0.0
  %v8739 = vsel %vm8701, %v8305, 0.0
  %v8740 = vsel %vm8701, %v8309, 0.0
  %v8741 = vsel %vm8701, %v8313, 0.0
  %v8742 = vsel %vm8701, %v8317, 0.0
  %v8743 = vsel %vm8701, %v8321, 0.0
  %v8744 = vsel %vm8701, %v8325, 0.0
  %v8745 = vsel %vm8701, %v8329, 0.0
  %v8746 = vsel %vm8701, %v8333, 0.0
  %v8747 = vsel %vm8701, %v8337, 0.0
  %v8748 = vsel %vm8701, %v8341, 0.0
  %v8749 = vsel %vm8701, %v8345, 0.0
  %v8750 = vsel %vm8701, %v8349, 0.0
  %v8751 = vsel %vm8701, %v8353, 0.0
  %v8752 = vsel %vm8701, %v8357, 0.0
  %v8753 = vsel %vm8701, %v8361, 0.0
  %v8754 = vsel %vm8701, %v8365, 0.0
  %v8755 = vsel %vm8701, %v8369, 0.0
  %v8756 = vsel %vm8701, %v8373, 0.0
  %v8757 = vsel %vm8701, %v8377, 0.0
  %v8758 = vsel %vm8701, %v8381, 0.0
  %v8759 = vsel %vm8701, %v8385, 0.0
  %v8760 = vsel %vm8701, %v8389, 0.0
  %v8761 = vsel %vm8701, %v8393, 0.0
  %v8762 = vsel %vm8701, %v8397, 0.0
  %v8763 = vsel %vm8701, %v8401, 0.0
  %v8764 = vsel %vm8701, %v8405, 0.0
  %v8765 = vsel %vm8701, %v8409, 0.0
  %v8766 = vsel %vm8701, %v8413, 0.0
  %v8767 = vsel %vm8701, %v8417, 0.0
  %v8768 = vsel %vm8701, %v8421, 0.0
  %v8769 = vsel %vm8701, %v8425, 0.0
  %v8770 = vsel %vm8701, %v8429, 0.0
  %v8771 = vsel %vm8701, %v8433, 0.0
  %v8772 = vsel %vm8701, %v8437, 0.0
  %v8773 = vsel %vm8701, %v8441, 0.0
  %v8774 = vsel %vm8701, %v8445, 0.0
  %v8775 = vsel %vm8701, %v8449, 0.0
  %v8776 = vsel %vm8701, %v8453, 0.0
  %v8777 = vsel %vm8701, %v8457, 0.0
  %v8778 = vsel %vm8701, %v8461, 0.0
  %v8779 = vsel %vm8701, %v8465, 0.0
  %v8780 = vld [vmem:[%s6] sm:$0x3]
  %v8782 = vlaneseq
  %v8783 = vshrl.u32 %v8782, 7
  %v8784 = vsub.s32 0, %v8783
  %v8785 = vrot.slane %v8780, %v8784
  %v8786 = vlaneseq
  %v8787 = vshrl.u32 %v8786, 7
  %v8788 = vsub.s32 1, %v8787
  %v8789 = vrot.slane %v8780, %v8788
  %v8792 = vmul.f32 %v8467, %v8785
  %v8793 = vmul.f32 %v8702, %v8789
  %v8794 = vmul.f32 %v8468, %v8785
  %v8795 = vmul.f32 %v8703, %v8789
  %v8796 = vmul.f32 %v8469, %v8785
  %v8797 = vmul.f32 %v8704, %v8789
  %v8798 = vmul.f32 %v8470, %v8785
  %v8799 = vmul.f32 %v8705, %v8789
  %v8800 = vmul.f32 %v8471, %v8785
  %v8801 = vmul.f32 %v8706, %v8789
  %v8802 = vmul.f32 %v8472, %v8785
  %v8803 = vmul.f32 %v8707, %v8789
  %v8804 = vmul.f32 %v8473, %v8785
  %v8805 = vmul.f32 %v8708, %v8789
  %v8806 = vmul.f32 %v8474, %v8785
  %v8807 = vmul.f32 %v8709, %v8789
  %v8808 = vmul.f32 %v8475, %v8785
  %v8809 = vmul.f32 %v8710, %v8789
  %v8810 = vmul.f32 %v8476, %v8785
  %v8811 = vmul.f32 %v8711, %v8789
  %v8812 = vmul.f32 %v8477, %v8785
  %v8813 = vmul.f32 %v8712, %v8789
  %v8814 = vmul.f32 %v8478, %v8785
  %v8815 = vmul.f32 %v8713, %v8789
  %v8816 = vmul.f32 %v8479, %v8785
  %v8817 = vmul.f32 %v8714, %v8789
  %v8818 = vmul.f32 %v8480, %v8785
  %v8819 = vmul.f32 %v8715, %v8789
  %v8820 = vmul.f32 %v8481, %v8785
  %v8821 = vmul.f32 %v8716, %v8789
  %v8822 = vmul.f32 %v8482, %v8785
  %v8823 = vmul.f32 %v8717, %v8789
  %v8824 = vmul.f32 %v8483, %v8785
  %v8825 = vmul.f32 %v8718, %v8789
  %v8826 = vmul.f32 %v8484, %v8785
  %v8827 = vmul.f32 %v8719, %v8789
  %v8828 = vmul.f32 %v8485, %v8785
  %v8829 = vmul.f32 %v8720, %v8789
  %v8830 = vmul.f32 %v8486, %v8785
  %v8831 = vmul.f32 %v8721, %v8789
  %v8832 = vmul.f32 %v8487, %v8785
  %v8833 = vmul.f32 %v8722, %v8789
  %v8834 = vmul.f32 %v8488, %v8785
  %v8835 = vmul.f32 %v8723, %v8789
  %v8836 = vmul.f32 %v8489, %v8785
  %v8837 = vmul.f32 %v8724, %v8789
  %v8838 = vmul.f32 %v8490, %v8785
  %v8839 = vmul.f32 %v8725, %v8789
  %v8840 = vmul.f32 %v8491, %v8785
  %v8841 = vmul.f32 %v8726, %v8789
  %v8842 = vmul.f32 %v8492, %v8785
  %v8843 = vmul.f32 %v8727, %v8789
  %v8844 = vmul.f32 %v8493, %v8785
  %v8845 = vmul.f32 %v8728, %v8789
  %v8846 = vmul.f32 %v8494, %v8785
  %v8847 = vmul.f32 %v8729, %v8789
  %v8848 = vmul.f32 %v8495, %v8785
  %v8849 = vmul.f32 %v8730, %v8789
  %v8850 = vmul.f32 %v8496, %v8785
  %v8851 = vmul.f32 %v8731, %v8789
  %v8852 = vmul.f32 %v8497, %v8785
  %v8853 = vmul.f32 %v8732, %v8789
  %v8854 = vmul.f32 %v8498, %v8785
  %v8855 = vmul.f32 %v8733, %v8789
  %v8856 = vmul.f32 %v8499, %v8785
  %v8857 = vmul.f32 %v8734, %v8789
  %v8858 = vmul.f32 %v8500, %v8785
  %v8859 = vmul.f32 %v8735, %v8789
  %v8860 = vmul.f32 %v8501, %v8785
  %v8861 = vmul.f32 %v8736, %v8789
  %v8862 = vmul.f32 %v8502, %v8785
  %v8863 = vmul.f32 %v8737, %v8789
  %v8864 = vmul.f32 %v8503, %v8785
  %v8865 = vmul.f32 %v8738, %v8789
  %v8866 = vmul.f32 %v8504, %v8785
  %v8867 = vmul.f32 %v8739, %v8789
  %v8868 = vmul.f32 %v8505, %v8785
  %v8869 = vmul.f32 %v8740, %v8789
  %v8870 = vmul.f32 %v8506, %v8785
  %v8871 = vmul.f32 %v8741, %v8789
  %v8872 = vmul.f32 %v8507, %v8785
  %v8873 = vmul.f32 %v8742, %v8789
  %v8874 = vmul.f32 %v8508, %v8785
  %v8875 = vmul.f32 %v8743, %v8789
  %v8876 = vmul.f32 %v8509, %v8785
  %v8877 = vmul.f32 %v8744, %v8789
  %v8878 = vmul.f32 %v8510, %v8785
  %v8879 = vmul.f32 %v8745, %v8789
  %v8880 = vmul.f32 %v8511, %v8785
  %v8881 = vmul.f32 %v8746, %v8789
  %v8882 = vmul.f32 %v8512, %v8785
  %v8883 = vmul.f32 %v8747, %v8789
  %v8884 = vmul.f32 %v8513, %v8785
  %v8885 = vmul.f32 %v8748, %v8789
  %v8886 = vmul.f32 %v8514, %v8785
  %v8887 = vmul.f32 %v8749, %v8789
  %v8888 = vmul.f32 %v8515, %v8785
  %v8889 = vmul.f32 %v8750, %v8789
  %v8890 = vmul.f32 %v8516, %v8785
  %v8891 = vmul.f32 %v8751, %v8789
  %v8892 = vmul.f32 %v8517, %v8785
  %v8893 = vmul.f32 %v8752, %v8789
  %v8894 = vmul.f32 %v8518, %v8785
  %v8895 = vmul.f32 %v8753, %v8789
  %v8896 = vmul.f32 %v8519, %v8785
  %v8897 = vmul.f32 %v8754, %v8789
  %v8898 = vmul.f32 %v8520, %v8785
  %v8899 = vmul.f32 %v8755, %v8789
  %v8900 = vmul.f32 %v8521, %v8785
  %v8901 = vmul.f32 %v8756, %v8789
  %v8902 = vmul.f32 %v8522, %v8785
  %v8903 = vmul.f32 %v8757, %v8789
  %v8904 = vmul.f32 %v8523, %v8785
  %v8905 = vmul.f32 %v8758, %v8789
  %v8906 = vmul.f32 %v8524, %v8785
  %v8907 = vmul.f32 %v8759, %v8789
  %v8908 = vmul.f32 %v8525, %v8785
  %v8909 = vmul.f32 %v8760, %v8789
  %v8910 = vmul.f32 %v8526, %v8785
  %v8911 = vmul.f32 %v8761, %v8789
  %v8912 = vmul.f32 %v8527, %v8785
  %v8913 = vmul.f32 %v8762, %v8789
  %v8914 = vmul.f32 %v8528, %v8785
  %v8915 = vmul.f32 %v8763, %v8789
  %v8916 = vmul.f32 %v8529, %v8785
  %v8917 = vmul.f32 %v8764, %v8789
  %v8918 = vmul.f32 %v8530, %v8785
  %v8919 = vmul.f32 %v8765, %v8789
  %v8920 = vmul.f32 %v8531, %v8785
  %v8921 = vmul.f32 %v8766, %v8789
  %v8922 = vmul.f32 %v8532, %v8785
  %v8923 = vmul.f32 %v8767, %v8789
  %v8924 = vmul.f32 %v8533, %v8785
  %v8925 = vmul.f32 %v8768, %v8789
  %v8926 = vmul.f32 %v8534, %v8785
  %v8927 = vmul.f32 %v8769, %v8789
  %v8928 = vmul.f32 %v8535, %v8785
  %v8929 = vmul.f32 %v8770, %v8789
  %v8930 = vmul.f32 %v8536, %v8785
  %v8931 = vmul.f32 %v8771, %v8789
  %v8932 = vmul.f32 %v8537, %v8785
  %v8933 = vmul.f32 %v8772, %v8789
  %v8934 = vmul.f32 %v8538, %v8785
  %v8935 = vmul.f32 %v8773, %v8789
  %v8936 = vmul.f32 %v8539, %v8785
  %v8937 = vmul.f32 %v8774, %v8789
  %v8938 = vmul.f32 %v8540, %v8785
  %v8939 = vmul.f32 %v8775, %v8789
  %v8940 = vmul.f32 %v8541, %v8785
  %v8941 = vmul.f32 %v8776, %v8789
  %v8942 = vmul.f32 %v8542, %v8785
  %v8943 = vmul.f32 %v8777, %v8789
  %v8944 = vmul.f32 %v8543, %v8785
  %v8945 = vmul.f32 %v8778, %v8789
  %v8946 = vmul.f32 %v8544, %v8785
  %v8947 = vmul.f32 %v8779, %v8789
  %v8948 = vadd.f32 %v7842, %v5177
  %v8949 = vadd.f32 %v7843, %v5178
  %v8950 = vadd.f32 %v7844, %v5179
  %v8951 = vadd.f32 %v7845, %v5180
  %v8952 = vadd.f32 %v7846, %v5181
  %v8953 = vadd.f32 %v7847, %v5182
  %v8954 = vadd.f32 %v7848, %v5183
  %v8955 = vadd.f32 %v7849, %v5184
  %v8956 = vadd.f32 %v7850, %v5185
  %v8957 = vadd.f32 %v7851, %v5186
  %v8958 = vadd.f32 %v7852, %v5187
  %v8959 = vadd.f32 %v7853, %v5188
  %v8960 = vadd.f32 %v7854, %v5189
  %v8961 = vadd.f32 %v7855, %v5190
  %v8962 = vadd.f32 %v7856, %v5191
  %v8963 = vadd.f32 %v7857, %v5192
  %v8964 = vadd.f32 %v7858, %v5193
  %v8965 = vadd.f32 %v7859, %v5194
  %v8966 = vadd.f32 %v7860, %v5195
  %v8967 = vadd.f32 %v7861, %v5196
  %v8968 = vadd.f32 %v7862, %v5197
  %v8969 = vadd.f32 %v7863, %v5198
  %v8970 = vadd.f32 %v7864, %v5199
  %v8971 = vadd.f32 %v7865, %v5200
  %v8972 = vadd.f32 %v7866, %v5201
  %v8973 = vadd.f32 %v7867, %v5202
  %v8974 = vadd.f32 %v7868, %v5203
  %v8975 = vadd.f32 %v7869, %v5204
  %v8976 = vadd.f32 %v7870, %v5205
  %v8977 = vadd.f32 %v7871, %v5206
  %v8978 = vadd.f32 %v7872, %v5207
  %v8979 = vadd.f32 %v7873, %v5208
  %v8980 = vadd.f32 %v7874, %v5209
  %v8981 = vadd.f32 %v7875, %v5210
  %v8982 = vadd.f32 %v7876, %v5211
  %v8983 = vadd.f32 %v7877, %v5212
  %v8984 = vadd.f32 %v7878, %v5213
  %v8985 = vadd.f32 %v7879, %v5214
  %v8986 = vadd.f32 %v7880, %v5215
  %v8987 = vadd.f32 %v7881, %v5216
  %v8988 = vadd.f32 %v7882, %v5217
  %v8989 = vadd.f32 %v7883, %v5218
  %v8990 = vadd.f32 %v7884, %v5219
  %v8991 = vadd.f32 %v7885, %v5220
  %v8992 = vadd.f32 %v7886, %v5221
  %v8993 = vadd.f32 %v7887, %v5222
  %v8994 = vadd.f32 %v7888, %v5223
  %v8995 = vadd.f32 %v7889, %v5224
  %v8996 = vadd.f32 %v7890, %v5225
  %v8997 = vadd.f32 %v7891, %v5226
  %v8998 = vadd.f32 %v7892, %v5227
  %v8999 = vadd.f32 %v7893, %v5228
  %v9000 = vadd.f32 %v7894, %v5229
  %v9001 = vadd.f32 %v7895, %v5230
  %v9002 = vadd.f32 %v7896, %v5231
  %v9003 = vadd.f32 %v7897, %v5232
  %v9004 = vadd.f32 %v7898, %v5233
  %v9005 = vadd.f32 %v7899, %v5234
  %v9006 = vadd.f32 %v7900, %v5235
  %v9007 = vadd.f32 %v7901, %v5236
  %v9008 = vadd.f32 %v7902, %v5237
  %v9009 = vadd.f32 %v7903, %v5238
  %v9010 = vadd.f32 %v7904, %v5239
  %v9011 = vadd.f32 %v7905, %v5240
  %v9012 = vadd.f32 %v7906, %v5241
  %v9013 = vadd.f32 %v7907, %v5242
  %v9014 = vadd.f32 %v7908, %v5243
  %v9015 = vadd.f32 %v7909, %v5244
  %v9016 = vadd.f32 %v7910, %v5245
  %v9017 = vadd.f32 %v7911, %v5246
  %v9018 = vadd.f32 %v7912, %v5247
  %v9019 = vadd.f32 %v7913, %v5248
  %v9020 = vadd.f32 %v7914, %v5249
  %v9021 = vadd.f32 %v7915, %v5250
  %v9022 = vadd.f32 %v7916, %v5251
  %v9023 = vadd.f32 %v7917, %v5252
  %v9024 = vadd.f32 %v7918, %v5253
  %v9025 = vadd.f32 %v7919, %v5254
  %v9026 = vadd.f32 %v7920, %v5255
  %v9027 = vadd.f32 %v7921, %v5256
  %v9028 = vadd.f32 %v7922, %v5257
  %v9029 = vadd.f32 %v7923, %v5258
  %v9030 = vadd.f32 %v7924, %v5259
  %v9031 = vadd.f32 %v7925, %v5260
  %v9032 = vadd.f32 %v7926, %v5261
  %v9033 = vadd.f32 %v7927, %v5262
  %v9034 = vadd.f32 %v7928, %v5263
  %v9035 = vadd.f32 %v7929, %v5264
  %v9036 = vadd.f32 %v7930, %v5265
  %v9037 = vadd.f32 %v7931, %v5266
  %v9038 = vadd.f32 %v7932, %v5267
  %v9039 = vadd.f32 %v7933, %v5268
  %v9040 = vadd.f32 %v7934, %v5269
  %v9041 = vadd.f32 %v7935, %v5270
  %v9042 = vadd.f32 %v7936, %v5271
  %v9043 = vadd.f32 %v7937, %v5272
  %v9044 = vadd.f32 %v7938, %v5273
  %v9045 = vadd.f32 %v7939, %v5274
  %v9046 = vadd.f32 %v7940, %v5275
  %v9047 = vadd.f32 %v7941, %v5276
  %v9048 = vadd.f32 %v7942, %v5277
  %v9049 = vadd.f32 %v7943, %v5278
  %v9050 = vadd.f32 %v7944, %v5279
  %v9051 = vadd.f32 %v7945, %v5280
  %v9052 = vadd.f32 %v7946, %v5281
  %v9053 = vadd.f32 %v7947, %v5282
  %v9054 = vadd.f32 %v7948, %v5283
  %v9055 = vadd.f32 %v7949, %v5284
  %v9056 = vadd.f32 %v7950, %v5285
  %v9057 = vadd.f32 %v7951, %v5286
  %v9058 = vadd.f32 %v7952, %v5287
  %v9059 = vadd.f32 %v7953, %v5288
  %v9060 = vadd.f32 %v7954, %v5289
  %v9061 = vadd.f32 %v7955, %v5290
  %v9062 = vadd.f32 %v7956, %v5291
  %v9063 = vadd.f32 %v7957, %v5292
  %v9064 = vadd.f32 %v7958, %v5293
  %v9065 = vadd.f32 %v7959, %v5294
  %v9066 = vadd.f32 %v7960, %v5295
  %v9067 = vadd.f32 %v7961, %v5296
  %v9068 = vadd.f32 %v7962, %v5297
  %v9069 = vadd.f32 %v7963, %v5298
  %v9070 = vadd.f32 %v7964, %v5299
  %v9071 = vadd.f32 %v7965, %v5300
  %v9072 = vadd.f32 %v7966, %v5301
  %v9073 = vadd.f32 %v7967, %v5302
  %v9074 = vadd.f32 %v7968, %v5303
  %v9075 = vadd.f32 %v7969, %v5304
  %v9076 = vadd.f32 %v7970, %v5305
  %v9077 = vadd.f32 %v7971, %v5306
  %v9078 = vadd.f32 %v7972, %v5307
  %v9079 = vadd.f32 %v7973, %v5308
  %v9080 = vadd.f32 %v7974, %v5309
  %v9081 = vadd.f32 %v7975, %v5310
  %v9082 = vadd.f32 %v7976, %v5311
  %v9083 = vadd.f32 %v7977, %v5312
  %v9084 = vadd.f32 %v7978, %v5313
  %v9085 = vadd.f32 %v7979, %v5314
  %v9086 = vadd.f32 %v7980, %v5315
  %v9087 = vadd.f32 %v7981, %v5316
  %v9088 = vadd.f32 %v7982, %v5317
  %v9089 = vadd.f32 %v7983, %v5318
  %v9090 = vadd.f32 %v7984, %v5319
  %v9091 = vadd.f32 %v7985, %v5320
  %v9092 = vadd.f32 %v7986, %v5321
  %v9093 = vadd.f32 %v7987, %v5322
  %v9094 = vadd.f32 %v7988, %v5323
  %v9095 = vadd.f32 %v7989, %v5324
  %v9096 = vadd.f32 %v7990, %v5325
  %v9097 = vadd.f32 %v7991, %v5326
  %v9098 = vadd.f32 %v7992, %v5327
  %v9099 = vadd.f32 %v7993, %v5328
  %v9100 = vadd.f32 %v7994, %v5329
  %v9101 = vadd.f32 %v7995, %v5330
  %v9102 = vadd.f32 %v7996, %v5331
  %v9103 = vadd.f32 %v7997, %v5332
  %v9104 = vadd.f32 %v8948, %v8792
  %v9105 = vadd.f32 %v8949, %v8793
  %v9106 = vadd.f32 %v8950, %v8794
  %v9107 = vadd.f32 %v8951, %v8795
  %v9108 = vadd.f32 %v8952, %v8796
  %v9109 = vadd.f32 %v8953, %v8797
  %v9110 = vadd.f32 %v8954, %v8798
  %v9111 = vadd.f32 %v8955, %v8799
  %v9112 = vadd.f32 %v8956, %v8800
  %v9113 = vadd.f32 %v8957, %v8801
  %v9114 = vadd.f32 %v8958, %v8802
  %v9115 = vadd.f32 %v8959, %v8803
  %v9116 = vadd.f32 %v8960, %v8804
  %v9117 = vadd.f32 %v8961, %v8805
  %v9118 = vadd.f32 %v8962, %v8806
  %v9119 = vadd.f32 %v8963, %v8807
  %v9120 = vadd.f32 %v8964, %v8808
  %v9121 = vadd.f32 %v8965, %v8809
  %v9122 = vadd.f32 %v8966, %v8810
  %v9123 = vadd.f32 %v8967, %v8811
  %v9124 = vadd.f32 %v8968, %v8812
  %v9125 = vadd.f32 %v8969, %v8813
  %v9126 = vadd.f32 %v8970, %v8814
  %v9127 = vadd.f32 %v8971, %v8815
  %v9128 = vadd.f32 %v8972, %v8816
  %v9129 = vadd.f32 %v8973, %v8817
  %v9130 = vadd.f32 %v8974, %v8818
  %v9131 = vadd.f32 %v8975, %v8819
  %v9132 = vadd.f32 %v8976, %v8820
  %v9133 = vadd.f32 %v8977, %v8821
  %v9134 = vadd.f32 %v8978, %v8822
  %v9135 = vadd.f32 %v8979, %v8823
  %v9136 = vadd.f32 %v8980, %v8824
  %v9137 = vadd.f32 %v8981, %v8825
  %v9138 = vadd.f32 %v8982, %v8826
  %v9139 = vadd.f32 %v8983, %v8827
  %v9140 = vadd.f32 %v8984, %v8828
  %v9141 = vadd.f32 %v8985, %v8829
  %v9142 = vadd.f32 %v8986, %v8830
  %v9143 = vadd.f32 %v8987, %v8831
  %v9144 = vadd.f32 %v8988, %v8832
  %v9145 = vadd.f32 %v8989, %v8833
  %v9146 = vadd.f32 %v8990, %v8834
  %v9147 = vadd.f32 %v8991, %v8835
  %v9148 = vadd.f32 %v8992, %v8836
  %v9149 = vadd.f32 %v8993, %v8837
  %v9150 = vadd.f32 %v8994, %v8838
  %v9151 = vadd.f32 %v8995, %v8839
  %v9152 = vadd.f32 %v8996, %v8840
  %v9153 = vadd.f32 %v8997, %v8841
  %v9154 = vadd.f32 %v8998, %v8842
  %v9155 = vadd.f32 %v8999, %v8843
  %v9156 = vadd.f32 %v9000, %v8844
  %v9157 = vadd.f32 %v9001, %v8845
  %v9158 = vadd.f32 %v9002, %v8846
  %v9159 = vadd.f32 %v9003, %v8847
  %v9160 = vadd.f32 %v9004, %v8848
  %v9161 = vadd.f32 %v9005, %v8849
  %v9162 = vadd.f32 %v9006, %v8850
  %v9163 = vadd.f32 %v9007, %v8851
  %v9164 = vadd.f32 %v9008, %v8852
  %v9165 = vadd.f32 %v9009, %v8853
  %v9166 = vadd.f32 %v9010, %v8854
  %v9167 = vadd.f32 %v9011, %v8855
  %v9168 = vadd.f32 %v9012, %v8856
  %v9169 = vadd.f32 %v9013, %v8857
  %v9170 = vadd.f32 %v9014, %v8858
  %v9171 = vadd.f32 %v9015, %v8859
  %v9172 = vadd.f32 %v9016, %v8860
  %v9173 = vadd.f32 %v9017, %v8861
  %v9174 = vadd.f32 %v9018, %v8862
  %v9175 = vadd.f32 %v9019, %v8863
  %v9176 = vadd.f32 %v9020, %v8864
  %v9177 = vadd.f32 %v9021, %v8865
  %v9178 = vadd.f32 %v9022, %v8866
  %v9179 = vadd.f32 %v9023, %v8867
  %v9180 = vadd.f32 %v9024, %v8868
  %v9181 = vadd.f32 %v9025, %v8869
  %v9182 = vadd.f32 %v9026, %v8870
  %v9183 = vadd.f32 %v9027, %v8871
  %v9184 = vadd.f32 %v9028, %v8872
  %v9185 = vadd.f32 %v9029, %v8873
  %v9186 = vadd.f32 %v9030, %v8874
  %v9187 = vadd.f32 %v9031, %v8875
  %v9188 = vadd.f32 %v9032, %v8876
  %v9189 = vadd.f32 %v9033, %v8877
  %v9190 = vadd.f32 %v9034, %v8878
  %v9191 = vadd.f32 %v9035, %v8879
  %v9192 = vadd.f32 %v9036, %v8880
  %v9193 = vadd.f32 %v9037, %v8881
  %v9194 = vadd.f32 %v9038, %v8882
  %v9195 = vadd.f32 %v9039, %v8883
  %v9196 = vadd.f32 %v9040, %v8884
  %v9197 = vadd.f32 %v9041, %v8885
  %v9198 = vadd.f32 %v9042, %v8886
  %v9199 = vadd.f32 %v9043, %v8887
  %v9200 = vadd.f32 %v9044, %v8888
  %v9201 = vadd.f32 %v9045, %v8889
  %v9202 = vadd.f32 %v9046, %v8890
  %v9203 = vadd.f32 %v9047, %v8891
  %v9204 = vadd.f32 %v9048, %v8892
  %v9205 = vadd.f32 %v9049, %v8893
  %v9206 = vadd.f32 %v9050, %v8894
  %v9207 = vadd.f32 %v9051, %v8895
  %v9208 = vadd.f32 %v9052, %v8896
  %v9209 = vadd.f32 %v9053, %v8897
  %v9210 = vadd.f32 %v9054, %v8898
  %v9211 = vadd.f32 %v9055, %v8899
  %v9212 = vadd.f32 %v9056, %v8900
  %v9213 = vadd.f32 %v9057, %v8901
  %v9214 = vadd.f32 %v9058, %v8902
  %v9215 = vadd.f32 %v9059, %v8903
  %v9216 = vadd.f32 %v9060, %v8904
  %v9217 = vadd.f32 %v9061, %v8905
  %v9218 = vadd.f32 %v9062, %v8906
  %v9219 = vadd.f32 %v9063, %v8907
  %v9220 = vadd.f32 %v9064, %v8908
  %v9221 = vadd.f32 %v9065, %v8909
  %v9222 = vadd.f32 %v9066, %v8910
  %v9223 = vadd.f32 %v9067, %v8911
  %v9224 = vadd.f32 %v9068, %v8912
  %v9225 = vadd.f32 %v9069, %v8913
  %v9226 = vadd.f32 %v9070, %v8914
  %v9227 = vadd.f32 %v9071, %v8915
  %v9228 = vadd.f32 %v9072, %v8916
  %v9229 = vadd.f32 %v9073, %v8917
  %v9230 = vadd.f32 %v9074, %v8918
  %v9231 = vadd.f32 %v9075, %v8919
  %v9232 = vadd.f32 %v9076, %v8920
  %v9233 = vadd.f32 %v9077, %v8921
  %v9234 = vadd.f32 %v9078, %v8922
  %v9235 = vadd.f32 %v9079, %v8923
  %v9236 = vadd.f32 %v9080, %v8924
  %v9237 = vadd.f32 %v9081, %v8925
  %v9238 = vadd.f32 %v9082, %v8926
  %v9239 = vadd.f32 %v9083, %v8927
  %v9240 = vadd.f32 %v9084, %v8928
  %v9241 = vadd.f32 %v9085, %v8929
  %v9242 = vadd.f32 %v9086, %v8930
  %v9243 = vadd.f32 %v9087, %v8931
  %v9244 = vadd.f32 %v9088, %v8932
  %v9245 = vadd.f32 %v9089, %v8933
  %v9246 = vadd.f32 %v9090, %v8934
  %v9247 = vadd.f32 %v9091, %v8935
  %v9248 = vadd.f32 %v9092, %v8936
  %v9249 = vadd.f32 %v9093, %v8937
  %v9250 = vadd.f32 %v9094, %v8938
  %v9251 = vadd.f32 %v9095, %v8939
  %v9252 = vadd.f32 %v9096, %v8940
  %v9253 = vadd.f32 %v9097, %v8941
  %v9254 = vadd.f32 %v9098, %v8942
  %v9255 = vadd.f32 %v9099, %v8943
  %v9256 = vadd.f32 %v9100, %v8944
  %v9257 = vadd.f32 %v9101, %v8945
  %v9258 = vadd.f32 %v9102, %v8946
  %v9259 = vadd.f32 %v9103, %v8947
  %vm9260 = vcmask 556032
  %v9261 = vsel %vm9260, %v9105, 0.0
  %v9262 = vadd.f32 %v9104, %v9261
  %9263 = vadd.xlane.f32.xlu0 %v9262
  %v9264 = vpop.xlane.xlu0 %9263
  %v9265 = vsel %vm9260, %v9107, 0.0
  %v9266 = vadd.f32 %v9106, %v9265
  %9267 = vadd.xlane.f32.xlu0 %v9266
  %v9268 = vpop.xlane.xlu0 %9267
  %v9269 = vsel %vm9260, %v9109, 0.0
  %v9270 = vadd.f32 %v9108, %v9269
  %9271 = vadd.xlane.f32.xlu0 %v9270
  %v9272 = vpop.xlane.xlu0 %9271
  %v9273 = vsel %vm9260, %v9111, 0.0
  %v9274 = vadd.f32 %v9110, %v9273
  %9275 = vadd.xlane.f32.xlu0 %v9274
  %v9276 = vpop.xlane.xlu0 %9275
  %v9277 = vsel %vm9260, %v9113, 0.0
  %v9278 = vadd.f32 %v9112, %v9277
  %9279 = vadd.xlane.f32.xlu0 %v9278
  %v9280 = vpop.xlane.xlu0 %9279
  %v9281 = vsel %vm9260, %v9115, 0.0
  %v9282 = vadd.f32 %v9114, %v9281
  %9283 = vadd.xlane.f32.xlu0 %v9282
  %v9284 = vpop.xlane.xlu0 %9283
  %v9285 = vsel %vm9260, %v9117, 0.0
  %v9286 = vadd.f32 %v9116, %v9285
  %9287 = vadd.xlane.f32.xlu0 %v9286
  %v9288 = vpop.xlane.xlu0 %9287
  %v9289 = vsel %vm9260, %v9119, 0.0
  %v9290 = vadd.f32 %v9118, %v9289
  %9291 = vadd.xlane.f32.xlu0 %v9290
  %v9292 = vpop.xlane.xlu0 %9291
  %v9293 = vsel %vm9260, %v9121, 0.0
  %v9294 = vadd.f32 %v9120, %v9293
  %9295 = vadd.xlane.f32.xlu0 %v9294
  %v9296 = vpop.xlane.xlu0 %9295
  %v9297 = vsel %vm9260, %v9123, 0.0
  %v9298 = vadd.f32 %v9122, %v9297
  %9299 = vadd.xlane.f32.xlu0 %v9298
  %v9300 = vpop.xlane.xlu0 %9299
  %v9301 = vsel %vm9260, %v9125, 0.0
  %v9302 = vadd.f32 %v9124, %v9301
  %9303 = vadd.xlane.f32.xlu0 %v9302
  %v9304 = vpop.xlane.xlu0 %9303
  %v9305 = vsel %vm9260, %v9127, 0.0
  %v9306 = vadd.f32 %v9126, %v9305
  %9307 = vadd.xlane.f32.xlu0 %v9306
  %v9308 = vpop.xlane.xlu0 %9307
  %v9309 = vsel %vm9260, %v9129, 0.0
  %v9310 = vadd.f32 %v9128, %v9309
  %9311 = vadd.xlane.f32.xlu0 %v9310
  %v9312 = vpop.xlane.xlu0 %9311
  %v9313 = vsel %vm9260, %v9131, 0.0
  %v9314 = vadd.f32 %v9130, %v9313
  %9315 = vadd.xlane.f32.xlu0 %v9314
  %v9316 = vpop.xlane.xlu0 %9315
  %v9317 = vsel %vm9260, %v9133, 0.0
  %v9318 = vadd.f32 %v9132, %v9317
  %9319 = vadd.xlane.f32.xlu0 %v9318
  %v9320 = vpop.xlane.xlu0 %9319
  %v9321 = vsel %vm9260, %v9135, 0.0
  %v9322 = vadd.f32 %v9134, %v9321
  %9323 = vadd.xlane.f32.xlu0 %v9322
  %v9324 = vpop.xlane.xlu0 %9323
  %v9325 = vsel %vm9260, %v9137, 0.0
  %v9326 = vadd.f32 %v9136, %v9325
  %9327 = vadd.xlane.f32.xlu0 %v9326
  %v9328 = vpop.xlane.xlu0 %9327
  %v9329 = vsel %vm9260, %v9139, 0.0
  %v9330 = vadd.f32 %v9138, %v9329
  %9331 = vadd.xlane.f32.xlu0 %v9330
  %v9332 = vpop.xlane.xlu0 %9331
  %v9333 = vsel %vm9260, %v9141, 0.0
  %v9334 = vadd.f32 %v9140, %v9333
  %9335 = vadd.xlane.f32.xlu0 %v9334
  %v9336 = vpop.xlane.xlu0 %9335
  %v9337 = vsel %vm9260, %v9143, 0.0
  %v9338 = vadd.f32 %v9142, %v9337
  %9339 = vadd.xlane.f32.xlu0 %v9338
  %v9340 = vpop.xlane.xlu0 %9339
  %v9341 = vsel %vm9260, %v9145, 0.0
  %v9342 = vadd.f32 %v9144, %v9341
  %9343 = vadd.xlane.f32.xlu0 %v9342
  %v9344 = vpop.xlane.xlu0 %9343
  %v9345 = vsel %vm9260, %v9147, 0.0
  %v9346 = vadd.f32 %v9146, %v9345
  %9347 = vadd.xlane.f32.xlu0 %v9346
  %v9348 = vpop.xlane.xlu0 %9347
  %v9349 = vsel %vm9260, %v9149, 0.0
  %v9350 = vadd.f32 %v9148, %v9349
  %9351 = vadd.xlane.f32.xlu0 %v9350
  %v9352 = vpop.xlane.xlu0 %9351
  %v9353 = vsel %vm9260, %v9151, 0.0
  %v9354 = vadd.f32 %v9150, %v9353
  %9355 = vadd.xlane.f32.xlu0 %v9354
  %v9356 = vpop.xlane.xlu0 %9355
  %v9357 = vsel %vm9260, %v9153, 0.0
  %v9358 = vadd.f32 %v9152, %v9357
  %9359 = vadd.xlane.f32.xlu0 %v9358
  %v9360 = vpop.xlane.xlu0 %9359
  %v9361 = vsel %vm9260, %v9155, 0.0
  %v9362 = vadd.f32 %v9154, %v9361
  %9363 = vadd.xlane.f32.xlu0 %v9362
  %v9364 = vpop.xlane.xlu0 %9363
  %v9365 = vsel %vm9260, %v9157, 0.0
  %v9366 = vadd.f32 %v9156, %v9365
  %9367 = vadd.xlane.f32.xlu0 %v9366
  %v9368 = vpop.xlane.xlu0 %9367
  %v9369 = vsel %vm9260, %v9159, 0.0
  %v9370 = vadd.f32 %v9158, %v9369
  %9371 = vadd.xlane.f32.xlu0 %v9370
  %v9372 = vpop.xlane.xlu0 %9371
  %v9373 = vsel %vm9260, %v9161, 0.0
  %v9374 = vadd.f32 %v9160, %v9373
  %9375 = vadd.xlane.f32.xlu0 %v9374
  %v9376 = vpop.xlane.xlu0 %9375
  %v9377 = vsel %vm9260, %v9163, 0.0
  %v9378 = vadd.f32 %v9162, %v9377
  %9379 = vadd.xlane.f32.xlu0 %v9378
  %v9380 = vpop.xlane.xlu0 %9379
  %v9381 = vsel %vm9260, %v9165, 0.0
  %v9382 = vadd.f32 %v9164, %v9381
  %9383 = vadd.xlane.f32.xlu0 %v9382
  %v9384 = vpop.xlane.xlu0 %9383
  %v9385 = vsel %vm9260, %v9167, 0.0
  %v9386 = vadd.f32 %v9166, %v9385
  %9387 = vadd.xlane.f32.xlu0 %v9386
  %v9388 = vpop.xlane.xlu0 %9387
  %v9389 = vsel %vm9260, %v9169, 0.0
  %v9390 = vadd.f32 %v9168, %v9389
  %9391 = vadd.xlane.f32.xlu0 %v9390
  %v9392 = vpop.xlane.xlu0 %9391
  %v9393 = vsel %vm9260, %v9171, 0.0
  %v9394 = vadd.f32 %v9170, %v9393
  %9395 = vadd.xlane.f32.xlu0 %v9394
  %v9396 = vpop.xlane.xlu0 %9395
  %v9397 = vsel %vm9260, %v9173, 0.0
  %v9398 = vadd.f32 %v9172, %v9397
  %9399 = vadd.xlane.f32.xlu0 %v9398
  %v9400 = vpop.xlane.xlu0 %9399
  %v9401 = vsel %vm9260, %v9175, 0.0
  %v9402 = vadd.f32 %v9174, %v9401
  %9403 = vadd.xlane.f32.xlu0 %v9402
  %v9404 = vpop.xlane.xlu0 %9403
  %v9405 = vsel %vm9260, %v9177, 0.0
  %v9406 = vadd.f32 %v9176, %v9405
  %9407 = vadd.xlane.f32.xlu0 %v9406
  %v9408 = vpop.xlane.xlu0 %9407
  %v9409 = vsel %vm9260, %v9179, 0.0
  %v9410 = vadd.f32 %v9178, %v9409
  %9411 = vadd.xlane.f32.xlu0 %v9410
  %v9412 = vpop.xlane.xlu0 %9411
  %v9413 = vsel %vm9260, %v9181, 0.0
  %v9414 = vadd.f32 %v9180, %v9413
  %9415 = vadd.xlane.f32.xlu0 %v9414
  %v9416 = vpop.xlane.xlu0 %9415
  %v9417 = vsel %vm9260, %v9183, 0.0
  %v9418 = vadd.f32 %v9182, %v9417
  %9419 = vadd.xlane.f32.xlu0 %v9418
  %v9420 = vpop.xlane.xlu0 %9419
  %v9421 = vsel %vm9260, %v9185, 0.0
  %v9422 = vadd.f32 %v9184, %v9421
  %9423 = vadd.xlane.f32.xlu0 %v9422
  %v9424 = vpop.xlane.xlu0 %9423
  %v9425 = vsel %vm9260, %v9187, 0.0
  %v9426 = vadd.f32 %v9186, %v9425
  %9427 = vadd.xlane.f32.xlu0 %v9426
  %v9428 = vpop.xlane.xlu0 %9427
  %v9429 = vsel %vm9260, %v9189, 0.0
  %v9430 = vadd.f32 %v9188, %v9429
  %9431 = vadd.xlane.f32.xlu0 %v9430
  %v9432 = vpop.xlane.xlu0 %9431
  %v9433 = vsel %vm9260, %v9191, 0.0
  %v9434 = vadd.f32 %v9190, %v9433
  %9435 = vadd.xlane.f32.xlu0 %v9434
  %v9436 = vpop.xlane.xlu0 %9435
  %v9437 = vsel %vm9260, %v9193, 0.0
  %v9438 = vadd.f32 %v9192, %v9437
  %9439 = vadd.xlane.f32.xlu0 %v9438
  %v9440 = vpop.xlane.xlu0 %9439
  %v9441 = vsel %vm9260, %v9195, 0.0
  %v9442 = vadd.f32 %v9194, %v9441
  %9443 = vadd.xlane.f32.xlu0 %v9442
  %v9444 = vpop.xlane.xlu0 %9443
  %v9445 = vsel %vm9260, %v9197, 0.0
  %v9446 = vadd.f32 %v9196, %v9445
  %9447 = vadd.xlane.f32.xlu0 %v9446
  %v9448 = vpop.xlane.xlu0 %9447
  %v9449 = vsel %vm9260, %v9199, 0.0
  %v9450 = vadd.f32 %v9198, %v9449
  %9451 = vadd.xlane.f32.xlu0 %v9450
  %v9452 = vpop.xlane.xlu0 %9451
  %v9453 = vsel %vm9260, %v9201, 0.0
  %v9454 = vadd.f32 %v9200, %v9453
  %9455 = vadd.xlane.f32.xlu0 %v9454
  %v9456 = vpop.xlane.xlu0 %9455
  %v9457 = vsel %vm9260, %v9203, 0.0
  %v9458 = vadd.f32 %v9202, %v9457
  %9459 = vadd.xlane.f32.xlu0 %v9458
  %v9460 = vpop.xlane.xlu0 %9459
  %v9461 = vsel %vm9260, %v9205, 0.0
  %v9462 = vadd.f32 %v9204, %v9461
  %9463 = vadd.xlane.f32.xlu0 %v9462
  %v9464 = vpop.xlane.xlu0 %9463
  %v9465 = vsel %vm9260, %v9207, 0.0
  %v9466 = vadd.f32 %v9206, %v9465
  %9467 = vadd.xlane.f32.xlu0 %v9466
  %v9468 = vpop.xlane.xlu0 %9467
  %v9469 = vsel %vm9260, %v9209, 0.0
  %v9470 = vadd.f32 %v9208, %v9469
  %9471 = vadd.xlane.f32.xlu0 %v9470
  %v9472 = vpop.xlane.xlu0 %9471
  %v9473 = vsel %vm9260, %v9211, 0.0
  %v9474 = vadd.f32 %v9210, %v9473
  %9475 = vadd.xlane.f32.xlu0 %v9474
  %v9476 = vpop.xlane.xlu0 %9475
  %v9477 = vsel %vm9260, %v9213, 0.0
  %v9478 = vadd.f32 %v9212, %v9477
  %9479 = vadd.xlane.f32.xlu0 %v9478
  %v9480 = vpop.xlane.xlu0 %9479
  %v9481 = vsel %vm9260, %v9215, 0.0
  %v9482 = vadd.f32 %v9214, %v9481
  %9483 = vadd.xlane.f32.xlu0 %v9482
  %v9484 = vpop.xlane.xlu0 %9483
  %v9485 = vsel %vm9260, %v9217, 0.0
  %v9486 = vadd.f32 %v9216, %v9485
  %9487 = vadd.xlane.f32.xlu0 %v9486
  %v9488 = vpop.xlane.xlu0 %9487
  %v9489 = vsel %vm9260, %v9219, 0.0
  %v9490 = vadd.f32 %v9218, %v9489
  %9491 = vadd.xlane.f32.xlu0 %v9490
  %v9492 = vpop.xlane.xlu0 %9491
  %v9493 = vsel %vm9260, %v9221, 0.0
  %v9494 = vadd.f32 %v9220, %v9493
  %9495 = vadd.xlane.f32.xlu0 %v9494
  %v9496 = vpop.xlane.xlu0 %9495
  %v9497 = vsel %vm9260, %v9223, 0.0
  %v9498 = vadd.f32 %v9222, %v9497
  %9499 = vadd.xlane.f32.xlu0 %v9498
  %v9500 = vpop.xlane.xlu0 %9499
  %v9501 = vsel %vm9260, %v9225, 0.0
  %v9502 = vadd.f32 %v9224, %v9501
  %9503 = vadd.xlane.f32.xlu0 %v9502
  %v9504 = vpop.xlane.xlu0 %9503
  %v9505 = vsel %vm9260, %v9227, 0.0
  %v9506 = vadd.f32 %v9226, %v9505
  %9507 = vadd.xlane.f32.xlu0 %v9506
  %v9508 = vpop.xlane.xlu0 %9507
  %v9509 = vsel %vm9260, %v9229, 0.0
  %v9510 = vadd.f32 %v9228, %v9509
  %9511 = vadd.xlane.f32.xlu0 %v9510
  %v9512 = vpop.xlane.xlu0 %9511
  %v9513 = vsel %vm9260, %v9231, 0.0
  %v9514 = vadd.f32 %v9230, %v9513
  %9515 = vadd.xlane.f32.xlu0 %v9514
  %v9516 = vpop.xlane.xlu0 %9515
  %v9517 = vsel %vm9260, %v9233, 0.0
  %v9518 = vadd.f32 %v9232, %v9517
  %9519 = vadd.xlane.f32.xlu0 %v9518
  %v9520 = vpop.xlane.xlu0 %9519
  %v9521 = vsel %vm9260, %v9235, 0.0
  %v9522 = vadd.f32 %v9234, %v9521
  %9523 = vadd.xlane.f32.xlu0 %v9522
  %v9524 = vpop.xlane.xlu0 %9523
  %v9525 = vsel %vm9260, %v9237, 0.0
  %v9526 = vadd.f32 %v9236, %v9525
  %9527 = vadd.xlane.f32.xlu0 %v9526
  %v9528 = vpop.xlane.xlu0 %9527
  %v9529 = vsel %vm9260, %v9239, 0.0
  %v9530 = vadd.f32 %v9238, %v9529
  %9531 = vadd.xlane.f32.xlu0 %v9530
  %v9532 = vpop.xlane.xlu0 %9531
  %v9533 = vsel %vm9260, %v9241, 0.0
  %v9534 = vadd.f32 %v9240, %v9533
  %9535 = vadd.xlane.f32.xlu0 %v9534
  %v9536 = vpop.xlane.xlu0 %9535
  %v9537 = vsel %vm9260, %v9243, 0.0
  %v9538 = vadd.f32 %v9242, %v9537
  %9539 = vadd.xlane.f32.xlu0 %v9538
  %v9540 = vpop.xlane.xlu0 %9539
  %v9541 = vsel %vm9260, %v9245, 0.0
  %v9542 = vadd.f32 %v9244, %v9541
  %9543 = vadd.xlane.f32.xlu0 %v9542
  %v9544 = vpop.xlane.xlu0 %9543
  %v9545 = vsel %vm9260, %v9247, 0.0
  %v9546 = vadd.f32 %v9246, %v9545
  %9547 = vadd.xlane.f32.xlu0 %v9546
  %v9548 = vpop.xlane.xlu0 %9547
  %v9549 = vsel %vm9260, %v9249, 0.0
  %v9550 = vadd.f32 %v9248, %v9549
  %9551 = vadd.xlane.f32.xlu0 %v9550
  %v9552 = vpop.xlane.xlu0 %9551
  %v9553 = vsel %vm9260, %v9251, 0.0
  %v9554 = vadd.f32 %v9250, %v9553
  %9555 = vadd.xlane.f32.xlu0 %v9554
  %v9556 = vpop.xlane.xlu0 %9555
  %v9557 = vsel %vm9260, %v9253, 0.0
  %v9558 = vadd.f32 %v9252, %v9557
  %9559 = vadd.xlane.f32.xlu0 %v9558
  %v9560 = vpop.xlane.xlu0 %9559
  %v9561 = vsel %vm9260, %v9255, 0.0
  %v9562 = vadd.f32 %v9254, %v9561
  %9563 = vadd.xlane.f32.xlu0 %v9562
  %v9564 = vpop.xlane.xlu0 %9563
  %v9565 = vsel %vm9260, %v9257, 0.0
  %v9566 = vadd.f32 %v9256, %v9565
  %9567 = vadd.xlane.f32.xlu0 %v9566
  %v9568 = vpop.xlane.xlu0 %9567
  %v9569 = vsel %vm9260, %v9259, 0.0
  %v9570 = vadd.f32 %v9258, %v9569
  %9571 = vadd.xlane.f32.xlu0 %v9570
  %v9572 = vpop.xlane.xlu0 %9571
  %v9573 = vmul.f32 %v9264, 0.0051020407
  %v9574 = vmul.f32 %v9268, 0.0051020407
  %v9575 = vmul.f32 %v9272, 0.0051020407
  %v9576 = vmul.f32 %v9276, 0.0051020407
  %v9577 = vmul.f32 %v9280, 0.0051020407
  %v9578 = vmul.f32 %v9284, 0.0051020407
  %v9579 = vmul.f32 %v9288, 0.0051020407
  %v9580 = vmul.f32 %v9292, 0.0051020407
  %v9581 = vmul.f32 %v9296, 0.0051020407
  %v9582 = vmul.f32 %v9300, 0.0051020407
  %v9583 = vmul.f32 %v9304, 0.0051020407
  %v9584 = vmul.f32 %v9308, 0.0051020407
  %v9585 = vmul.f32 %v9312, 0.0051020407
  %v9586 = vmul.f32 %v9316, 0.0051020407
  %v9587 = vmul.f32 %v9320, 0.0051020407
  %v9588 = vmul.f32 %v9324, 0.0051020407
  %v9589 = vmul.f32 %v9328, 0.0051020407
  %v9590 = vmul.f32 %v9332, 0.0051020407
  %v9591 = vmul.f32 %v9336, 0.0051020407
  %v9592 = vmul.f32 %v9340, 0.0051020407
  %v9593 = vmul.f32 %v9344, 0.0051020407
  %v9594 = vmul.f32 %v9348, 0.0051020407
  %v9595 = vmul.f32 %v9352, 0.0051020407
  %v9596 = vmul.f32 %v9356, 0.0051020407
  %v9597 = vmul.f32 %v9360, 0.0051020407
  %v9598 = vmul.f32 %v9364, 0.0051020407
  %v9599 = vmul.f32 %v9368, 0.0051020407
  %v9600 = vmul.f32 %v9372, 0.0051020407
  %v9601 = vmul.f32 %v9376, 0.0051020407
  %v9602 = vmul.f32 %v9380, 0.0051020407
  %v9603 = vmul.f32 %v9384, 0.0051020407
  %v9604 = vmul.f32 %v9388, 0.0051020407
  %v9605 = vmul.f32 %v9392, 0.0051020407
  %v9606 = vmul.f32 %v9396, 0.0051020407
  %v9607 = vmul.f32 %v9400, 0.0051020407
  %v9608 = vmul.f32 %v9404, 0.0051020407
  %v9609 = vmul.f32 %v9408, 0.0051020407
  %v9610 = vmul.f32 %v9412, 0.0051020407
  %v9611 = vmul.f32 %v9416, 0.0051020407
  %v9612 = vmul.f32 %v9420, 0.0051020407
  %v9613 = vmul.f32 %v9424, 0.0051020407
  %v9614 = vmul.f32 %v9428, 0.0051020407
  %v9615 = vmul.f32 %v9432, 0.0051020407
  %v9616 = vmul.f32 %v9436, 0.0051020407
  %v9617 = vmul.f32 %v9440, 0.0051020407
  %v9618 = vmul.f32 %v9444, 0.0051020407
  %v9619 = vmul.f32 %v9448, 0.0051020407
  %v9620 = vmul.f32 %v9452, 0.0051020407
  %v9621 = vmul.f32 %v9456, 0.0051020407
  %v9622 = vmul.f32 %v9460, 0.0051020407
  %v9623 = vmul.f32 %v9464, 0.0051020407
  %v9624 = vmul.f32 %v9468, 0.0051020407
  %v9625 = vmul.f32 %v9472, 0.0051020407
  %v9626 = vmul.f32 %v9476, 0.0051020407
  %v9627 = vmul.f32 %v9480, 0.0051020407
  %v9628 = vmul.f32 %v9484, 0.0051020407
  %v9629 = vmul.f32 %v9488, 0.0051020407
  %v9630 = vmul.f32 %v9492, 0.0051020407
  %v9631 = vmul.f32 %v9496, 0.0051020407
  %v9632 = vmul.f32 %v9500, 0.0051020407
  %v9633 = vmul.f32 %v9504, 0.0051020407
  %v9634 = vmul.f32 %v9508, 0.0051020407
  %v9635 = vmul.f32 %v9512, 0.0051020407
  %v9636 = vmul.f32 %v9516, 0.0051020407
  %v9637 = vmul.f32 %v9520, 0.0051020407
  %v9638 = vmul.f32 %v9524, 0.0051020407
  %v9639 = vmul.f32 %v9528, 0.0051020407
  %v9640 = vmul.f32 %v9532, 0.0051020407
  %v9641 = vmul.f32 %v9536, 0.0051020407
  %v9642 = vmul.f32 %v9540, 0.0051020407
  %v9643 = vmul.f32 %v9544, 0.0051020407
  %v9644 = vmul.f32 %v9548, 0.0051020407
  %v9645 = vmul.f32 %v9552, 0.0051020407
  %v9646 = vmul.f32 %v9556, 0.0051020407
  %v9647 = vmul.f32 %v9560, 0.0051020407
  %v9648 = vmul.f32 %v9564, 0.0051020407
  %v9649 = vmul.f32 %v9568, 0.0051020407
  %v9650 = vmul.f32 %v9572, 0.0051020407
  %v9651 = vmul.f32 %v9104, %v9104
  %v9652 = vmul.f32 %v9105, %v9105
  %v9653 = vmul.f32 %v9106, %v9106
  %v9654 = vmul.f32 %v9107, %v9107
  %v9655 = vmul.f32 %v9108, %v9108
  %v9656 = vmul.f32 %v9109, %v9109
  %v9657 = vmul.f32 %v9110, %v9110
  %v9658 = vmul.f32 %v9111, %v9111
  %v9659 = vmul.f32 %v9112, %v9112
  %v9660 = vmul.f32 %v9113, %v9113
  %v9661 = vmul.f32 %v9114, %v9114
  %v9662 = vmul.f32 %v9115, %v9115
  %v9663 = vmul.f32 %v9116, %v9116
  %v9664 = vmul.f32 %v9117, %v9117
  %v9665 = vmul.f32 %v9118, %v9118
  %v9666 = vmul.f32 %v9119, %v9119
  %v9667 = vmul.f32 %v9120, %v9120
  %v9668 = vmul.f32 %v9121, %v9121
  %v9669 = vmul.f32 %v9122, %v9122
  %v9670 = vmul.f32 %v9123, %v9123
  %v9671 = vmul.f32 %v9124, %v9124
  %v9672 = vmul.f32 %v9125, %v9125
  %v9673 = vmul.f32 %v9126, %v9126
  %v9674 = vmul.f32 %v9127, %v9127
  %v9675 = vmul.f32 %v9128, %v9128
  %v9676 = vmul.f32 %v9129, %v9129
  %v9677 = vmul.f32 %v9130, %v9130
  %v9678 = vmul.f32 %v9131, %v9131
  %v9679 = vmul.f32 %v9132, %v9132
  %v9680 = vmul.f32 %v9133, %v9133
  %v9681 = vmul.f32 %v9134, %v9134
  %v9682 = vmul.f32 %v9135, %v9135
  %v9683 = vmul.f32 %v9136, %v9136
  %v9684 = vmul.f32 %v9137, %v9137
  %v9685 = vmul.f32 %v9138, %v9138
  %v9686 = vmul.f32 %v9139, %v9139
  %v9687 = vmul.f32 %v9140, %v9140
  %v9688 = vmul.f32 %v9141, %v9141
  %v9689 = vmul.f32 %v9142, %v9142
  %v9690 = vmul.f32 %v9143, %v9143
  %v9691 = vmul.f32 %v9144, %v9144
  %v9692 = vmul.f32 %v9145, %v9145
  %v9693 = vmul.f32 %v9146, %v9146
  %v9694 = vmul.f32 %v9147, %v9147
  %v9695 = vmul.f32 %v9148, %v9148
  %v9696 = vmul.f32 %v9149, %v9149
  %v9697 = vmul.f32 %v9150, %v9150
  %v9698 = vmul.f32 %v9151, %v9151
  %v9699 = vmul.f32 %v9152, %v9152
  %v9700 = vmul.f32 %v9153, %v9153
  %v9701 = vmul.f32 %v9154, %v9154
  %v9702 = vmul.f32 %v9155, %v9155
  %v9703 = vmul.f32 %v9156, %v9156
  %v9704 = vmul.f32 %v9157, %v9157
  %v9705 = vmul.f32 %v9158, %v9158
  %v9706 = vmul.f32 %v9159, %v9159
  %v9707 = vmul.f32 %v9160, %v9160
  %v9708 = vmul.f32 %v9161, %v9161
  %v9709 = vmul.f32 %v9162, %v9162
  %v9710 = vmul.f32 %v9163, %v9163
  %v9711 = vmul.f32 %v9164, %v9164
  %v9712 = vmul.f32 %v9165, %v9165
  %v9713 = vmul.f32 %v9166, %v9166
  %v9714 = vmul.f32 %v9167, %v9167
  %v9715 = vmul.f32 %v9168, %v9168
  %v9716 = vmul.f32 %v9169, %v9169
  %v9717 = vmul.f32 %v9170, %v9170
  %v9718 = vmul.f32 %v9171, %v9171
  %v9719 = vmul.f32 %v9172, %v9172
  %v9720 = vmul.f32 %v9173, %v9173
  %v9721 = vmul.f32 %v9174, %v9174
  %v9722 = vmul.f32 %v9175, %v9175
  %v9723 = vmul.f32 %v9176, %v9176
  %v9724 = vmul.f32 %v9177, %v9177
  %v9725 = vmul.f32 %v9178, %v9178
  %v9726 = vmul.f32 %v9179, %v9179
  %v9727 = vmul.f32 %v9180, %v9180
  %v9728 = vmul.f32 %v9181, %v9181
  %v9729 = vmul.f32 %v9182, %v9182
  %v9730 = vmul.f32 %v9183, %v9183
  %v9731 = vmul.f32 %v9184, %v9184
  %v9732 = vmul.f32 %v9185, %v9185
  %v9733 = vmul.f32 %v9186, %v9186
  %v9734 = vmul.f32 %v9187, %v9187
  %v9735 = vmul.f32 %v9188, %v9188
  %v9736 = vmul.f32 %v9189, %v9189
  %v9737 = vmul.f32 %v9190, %v9190
  %v9738 = vmul.f32 %v9191, %v9191
  %v9739 = vmul.f32 %v9192, %v9192
  %v9740 = vmul.f32 %v9193, %v9193
  %v9741 = vmul.f32 %v9194, %v9194
  %v9742 = vmul.f32 %v9195, %v9195
  %v9743 = vmul.f32 %v9196, %v9196
  %v9744 = vmul.f32 %v9197, %v9197
  %v9745 = vmul.f32 %v9198, %v9198
  %v9746 = vmul.f32 %v9199, %v9199
  %v9747 = vmul.f32 %v9200, %v9200
  %v9748 = vmul.f32 %v9201, %v9201
  %v9749 = vmul.f32 %v9202, %v9202
  %v9750 = vmul.f32 %v9203, %v9203
  %v9751 = vmul.f32 %v9204, %v9204
  %v9752 = vmul.f32 %v9205, %v9205
  %v9753 = vmul.f32 %v9206, %v9206
  %v9754 = vmul.f32 %v9207, %v9207
  %v9755 = vmul.f32 %v9208, %v9208
  %v9756 = vmul.f32 %v9209, %v9209
  %v9757 = vmul.f32 %v9210, %v9210
  %v9758 = vmul.f32 %v9211, %v9211
  %v9759 = vmul.f32 %v9212, %v9212
  %v9760 = vmul.f32 %v9213, %v9213
  %v9761 = vmul.f32 %v9214, %v9214
  %v9762 = vmul.f32 %v9215, %v9215
  %v9763 = vmul.f32 %v9216, %v9216
  %v9764 = vmul.f32 %v9217, %v9217
  %v9765 = vmul.f32 %v9218, %v9218
  %v9766 = vmul.f32 %v9219, %v9219
  %v9767 = vmul.f32 %v9220, %v9220
  %v9768 = vmul.f32 %v9221, %v9221
  %v9769 = vmul.f32 %v9222, %v9222
  %v9770 = vmul.f32 %v9223, %v9223
  %v9771 = vmul.f32 %v9224, %v9224
  %v9772 = vmul.f32 %v9225, %v9225
  %v9773 = vmul.f32 %v9226, %v9226
  %v9774 = vmul.f32 %v9227, %v9227
  %v9775 = vmul.f32 %v9228, %v9228
  %v9776 = vmul.f32 %v9229, %v9229
  %v9777 = vmul.f32 %v9230, %v9230
  %v9778 = vmul.f32 %v9231, %v9231
  %v9779 = vmul.f32 %v9232, %v9232
  %v9780 = vmul.f32 %v9233, %v9233
  %v9781 = vmul.f32 %v9234, %v9234
  %v9782 = vmul.f32 %v9235, %v9235
  %v9783 = vmul.f32 %v9236, %v9236
  %v9784 = vmul.f32 %v9237, %v9237
  %v9785 = vmul.f32 %v9238, %v9238
  %v9786 = vmul.f32 %v9239, %v9239
  %v9787 = vmul.f32 %v9240, %v9240
  %v9788 = vmul.f32 %v9241, %v9241
  %v9789 = vmul.f32 %v9242, %v9242
  %v9790 = vmul.f32 %v9243, %v9243
  %v9791 = vmul.f32 %v9244, %v9244
  %v9792 = vmul.f32 %v9245, %v9245
  %v9793 = vmul.f32 %v9246, %v9246
  %v9794 = vmul.f32 %v9247, %v9247
  %v9795 = vmul.f32 %v9248, %v9248
  %v9796 = vmul.f32 %v9249, %v9249
  %v9797 = vmul.f32 %v9250, %v9250
  %v9798 = vmul.f32 %v9251, %v9251
  %v9799 = vmul.f32 %v9252, %v9252
  %v9800 = vmul.f32 %v9253, %v9253
  %v9801 = vmul.f32 %v9254, %v9254
  %v9802 = vmul.f32 %v9255, %v9255
  %v9803 = vmul.f32 %v9256, %v9256
  %v9804 = vmul.f32 %v9257, %v9257
  %v9805 = vmul.f32 %v9258, %v9258
  %v9806 = vmul.f32 %v9259, %v9259
  %v9807 = vsel %vm9260, %v9652, 0.0
  %v9808 = vadd.f32 %v9651, %v9807
  %9809 = vadd.xlane.f32.xlu0 %v9808
  %v9810 = vpop.xlane.xlu0 %9809
  %v9811 = vsel %vm9260, %v9654, 0.0
  %v9812 = vadd.f32 %v9653, %v9811
  %9813 = vadd.xlane.f32.xlu0 %v9812
  %v9814 = vpop.xlane.xlu0 %9813
  %v9815 = vsel %vm9260, %v9656, 0.0
  %v9816 = vadd.f32 %v9655, %v9815
  %9817 = vadd.xlane.f32.xlu0 %v9816
  %v9818 = vpop.xlane.xlu0 %9817
  %v9819 = vsel %vm9260, %v9658, 0.0
  %v9820 = vadd.f32 %v9657, %v9819
  %9821 = vadd.xlane.f32.xlu0 %v9820
  %v9822 = vpop.xlane.xlu0 %9821
  %v9823 = vsel %vm9260, %v9660, 0.0
  %v9824 = vadd.f32 %v9659, %v9823
  %9825 = vadd.xlane.f32.xlu0 %v9824
  %v9826 = vpop.xlane.xlu0 %9825
  %v9827 = vsel %vm9260, %v9662, 0.0
  %v9828 = vadd.f32 %v9661, %v9827
  %9829 = vadd.xlane.f32.xlu0 %v9828
  %v9830 = vpop.xlane.xlu0 %9829
  %v9831 = vsel %vm9260, %v9664, 0.0
  %v9832 = vadd.f32 %v9663, %v9831
  %9833 = vadd.xlane.f32.xlu0 %v9832
  %v9834 = vpop.xlane.xlu0 %9833
  %v9835 = vsel %vm9260, %v9666, 0.0
  %v9836 = vadd.f32 %v9665, %v9835
  %9837 = vadd.xlane.f32.xlu0 %v9836
  %v9838 = vpop.xlane.xlu0 %9837
  %v9839 = vsel %vm9260, %v9668, 0.0
  %v9840 = vadd.f32 %v9667, %v9839
  %9841 = vadd.xlane.f32.xlu0 %v9840
  %v9842 = vpop.xlane.xlu0 %9841
  %v9843 = vsel %vm9260, %v9670, 0.0
  %v9844 = vadd.f32 %v9669, %v9843
  %9845 = vadd.xlane.f32.xlu0 %v9844
  %v9846 = vpop.xlane.xlu0 %9845
  %v9847 = vsel %vm9260, %v9672, 0.0
  %v9848 = vadd.f32 %v9671, %v9847
  %9849 = vadd.xlane.f32.xlu0 %v9848
  %v9850 = vpop.xlane.xlu0 %9849
  %v9851 = vsel %vm9260, %v9674, 0.0
  %v9852 = vadd.f32 %v9673, %v9851
  %9853 = vadd.xlane.f32.xlu0 %v9852
  %v9854 = vpop.xlane.xlu0 %9853
  %v9855 = vsel %vm9260, %v9676, 0.0
  %v9856 = vadd.f32 %v9675, %v9855
  %9857 = vadd.xlane.f32.xlu0 %v9856
  %v9858 = vpop.xlane.xlu0 %9857
  %v9859 = vsel %vm9260, %v9678, 0.0
  %v9860 = vadd.f32 %v9677, %v9859
  %9861 = vadd.xlane.f32.xlu0 %v9860
  %v9862 = vpop.xlane.xlu0 %9861
  %v9863 = vsel %vm9260, %v9680, 0.0
  %v9864 = vadd.f32 %v9679, %v9863
  %9865 = vadd.xlane.f32.xlu0 %v9864
  %v9866 = vpop.xlane.xlu0 %9865
  %v9867 = vsel %vm9260, %v9682, 0.0
  %v9868 = vadd.f32 %v9681, %v9867
  %9869 = vadd.xlane.f32.xlu0 %v9868
  %v9870 = vpop.xlane.xlu0 %9869
  %v9871 = vsel %vm9260, %v9684, 0.0
  %v9872 = vadd.f32 %v9683, %v9871
  %9873 = vadd.xlane.f32.xlu0 %v9872
  %v9874 = vpop.xlane.xlu0 %9873
  %v9875 = vsel %vm9260, %v9686, 0.0
  %v9876 = vadd.f32 %v9685, %v9875
  %9877 = vadd.xlane.f32.xlu0 %v9876
  %v9878 = vpop.xlane.xlu0 %9877
  %v9879 = vsel %vm9260, %v9688, 0.0
  %v9880 = vadd.f32 %v9687, %v9879
  %9881 = vadd.xlane.f32.xlu0 %v9880
  %v9882 = vpop.xlane.xlu0 %9881
  %v9883 = vsel %vm9260, %v9690, 0.0
  %v9884 = vadd.f32 %v9689, %v9883
  %9885 = vadd.xlane.f32.xlu0 %v9884
  %v9886 = vpop.xlane.xlu0 %9885
  %v9887 = vsel %vm9260, %v9692, 0.0
  %v9888 = vadd.f32 %v9691, %v9887
  %9889 = vadd.xlane.f32.xlu0 %v9888
  %v9890 = vpop.xlane.xlu0 %9889
  %v9891 = vsel %vm9260, %v9694, 0.0
  %v9892 = vadd.f32 %v9693, %v9891
  %9893 = vadd.xlane.f32.xlu0 %v9892
  %v9894 = vpop.xlane.xlu0 %9893
  %v9895 = vsel %vm9260, %v9696, 0.0
  %v9896 = vadd.f32 %v9695, %v9895
  %9897 = vadd.xlane.f32.xlu0 %v9896
  %v9898 = vpop.xlane.xlu0 %9897
  %v9899 = vsel %vm9260, %v9698, 0.0
  %v9900 = vadd.f32 %v9697, %v9899
  %9901 = vadd.xlane.f32.xlu0 %v9900
  %v9902 = vpop.xlane.xlu0 %9901
  %v9903 = vsel %vm9260, %v9700, 0.0
  %v9904 = vadd.f32 %v9699, %v9903
  %9905 = vadd.xlane.f32.xlu0 %v9904
  %v9906 = vpop.xlane.xlu0 %9905
  %v9907 = vsel %vm9260, %v9702, 0.0
  %v9908 = vadd.f32 %v9701, %v9907
  %9909 = vadd.xlane.f32.xlu0 %v9908
  %v9910 = vpop.xlane.xlu0 %9909
  %v9911 = vsel %vm9260, %v9704, 0.0
  %v9912 = vadd.f32 %v9703, %v9911
  %9913 = vadd.xlane.f32.xlu0 %v9912
  %v9914 = vpop.xlane.xlu0 %9913
  %v9915 = vsel %vm9260, %v9706, 0.0
  %v9916 = vadd.f32 %v9705, %v9915
  %9917 = vadd.xlane.f32.xlu0 %v9916
  %v9918 = vpop.xlane.xlu0 %9917
  %v9919 = vsel %vm9260, %v9708, 0.0
  %v9920 = vadd.f32 %v9707, %v9919
  %9921 = vadd.xlane.f32.xlu0 %v9920
  %v9922 = vpop.xlane.xlu0 %9921
  %v9923 = vsel %vm9260, %v9710, 0.0
  %v9924 = vadd.f32 %v9709, %v9923
  %9925 = vadd.xlane.f32.xlu0 %v9924
  %v9926 = vpop.xlane.xlu0 %9925
  %v9927 = vsel %vm9260, %v9712, 0.0
  %v9928 = vadd.f32 %v9711, %v9927
  %9929 = vadd.xlane.f32.xlu0 %v9928
  %v9930 = vpop.xlane.xlu0 %9929
  %v9931 = vsel %vm9260, %v9714, 0.0
  %v9932 = vadd.f32 %v9713, %v9931
  %9933 = vadd.xlane.f32.xlu0 %v9932
  %v9934 = vpop.xlane.xlu0 %9933
  %v9935 = vsel %vm9260, %v9716, 0.0
  %v9936 = vadd.f32 %v9715, %v9935
  %9937 = vadd.xlane.f32.xlu0 %v9936
  %v9938 = vpop.xlane.xlu0 %9937
  %v9939 = vsel %vm9260, %v9718, 0.0
  %v9940 = vadd.f32 %v9717, %v9939
  %9941 = vadd.xlane.f32.xlu0 %v9940
  %v9942 = vpop.xlane.xlu0 %9941
  %v9943 = vsel %vm9260, %v9720, 0.0
  %v9944 = vadd.f32 %v9719, %v9943
  %9945 = vadd.xlane.f32.xlu0 %v9944
  %v9946 = vpop.xlane.xlu0 %9945
  %v9947 = vsel %vm9260, %v9722, 0.0
  %v9948 = vadd.f32 %v9721, %v9947
  %9949 = vadd.xlane.f32.xlu0 %v9948
  %v9950 = vpop.xlane.xlu0 %9949
  %v9951 = vsel %vm9260, %v9724, 0.0
  %v9952 = vadd.f32 %v9723, %v9951
  %9953 = vadd.xlane.f32.xlu0 %v9952
  %v9954 = vpop.xlane.xlu0 %9953
  %v9955 = vsel %vm9260, %v9726, 0.0
  %v9956 = vadd.f32 %v9725, %v9955
  %9957 = vadd.xlane.f32.xlu0 %v9956
  %v9958 = vpop.xlane.xlu0 %9957
  %v9959 = vsel %vm9260, %v9728, 0.0
  %v9960 = vadd.f32 %v9727, %v9959
  %9961 = vadd.xlane.f32.xlu0 %v9960
  %v9962 = vpop.xlane.xlu0 %9961
  %v9963 = vsel %vm9260, %v9730, 0.0
  %v9964 = vadd.f32 %v9729, %v9963
  %9965 = vadd.xlane.f32.xlu0 %v9964
  %v9966 = vpop.xlane.xlu0 %9965
  %v9967 = vsel %vm9260, %v9732, 0.0
  %v9968 = vadd.f32 %v9731, %v9967
  %9969 = vadd.xlane.f32.xlu0 %v9968
  %v9970 = vpop.xlane.xlu0 %9969
  %v9971 = vsel %vm9260, %v9734, 0.0
  %v9972 = vadd.f32 %v9733, %v9971
  %9973 = vadd.xlane.f32.xlu0 %v9972
  %v9974 = vpop.xlane.xlu0 %9973
  %v9975 = vsel %vm9260, %v9736, 0.0
  %v9976 = vadd.f32 %v9735, %v9975
  %9977 = vadd.xlane.f32.xlu0 %v9976
  %v9978 = vpop.xlane.xlu0 %9977
  %v9979 = vsel %vm9260, %v9738, 0.0
  %v9980 = vadd.f32 %v9737, %v9979
  %9981 = vadd.xlane.f32.xlu0 %v9980
  %v9982 = vpop.xlane.xlu0 %9981
  %v9983 = vsel %vm9260, %v9740, 0.0
  %v9984 = vadd.f32 %v9739, %v9983
  %9985 = vadd.xlane.f32.xlu0 %v9984
  %v9986 = vpop.xlane.xlu0 %9985
  %v9987 = vsel %vm9260, %v9742, 0.0
  %v9988 = vadd.f32 %v9741, %v9987
  %9989 = vadd.xlane.f32.xlu0 %v9988
  %v9990 = vpop.xlane.xlu0 %9989
  %v9991 = vsel %vm9260, %v9744, 0.0
  %v9992 = vadd.f32 %v9743, %v9991
  %9993 = vadd.xlane.f32.xlu0 %v9992
  %v9994 = vpop.xlane.xlu0 %9993
  %v9995 = vsel %vm9260, %v9746, 0.0
  %v9996 = vadd.f32 %v9745, %v9995
  %9997 = vadd.xlane.f32.xlu0 %v9996
  %v9998 = vpop.xlane.xlu0 %9997
  %v9999 = vsel %vm9260, %v9748, 0.0
  %v10000 = vadd.f32 %v9747, %v9999
  %10001 = vadd.xlane.f32.xlu0 %v10000
  %v10002 = vpop.xlane.xlu0 %10001
  %v10003 = vsel %vm9260, %v9750, 0.0
  %v10004 = vadd.f32 %v9749, %v10003
  %10005 = vadd.xlane.f32.xlu0 %v10004
  %v10006 = vpop.xlane.xlu0 %10005
  %v10007 = vsel %vm9260, %v9752, 0.0
  %v10008 = vadd.f32 %v9751, %v10007
  %10009 = vadd.xlane.f32.xlu0 %v10008
  %v10010 = vpop.xlane.xlu0 %10009
  %v10011 = vsel %vm9260, %v9754, 0.0
  %v10012 = vadd.f32 %v9753, %v10011
  %10013 = vadd.xlane.f32.xlu0 %v10012
  %v10014 = vpop.xlane.xlu0 %10013
  %v10015 = vsel %vm9260, %v9756, 0.0
  %v10016 = vadd.f32 %v9755, %v10015
  %10017 = vadd.xlane.f32.xlu0 %v10016
  %v10018 = vpop.xlane.xlu0 %10017
  %v10019 = vsel %vm9260, %v9758, 0.0
  %v10020 = vadd.f32 %v9757, %v10019
  %10021 = vadd.xlane.f32.xlu0 %v10020
  %v10022 = vpop.xlane.xlu0 %10021
  %v10023 = vsel %vm9260, %v9760, 0.0
  %v10024 = vadd.f32 %v9759, %v10023
  %10025 = vadd.xlane.f32.xlu0 %v10024
  %v10026 = vpop.xlane.xlu0 %10025
  %v10027 = vsel %vm9260, %v9762, 0.0
  %v10028 = vadd.f32 %v9761, %v10027
  %10029 = vadd.xlane.f32.xlu0 %v10028
  %v10030 = vpop.xlane.xlu0 %10029
  %v10031 = vsel %vm9260, %v9764, 0.0
  %v10032 = vadd.f32 %v9763, %v10031
  %10033 = vadd.xlane.f32.xlu0 %v10032
  %v10034 = vpop.xlane.xlu0 %10033
  %v10035 = vsel %vm9260, %v9766, 0.0
  %v10036 = vadd.f32 %v9765, %v10035
  %10037 = vadd.xlane.f32.xlu0 %v10036
  %v10038 = vpop.xlane.xlu0 %10037
  %v10039 = vsel %vm9260, %v9768, 0.0
  %v10040 = vadd.f32 %v9767, %v10039
  %10041 = vadd.xlane.f32.xlu0 %v10040
  %v10042 = vpop.xlane.xlu0 %10041
  %v10043 = vsel %vm9260, %v9770, 0.0
  %v10044 = vadd.f32 %v9769, %v10043
  %10045 = vadd.xlane.f32.xlu0 %v10044
  %v10046 = vpop.xlane.xlu0 %10045
  %v10047 = vsel %vm9260, %v9772, 0.0
  %v10048 = vadd.f32 %v9771, %v10047
  %10049 = vadd.xlane.f32.xlu0 %v10048
  %v10050 = vpop.xlane.xlu0 %10049
  %v10051 = vsel %vm9260, %v9774, 0.0
  %v10052 = vadd.f32 %v9773, %v10051
  %10053 = vadd.xlane.f32.xlu0 %v10052
  %v10054 = vpop.xlane.xlu0 %10053
  %v10055 = vsel %vm9260, %v9776, 0.0
  %v10056 = vadd.f32 %v9775, %v10055
  %10057 = vadd.xlane.f32.xlu0 %v10056
  %v10058 = vpop.xlane.xlu0 %10057
  %v10059 = vsel %vm9260, %v9778, 0.0
  %v10060 = vadd.f32 %v9777, %v10059
  %10061 = vadd.xlane.f32.xlu0 %v10060
  %v10062 = vpop.xlane.xlu0 %10061
  %v10063 = vsel %vm9260, %v9780, 0.0
  %v10064 = vadd.f32 %v9779, %v10063
  %10065 = vadd.xlane.f32.xlu0 %v10064
  %v10066 = vpop.xlane.xlu0 %10065
  %v10067 = vsel %vm9260, %v9782, 0.0
  %v10068 = vadd.f32 %v9781, %v10067
  %10069 = vadd.xlane.f32.xlu0 %v10068
  %v10070 = vpop.xlane.xlu0 %10069
  %v10071 = vsel %vm9260, %v9784, 0.0
  %v10072 = vadd.f32 %v9783, %v10071
  %10073 = vadd.xlane.f32.xlu0 %v10072
  %v10074 = vpop.xlane.xlu0 %10073
  %v10075 = vsel %vm9260, %v9786, 0.0
  %v10076 = vadd.f32 %v9785, %v10075
  %10077 = vadd.xlane.f32.xlu0 %v10076
  %v10078 = vpop.xlane.xlu0 %10077
  %v10079 = vsel %vm9260, %v9788, 0.0
  %v10080 = vadd.f32 %v9787, %v10079
  %10081 = vadd.xlane.f32.xlu0 %v10080
  %v10082 = vpop.xlane.xlu0 %10081
  %v10083 = vsel %vm9260, %v9790, 0.0
  %v10084 = vadd.f32 %v9789, %v10083
  %10085 = vadd.xlane.f32.xlu0 %v10084
  %v10086 = vpop.xlane.xlu0 %10085
  %v10087 = vsel %vm9260, %v9792, 0.0
  %v10088 = vadd.f32 %v9791, %v10087
  %10089 = vadd.xlane.f32.xlu0 %v10088
  %v10090 = vpop.xlane.xlu0 %10089
  %v10091 = vsel %vm9260, %v9794, 0.0
  %v10092 = vadd.f32 %v9793, %v10091
  %10093 = vadd.xlane.f32.xlu0 %v10092
  %v10094 = vpop.xlane.xlu0 %10093
  %v10095 = vsel %vm9260, %v9796, 0.0
  %v10096 = vadd.f32 %v9795, %v10095
  %10097 = vadd.xlane.f32.xlu0 %v10096
  %v10098 = vpop.xlane.xlu0 %10097
  %v10099 = vsel %vm9260, %v9798, 0.0
  %v10100 = vadd.f32 %v9797, %v10099
  %10101 = vadd.xlane.f32.xlu0 %v10100
  %v10102 = vpop.xlane.xlu0 %10101
  %v10103 = vsel %vm9260, %v9800, 0.0
  %v10104 = vadd.f32 %v9799, %v10103
  %10105 = vadd.xlane.f32.xlu0 %v10104
  %v10106 = vpop.xlane.xlu0 %10105
  %v10107 = vsel %vm9260, %v9802, 0.0
  %v10108 = vadd.f32 %v9801, %v10107
  %10109 = vadd.xlane.f32.xlu0 %v10108
  %v10110 = vpop.xlane.xlu0 %10109
  %v10111 = vsel %vm9260, %v9804, 0.0
  %v10112 = vadd.f32 %v9803, %v10111
  %10113 = vadd.xlane.f32.xlu0 %v10112
  %v10114 = vpop.xlane.xlu0 %10113
  %v10115 = vsel %vm9260, %v9806, 0.0
  %v10116 = vadd.f32 %v9805, %v10115
  %10117 = vadd.xlane.f32.xlu0 %v10116
  %v10118 = vpop.xlane.xlu0 %10117
  %v10119 = vmul.f32 %v9810, 0.0051020407
  %v10120 = vmul.f32 %v9814, 0.0051020407
  %v10121 = vmul.f32 %v9818, 0.0051020407
  %v10122 = vmul.f32 %v9822, 0.0051020407
  %v10123 = vmul.f32 %v9826, 0.0051020407
  %v10124 = vmul.f32 %v9830, 0.0051020407
  %v10125 = vmul.f32 %v9834, 0.0051020407
  %v10126 = vmul.f32 %v9838, 0.0051020407
  %v10127 = vmul.f32 %v9842, 0.0051020407
  %v10128 = vmul.f32 %v9846, 0.0051020407
  %v10129 = vmul.f32 %v9850, 0.0051020407
  %v10130 = vmul.f32 %v9854, 0.0051020407
  %v10131 = vmul.f32 %v9858, 0.0051020407
  %v10132 = vmul.f32 %v9862, 0.0051020407
  %v10133 = vmul.f32 %v9866, 0.0051020407
  %v10134 = vmul.f32 %v9870, 0.0051020407
  %v10135 = vmul.f32 %v9874, 0.0051020407
  %v10136 = vmul.f32 %v9878, 0.0051020407
  %v10137 = vmul.f32 %v9882, 0.0051020407
  %v10138 = vmul.f32 %v9886, 0.0051020407
  %v10139 = vmul.f32 %v9890, 0.0051020407
  %v10140 = vmul.f32 %v9894, 0.0051020407
  %v10141 = vmul.f32 %v9898, 0.0051020407
  %v10142 = vmul.f32 %v9902, 0.0051020407
  %v10143 = vmul.f32 %v9906, 0.0051020407
  %v10144 = vmul.f32 %v9910, 0.0051020407
  %v10145 = vmul.f32 %v9914, 0.0051020407
  %v10146 = vmul.f32 %v9918, 0.0051020407
  %v10147 = vmul.f32 %v9922, 0.0051020407
  %v10148 = vmul.f32 %v9926, 0.0051020407
  %v10149 = vmul.f32 %v9930, 0.0051020407
  %v10150 = vmul.f32 %v9934, 0.0051020407
  %v10151 = vmul.f32 %v9938, 0.0051020407
  %v10152 = vmul.f32 %v9942, 0.0051020407
  %v10153 = vmul.f32 %v9946, 0.0051020407
  %v10154 = vmul.f32 %v9950, 0.0051020407
  %v10155 = vmul.f32 %v9954, 0.0051020407
  %v10156 = vmul.f32 %v9958, 0.0051020407
  %v10157 = vmul.f32 %v9962, 0.0051020407
  %v10158 = vmul.f32 %v9966, 0.0051020407
  %v10159 = vmul.f32 %v9970, 0.0051020407
  %v10160 = vmul.f32 %v9974, 0.0051020407
  %v10161 = vmul.f32 %v9978, 0.0051020407
  %v10162 = vmul.f32 %v9982, 0.0051020407
  %v10163 = vmul.f32 %v9986, 0.0051020407
  %v10164 = vmul.f32 %v9990, 0.0051020407
  %v10165 = vmul.f32 %v9994, 0.0051020407
  %v10166 = vmul.f32 %v9998, 0.0051020407
  %v10167 = vmul.f32 %v10002, 0.0051020407
  %v10168 = vmul.f32 %v10006, 0.0051020407
  %v10169 = vmul.f32 %v10010, 0.0051020407
  %v10170 = vmul.f32 %v10014, 0.0051020407
  %v10171 = vmul.f32 %v10018, 0.0051020407
  %v10172 = vmul.f32 %v10022, 0.0051020407
  %v10173 = vmul.f32 %v10026, 0.0051020407
  %v10174 = vmul.f32 %v10030, 0.0051020407
  %v10175 = vmul.f32 %v10034, 0.0051020407
  %v10176 = vmul.f32 %v10038, 0.0051020407
  %v10177 = vmul.f32 %v10042, 0.0051020407
  %v10178 = vmul.f32 %v10046, 0.0051020407
  %v10179 = vmul.f32 %v10050, 0.0051020407
  %v10180 = vmul.f32 %v10054, 0.0051020407
  %v10181 = vmul.f32 %v10058, 0.0051020407
  %v10182 = vmul.f32 %v10062, 0.0051020407
  %v10183 = vmul.f32 %v10066, 0.0051020407
  %v10184 = vmul.f32 %v10070, 0.0051020407
  %v10185 = vmul.f32 %v10074, 0.0051020407
  %v10186 = vmul.f32 %v10078, 0.0051020407
  %v10187 = vmul.f32 %v10082, 0.0051020407
  %v10188 = vmul.f32 %v10086, 0.0051020407
  %v10189 = vmul.f32 %v10090, 0.0051020407
  %v10190 = vmul.f32 %v10094, 0.0051020407
  %v10191 = vmul.f32 %v10098, 0.0051020407
  %v10192 = vmul.f32 %v10102, 0.0051020407
  %v10193 = vmul.f32 %v10106, 0.0051020407
  %v10194 = vmul.f32 %v10110, 0.0051020407
  %v10195 = vmul.f32 %v10114, 0.0051020407
  %v10196 = vmul.f32 %v10118, 0.0051020407
  %v10197 = vmul.f32 %v9573, %v9573
  %v10198 = vmul.f32 %v9574, %v9574
  %v10199 = vmul.f32 %v9575, %v9575
  %v10200 = vmul.f32 %v9576, %v9576
  %v10201 = vmul.f32 %v9577, %v9577
  %v10202 = vmul.f32 %v9578, %v9578
  %v10203 = vmul.f32 %v9579, %v9579
  %v10204 = vmul.f32 %v9580, %v9580
  %v10205 = vmul.f32 %v9581, %v9581
  %v10206 = vmul.f32 %v9582, %v9582
  %v10207 = vmul.f32 %v9583, %v9583
  %v10208 = vmul.f32 %v9584, %v9584
  %v10209 = vmul.f32 %v9585, %v9585
  %v10210 = vmul.f32 %v9586, %v9586
  %v10211 = vmul.f32 %v9587, %v9587
  %v10212 = vmul.f32 %v9588, %v9588
  %v10213 = vmul.f32 %v9589, %v9589
  %v10214 = vmul.f32 %v9590, %v9590
  %v10215 = vmul.f32 %v9591, %v9591
  %v10216 = vmul.f32 %v9592, %v9592
  %v10217 = vmul.f32 %v9593, %v9593
  %v10218 = vmul.f32 %v9594, %v9594
  %v10219 = vmul.f32 %v9595, %v9595
  %v10220 = vmul.f32 %v9596, %v9596
  %v10221 = vmul.f32 %v9597, %v9597
  %v10222 = vmul.f32 %v9598, %v9598
  %v10223 = vmul.f32 %v9599, %v9599
  %v10224 = vmul.f32 %v9600, %v9600
  %v10225 = vmul.f32 %v9601, %v9601
  %v10226 = vmul.f32 %v9602, %v9602
  %v10227 = vmul.f32 %v9603, %v9603
  %v10228 = vmul.f32 %v9604, %v9604
  %v10229 = vmul.f32 %v9605, %v9605
  %v10230 = vmul.f32 %v9606, %v9606
  %v10231 = vmul.f32 %v9607, %v9607
  %v10232 = vmul.f32 %v9608, %v9608
  %v10233 = vmul.f32 %v9609, %v9609
  %v10234 = vmul.f32 %v9610, %v9610
  %v10235 = vmul.f32 %v9611, %v9611
  %v10236 = vmul.f32 %v9612, %v9612
  %v10237 = vmul.f32 %v9613, %v9613
  %v10238 = vmul.f32 %v9614, %v9614
  %v10239 = vmul.f32 %v9615, %v9615
  %v10240 = vmul.f32 %v9616, %v9616
  %v10241 = vmul.f32 %v9617, %v9617
  %v10242 = vmul.f32 %v9618, %v9618
  %v10243 = vmul.f32 %v9619, %v9619
  %v10244 = vmul.f32 %v9620, %v9620
  %v10245 = vmul.f32 %v9621, %v9621
  %v10246 = vmul.f32 %v9622, %v9622
  %v10247 = vmul.f32 %v9623, %v9623
  %v10248 = vmul.f32 %v9624, %v9624
  %v10249 = vmul.f32 %v9625, %v9625
  %v10250 = vmul.f32 %v9626, %v9626
  %v10251 = vmul.f32 %v9627, %v9627
  %v10252 = vmul.f32 %v9628, %v9628
  %v10253 = vmul.f32 %v9629, %v9629
  %v10254 = vmul.f32 %v9630, %v9630
  %v10255 = vmul.f32 %v9631, %v9631
  %v10256 = vmul.f32 %v9632, %v9632
  %v10257 = vmul.f32 %v9633, %v9633
  %v10258 = vmul.f32 %v9634, %v9634
  %v10259 = vmul.f32 %v9635, %v9635
  %v10260 = vmul.f32 %v9636, %v9636
  %v10261 = vmul.f32 %v9637, %v9637
  %v10262 = vmul.f32 %v9638, %v9638
  %v10263 = vmul.f32 %v9639, %v9639
  %v10264 = vmul.f32 %v9640, %v9640
  %v10265 = vmul.f32 %v9641, %v9641
  %v10266 = vmul.f32 %v9642, %v9642
  %v10267 = vmul.f32 %v9643, %v9643
  %v10268 = vmul.f32 %v9644, %v9644
  %v10269 = vmul.f32 %v9645, %v9645
  %v10270 = vmul.f32 %v9646, %v9646
  %v10271 = vmul.f32 %v9647, %v9647
  %v10272 = vmul.f32 %v9648, %v9648
  %v10273 = vmul.f32 %v9649, %v9649
  %v10274 = vmul.f32 %v9650, %v9650
  %v10275 = vsub.f32 %v10119, %v10197
  %v10276 = vsub.f32 %v10120, %v10198
  %v10277 = vsub.f32 %v10121, %v10199
  %v10278 = vsub.f32 %v10122, %v10200
  %v10279 = vsub.f32 %v10123, %v10201
  %v10280 = vsub.f32 %v10124, %v10202
  %v10281 = vsub.f32 %v10125, %v10203
  %v10282 = vsub.f32 %v10126, %v10204
  %v10283 = vsub.f32 %v10127, %v10205
  %v10284 = vsub.f32 %v10128, %v10206
  %v10285 = vsub.f32 %v10129, %v10207
  %v10286 = vsub.f32 %v10130, %v10208
  %v10287 = vsub.f32 %v10131, %v10209
  %v10288 = vsub.f32 %v10132, %v10210
  %v10289 = vsub.f32 %v10133, %v10211
  %v10290 = vsub.f32 %v10134, %v10212
  %v10291 = vsub.f32 %v10135, %v10213
  %v10292 = vsub.f32 %v10136, %v10214
  %v10293 = vsub.f32 %v10137, %v10215
  %v10294 = vsub.f32 %v10138, %v10216
  %v10295 = vsub.f32 %v10139, %v10217
  %v10296 = vsub.f32 %v10140, %v10218
  %v10297 = vsub.f32 %v10141, %v10219
  %v10298 = vsub.f32 %v10142, %v10220
  %v10299 = vsub.f32 %v10143, %v10221
  %v10300 = vsub.f32 %v10144, %v10222
  %v10301 = vsub.f32 %v10145, %v10223
  %v10302 = vsub.f32 %v10146, %v10224
  %v10303 = vsub.f32 %v10147, %v10225
  %v10304 = vsub.f32 %v10148, %v10226
  %v10305 = vsub.f32 %v10149, %v10227
  %v10306 = vsub.f32 %v10150, %v10228
  %v10307 = vsub.f32 %v10151, %v10229
  %v10308 = vsub.f32 %v10152, %v10230
  %v10309 = vsub.f32 %v10153, %v10231
  %v10310 = vsub.f32 %v10154, %v10232
  %v10311 = vsub.f32 %v10155, %v10233
  %v10312 = vsub.f32 %v10156, %v10234
  %v10313 = vsub.f32 %v10157, %v10235
  %v10314 = vsub.f32 %v10158, %v10236
  %v10315 = vsub.f32 %v10159, %v10237
  %v10316 = vsub.f32 %v10160, %v10238
  %v10317 = vsub.f32 %v10161, %v10239
  %v10318 = vsub.f32 %v10162, %v10240
  %v10319 = vsub.f32 %v10163, %v10241
  %v10320 = vsub.f32 %v10164, %v10242
  %v10321 = vsub.f32 %v10165, %v10243
  %v10322 = vsub.f32 %v10166, %v10244
  %v10323 = vsub.f32 %v10167, %v10245
  %v10324 = vsub.f32 %v10168, %v10246
  %v10325 = vsub.f32 %v10169, %v10247
  %v10326 = vsub.f32 %v10170, %v10248
  %v10327 = vsub.f32 %v10171, %v10249
  %v10328 = vsub.f32 %v10172, %v10250
  %v10329 = vsub.f32 %v10173, %v10251
  %v10330 = vsub.f32 %v10174, %v10252
  %v10331 = vsub.f32 %v10175, %v10253
  %v10332 = vsub.f32 %v10176, %v10254
  %v10333 = vsub.f32 %v10177, %v10255
  %v10334 = vsub.f32 %v10178, %v10256
  %v10335 = vsub.f32 %v10179, %v10257
  %v10336 = vsub.f32 %v10180, %v10258
  %v10337 = vsub.f32 %v10181, %v10259
  %v10338 = vsub.f32 %v10182, %v10260
  %v10339 = vsub.f32 %v10183, %v10261
  %v10340 = vsub.f32 %v10184, %v10262
  %v10341 = vsub.f32 %v10185, %v10263
  %v10342 = vsub.f32 %v10186, %v10264
  %v10343 = vsub.f32 %v10187, %v10265
  %v10344 = vsub.f32 %v10188, %v10266
  %v10345 = vsub.f32 %v10189, %v10267
  %v10346 = vsub.f32 %v10190, %v10268
  %v10347 = vsub.f32 %v10191, %v10269
  %v10348 = vsub.f32 %v10192, %v10270
  %v10349 = vsub.f32 %v10193, %v10271
  %v10350 = vsub.f32 %v10194, %v10272
  %v10351 = vsub.f32 %v10195, %v10273
  %v10352 = vsub.f32 %v10196, %v10274
  %v10353 = vmax.f32 %v10275, 0.0
  %v10354 = vmax.f32 %v10276, 0.0
  %v10355 = vmax.f32 %v10277, 0.0
  %v10356 = vmax.f32 %v10278, 0.0
  %v10357 = vmax.f32 %v10279, 0.0
  %v10358 = vmax.f32 %v10280, 0.0
  %v10359 = vmax.f32 %v10281, 0.0
  %v10360 = vmax.f32 %v10282, 0.0
  %v10361 = vmax.f32 %v10283, 0.0
  %v10362 = vmax.f32 %v10284, 0.0
  %v10363 = vmax.f32 %v10285, 0.0
  %v10364 = vmax.f32 %v10286, 0.0
  %v10365 = vmax.f32 %v10287, 0.0
  %v10366 = vmax.f32 %v10288, 0.0
  %v10367 = vmax.f32 %v10289, 0.0
  %v10368 = vmax.f32 %v10290, 0.0
  %v10369 = vmax.f32 %v10291, 0.0
  %v10370 = vmax.f32 %v10292, 0.0
  %v10371 = vmax.f32 %v10293, 0.0
  %v10372 = vmax.f32 %v10294, 0.0
  %v10373 = vmax.f32 %v10295, 0.0
  %v10374 = vmax.f32 %v10296, 0.0
  %v10375 = vmax.f32 %v10297, 0.0
  %v10376 = vmax.f32 %v10298, 0.0
  %v10377 = vmax.f32 %v10299, 0.0
  %v10378 = vmax.f32 %v10300, 0.0
  %v10379 = vmax.f32 %v10301, 0.0
  %v10380 = vmax.f32 %v10302, 0.0
  %v10381 = vmax.f32 %v10303, 0.0
  %v10382 = vmax.f32 %v10304, 0.0
  %v10383 = vmax.f32 %v10305, 0.0
  %v10384 = vmax.f32 %v10306, 0.0
  %v10385 = vmax.f32 %v10307, 0.0
  %v10386 = vmax.f32 %v10308, 0.0
  %v10387 = vmax.f32 %v10309, 0.0
  %v10388 = vmax.f32 %v10310, 0.0
  %v10389 = vmax.f32 %v10311, 0.0
  %v10390 = vmax.f32 %v10312, 0.0
  %v10391 = vmax.f32 %v10313, 0.0
  %v10392 = vmax.f32 %v10314, 0.0
  %v10393 = vmax.f32 %v10315, 0.0
  %v10394 = vmax.f32 %v10316, 0.0
  %v10395 = vmax.f32 %v10317, 0.0
  %v10396 = vmax.f32 %v10318, 0.0
  %v10397 = vmax.f32 %v10319, 0.0
  %v10398 = vmax.f32 %v10320, 0.0
  %v10399 = vmax.f32 %v10321, 0.0
  %v10400 = vmax.f32 %v10322, 0.0
  %v10401 = vmax.f32 %v10323, 0.0
  %v10402 = vmax.f32 %v10324, 0.0
  %v10403 = vmax.f32 %v10325, 0.0
  %v10404 = vmax.f32 %v10326, 0.0
  %v10405 = vmax.f32 %v10327, 0.0
  %v10406 = vmax.f32 %v10328, 0.0
  %v10407 = vmax.f32 %v10329, 0.0
  %v10408 = vmax.f32 %v10330, 0.0
  %v10409 = vmax.f32 %v10331, 0.0
  %v10410 = vmax.f32 %v10332, 0.0
  %v10411 = vmax.f32 %v10333, 0.0
  %v10412 = vmax.f32 %v10334, 0.0
  %v10413 = vmax.f32 %v10335, 0.0
  %v10414 = vmax.f32 %v10336, 0.0
  %v10415 = vmax.f32 %v10337, 0.0
  %v10416 = vmax.f32 %v10338, 0.0
  %v10417 = vmax.f32 %v10339, 0.0
  %v10418 = vmax.f32 %v10340, 0.0
  %v10419 = vmax.f32 %v10341, 0.0
  %v10420 = vmax.f32 %v10342, 0.0
  %v10421 = vmax.f32 %v10343, 0.0
  %v10422 = vmax.f32 %v10344, 0.0
  %v10423 = vmax.f32 %v10345, 0.0
  %v10424 = vmax.f32 %v10346, 0.0
  %v10425 = vmax.f32 %v10347, 0.0
  %v10426 = vmax.f32 %v10348, 0.0
  %v10427 = vmax.f32 %v10349, 0.0
  %v10428 = vmax.f32 %v10350, 0.0
  %v10429 = vmax.f32 %v10351, 0.0
  %v10430 = vmax.f32 %v10352, 0.0
  %v10431 = vld [vmem:[%s2] sm:$0xff]
  %v10432 = vld [vmem:[%s2 + $0x8] sm:$0xff]
  %v10433 = vld [vmem:[%s2 + $0x10] sm:$0xff]
  %v10434 = vld [vmem:[%s2 + $0x18] sm:$0xff]
  %v10435 = vld [vmem:[%s2 + $0x20] sm:$0xff]
  %v10436 = vld [vmem:[%s2 + $0x28] sm:$0xff]
  %v10437 = vld [vmem:[%s2 + $0x30] sm:$0xff]
  %v10438 = vld [vmem:[%s2 + $0x38] sm:$0xff]
  %v10439 = vld [vmem:[%s2 + $0x40] sm:$0xff]
  %v10440 = vld [vmem:[%s2 + $0x48] sm:$0xff]
  %v10441 = vld [vmem:[%s2 + $0x50] sm:$0xff]
  %v10442 = vld [vmem:[%s2 + $0x58] sm:$0xff]
  %v10443 = vld [vmem:[%s2 + $0x60] sm:$0xff]
  %v10444 = vld [vmem:[%s2 + $0x68] sm:$0xff]
  %v10445 = vld [vmem:[%s2 + $0x70] sm:$0xff]
  %v10446 = vld [vmem:[%s2 + $0x78] sm:$0xff]
  %v10447 = vld [vmem:[%s2 + $0x80] sm:$0xff]
  %v10448 = vld [vmem:[%s2 + $0x88] sm:$0xff]
  %v10449 = vld [vmem:[%s2 + $0x90] sm:$0xff]
  %v10450 = vld [vmem:[%s2 + $0x98] sm:$0xff]
  %v10451 = vld [vmem:[%s2 + $0xa0] sm:$0xff]
  %v10452 = vld [vmem:[%s2 + $0xa8] sm:$0xff]
  %v10453 = vld [vmem:[%s2 + $0xb0] sm:$0xff]
  %v10454 = vld [vmem:[%s2 + $0xb8] sm:$0xff]
  %v10455 = vld [vmem:[%s2 + $0xc0] sm:$0xff]
  %v10456 = vld [vmem:[%s2 + $0xc8] sm:$0xff]
  %v10457 = vld [vmem:[%s2 + $0xd0] sm:$0xff]
  %v10458 = vld [vmem:[%s2 + $0xd8] sm:$0xff]
  %v10459 = vld [vmem:[%s2 + $0xe0] sm:$0xff]
  %v10460 = vld [vmem:[%s2 + $0xe8] sm:$0xff]
  %v10461 = vld [vmem:[%s2 + $0xf0] sm:$0xff]
  %v10462 = vld [vmem:[%s2 + $0xf8] sm:$0xff]
  %v10463 = vld [vmem:[%s2 + $0x100] sm:$0xff]
  %v10464 = vld [vmem:[%s2 + $0x108] sm:$0xff]
  %v10465 = vld [vmem:[%s2 + $0x110] sm:$0xff]
  %v10466 = vld [vmem:[%s2 + $0x118] sm:$0xff]
  %v10467 = vld [vmem:[%s2 + $0x120] sm:$0xff]
  %v10468 = vld [vmem:[%s2 + $0x128] sm:$0xff]
  %v10469 = vld [vmem:[%s2 + $0x130] sm:$0xff]
  %v10470 = vld [vmem:[%s2 + $0x138] sm:$0xff]
  %v10471 = vld [vmem:[%s2 + $0x140] sm:$0xff]
  %v10472 = vld [vmem:[%s2 + $0x148] sm:$0xff]
  %v10473 = vld [vmem:[%s2 + $0x150] sm:$0xff]
  %v10474 = vld [vmem:[%s2 + $0x158] sm:$0xff]
  %v10475 = vld [vmem:[%s2 + $0x160] sm:$0xff]
  %v10476 = vld [vmem:[%s2 + $0x168] sm:$0xff]
  %v10477 = vld [vmem:[%s2 + $0x170] sm:$0xff]
  %v10478 = vld [vmem:[%s2 + $0x178] sm:$0xff]
  %v10479 = vld [vmem:[%s2 + $0x180] sm:$0xff]
  %v10480 = vld [vmem:[%s2 + $0x188] sm:$0xff]
  %v10481 = vld [vmem:[%s2 + $0x190] sm:$0xff]
  %v10482 = vld [vmem:[%s2 + $0x198] sm:$0xff]
  %v10483 = vld [vmem:[%s2 + $0x1a0] sm:$0xff]
  %v10484 = vld [vmem:[%s2 + $0x1a8] sm:$0xff]
  %v10485 = vld [vmem:[%s2 + $0x1b0] sm:$0xff]
  %v10486 = vld [vmem:[%s2 + $0x1b8] sm:$0xff]
  %v10487 = vld [vmem:[%s2 + $0x1c0] sm:$0xff]
  %v10488 = vld [vmem:[%s2 + $0x1c8] sm:$0xff]
  %v10489 = vld [vmem:[%s2 + $0x1d0] sm:$0xff]
  %v10490 = vld [vmem:[%s2 + $0x1d8] sm:$0xff]
  %v10491 = vld [vmem:[%s2 + $0x1e0] sm:$0xff]
  %v10492 = vld [vmem:[%s2 + $0x1e8] sm:$0xff]
  %v10493 = vld [vmem:[%s2 + $0x1f0] sm:$0xff]
  %v10494 = vld [vmem:[%s2 + $0x1f8] sm:$0xff]
  %v10495 = vld [vmem:[%s2 + $0x200] sm:$0xff]
  %v10496 = vld [vmem:[%s2 + $0x208] sm:$0xff]
  %v10497 = vld [vmem:[%s2 + $0x210] sm:$0xff]
  %v10498 = vld [vmem:[%s2 + $0x218] sm:$0xff]
  %v10499 = vld [vmem:[%s2 + $0x220] sm:$0xff]
  %v10500 = vld [vmem:[%s2 + $0x228] sm:$0xff]
  %v10501 = vld [vmem:[%s2 + $0x230] sm:$0xff]
  %v10502 = vld [vmem:[%s2 + $0x238] sm:$0xff]
  %v10503 = vld [vmem:[%s2 + $0x240] sm:$0xff]
  %v10504 = vld [vmem:[%s2 + $0x248] sm:$0xff]
  %v10505 = vld [vmem:[%s2 + $0x250] sm:$0xff]
  %v10506 = vld [vmem:[%s2 + $0x258] sm:$0xff]
  %v10507 = vld [vmem:[%s2 + $0x260] sm:$0xff]
  %v10508 = vld [vmem:[%s2 + $0x268] sm:$0xff]
  %v10509 = vadd.f32 %v10353, 1e-05
  %v10510 = vadd.f32 %v10354, 1e-05
  %v10511 = vadd.f32 %v10355, 1e-05
  %v10512 = vadd.f32 %v10356, 1e-05
  %v10513 = vadd.f32 %v10357, 1e-05
  %v10514 = vadd.f32 %v10358, 1e-05
  %v10515 = vadd.f32 %v10359, 1e-05
  %v10516 = vadd.f32 %v10360, 1e-05
  %v10517 = vadd.f32 %v10361, 1e-05
  %v10518 = vadd.f32 %v10362, 1e-05
  %v10519 = vadd.f32 %v10363, 1e-05
  %v10520 = vadd.f32 %v10364, 1e-05
  %v10521 = vadd.f32 %v10365, 1e-05
  %v10522 = vadd.f32 %v10366, 1e-05
  %v10523 = vadd.f32 %v10367, 1e-05
  %v10524 = vadd.f32 %v10368, 1e-05
  %v10525 = vadd.f32 %v10369, 1e-05
  %v10526 = vadd.f32 %v10370, 1e-05
  %v10527 = vadd.f32 %v10371, 1e-05
  %v10528 = vadd.f32 %v10372, 1e-05
  %v10529 = vadd.f32 %v10373, 1e-05
  %v10530 = vadd.f32 %v10374, 1e-05
  %v10531 = vadd.f32 %v10375, 1e-05
  %v10532 = vadd.f32 %v10376, 1e-05
  %v10533 = vadd.f32 %v10377, 1e-05
  %v10534 = vadd.f32 %v10378, 1e-05
  %v10535 = vadd.f32 %v10379, 1e-05
  %v10536 = vadd.f32 %v10380, 1e-05
  %v10537 = vadd.f32 %v10381, 1e-05
  %v10538 = vadd.f32 %v10382, 1e-05
  %v10539 = vadd.f32 %v10383, 1e-05
  %v10540 = vadd.f32 %v10384, 1e-05
  %v10541 = vadd.f32 %v10385, 1e-05
  %v10542 = vadd.f32 %v10386, 1e-05
  %v10543 = vadd.f32 %v10387, 1e-05
  %v10544 = vadd.f32 %v10388, 1e-05
  %v10545 = vadd.f32 %v10389, 1e-05
  %v10546 = vadd.f32 %v10390, 1e-05
  %v10547 = vadd.f32 %v10391, 1e-05
  %v10548 = vadd.f32 %v10392, 1e-05
  %v10549 = vadd.f32 %v10393, 1e-05
  %v10550 = vadd.f32 %v10394, 1e-05
  %v10551 = vadd.f32 %v10395, 1e-05
  %v10552 = vadd.f32 %v10396, 1e-05
  %v10553 = vadd.f32 %v10397, 1e-05
  %v10554 = vadd.f32 %v10398, 1e-05
  %v10555 = vadd.f32 %v10399, 1e-05
  %v10556 = vadd.f32 %v10400, 1e-05
  %v10557 = vadd.f32 %v10401, 1e-05
  %v10558 = vadd.f32 %v10402, 1e-05
  %v10559 = vadd.f32 %v10403, 1e-05
  %v10560 = vadd.f32 %v10404, 1e-05
  %v10561 = vadd.f32 %v10405, 1e-05
  %v10562 = vadd.f32 %v10406, 1e-05
  %v10563 = vadd.f32 %v10407, 1e-05
  %v10564 = vadd.f32 %v10408, 1e-05
  %v10565 = vadd.f32 %v10409, 1e-05
  %v10566 = vadd.f32 %v10410, 1e-05
  %v10567 = vadd.f32 %v10411, 1e-05
  %v10568 = vadd.f32 %v10412, 1e-05
  %v10569 = vadd.f32 %v10413, 1e-05
  %v10570 = vadd.f32 %v10414, 1e-05
  %v10571 = vadd.f32 %v10415, 1e-05
  %v10572 = vadd.f32 %v10416, 1e-05
  %v10573 = vadd.f32 %v10417, 1e-05
  %v10574 = vadd.f32 %v10418, 1e-05
  %v10575 = vadd.f32 %v10419, 1e-05
  %v10576 = vadd.f32 %v10420, 1e-05
  %v10577 = vadd.f32 %v10421, 1e-05
  %v10578 = vadd.f32 %v10422, 1e-05
  %v10579 = vadd.f32 %v10423, 1e-05
  %v10580 = vadd.f32 %v10424, 1e-05
  %v10581 = vadd.f32 %v10425, 1e-05
  %v10582 = vadd.f32 %v10426, 1e-05
  %v10583 = vadd.f32 %v10427, 1e-05
  %v10584 = vadd.f32 %v10428, 1e-05
  %v10585 = vadd.f32 %v10429, 1e-05
  %v10586 = vadd.f32 %v10430, 1e-05
  %v10587 = vrsqrt.pop %v10509
  %v10588 = vrsqrt.pop %v10510
  %v10589 = vrsqrt.pop %v10511
  %v10590 = vrsqrt.pop %v10512
  %v10591 = vrsqrt.pop %v10513
  %v10592 = vrsqrt.pop %v10514
  %v10593 = vrsqrt.pop %v10515
  %v10594 = vrsqrt.pop %v10516
  %v10595 = vrsqrt.pop %v10517
  %v10596 = vrsqrt.pop %v10518
  %v10597 = vrsqrt.pop %v10519
  %v10598 = vrsqrt.pop %v10520
  %v10599 = vrsqrt.pop %v10521
  %v10600 = vrsqrt.pop %v10522
  %v10601 = vrsqrt.pop %v10523
  %v10602 = vrsqrt.pop %v10524
  %v10603 = vrsqrt.pop %v10525
  %v10604 = vrsqrt.pop %v10526
  %v10605 = vrsqrt.pop %v10527
  %v10606 = vrsqrt.pop %v10528
  %v10607 = vrsqrt.pop %v10529
  %v10608 = vrsqrt.pop %v10530
  %v10609 = vrsqrt.pop %v10531
  %v10610 = vrsqrt.pop %v10532
  %v10611 = vrsqrt.pop %v10533
  %v10612 = vrsqrt.pop %v10534
  %v10613 = vrsqrt.pop %v10535
  %v10614 = vrsqrt.pop %v10536
  %v10615 = vrsqrt.pop %v10537
  %v10616 = vrsqrt.pop %v10538
  %v10617 = vrsqrt.pop %v10539
  %v10618 = vrsqrt.pop %v10540
  %v10619 = vrsqrt.pop %v10541
  %v10620 = vrsqrt.pop %v10542
  %v10621 = vrsqrt.pop %v10543
  %v10622 = vrsqrt.pop %v10544
  %v10623 = vrsqrt.pop %v10545
  %v10624 = vrsqrt.pop %v10546
  %v10625 = vrsqrt.pop %v10547
  %v10626 = vrsqrt.pop %v10548
  %v10627 = vrsqrt.pop %v10549
  %v10628 = vrsqrt.pop %v10550
  %v10629 = vrsqrt.pop %v10551
  %v10630 = vrsqrt.pop %v10552
  %v10631 = vrsqrt.pop %v10553
  %v10632 = vrsqrt.pop %v10554
  %v10633 = vrsqrt.pop %v10555
  %v10634 = vrsqrt.pop %v10556
  %v10635 = vrsqrt.pop %v10557
  %v10636 = vrsqrt.pop %v10558
  %v10637 = vrsqrt.pop %v10559
  %v10638 = vrsqrt.pop %v10560
  %v10639 = vrsqrt.pop %v10561
  %v10640 = vrsqrt.pop %v10562
  %v10641 = vrsqrt.pop %v10563
  %v10642 = vrsqrt.pop %v10564
  %v10643 = vrsqrt.pop %v10565
  %v10644 = vrsqrt.pop %v10566
  %v10645 = vrsqrt.pop %v10567
  %v10646 = vrsqrt.pop %v10568
  %v10647 = vrsqrt.pop %v10569
  %v10648 = vrsqrt.pop %v10570
  %v10649 = vrsqrt.pop %v10571
  %v10650 = vrsqrt.pop %v10572
  %v10651 = vrsqrt.pop %v10573
  %v10652 = vrsqrt.pop %v10574
  %v10653 = vrsqrt.pop %v10575
  %v10654 = vrsqrt.pop %v10576
  %v10655 = vrsqrt.pop %v10577
  %v10656 = vrsqrt.pop %v10578
  %v10657 = vrsqrt.pop %v10579
  %v10658 = vrsqrt.pop %v10580
  %v10659 = vrsqrt.pop %v10581
  %v10660 = vrsqrt.pop %v10582
  %v10661 = vrsqrt.pop %v10583
  %v10662 = vrsqrt.pop %v10584
  %v10663 = vrsqrt.pop %v10585
  %v10664 = vrsqrt.pop %v10586
  %v10665 = vmul.f32 %v10431, %v10587
  %v10666 = vmul.f32 %v10432, %v10588
  %v10667 = vmul.f32 %v10433, %v10589
  %v10668 = vmul.f32 %v10434, %v10590
  %v10669 = vmul.f32 %v10435, %v10591
  %v10670 = vmul.f32 %v10436, %v10592
  %v10671 = vmul.f32 %v10437, %v10593
  %v10672 = vmul.f32 %v10438, %v10594
  %v10673 = vmul.f32 %v10439, %v10595
  %v10674 = vmul.f32 %v10440, %v10596
  %v10675 = vmul.f32 %v10441, %v10597
  %v10676 = vmul.f32 %v10442, %v10598
  %v10677 = vmul.f32 %v10443, %v10599
  %v10678 = vmul.f32 %v10444, %v10600
  %v10679 = vmul.f32 %v10445, %v10601
  %v10680 = vmul.f32 %v10446, %v10602
  %v10681 = vmul.f32 %v10447, %v10603
  %v10682 = vmul.f32 %v10448, %v10604
  %v10683 = vmul.f32 %v10449, %v10605
  %v10684 = vmul.f32 %v10450, %v10606
  %v10685 = vmul.f32 %v10451, %v10607
  %v10686 = vmul.f32 %v10452, %v10608
  %v10687 = vmul.f32 %v10453, %v10609
  %v10688 = vmul.f32 %v10454, %v10610
  %v10689 = vmul.f32 %v10455, %v10611
  %v10690 = vmul.f32 %v10456, %v10612
  %v10691 = vmul.f32 %v10457, %v10613
  %v10692 = vmul.f32 %v10458, %v10614
  %v10693 = vmul.f32 %v10459, %v10615
  %v10694 = vmul.f32 %v10460, %v10616
  %v10695 = vmul.f32 %v10461, %v10617
  %v10696 = vmul.f32 %v10462, %v10618
  %v10697 = vmul.f32 %v10463, %v10619
  %v10698 = vmul.f32 %v10464, %v10620
  %v10699 = vmul.f32 %v10465, %v10621
  %v10700 = vmul.f32 %v10466, %v10622
  %v10701 = vmul.f32 %v10467, %v10623
  %v10702 = vmul.f32 %v10468, %v10624
  %v10703 = vmul.f32 %v10469, %v10625
  %v10704 = vmul.f32 %v10470, %v10626
  %v10705 = vmul.f32 %v10471, %v10627
  %v10706 = vmul.f32 %v10472, %v10628
  %v10707 = vmul.f32 %v10473, %v10629
  %v10708 = vmul.f32 %v10474, %v10630
  %v10709 = vmul.f32 %v10475, %v10631
  %v10710 = vmul.f32 %v10476, %v10632
  %v10711 = vmul.f32 %v10477, %v10633
  %v10712 = vmul.f32 %v10478, %v10634
  %v10713 = vmul.f32 %v10479, %v10635
  %v10714 = vmul.f32 %v10480, %v10636
  %v10715 = vmul.f32 %v10481, %v10637
  %v10716 = vmul.f32 %v10482, %v10638
  %v10717 = vmul.f32 %v10483, %v10639
  %v10718 = vmul.f32 %v10484, %v10640
  %v10719 = vmul.f32 %v10485, %v10641
  %v10720 = vmul.f32 %v10486, %v10642
  %v10721 = vmul.f32 %v10487, %v10643
  %v10722 = vmul.f32 %v10488, %v10644
  %v10723 = vmul.f32 %v10489, %v10645
  %v10724 = vmul.f32 %v10490, %v10646
  %v10725 = vmul.f32 %v10491, %v10647
  %v10726 = vmul.f32 %v10492, %v10648
  %v10727 = vmul.f32 %v10493, %v10649
  %v10728 = vmul.f32 %v10494, %v10650
  %v10729 = vmul.f32 %v10495, %v10651
  %v10730 = vmul.f32 %v10496, %v10652
  %v10731 = vmul.f32 %v10497, %v10653
  %v10732 = vmul.f32 %v10498, %v10654
  %v10733 = vmul.f32 %v10499, %v10655
  %v10734 = vmul.f32 %v10500, %v10656
  %v10735 = vmul.f32 %v10501, %v10657
  %v10736 = vmul.f32 %v10502, %v10658
  %v10737 = vmul.f32 %v10503, %v10659
  %v10738 = vmul.f32 %v10504, %v10660
  %v10739 = vmul.f32 %v10505, %v10661
  %v10740 = vmul.f32 %v10506, %v10662
  %v10741 = vmul.f32 %v10507, %v10663
  %v10742 = vmul.f32 %v10508, %v10664
  %v10743 = vld [vmem:[%s3] sm:$0xff]
  %v10744 = vld [vmem:[%s3 + $0x8] sm:$0xff]
  %v10745 = vld [vmem:[%s3 + $0x10] sm:$0xff]
  %v10746 = vld [vmem:[%s3 + $0x18] sm:$0xff]
  %v10747 = vld [vmem:[%s3 + $0x20] sm:$0xff]
  %v10748 = vld [vmem:[%s3 + $0x28] sm:$0xff]
  %v10749 = vld [vmem:[%s3 + $0x30] sm:$0xff]
  %v10750 = vld [vmem:[%s3 + $0x38] sm:$0xff]
  %v10751 = vld [vmem:[%s3 + $0x40] sm:$0xff]
  %v10752 = vld [vmem:[%s3 + $0x48] sm:$0xff]
  %v10753 = vld [vmem:[%s3 + $0x50] sm:$0xff]
  %v10754 = vld [vmem:[%s3 + $0x58] sm:$0xff]
  %v10755 = vld [vmem:[%s3 + $0x60] sm:$0xff]
  %v10756 = vld [vmem:[%s3 + $0x68] sm:$0xff]
  %v10757 = vld [vmem:[%s3 + $0x70] sm:$0xff]
  %v10758 = vld [vmem:[%s3 + $0x78] sm:$0xff]
  %v10759 = vld [vmem:[%s3 + $0x80] sm:$0xff]
  %v10760 = vld [vmem:[%s3 + $0x88] sm:$0xff]
  %v10761 = vld [vmem:[%s3 + $0x90] sm:$0xff]
  %v10762 = vld [vmem:[%s3 + $0x98] sm:$0xff]
  %v10763 = vld [vmem:[%s3 + $0xa0] sm:$0xff]
  %v10764 = vld [vmem:[%s3 + $0xa8] sm:$0xff]
  %v10765 = vld [vmem:[%s3 + $0xb0] sm:$0xff]
  %v10766 = vld [vmem:[%s3 + $0xb8] sm:$0xff]
  %v10767 = vld [vmem:[%s3 + $0xc0] sm:$0xff]
  %v10768 = vld [vmem:[%s3 + $0xc8] sm:$0xff]
  %v10769 = vld [vmem:[%s3 + $0xd0] sm:$0xff]
  %v10770 = vld [vmem:[%s3 + $0xd8] sm:$0xff]
  %v10771 = vld [vmem:[%s3 + $0xe0] sm:$0xff]
  %v10772 = vld [vmem:[%s3 + $0xe8] sm:$0xff]
  %v10773 = vld [vmem:[%s3 + $0xf0] sm:$0xff]
  %v10774 = vld [vmem:[%s3 + $0xf8] sm:$0xff]
  %v10775 = vld [vmem:[%s3 + $0x100] sm:$0xff]
  %v10776 = vld [vmem:[%s3 + $0x108] sm:$0xff]
  %v10777 = vld [vmem:[%s3 + $0x110] sm:$0xff]
  %v10778 = vld [vmem:[%s3 + $0x118] sm:$0xff]
  %v10779 = vld [vmem:[%s3 + $0x120] sm:$0xff]
  %v10780 = vld [vmem:[%s3 + $0x128] sm:$0xff]
  %v10781 = vld [vmem:[%s3 + $0x130] sm:$0xff]
  %v10782 = vld [vmem:[%s3 + $0x138] sm:$0xff]
  %v10783 = vld [vmem:[%s3 + $0x140] sm:$0xff]
  %v10784 = vld [vmem:[%s3 + $0x148] sm:$0xff]
  %v10785 = vld [vmem:[%s3 + $0x150] sm:$0xff]
  %v10786 = vld [vmem:[%s3 + $0x158] sm:$0xff]
  %v10787 = vld [vmem:[%s3 + $0x160] sm:$0xff]
  %v10788 = vld [vmem:[%s3 + $0x168] sm:$0xff]
  %v10789 = vld [vmem:[%s3 + $0x170] sm:$0xff]
  %v10790 = vld [vmem:[%s3 + $0x178] sm:$0xff]
  %v10791 = vld [vmem:[%s3 + $0x180] sm:$0xff]
  %v10792 = vld [vmem:[%s3 + $0x188] sm:$0xff]
  %v10793 = vld [vmem:[%s3 + $0x190] sm:$0xff]
  %v10794 = vld [vmem:[%s3 + $0x198] sm:$0xff]
  %v10795 = vld [vmem:[%s3 + $0x1a0] sm:$0xff]
  %v10796 = vld [vmem:[%s3 + $0x1a8] sm:$0xff]
  %v10797 = vld [vmem:[%s3 + $0x1b0] sm:$0xff]
  %v10798 = vld [vmem:[%s3 + $0x1b8] sm:$0xff]
  %v10799 = vld [vmem:[%s3 + $0x1c0] sm:$0xff]
  %v10800 = vld [vmem:[%s3 + $0x1c8] sm:$0xff]
  %v10801 = vld [vmem:[%s3 + $0x1d0] sm:$0xff]
  %v10802 = vld [vmem:[%s3 + $0x1d8] sm:$0xff]
  %v10803 = vld [vmem:[%s3 + $0x1e0] sm:$0xff]
  %v10804 = vld [vmem:[%s3 + $0x1e8] sm:$0xff]
  %v10805 = vld [vmem:[%s3 + $0x1f0] sm:$0xff]
  %v10806 = vld [vmem:[%s3 + $0x1f8] sm:$0xff]
  %v10807 = vld [vmem:[%s3 + $0x200] sm:$0xff]
  %v10808 = vld [vmem:[%s3 + $0x208] sm:$0xff]
  %v10809 = vld [vmem:[%s3 + $0x210] sm:$0xff]
  %v10810 = vld [vmem:[%s3 + $0x218] sm:$0xff]
  %v10811 = vld [vmem:[%s3 + $0x220] sm:$0xff]
  %v10812 = vld [vmem:[%s3 + $0x228] sm:$0xff]
  %v10813 = vld [vmem:[%s3 + $0x230] sm:$0xff]
  %v10814 = vld [vmem:[%s3 + $0x238] sm:$0xff]
  %v10815 = vld [vmem:[%s3 + $0x240] sm:$0xff]
  %v10816 = vld [vmem:[%s3 + $0x248] sm:$0xff]
  %v10817 = vld [vmem:[%s3 + $0x250] sm:$0xff]
  %v10818 = vld [vmem:[%s3 + $0x258] sm:$0xff]
  %v10819 = vld [vmem:[%s3 + $0x260] sm:$0xff]
  %v10820 = vld [vmem:[%s3 + $0x268] sm:$0xff]
  %v10821 = vmul.f32 %v9573, %v10665
  %v10822 = vmul.f32 %v9574, %v10666
  %v10823 = vmul.f32 %v9575, %v10667
  %v10824 = vmul.f32 %v9576, %v10668
  %v10825 = vmul.f32 %v9577, %v10669
  %v10826 = vmul.f32 %v9578, %v10670
  %v10827 = vmul.f32 %v9579, %v10671
  %v10828 = vmul.f32 %v9580, %v10672
  %v10829 = vmul.f32 %v9581, %v10673
  %v10830 = vmul.f32 %v9582, %v10674
  %v10831 = vmul.f32 %v9583, %v10675
  %v10832 = vmul.f32 %v9584, %v10676
  %v10833 = vmul.f32 %v9585, %v10677
  %v10834 = vmul.f32 %v9586, %v10678
  %v10835 = vmul.f32 %v9587, %v10679
  %v10836 = vmul.f32 %v9588, %v10680
  %v10837 = vmul.f32 %v9589, %v10681
  %v10838 = vmul.f32 %v9590, %v10682
  %v10839 = vmul.f32 %v9591, %v10683
  %v10840 = vmul.f32 %v9592, %v10684
  %v10841 = vmul.f32 %v9593, %v10685
  %v10842 = vmul.f32 %v9594, %v10686
  %v10843 = vmul.f32 %v9595, %v10687
  %v10844 = vmul.f32 %v9596, %v10688
  %v10845 = vmul.f32 %v9597, %v10689
  %v10846 = vmul.f32 %v9598, %v10690
  %v10847 = vmul.f32 %v9599, %v10691
  %v10848 = vmul.f32 %v9600, %v10692
  %v10849 = vmul.f32 %v9601, %v10693
  %v10850 = vmul.f32 %v9602, %v10694
  %v10851 = vmul.f32 %v9603, %v10695
  %v10852 = vmul.f32 %v9604, %v10696
  %v10853 = vmul.f32 %v9605, %v10697
  %v10854 = vmul.f32 %v9606, %v10698
  %v10855 = vmul.f32 %v9607, %v10699
  %v10856 = vmul.f32 %v9608, %v10700
  %v10857 = vmul.f32 %v9609, %v10701
  %v10858 = vmul.f32 %v9610, %v10702
  %v10859 = vmul.f32 %v9611, %v10703
  %v10860 = vmul.f32 %v9612, %v10704
  %v10861 = vmul.f32 %v9613, %v10705
  %v10862 = vmul.f32 %v9614, %v10706
  %v10863 = vmul.f32 %v9615, %v10707
  %v10864 = vmul.f32 %v9616, %v10708
  %v10865 = vmul.f32 %v9617, %v10709
  %v10866 = vmul.f32 %v9618, %v10710
  %v10867 = vmul.f32 %v9619, %v10711
  %v10868 = vmul.f32 %v9620, %v10712
  %v10869 = vmul.f32 %v9621, %v10713
  %v10870 = vmul.f32 %v9622, %v10714
  %v10871 = vmul.f32 %v9623, %v10715
  %v10872 = vmul.f32 %v9624, %v10716
  %v10873 = vmul.f32 %v9625, %v10717
  %v10874 = vmul.f32 %v9626, %v10718
  %v10875 = vmul.f32 %v9627, %v10719
  %v10876 = vmul.f32 %v9628, %v10720
  %v10877 = vmul.f32 %v9629, %v10721
  %v10878 = vmul.f32 %v9630, %v10722
  %v10879 = vmul.f32 %v9631, %v10723
  %v10880 = vmul.f32 %v9632, %v10724
  %v10881 = vmul.f32 %v9633, %v10725
  %v10882 = vmul.f32 %v9634, %v10726
  %v10883 = vmul.f32 %v9635, %v10727
  %v10884 = vmul.f32 %v9636, %v10728
  %v10885 = vmul.f32 %v9637, %v10729
  %v10886 = vmul.f32 %v9638, %v10730
  %v10887 = vmul.f32 %v9639, %v10731
  %v10888 = vmul.f32 %v9640, %v10732
  %v10889 = vmul.f32 %v9641, %v10733
  %v10890 = vmul.f32 %v9642, %v10734
  %v10891 = vmul.f32 %v9643, %v10735
  %v10892 = vmul.f32 %v9644, %v10736
  %v10893 = vmul.f32 %v9645, %v10737
  %v10894 = vmul.f32 %v9646, %v10738
  %v10895 = vmul.f32 %v9647, %v10739
  %v10896 = vmul.f32 %v9648, %v10740
  %v10897 = vmul.f32 %v9649, %v10741
  %v10898 = vmul.f32 %v9650, %v10742
  %v10899 = vsub.f32 %v10743, %v10821
  %v10900 = vsub.f32 %v10744, %v10822
  %v10901 = vsub.f32 %v10745, %v10823
  %v10902 = vsub.f32 %v10746, %v10824
  %v10903 = vsub.f32 %v10747, %v10825
  %v10904 = vsub.f32 %v10748, %v10826
  %v10905 = vsub.f32 %v10749, %v10827
  %v10906 = vsub.f32 %v10750, %v10828
  %v10907 = vsub.f32 %v10751, %v10829
  %v10908 = vsub.f32 %v10752, %v10830
  %v10909 = vsub.f32 %v10753, %v10831
  %v10910 = vsub.f32 %v10754, %v10832
  %v10911 = vsub.f32 %v10755, %v10833
  %v10912 = vsub.f32 %v10756, %v10834
  %v10913 = vsub.f32 %v10757, %v10835
  %v10914 = vsub.f32 %v10758, %v10836
  %v10915 = vsub.f32 %v10759, %v10837
  %v10916 = vsub.f32 %v10760, %v10838
  %v10917 = vsub.f32 %v10761, %v10839
  %v10918 = vsub.f32 %v10762, %v10840
  %v10919 = vsub.f32 %v10763, %v10841
  %v10920 = vsub.f32 %v10764, %v10842
  %v10921 = vsub.f32 %v10765, %v10843
  %v10922 = vsub.f32 %v10766, %v10844
  %v10923 = vsub.f32 %v10767, %v10845
  %v10924 = vsub.f32 %v10768, %v10846
  %v10925 = vsub.f32 %v10769, %v10847
  %v10926 = vsub.f32 %v10770, %v10848
  %v10927 = vsub.f32 %v10771, %v10849
  %v10928 = vsub.f32 %v10772, %v10850
  %v10929 = vsub.f32 %v10773, %v10851
  %v10930 = vsub.f32 %v10774, %v10852
  %v10931 = vsub.f32 %v10775, %v10853
  %v10932 = vsub.f32 %v10776, %v10854
  %v10933 = vsub.f32 %v10777, %v10855
  %v10934 = vsub.f32 %v10778, %v10856
  %v10935 = vsub.f32 %v10779, %v10857
  %v10936 = vsub.f32 %v10780, %v10858
  %v10937 = vsub.f32 %v10781, %v10859
  %v10938 = vsub.f32 %v10782, %v10860
  %v10939 = vsub.f32 %v10783, %v10861
  %v10940 = vsub.f32 %v10784, %v10862
  %v10941 = vsub.f32 %v10785, %v10863
  %v10942 = vsub.f32 %v10786, %v10864
  %v10943 = vsub.f32 %v10787, %v10865
  %v10944 = vsub.f32 %v10788, %v10866
  %v10945 = vsub.f32 %v10789, %v10867
  %v10946 = vsub.f32 %v10790, %v10868
  %v10947 = vsub.f32 %v10791, %v10869
  %v10948 = vsub.f32 %v10792, %v10870
  %v10949 = vsub.f32 %v10793, %v10871
  %v10950 = vsub.f32 %v10794, %v10872
  %v10951 = vsub.f32 %v10795, %v10873
  %v10952 = vsub.f32 %v10796, %v10874
  %v10953 = vsub.f32 %v10797, %v10875
  %v10954 = vsub.f32 %v10798, %v10876
  %v10955 = vsub.f32 %v10799, %v10877
  %v10956 = vsub.f32 %v10800, %v10878
  %v10957 = vsub.f32 %v10801, %v10879
  %v10958 = vsub.f32 %v10802, %v10880
  %v10959 = vsub.f32 %v10803, %v10881
  %v10960 = vsub.f32 %v10804, %v10882
  %v10961 = vsub.f32 %v10805, %v10883
  %v10962 = vsub.f32 %v10806, %v10884
  %v10963 = vsub.f32 %v10807, %v10885
  %v10964 = vsub.f32 %v10808, %v10886
  %v10965 = vsub.f32 %v10809, %v10887
  %v10966 = vsub.f32 %v10810, %v10888
  %v10967 = vsub.f32 %v10811, %v10889
  %v10968 = vsub.f32 %v10812, %v10890
  %v10969 = vsub.f32 %v10813, %v10891
  %v10970 = vsub.f32 %v10814, %v10892
  %v10971 = vsub.f32 %v10815, %v10893
  %v10972 = vsub.f32 %v10816, %v10894
  %v10973 = vsub.f32 %v10817, %v10895
  %v10974 = vsub.f32 %v10818, %v10896
  %v10975 = vsub.f32 %v10819, %v10897
  %v10976 = vsub.f32 %v10820, %v10898
  %10978 = vset.pattern.permute.xlu0 0
  %10979 = vperm.xlu0 %10978, %v10665
  %v10980 = vpop.permute.xlu0 %10979
  %10983 = vset.pattern.permute.xlu0 0
  %10984 = vperm.xlu0 %10983, %v10666
  %v10985 = vpop.permute.xlu0 %10984
  %10988 = vset.pattern.permute.xlu0 0
  %10989 = vperm.xlu0 %10988, %v10667
  %v10990 = vpop.permute.xlu0 %10989
  %10993 = vset.pattern.permute.xlu0 0
  %10994 = vperm.xlu0 %10993, %v10668
  %v10995 = vpop.permute.xlu0 %10994
  %10998 = vset.pattern.permute.xlu0 0
  %10999 = vperm.xlu0 %10998, %v10669
  %v11000 = vpop.permute.xlu0 %10999
  %11003 = vset.pattern.permute.xlu0 0
  %11004 = vperm.xlu0 %11003, %v10670
  %v11005 = vpop.permute.xlu0 %11004
  %11008 = vset.pattern.permute.xlu0 0
  %11009 = vperm.xlu0 %11008, %v10671
  %v11010 = vpop.permute.xlu0 %11009
  %11013 = vset.pattern.permute.xlu0 0
  %11014 = vperm.xlu0 %11013, %v10672
  %v11015 = vpop.permute.xlu0 %11014
  %11018 = vset.pattern.permute.xlu0 0
  %11019 = vperm.xlu0 %11018, %v10673
  %v11020 = vpop.permute.xlu0 %11019
  %11023 = vset.pattern.permute.xlu0 0
  %11024 = vperm.xlu0 %11023, %v10674
  %v11025 = vpop.permute.xlu0 %11024
  %11028 = vset.pattern.permute.xlu0 0
  %11029 = vperm.xlu0 %11028, %v10675
  %v11030 = vpop.permute.xlu0 %11029
  %11033 = vset.pattern.permute.xlu0 0
  %11034 = vperm.xlu0 %11033, %v10676
  %v11035 = vpop.permute.xlu0 %11034
  %11038 = vset.pattern.permute.xlu0 0
  %11039 = vperm.xlu0 %11038, %v10677
  %v11040 = vpop.permute.xlu0 %11039
  %11043 = vset.pattern.permute.xlu0 0
  %11044 = vperm.xlu0 %11043, %v10678
  %v11045 = vpop.permute.xlu0 %11044
  %11048 = vset.pattern.permute.xlu0 0
  %11049 = vperm.xlu0 %11048, %v10679
  %v11050 = vpop.permute.xlu0 %11049
  %11053 = vset.pattern.permute.xlu0 0
  %11054 = vperm.xlu0 %11053, %v10680
  %v11055 = vpop.permute.xlu0 %11054
  %11058 = vset.pattern.permute.xlu0 0
  %11059 = vperm.xlu0 %11058, %v10681
  %v11060 = vpop.permute.xlu0 %11059
  %11063 = vset.pattern.permute.xlu0 0
  %11064 = vperm.xlu0 %11063, %v10682
  %v11065 = vpop.permute.xlu0 %11064
  %11068 = vset.pattern.permute.xlu0 0
  %11069 = vperm.xlu0 %11068, %v10683
  %v11070 = vpop.permute.xlu0 %11069
  %11073 = vset.pattern.permute.xlu0 0
  %11074 = vperm.xlu0 %11073, %v10684
  %v11075 = vpop.permute.xlu0 %11074
  %11078 = vset.pattern.permute.xlu0 0
  %11079 = vperm.xlu0 %11078, %v10685
  %v11080 = vpop.permute.xlu0 %11079
  %11083 = vset.pattern.permute.xlu0 0
  %11084 = vperm.xlu0 %11083, %v10686
  %v11085 = vpop.permute.xlu0 %11084
  %11088 = vset.pattern.permute.xlu0 0
  %11089 = vperm.xlu0 %11088, %v10687
  %v11090 = vpop.permute.xlu0 %11089
  %11093 = vset.pattern.permute.xlu0 0
  %11094 = vperm.xlu0 %11093, %v10688
  %v11095 = vpop.permute.xlu0 %11094
  %11098 = vset.pattern.permute.xlu0 0
  %11099 = vperm.xlu0 %11098, %v10689
  %v11100 = vpop.permute.xlu0 %11099
  %11103 = vset.pattern.permute.xlu0 0
  %11104 = vperm.xlu0 %11103, %v10690
  %v11105 = vpop.permute.xlu0 %11104
  %11108 = vset.pattern.permute.xlu0 0
  %11109 = vperm.xlu0 %11108, %v10691
  %v11110 = vpop.permute.xlu0 %11109
  %11113 = vset.pattern.permute.xlu0 0
  %11114 = vperm.xlu0 %11113, %v10692
  %v11115 = vpop.permute.xlu0 %11114
  %11118 = vset.pattern.permute.xlu0 0
  %11119 = vperm.xlu0 %11118, %v10693
  %v11120 = vpop.permute.xlu0 %11119
  %11123 = vset.pattern.permute.xlu0 0
  %11124 = vperm.xlu0 %11123, %v10694
  %v11125 = vpop.permute.xlu0 %11124
  %11128 = vset.pattern.permute.xlu0 0
  %11129 = vperm.xlu0 %11128, %v10695
  %v11130 = vpop.permute.xlu0 %11129
  %11133 = vset.pattern.permute.xlu0 0
  %11134 = vperm.xlu0 %11133, %v10696
  %v11135 = vpop.permute.xlu0 %11134
  %11138 = vset.pattern.permute.xlu0 0
  %11139 = vperm.xlu0 %11138, %v10697
  %v11140 = vpop.permute.xlu0 %11139
  %11143 = vset.pattern.permute.xlu0 0
  %11144 = vperm.xlu0 %11143, %v10698
  %v11145 = vpop.permute.xlu0 %11144
  %11148 = vset.pattern.permute.xlu0 0
  %11149 = vperm.xlu0 %11148, %v10699
  %v11150 = vpop.permute.xlu0 %11149
  %11153 = vset.pattern.permute.xlu0 0
  %11154 = vperm.xlu0 %11153, %v10700
  %v11155 = vpop.permute.xlu0 %11154
  %11158 = vset.pattern.permute.xlu0 0
  %11159 = vperm.xlu0 %11158, %v10701
  %v11160 = vpop.permute.xlu0 %11159
  %11163 = vset.pattern.permute.xlu0 0
  %11164 = vperm.xlu0 %11163, %v10702
  %v11165 = vpop.permute.xlu0 %11164
  %11168 = vset.pattern.permute.xlu0 0
  %11169 = vperm.xlu0 %11168, %v10703
  %v11170 = vpop.permute.xlu0 %11169
  %11173 = vset.pattern.permute.xlu0 0
  %11174 = vperm.xlu0 %11173, %v10704
  %v11175 = vpop.permute.xlu0 %11174
  %11178 = vset.pattern.permute.xlu0 0
  %11179 = vperm.xlu0 %11178, %v10705
  %v11180 = vpop.permute.xlu0 %11179
  %11183 = vset.pattern.permute.xlu0 0
  %11184 = vperm.xlu0 %11183, %v10706
  %v11185 = vpop.permute.xlu0 %11184
  %11188 = vset.pattern.permute.xlu0 0
  %11189 = vperm.xlu0 %11188, %v10707
  %v11190 = vpop.permute.xlu0 %11189
  %11193 = vset.pattern.permute.xlu0 0
  %11194 = vperm.xlu0 %11193, %v10708
  %v11195 = vpop.permute.xlu0 %11194
  %11198 = vset.pattern.permute.xlu0 0
  %11199 = vperm.xlu0 %11198, %v10709
  %v11200 = vpop.permute.xlu0 %11199
  %11203 = vset.pattern.permute.xlu0 0
  %11204 = vperm.xlu0 %11203, %v10710
  %v11205 = vpop.permute.xlu0 %11204
  %11208 = vset.pattern.permute.xlu0 0
  %11209 = vperm.xlu0 %11208, %v10711
  %v11210 = vpop.permute.xlu0 %11209
  %11213 = vset.pattern.permute.xlu0 0
  %11214 = vperm.xlu0 %11213, %v10712
  %v11215 = vpop.permute.xlu0 %11214
  %11218 = vset.pattern.permute.xlu0 0
  %11219 = vperm.xlu0 %11218, %v10713
  %v11220 = vpop.permute.xlu0 %11219
  %11223 = vset.pattern.permute.xlu0 0
  %11224 = vperm.xlu0 %11223, %v10714
  %v11225 = vpop.permute.xlu0 %11224
  %11228 = vset.pattern.permute.xlu0 0
  %11229 = vperm.xlu0 %11228, %v10715
  %v11230 = vpop.permute.xlu0 %11229
  %11233 = vset.pattern.permute.xlu0 0
  %11234 = vperm.xlu0 %11233, %v10716
  %v11235 = vpop.permute.xlu0 %11234
  %11238 = vset.pattern.permute.xlu0 0
  %11239 = vperm.xlu0 %11238, %v10717
  %v11240 = vpop.permute.xlu0 %11239
  %11243 = vset.pattern.permute.xlu0 0
  %11244 = vperm.xlu0 %11243, %v10718
  %v11245 = vpop.permute.xlu0 %11244
  %11248 = vset.pattern.permute.xlu0 0
  %11249 = vperm.xlu0 %11248, %v10719
  %v11250 = vpop.permute.xlu0 %11249
  %11253 = vset.pattern.permute.xlu0 0
  %11254 = vperm.xlu0 %11253, %v10720
  %v11255 = vpop.permute.xlu0 %11254
  %11258 = vset.pattern.permute.xlu0 0
  %11259 = vperm.xlu0 %11258, %v10721
  %v11260 = vpop.permute.xlu0 %11259
  %11263 = vset.pattern.permute.xlu0 0
  %11264 = vperm.xlu0 %11263, %v10722
  %v11265 = vpop.permute.xlu0 %11264
  %11268 = vset.pattern.permute.xlu0 0
  %11269 = vperm.xlu0 %11268, %v10723
  %v11270 = vpop.permute.xlu0 %11269
  %11273 = vset.pattern.permute.xlu0 0
  %11274 = vperm.xlu0 %11273, %v10724
  %v11275 = vpop.permute.xlu0 %11274
  %11278 = vset.pattern.permute.xlu0 0
  %11279 = vperm.xlu0 %11278, %v10725
  %v11280 = vpop.permute.xlu0 %11279
  %11283 = vset.pattern.permute.xlu0 0
  %11284 = vperm.xlu0 %11283, %v10726
  %v11285 = vpop.permute.xlu0 %11284
  %11288 = vset.pattern.permute.xlu0 0
  %11289 = vperm.xlu0 %11288, %v10727
  %v11290 = vpop.permute.xlu0 %11289
  %11293 = vset.pattern.permute.xlu0 0
  %11294 = vperm.xlu0 %11293, %v10728
  %v11295 = vpop.permute.xlu0 %11294
  %11298 = vset.pattern.permute.xlu0 0
  %11299 = vperm.xlu0 %11298, %v10729
  %v11300 = vpop.permute.xlu0 %11299
  %11303 = vset.pattern.permute.xlu0 0
  %11304 = vperm.xlu0 %11303, %v10730
  %v11305 = vpop.permute.xlu0 %11304
  %11308 = vset.pattern.permute.xlu0 0
  %11309 = vperm.xlu0 %11308, %v10731
  %v11310 = vpop.permute.xlu0 %11309
  %11313 = vset.pattern.permute.xlu0 0
  %11314 = vperm.xlu0 %11313, %v10732
  %v11315 = vpop.permute.xlu0 %11314
  %11318 = vset.pattern.permute.xlu0 0
  %11319 = vperm.xlu0 %11318, %v10733
  %v11320 = vpop.permute.xlu0 %11319
  %11323 = vset.pattern.permute.xlu0 0
  %11324 = vperm.xlu0 %11323, %v10734
  %v11325 = vpop.permute.xlu0 %11324
  %11328 = vset.pattern.permute.xlu0 0
  %11329 = vperm.xlu0 %11328, %v10735
  %v11330 = vpop.permute.xlu0 %11329
  %11333 = vset.pattern.permute.xlu0 0
  %11334 = vperm.xlu0 %11333, %v10736
  %v11335 = vpop.permute.xlu0 %11334
  %11338 = vset.pattern.permute.xlu0 0
  %11339 = vperm.xlu0 %11338, %v10737
  %v11340 = vpop.permute.xlu0 %11339
  %11343 = vset.pattern.permute.xlu0 0
  %11344 = vperm.xlu0 %11343, %v10738
  %v11345 = vpop.permute.xlu0 %11344
  %11348 = vset.pattern.permute.xlu0 0
  %11349 = vperm.xlu0 %11348, %v10739
  %v11350 = vpop.permute.xlu0 %11349
  %11353 = vset.pattern.permute.xlu0 0
  %11354 = vperm.xlu0 %11353, %v10740
  %v11355 = vpop.permute.xlu0 %11354
  %11358 = vset.pattern.permute.xlu0 0
  %11359 = vperm.xlu0 %11358, %v10741
  %v11360 = vpop.permute.xlu0 %11359
  %11363 = vset.pattern.permute.xlu0 0
  %11364 = vperm.xlu0 %11363, %v10742
  %v11365 = vpop.permute.xlu0 %11364
  %v11367 = vmul.f32 %v9104, %v10980
  %v11368 = vmul.f32 %v9105, %v10980
  %v11369 = vmul.f32 %v9106, %v10985
  %v11370 = vmul.f32 %v9107, %v10985
  %v11371 = vmul.f32 %v9108, %v10990
  %v11372 = vmul.f32 %v9109, %v10990
  %v11373 = vmul.f32 %v9110, %v10995
  %v11374 = vmul.f32 %v9111, %v10995
  %v11375 = vmul.f32 %v9112, %v11000
  %v11376 = vmul.f32 %v9113, %v11000
  %v11377 = vmul.f32 %v9114, %v11005
  %v11378 = vmul.f32 %v9115, %v11005
  %v11379 = vmul.f32 %v9116, %v11010
  %v11380 = vmul.f32 %v9117, %v11010
  %v11381 = vmul.f32 %v9118, %v11015
  %v11382 = vmul.f32 %v9119, %v11015
  %v11383 = vmul.f32 %v9120, %v11020
  %v11384 = vmul.f32 %v9121, %v11020
  %v11385 = vmul.f32 %v9122, %v11025
  %v11386 = vmul.f32 %v9123, %v11025
  %v11387 = vmul.f32 %v9124, %v11030
  %v11388 = vmul.f32 %v9125, %v11030
  %v11389 = vmul.f32 %v9126, %v11035
  %v11390 = vmul.f32 %v9127, %v11035
  %v11391 = vmul.f32 %v9128, %v11040
  %v11392 = vmul.f32 %v9129, %v11040
  %v11393 = vmul.f32 %v9130, %v11045
  %v11394 = vmul.f32 %v9131, %v11045
  %v11395 = vmul.f32 %v9132, %v11050
  %v11396 = vmul.f32 %v9133, %v11050
  %v11397 = vmul.f32 %v9134, %v11055
  %v11398 = vmul.f32 %v9135, %v11055
  %v11399 = vmul.f32 %v9136, %v11060
  %v11400 = vmul.f32 %v9137, %v11060
  %v11401 = vmul.f32 %v9138, %v11065
  %v11402 = vmul.f32 %v9139, %v11065
  %v11403 = vmul.f32 %v9140, %v11070
  %v11404 = vmul.f32 %v9141, %v11070
  %v11405 = vmul.f32 %v9142, %v11075
  %v11406 = vmul.f32 %v9143, %v11075
  %v11407 = vmul.f32 %v9144, %v11080
  %v11408 = vmul.f32 %v9145, %v11080
  %v11409 = vmul.f32 %v9146, %v11085
  %v11410 = vmul.f32 %v9147, %v11085
  %v11411 = vmul.f32 %v9148, %v11090
  %v11412 = vmul.f32 %v9149, %v11090
  %v11413 = vmul.f32 %v9150, %v11095
  %v11414 = vmul.f32 %v9151, %v11095
  %v11415 = vmul.f32 %v9152, %v11100
  %v11416 = vmul.f32 %v9153, %v11100
  %v11417 = vmul.f32 %v9154, %v11105
  %v11418 = vmul.f32 %v9155, %v11105
  %v11419 = vmul.f32 %v9156, %v11110
  %v11420 = vmul.f32 %v9157, %v11110
  %v11421 = vmul.f32 %v9158, %v11115
  %v11422 = vmul.f32 %v9159, %v11115
  %v11423 = vmul.f32 %v9160, %v11120
  %v11424 = vmul.f32 %v9161, %v11120
  %v11425 = vmul.f32 %v9162, %v11125
  %v11426 = vmul.f32 %v9163, %v11125
  %v11427 = vmul.f32 %v9164, %v11130
  %v11428 = vmul.f32 %v9165, %v11130
  %v11429 = vmul.f32 %v9166, %v11135
  %v11430 = vmul.f32 %v9167, %v11135
  %v11431 = vmul.f32 %v9168, %v11140
  %v11432 = vmul.f32 %v9169, %v11140
  %v11433 = vmul.f32 %v9170, %v11145
  %v11434 = vmul.f32 %v9171, %v11145
  %v11435 = vmul.f32 %v9172, %v11150
  %v11436 = vmul.f32 %v9173, %v11150
  %v11437 = vmul.f32 %v9174, %v11155
  %v11438 = vmul.f32 %v9175, %v11155
  %v11439 = vmul.f32 %v9176, %v11160
  %v11440 = vmul.f32 %v9177, %v11160
  %v11441 = vmul.f32 %v9178, %v11165
  %v11442 = vmul.f32 %v9179, %v11165
  %v11443 = vmul.f32 %v9180, %v11170
  %v11444 = vmul.f32 %v9181, %v11170
  %v11445 = vmul.f32 %v9182, %v11175
  %v11446 = vmul.f32 %v9183, %v11175
  %v11447 = vmul.f32 %v9184, %v11180
  %v11448 = vmul.f32 %v9185, %v11180
  %v11449 = vmul.f32 %v9186, %v11185
  %v11450 = vmul.f32 %v9187, %v11185
  %v11451 = vmul.f32 %v9188, %v11190
  %v11452 = vmul.f32 %v9189, %v11190
  %v11453 = vmul.f32 %v9190, %v11195
  %v11454 = vmul.f32 %v9191, %v11195
  %v11455 = vmul.f32 %v9192, %v11200
  %v11456 = vmul.f32 %v9193, %v11200
  %v11457 = vmul.f32 %v9194, %v11205
  %v11458 = vmul.f32 %v9195, %v11205
  %v11459 = vmul.f32 %v9196, %v11210
  %v11460 = vmul.f32 %v9197, %v11210
  %v11461 = vmul.f32 %v9198, %v11215
  %v11462 = vmul.f32 %v9199, %v11215
  %v11463 = vmul.f32 %v9200, %v11220
  %v11464 = vmul.f32 %v9201, %v11220
  %v11465 = vmul.f32 %v9202, %v11225
  %v11466 = vmul.f32 %v9203, %v11225
  %v11467 = vmul.f32 %v9204, %v11230
  %v11468 = vmul.f32 %v9205, %v11230
  %v11469 = vmul.f32 %v9206, %v11235
  %v11470 = vmul.f32 %v9207, %v11235
  %v11471 = vmul.f32 %v9208, %v11240
  %v11472 = vmul.f32 %v9209, %v11240
  %v11473 = vmul.f32 %v9210, %v11245
  %v11474 = vmul.f32 %v9211, %v11245
  %v11475 = vmul.f32 %v9212, %v11250
  %v11476 = vmul.f32 %v9213, %v11250
  %v11477 = vmul.f32 %v9214, %v11255
  %v11478 = vmul.f32 %v9215, %v11255
  %v11479 = vmul.f32 %v9216, %v11260
  %v11480 = vmul.f32 %v9217, %v11260
  %v11481 = vmul.f32 %v9218, %v11265
  %v11482 = vmul.f32 %v9219, %v11265
  %v11483 = vmul.f32 %v9220, %v11270
  %v11484 = vmul.f32 %v9221, %v11270
  %v11485 = vmul.f32 %v9222, %v11275
  %v11486 = vmul.f32 %v9223, %v11275
  %v11487 = vmul.f32 %v9224, %v11280
  %v11488 = vmul.f32 %v9225, %v11280
  %v11489 = vmul.f32 %v9226, %v11285
  %v11490 = vmul.f32 %v9227, %v11285
  %v11491 = vmul.f32 %v9228, %v11290
  %v11492 = vmul.f32 %v9229, %v11290
  %v11493 = vmul.f32 %v9230, %v11295
  %v11494 = vmul.f32 %v9231, %v11295
  %v11495 = vmul.f32 %v9232, %v11300
  %v11496 = vmul.f32 %v9233, %v11300
  %v11497 = vmul.f32 %v9234, %v11305
  %v11498 = vmul.f32 %v9235, %v11305
  %v11499 = vmul.f32 %v9236, %v11310
  %v11500 = vmul.f32 %v9237, %v11310
  %v11501 = vmul.f32 %v9238, %v11315
  %v11502 = vmul.f32 %v9239, %v11315
  %v11503 = vmul.f32 %v9240, %v11320
  %v11504 = vmul.f32 %v9241, %v11320
  %v11505 = vmul.f32 %v9242, %v11325
  %v11506 = vmul.f32 %v9243, %v11325
  %v11507 = vmul.f32 %v9244, %v11330
  %v11508 = vmul.f32 %v9245, %v11330
  %v11509 = vmul.f32 %v9246, %v11335
  %v11510 = vmul.f32 %v9247, %v11335
  %v11511 = vmul.f32 %v9248, %v11340
  %v11512 = vmul.f32 %v9249, %v11340
  %v11513 = vmul.f32 %v9250, %v11345
  %v11514 = vmul.f32 %v9251, %v11345
  %v11515 = vmul.f32 %v9252, %v11350
  %v11516 = vmul.f32 %v9253, %v11350
  %v11517 = vmul.f32 %v9254, %v11355
  %v11518 = vmul.f32 %v9255, %v11355
  %v11519 = vmul.f32 %v9256, %v11360
  %v11520 = vmul.f32 %v9257, %v11360
  %v11521 = vmul.f32 %v9258, %v11365
  %v11522 = vmul.f32 %v9259, %v11365
  %11524 = vset.pattern.permute.xlu0 0
  %11525 = vperm.xlu0 %11524, %v10899
  %v11526 = vpop.permute.xlu0 %11525
  %11529 = vset.pattern.permute.xlu0 0
  %11530 = vperm.xlu0 %11529, %v10900
  %v11531 = vpop.permute.xlu0 %11530
  %11534 = vset.pattern.permute.xlu0 0
  %11535 = vperm.xlu0 %11534, %v10901
  %v11536 = vpop.permute.xlu0 %11535
  %11539 = vset.pattern.permute.xlu0 0
  %11540 = vperm.xlu0 %11539, %v10902
  %v11541 = vpop.permute.xlu0 %11540
  %11544 = vset.pattern.permute.xlu0 0
  %11545 = vperm.xlu0 %11544, %v10903
  %v11546 = vpop.permute.xlu0 %11545
  %11549 = vset.pattern.permute.xlu0 0
  %11550 = vperm.xlu0 %11549, %v10904
  %v11551 = vpop.permute.xlu0 %11550
  %11554 = vset.pattern.permute.xlu0 0
  %11555 = vperm.xlu0 %11554, %v10905
  %v11556 = vpop.permute.xlu0 %11555
  %11559 = vset.pattern.permute.xlu0 0
  %11560 = vperm.xlu0 %11559, %v10906
  %v11561 = vpop.permute.xlu0 %11560
  %11564 = vset.pattern.permute.xlu0 0
  %11565 = vperm.xlu0 %11564, %v10907
  %v11566 = vpop.permute.xlu0 %11565
  %11569 = vset.pattern.permute.xlu0 0
  %11570 = vperm.xlu0 %11569, %v10908
  %v11571 = vpop.permute.xlu0 %11570
  %11574 = vset.pattern.permute.xlu0 0
  %11575 = vperm.xlu0 %11574, %v10909
  %v11576 = vpop.permute.xlu0 %11575
  %11579 = vset.pattern.permute.xlu0 0
  %11580 = vperm.xlu0 %11579, %v10910
  %v11581 = vpop.permute.xlu0 %11580
  %11584 = vset.pattern.permute.xlu0 0
  %11585 = vperm.xlu0 %11584, %v10911
  %v11586 = vpop.permute.xlu0 %11585
  %11589 = vset.pattern.permute.xlu0 0
  %11590 = vperm.xlu0 %11589, %v10912
  %v11591 = vpop.permute.xlu0 %11590
  %11594 = vset.pattern.permute.xlu0 0
  %11595 = vperm.xlu0 %11594, %v10913
  %v11596 = vpop.permute.xlu0 %11595
  %11599 = vset.pattern.permute.xlu0 0
  %11600 = vperm.xlu0 %11599, %v10914
  %v11601 = vpop.permute.xlu0 %11600
  %11604 = vset.pattern.permute.xlu0 0
  %11605 = vperm.xlu0 %11604, %v10915
  %v11606 = vpop.permute.xlu0 %11605
  %11609 = vset.pattern.permute.xlu0 0
  %11610 = vperm.xlu0 %11609, %v10916
  %v11611 = vpop.permute.xlu0 %11610
  %11614 = vset.pattern.permute.xlu0 0
  %11615 = vperm.xlu0 %11614, %v10917
  %v11616 = vpop.permute.xlu0 %11615
  %11619 = vset.pattern.permute.xlu0 0
  %11620 = vperm.xlu0 %11619, %v10918
  %v11621 = vpop.permute.xlu0 %11620
  %11624 = vset.pattern.permute.xlu0 0
  %11625 = vperm.xlu0 %11624, %v10919
  %v11626 = vpop.permute.xlu0 %11625
  %11629 = vset.pattern.permute.xlu0 0
  %11630 = vperm.xlu0 %11629, %v10920
  %v11631 = vpop.permute.xlu0 %11630
  %11634 = vset.pattern.permute.xlu0 0
  %11635 = vperm.xlu0 %11634, %v10921
  %v11636 = vpop.permute.xlu0 %11635
  %11639 = vset.pattern.permute.xlu0 0
  %11640 = vperm.xlu0 %11639, %v10922
  %v11641 = vpop.permute.xlu0 %11640
  %11644 = vset.pattern.permute.xlu0 0
  %11645 = vperm.xlu0 %11644, %v10923
  %v11646 = vpop.permute.xlu0 %11645
  %11649 = vset.pattern.permute.xlu0 0
  %11650 = vperm.xlu0 %11649, %v10924
  %v11651 = vpop.permute.xlu0 %11650
  %11654 = vset.pattern.permute.xlu0 0
  %11655 = vperm.xlu0 %11654, %v10925
  %v11656 = vpop.permute.xlu0 %11655
  %11659 = vset.pattern.permute.xlu0 0
  %11660 = vperm.xlu0 %11659, %v10926
  %v11661 = vpop.permute.xlu0 %11660
  %11664 = vset.pattern.permute.xlu0 0
  %11665 = vperm.xlu0 %11664, %v10927
  %v11666 = vpop.permute.xlu0 %11665
  %11669 = vset.pattern.permute.xlu0 0
  %11670 = vperm.xlu0 %11669, %v10928
  %v11671 = vpop.permute.xlu0 %11670
  %11674 = vset.pattern.permute.xlu0 0
  %11675 = vperm.xlu0 %11674, %v10929
  %v11676 = vpop.permute.xlu0 %11675
  %11679 = vset.pattern.permute.xlu0 0
  %11680 = vperm.xlu0 %11679, %v10930
  %v11681 = vpop.permute.xlu0 %11680
  %11684 = vset.pattern.permute.xlu0 0
  %11685 = vperm.xlu0 %11684, %v10931
  %v11686 = vpop.permute.xlu0 %11685
  %11689 = vset.pattern.permute.xlu0 0
  %11690 = vperm.xlu0 %11689, %v10932
  %v11691 = vpop.permute.xlu0 %11690
  %11694 = vset.pattern.permute.xlu0 0
  %11695 = vperm.xlu0 %11694, %v10933
  %v11696 = vpop.permute.xlu0 %11695
  %11699 = vset.pattern.permute.xlu0 0
  %11700 = vperm.xlu0 %11699, %v10934
  %v11701 = vpop.permute.xlu0 %11700
  %11704 = vset.pattern.permute.xlu0 0
  %11705 = vperm.xlu0 %11704, %v10935
  %v11706 = vpop.permute.xlu0 %11705
  %11709 = vset.pattern.permute.xlu0 0
  %11710 = vperm.xlu0 %11709, %v10936
  %v11711 = vpop.permute.xlu0 %11710
  %11714 = vset.pattern.permute.xlu0 0
  %11715 = vperm.xlu0 %11714, %v10937
  %v11716 = vpop.permute.xlu0 %11715
  %11719 = vset.pattern.permute.xlu0 0
  %11720 = vperm.xlu0 %11719, %v10938
  %v11721 = vpop.permute.xlu0 %11720
  %11724 = vset.pattern.permute.xlu0 0
  %11725 = vperm.xlu0 %11724, %v10939
  %v11726 = vpop.permute.xlu0 %11725
  %11729 = vset.pattern.permute.xlu0 0
  %11730 = vperm.xlu0 %11729, %v10940
  %v11731 = vpop.permute.xlu0 %11730
  %11734 = vset.pattern.permute.xlu0 0
  %11735 = vperm.xlu0 %11734, %v10941
  %v11736 = vpop.permute.xlu0 %11735
  %11739 = vset.pattern.permute.xlu0 0
  %11740 = vperm.xlu0 %11739, %v10942
  %v11741 = vpop.permute.xlu0 %11740
  %11744 = vset.pattern.permute.xlu0 0
  %11745 = vperm.xlu0 %11744, %v10943
  %v11746 = vpop.permute.xlu0 %11745
  %11749 = vset.pattern.permute.xlu0 0
  %11750 = vperm.xlu0 %11749, %v10944
  %v11751 = vpop.permute.xlu0 %11750
  %11754 = vset.pattern.permute.xlu0 0
  %11755 = vperm.xlu0 %11754, %v10945
  %v11756 = vpop.permute.xlu0 %11755
  %11759 = vset.pattern.permute.xlu0 0
  %11760 = vperm.xlu0 %11759, %v10946
  %v11761 = vpop.permute.xlu0 %11760
  %11764 = vset.pattern.permute.xlu0 0
  %11765 = vperm.xlu0 %11764, %v10947
  %v11766 = vpop.permute.xlu0 %11765
  %11769 = vset.pattern.permute.xlu0 0
  %11770 = vperm.xlu0 %11769, %v10948
  %v11771 = vpop.permute.xlu0 %11770
  %11774 = vset.pattern.permute.xlu0 0
  %11775 = vperm.xlu0 %11774, %v10949
  %v11776 = vpop.permute.xlu0 %11775
  %11779 = vset.pattern.permute.xlu0 0
  %11780 = vperm.xlu0 %11779, %v10950
  %v11781 = vpop.permute.xlu0 %11780
  %11784 = vset.pattern.permute.xlu0 0
  %11785 = vperm.xlu0 %11784, %v10951
  %v11786 = vpop.permute.xlu0 %11785
  %11789 = vset.pattern.permute.xlu0 0
  %11790 = vperm.xlu0 %11789, %v10952
  %v11791 = vpop.permute.xlu0 %11790
  %11794 = vset.pattern.permute.xlu0 0
  %11795 = vperm.xlu0 %11794, %v10953
  %v11796 = vpop.permute.xlu0 %11795
  %11799 = vset.pattern.permute.xlu0 0
  %11800 = vperm.xlu0 %11799, %v10954
  %v11801 = vpop.permute.xlu0 %11800
  %11804 = vset.pattern.permute.xlu0 0
  %11805 = vperm.xlu0 %11804, %v10955
  %v11806 = vpop.permute.xlu0 %11805
  %11809 = vset.pattern.permute.xlu0 0
  %11810 = vperm.xlu0 %11809, %v10956
  %v11811 = vpop.permute.xlu0 %11810
  %11814 = vset.pattern.permute.xlu0 0
  %11815 = vperm.xlu0 %11814, %v10957
  %v11816 = vpop.permute.xlu0 %11815
  %11819 = vset.pattern.permute.xlu0 0
  %11820 = vperm.xlu0 %11819, %v10958
  %v11821 = vpop.permute.xlu0 %11820
  %11824 = vset.pattern.permute.xlu0 0
  %11825 = vperm.xlu0 %11824, %v10959
  %v11826 = vpop.permute.xlu0 %11825
  %11829 = vset.pattern.permute.xlu0 0
  %11830 = vperm.xlu0 %11829, %v10960
  %v11831 = vpop.permute.xlu0 %11830
  %11834 = vset.pattern.permute.xlu0 0
  %11835 = vperm.xlu0 %11834, %v10961
  %v11836 = vpop.permute.xlu0 %11835
  %11839 = vset.pattern.permute.xlu0 0
  %11840 = vperm.xlu0 %11839, %v10962
  %v11841 = vpop.permute.xlu0 %11840
  %11844 = vset.pattern.permute.xlu0 0
  %11845 = vperm.xlu0 %11844, %v10963
  %v11846 = vpop.permute.xlu0 %11845
  %11849 = vset.pattern.permute.xlu0 0
  %11850 = vperm.xlu0 %11849, %v10964
  %v11851 = vpop.permute.xlu0 %11850
  %11854 = vset.pattern.permute.xlu0 0
  %11855 = vperm.xlu0 %11854, %v10965
  %v11856 = vpop.permute.xlu0 %11855
  %11859 = vset.pattern.permute.xlu0 0
  %11860 = vperm.xlu0 %11859, %v10966
  %v11861 = vpop.permute.xlu0 %11860
  %11864 = vset.pattern.permute.xlu0 0
  %11865 = vperm.xlu0 %11864, %v10967
  %v11866 = vpop.permute.xlu0 %11865
  %11869 = vset.pattern.permute.xlu0 0
  %11870 = vperm.xlu0 %11869, %v10968
  %v11871 = vpop.permute.xlu0 %11870
  %11874 = vset.pattern.permute.xlu0 0
  %11875 = vperm.xlu0 %11874, %v10969
  %v11876 = vpop.permute.xlu0 %11875
  %11879 = vset.pattern.permute.xlu0 0
  %11880 = vperm.xlu0 %11879, %v10970
  %v11881 = vpop.permute.xlu0 %11880
  %11884 = vset.pattern.permute.xlu0 0
  %11885 = vperm.xlu0 %11884, %v10971
  %v11886 = vpop.permute.xlu0 %11885
  %11889 = vset.pattern.permute.xlu0 0
  %11890 = vperm.xlu0 %11889, %v10972
  %v11891 = vpop.permute.xlu0 %11890
  %11894 = vset.pattern.permute.xlu0 0
  %11895 = vperm.xlu0 %11894, %v10973
  %v11896 = vpop.permute.xlu0 %11895
  %11899 = vset.pattern.permute.xlu0 0
  %11900 = vperm.xlu0 %11899, %v10974
  %v11901 = vpop.permute.xlu0 %11900
  %11904 = vset.pattern.permute.xlu0 0
  %11905 = vperm.xlu0 %11904, %v10975
  %v11906 = vpop.permute.xlu0 %11905
  %11909 = vset.pattern.permute.xlu0 0
  %11910 = vperm.xlu0 %11909, %v10976
  %v11911 = vpop.permute.xlu0 %11910
  %v11913 = vadd.f32 %v11367, %v11526
  %v11914 = vadd.f32 %v11368, %v11526
  %v11915 = vadd.f32 %v11369, %v11531
  %v11916 = vadd.f32 %v11370, %v11531
  %v11917 = vadd.f32 %v11371, %v11536
  %v11918 = vadd.f32 %v11372, %v11536
  %v11919 = vadd.f32 %v11373, %v11541
  %v11920 = vadd.f32 %v11374, %v11541
  %v11921 = vadd.f32 %v11375, %v11546
  %v11922 = vadd.f32 %v11376, %v11546
  %v11923 = vadd.f32 %v11377, %v11551
  %v11924 = vadd.f32 %v11378, %v11551
  %v11925 = vadd.f32 %v11379, %v11556
  %v11926 = vadd.f32 %v11380, %v11556
  %v11927 = vadd.f32 %v11381, %v11561
  %v11928 = vadd.f32 %v11382, %v11561
  %v11929 = vadd.f32 %v11383, %v11566
  %v11930 = vadd.f32 %v11384, %v11566
  %v11931 = vadd.f32 %v11385, %v11571
  %v11932 = vadd.f32 %v11386, %v11571
  %v11933 = vadd.f32 %v11387, %v11576
  %v11934 = vadd.f32 %v11388, %v11576
  %v11935 = vadd.f32 %v11389, %v11581
  %v11936 = vadd.f32 %v11390, %v11581
  %v11937 = vadd.f32 %v11391, %v11586
  %v11938 = vadd.f32 %v11392, %v11586
  %v11939 = vadd.f32 %v11393, %v11591
  %v11940 = vadd.f32 %v11394, %v11591
  %v11941 = vadd.f32 %v11395, %v11596
  %v11942 = vadd.f32 %v11396, %v11596
  %v11943 = vadd.f32 %v11397, %v11601
  %v11944 = vadd.f32 %v11398, %v11601
  %v11945 = vadd.f32 %v11399, %v11606
  %v11946 = vadd.f32 %v11400, %v11606
  %v11947 = vadd.f32 %v11401, %v11611
  %v11948 = vadd.f32 %v11402, %v11611
  %v11949 = vadd.f32 %v11403, %v11616
  %v11950 = vadd.f32 %v11404, %v11616
  %v11951 = vadd.f32 %v11405, %v11621
  %v11952 = vadd.f32 %v11406, %v11621
  %v11953 = vadd.f32 %v11407, %v11626
  %v11954 = vadd.f32 %v11408, %v11626
  %v11955 = vadd.f32 %v11409, %v11631
  %v11956 = vadd.f32 %v11410, %v11631
  %v11957 = vadd.f32 %v11411, %v11636
  %v11958 = vadd.f32 %v11412, %v11636
  %v11959 = vadd.f32 %v11413, %v11641
  %v11960 = vadd.f32 %v11414, %v11641
  %v11961 = vadd.f32 %v11415, %v11646
  %v11962 = vadd.f32 %v11416, %v11646
  %v11963 = vadd.f32 %v11417, %v11651
  %v11964 = vadd.f32 %v11418, %v11651
  %v11965 = vadd.f32 %v11419, %v11656
  %v11966 = vadd.f32 %v11420, %v11656
  %v11967 = vadd.f32 %v11421, %v11661
  %v11968 = vadd.f32 %v11422, %v11661
  %v11969 = vadd.f32 %v11423, %v11666
  %v11970 = vadd.f32 %v11424, %v11666
  %v11971 = vadd.f32 %v11425, %v11671
  %v11972 = vadd.f32 %v11426, %v11671
  %v11973 = vadd.f32 %v11427, %v11676
  %v11974 = vadd.f32 %v11428, %v11676
  %v11975 = vadd.f32 %v11429, %v11681
  %v11976 = vadd.f32 %v11430, %v11681
  %v11977 = vadd.f32 %v11431, %v11686
  %v11978 = vadd.f32 %v11432, %v11686
  %v11979 = vadd.f32 %v11433, %v11691
  %v11980 = vadd.f32 %v11434, %v11691
  %v11981 = vadd.f32 %v11435, %v11696
  %v11982 = vadd.f32 %v11436, %v11696
  %v11983 = vadd.f32 %v11437, %v11701
  %v11984 = vadd.f32 %v11438, %v11701
  %v11985 = vadd.f32 %v11439, %v11706
  %v11986 = vadd.f32 %v11440, %v11706
  %v11987 = vadd.f32 %v11441, %v11711
  %v11988 = vadd.f32 %v11442, %v11711
  %v11989 = vadd.f32 %v11443, %v11716
  %v11990 = vadd.f32 %v11444, %v11716
  %v11991 = vadd.f32 %v11445, %v11721
  %v11992 = vadd.f32 %v11446, %v11721
  %v11993 = vadd.f32 %v11447, %v11726
  %v11994 = vadd.f32 %v11448, %v11726
  %v11995 = vadd.f32 %v11449, %v11731
  %v11996 = vadd.f32 %v11450, %v11731
  %v11997 = vadd.f32 %v11451, %v11736
  %v11998 = vadd.f32 %v11452, %v11736
  %v11999 = vadd.f32 %v11453, %v11741
  %v12000 = vadd.f32 %v11454, %v11741
  %v12001 = vadd.f32 %v11455, %v11746
  %v12002 = vadd.f32 %v11456, %v11746
  %v12003 = vadd.f32 %v11457, %v11751
  %v12004 = vadd.f32 %v11458, %v11751
  %v12005 = vadd.f32 %v11459, %v11756
  %v12006 = vadd.f32 %v11460, %v11756
  %v12007 = vadd.f32 %v11461, %v11761
  %v12008 = vadd.f32 %v11462, %v11761
  %v12009 = vadd.f32 %v11463, %v11766
  %v12010 = vadd.f32 %v11464, %v11766
  %v12011 = vadd.f32 %v11465, %v11771
  %v12012 = vadd.f32 %v11466, %v11771
  %v12013 = vadd.f32 %v11467, %v11776
  %v12014 = vadd.f32 %v11468, %v11776
  %v12015 = vadd.f32 %v11469, %v11781
  %v12016 = vadd.f32 %v11470, %v11781
  %v12017 = vadd.f32 %v11471, %v11786
  %v12018 = vadd.f32 %v11472, %v11786
  %v12019 = vadd.f32 %v11473, %v11791
  %v12020 = vadd.f32 %v11474, %v11791
  %v12021 = vadd.f32 %v11475, %v11796
  %v12022 = vadd.f32 %v11476, %v11796
  %v12023 = vadd.f32 %v11477, %v11801
  %v12024 = vadd.f32 %v11478, %v11801
  %v12025 = vadd.f32 %v11479, %v11806
  %v12026 = vadd.f32 %v11480, %v11806
  %v12027 = vadd.f32 %v11481, %v11811
  %v12028 = vadd.f32 %v11482, %v11811
  %v12029 = vadd.f32 %v11483, %v11816
  %v12030 = vadd.f32 %v11484, %v11816
  %v12031 = vadd.f32 %v11485, %v11821
  %v12032 = vadd.f32 %v11486, %v11821
  %v12033 = vadd.f32 %v11487, %v11826
  %v12034 = vadd.f32 %v11488, %v11826
  %v12035 = vadd.f32 %v11489, %v11831
  %v12036 = vadd.f32 %v11490, %v11831
  %v12037 = vadd.f32 %v11491, %v11836
  %v12038 = vadd.f32 %v11492, %v11836
  %v12039 = vadd.f32 %v11493, %v11841
  %v12040 = vadd.f32 %v11494, %v11841
  %v12041 = vadd.f32 %v11495, %v11846
  %v12042 = vadd.f32 %v11496, %v11846
  %v12043 = vadd.f32 %v11497, %v11851
  %v12044 = vadd.f32 %v11498, %v11851
  %v12045 = vadd.f32 %v11499, %v11856
  %v12046 = vadd.f32 %v11500, %v11856
  %v12047 = vadd.f32 %v11501, %v11861
  %v12048 = vadd.f32 %v11502, %v11861
  %v12049 = vadd.f32 %v11503, %v11866
  %v12050 = vadd.f32 %v11504, %v11866
  %v12051 = vadd.f32 %v11505, %v11871
  %v12052 = vadd.f32 %v11506, %v11871
  %v12053 = vadd.f32 %v11507, %v11876
  %v12054 = vadd.f32 %v11508, %v11876
  %v12055 = vadd.f32 %v11509, %v11881
  %v12056 = vadd.f32 %v11510, %v11881
  %v12057 = vadd.f32 %v11511, %v11886
  %v12058 = vadd.f32 %v11512, %v11886
  %v12059 = vadd.f32 %v11513, %v11891
  %v12060 = vadd.f32 %v11514, %v11891
  %v12061 = vadd.f32 %v11515, %v11896
  %v12062 = vadd.f32 %v11516, %v11896
  %v12063 = vadd.f32 %v11517, %v11901
  %v12064 = vadd.f32 %v11518, %v11901
  %v12065 = vadd.f32 %v11519, %v11906
  %v12066 = vadd.f32 %v11520, %v11906
  %v12067 = vadd.f32 %v11521, %v11911
  %v12068 = vadd.f32 %v11522, %v11911
  %v12069 = vmax.f32 %v11913, 0.0
  %v12070 = vmax.f32 %v11914, 0.0
  %v12071 = vmax.f32 %v11915, 0.0
  %v12072 = vmax.f32 %v11916, 0.0
  %v12073 = vmax.f32 %v11917, 0.0
  %v12074 = vmax.f32 %v11918, 0.0
  %v12075 = vmax.f32 %v11919, 0.0
  %v12076 = vmax.f32 %v11920, 0.0
  %v12077 = vmax.f32 %v11921, 0.0
  %v12078 = vmax.f32 %v11922, 0.0
  %v12079 = vmax.f32 %v11923, 0.0
  %v12080 = vmax.f32 %v11924, 0.0
  %v12081 = vmax.f32 %v11925, 0.0
  %v12082 = vmax.f32 %v11926, 0.0
  %v12083 = vmax.f32 %v11927, 0.0
  %v12084 = vmax.f32 %v11928, 0.0
  %v12085 = vmax.f32 %v11929, 0.0
  %v12086 = vmax.f32 %v11930, 0.0
  %v12087 = vmax.f32 %v11931, 0.0
  %v12088 = vmax.f32 %v11932, 0.0
  %v12089 = vmax.f32 %v11933, 0.0
  %v12090 = vmax.f32 %v11934, 0.0
  %v12091 = vmax.f32 %v11935, 0.0
  %v12092 = vmax.f32 %v11936, 0.0
  %v12093 = vmax.f32 %v11937, 0.0
  %v12094 = vmax.f32 %v11938, 0.0
  %v12095 = vmax.f32 %v11939, 0.0
  %v12096 = vmax.f32 %v11940, 0.0
  %v12097 = vmax.f32 %v11941, 0.0
  %v12098 = vmax.f32 %v11942, 0.0
  %v12099 = vmax.f32 %v11943, 0.0
  %v12100 = vmax.f32 %v11944, 0.0
  %v12101 = vmax.f32 %v11945, 0.0
  %v12102 = vmax.f32 %v11946, 0.0
  %v12103 = vmax.f32 %v11947, 0.0
  %v12104 = vmax.f32 %v11948, 0.0
  %v12105 = vmax.f32 %v11949, 0.0
  %v12106 = vmax.f32 %v11950, 0.0
  %v12107 = vmax.f32 %v11951, 0.0
  %v12108 = vmax.f32 %v11952, 0.0
  %v12109 = vmax.f32 %v11953, 0.0
  %v12110 = vmax.f32 %v11954, 0.0
  %v12111 = vmax.f32 %v11955, 0.0
  %v12112 = vmax.f32 %v11956, 0.0
  %v12113 = vmax.f32 %v11957, 0.0
  %v12114 = vmax.f32 %v11958, 0.0
  %v12115 = vmax.f32 %v11959, 0.0
  %v12116 = vmax.f32 %v11960, 0.0
  %v12117 = vmax.f32 %v11961, 0.0
  %v12118 = vmax.f32 %v11962, 0.0
  %v12119 = vmax.f32 %v11963, 0.0
  %v12120 = vmax.f32 %v11964, 0.0
  %v12121 = vmax.f32 %v11965, 0.0
  %v12122 = vmax.f32 %v11966, 0.0
  %v12123 = vmax.f32 %v11967, 0.0
  %v12124 = vmax.f32 %v11968, 0.0
  %v12125 = vmax.f32 %v11969, 0.0
  %v12126 = vmax.f32 %v11970, 0.0
  %v12127 = vmax.f32 %v11971, 0.0
  %v12128 = vmax.f32 %v11972, 0.0
  %v12129 = vmax.f32 %v11973, 0.0
  %v12130 = vmax.f32 %v11974, 0.0
  %v12131 = vmax.f32 %v11975, 0.0
  %v12132 = vmax.f32 %v11976, 0.0
  %v12133 = vmax.f32 %v11977, 0.0
  %v12134 = vmax.f32 %v11978, 0.0
  %v12135 = vmax.f32 %v11979, 0.0
  %v12136 = vmax.f32 %v11980, 0.0
  %v12137 = vmax.f32 %v11981, 0.0
  %v12138 = vmax.f32 %v11982, 0.0
  %v12139 = vmax.f32 %v11983, 0.0
  %v12140 = vmax.f32 %v11984, 0.0
  %v12141 = vmax.f32 %v11985, 0.0
  %v12142 = vmax.f32 %v11986, 0.0
  %v12143 = vmax.f32 %v11987, 0.0
  %v12144 = vmax.f32 %v11988, 0.0
  %v12145 = vmax.f32 %v11989, 0.0
  %v12146 = vmax.f32 %v11990, 0.0
  %v12147 = vmax.f32 %v11991, 0.0
  %v12148 = vmax.f32 %v11992, 0.0
  %v12149 = vmax.f32 %v11993, 0.0
  %v12150 = vmax.f32 %v11994, 0.0
  %v12151 = vmax.f32 %v11995, 0.0
  %v12152 = vmax.f32 %v11996, 0.0
  %v12153 = vmax.f32 %v11997, 0.0
  %v12154 = vmax.f32 %v11998, 0.0
  %v12155 = vmax.f32 %v11999, 0.0
  %v12156 = vmax.f32 %v12000, 0.0
  %v12157 = vmax.f32 %v12001, 0.0
  %v12158 = vmax.f32 %v12002, 0.0
  %v12159 = vmax.f32 %v12003, 0.0
  %v12160 = vmax.f32 %v12004, 0.0
  %v12161 = vmax.f32 %v12005, 0.0
  %v12162 = vmax.f32 %v12006, 0.0
  %v12163 = vmax.f32 %v12007, 0.0
  %v12164 = vmax.f32 %v12008, 0.0
  %v12165 = vmax.f32 %v12009, 0.0
  %v12166 = vmax.f32 %v12010, 0.0
  %v12167 = vmax.f32 %v12011, 0.0
  %v12168 = vmax.f32 %v12012, 0.0
  %v12169 = vmax.f32 %v12013, 0.0
  %v12170 = vmax.f32 %v12014, 0.0
  %v12171 = vmax.f32 %v12015, 0.0
  %v12172 = vmax.f32 %v12016, 0.0
  %v12173 = vmax.f32 %v12017, 0.0
  %v12174 = vmax.f32 %v12018, 0.0
  %v12175 = vmax.f32 %v12019, 0.0
  %v12176 = vmax.f32 %v12020, 0.0
  %v12177 = vmax.f32 %v12021, 0.0
  %v12178 = vmax.f32 %v12022, 0.0
  %v12179 = vmax.f32 %v12023, 0.0
  %v12180 = vmax.f32 %v12024, 0.0
  %v12181 = vmax.f32 %v12025, 0.0
  %v12182 = vmax.f32 %v12026, 0.0
  %v12183 = vmax.f32 %v12027, 0.0
  %v12184 = vmax.f32 %v12028, 0.0
  %v12185 = vmax.f32 %v12029, 0.0
  %v12186 = vmax.f32 %v12030, 0.0
  %v12187 = vmax.f32 %v12031, 0.0
  %v12188 = vmax.f32 %v12032, 0.0
  %v12189 = vmax.f32 %v12033, 0.0
  %v12190 = vmax.f32 %v12034, 0.0
  %v12191 = vmax.f32 %v12035, 0.0
  %v12192 = vmax.f32 %v12036, 0.0
  %v12193 = vmax.f32 %v12037, 0.0
  %v12194 = vmax.f32 %v12038, 0.0
  %v12195 = vmax.f32 %v12039, 0.0
  %v12196 = vmax.f32 %v12040, 0.0
  %v12197 = vmax.f32 %v12041, 0.0
  %v12198 = vmax.f32 %v12042, 0.0
  %v12199 = vmax.f32 %v12043, 0.0
  %v12200 = vmax.f32 %v12044, 0.0
  %v12201 = vmax.f32 %v12045, 0.0
  %v12202 = vmax.f32 %v12046, 0.0
  %v12203 = vmax.f32 %v12047, 0.0
  %v12204 = vmax.f32 %v12048, 0.0
  %v12205 = vmax.f32 %v12049, 0.0
  %v12206 = vmax.f32 %v12050, 0.0
  %v12207 = vmax.f32 %v12051, 0.0
  %v12208 = vmax.f32 %v12052, 0.0
  %v12209 = vmax.f32 %v12053, 0.0
  %v12210 = vmax.f32 %v12054, 0.0
  %v12211 = vmax.f32 %v12055, 0.0
  %v12212 = vmax.f32 %v12056, 0.0
  %v12213 = vmax.f32 %v12057, 0.0
  %v12214 = vmax.f32 %v12058, 0.0
  %v12215 = vmax.f32 %v12059, 0.0
  %v12216 = vmax.f32 %v12060, 0.0
  %v12217 = vmax.f32 %v12061, 0.0
  %v12218 = vmax.f32 %v12062, 0.0
  %v12219 = vmax.f32 %v12063, 0.0
  %v12220 = vmax.f32 %v12064, 0.0
  %v12221 = vmax.f32 %v12065, 0.0
  %v12222 = vmax.f32 %v12066, 0.0
  %v12223 = vmax.f32 %v12067, 0.0
  %v12224 = vmax.f32 %v12068, 0.0
  %v12225 = vld [vmem:[%s4] sm:$0xff]
  %v12226 = vld [vmem:[%s4 + $0x8] sm:$0xff]
  %v12227 = vld [vmem:[%s4 + $0x10] sm:$0xff]
  %v12228 = vld [vmem:[%s4 + $0x18] sm:$0xff]
  %v12229 = vld [vmem:[%s4 + $0x20] sm:$0xff]
  %v12230 = vld [vmem:[%s4 + $0x28] sm:$0xff]
  %v12231 = vld [vmem:[%s4 + $0x30] sm:$0xff]
  %v12232 = vld [vmem:[%s4 + $0x38] sm:$0xff]
  %v12233 = vld [vmem:[%s4 + $0x40] sm:$0xff]
  %v12234 = vld [vmem:[%s4 + $0x48] sm:$0xff]
  %v12235 = vld [vmem:[%s4 + $0x50] sm:$0xff]
  %v12236 = vld [vmem:[%s4 + $0x58] sm:$0xff]
  %v12237 = vld [vmem:[%s4 + $0x60] sm:$0xff]
  %v12238 = vld [vmem:[%s4 + $0x68] sm:$0xff]
  %v12239 = vld [vmem:[%s4 + $0x70] sm:$0xff]
  %v12240 = vld [vmem:[%s4 + $0x78] sm:$0xff]
  %v12241 = vld [vmem:[%s4 + $0x80] sm:$0xff]
  %v12242 = vld [vmem:[%s4 + $0x88] sm:$0xff]
  %v12243 = vld [vmem:[%s4 + $0x90] sm:$0xff]
  %v12244 = vld [vmem:[%s4 + $0x98] sm:$0xff]
  %v12245 = vld [vmem:[%s4 + $0xa0] sm:$0xff]
  %v12246 = vld [vmem:[%s4 + $0xa8] sm:$0xff]
  %v12247 = vld [vmem:[%s4 + $0xb0] sm:$0xff]
  %v12248 = vld [vmem:[%s4 + $0xb8] sm:$0xff]
  %v12249 = vld [vmem:[%s4 + $0xc0] sm:$0xff]
  %v12250 = vld [vmem:[%s4 + $0xc8] sm:$0xff]
  %v12251 = vld [vmem:[%s4 + $0xd0] sm:$0xff]
  %v12252 = vld [vmem:[%s4 + $0xd8] sm:$0xff]
  %v12253 = vld [vmem:[%s4 + $0xe0] sm:$0xff]
  %v12254 = vld [vmem:[%s4 + $0xe8] sm:$0xff]
  %v12255 = vld [vmem:[%s4 + $0xf0] sm:$0xff]
  %v12256 = vld [vmem:[%s4 + $0xf8] sm:$0xff]
  %v12257 = vld [vmem:[%s4 + $0x100] sm:$0xff]
  %v12258 = vld [vmem:[%s4 + $0x108] sm:$0xff]
  %v12259 = vld [vmem:[%s4 + $0x110] sm:$0xff]
  %v12260 = vld [vmem:[%s4 + $0x118] sm:$0xff]
  %v12261 = vld [vmem:[%s4 + $0x120] sm:$0xff]
  %v12262 = vld [vmem:[%s4 + $0x128] sm:$0xff]
  %v12263 = vld [vmem:[%s4 + $0x130] sm:$0xff]
  %v12264 = vld [vmem:[%s4 + $0x138] sm:$0xff]
  %v12265 = vld [vmem:[%s4 + $0x140] sm:$0xff]
  %v12266 = vld [vmem:[%s4 + $0x148] sm:$0xff]
  %v12267 = vld [vmem:[%s4 + $0x150] sm:$0xff]
  %v12268 = vld [vmem:[%s4 + $0x158] sm:$0xff]
  %v12269 = vld [vmem:[%s4 + $0x160] sm:$0xff]
  %v12270 = vld [vmem:[%s4 + $0x168] sm:$0xff]
  %v12271 = vld [vmem:[%s4 + $0x170] sm:$0xff]
  %v12272 = vld [vmem:[%s4 + $0x178] sm:$0xff]
  %v12273 = vld [vmem:[%s4 + $0x180] sm:$0xff]
  %v12274 = vld [vmem:[%s4 + $0x188] sm:$0xff]
  %v12275 = vld [vmem:[%s4 + $0x190] sm:$0xff]
  %v12276 = vld [vmem:[%s4 + $0x198] sm:$0xff]
  %v12277 = vld [vmem:[%s4 + $0x1a0] sm:$0xff]
  %v12278 = vld [vmem:[%s4 + $0x1a8] sm:$0xff]
  %v12279 = vld [vmem:[%s4 + $0x1b0] sm:$0xff]
  %v12280 = vld [vmem:[%s4 + $0x1b8] sm:$0xff]
  %v12281 = vld [vmem:[%s4 + $0x1c0] sm:$0xff]
  %v12282 = vld [vmem:[%s4 + $0x1c8] sm:$0xff]
  %v12283 = vld [vmem:[%s4 + $0x1d0] sm:$0xff]
  %v12284 = vld [vmem:[%s4 + $0x1d8] sm:$0xff]
  %v12285 = vld [vmem:[%s4 + $0x1e0] sm:$0xff]
  %v12286 = vld [vmem:[%s4 + $0x1e8] sm:$0xff]
  %v12287 = vld [vmem:[%s4 + $0x1f0] sm:$0xff]
  %v12288 = vld [vmem:[%s4 + $0x1f8] sm:$0xff]
  %v12289 = vld [vmem:[%s4 + $0x200] sm:$0xff]
  %v12290 = vld [vmem:[%s4 + $0x208] sm:$0xff]
  %v12291 = vld [vmem:[%s4 + $0x210] sm:$0xff]
  %v12292 = vld [vmem:[%s4 + $0x218] sm:$0xff]
  %v12293 = vld [vmem:[%s4 + $0x220] sm:$0xff]
  %v12294 = vld [vmem:[%s4 + $0x228] sm:$0xff]
  %v12295 = vld [vmem:[%s4 + $0x230] sm:$0xff]
  %v12296 = vld [vmem:[%s4 + $0x238] sm:$0xff]
  %v12297 = vld [vmem:[%s4 + $0x240] sm:$0xff]
  %v12298 = vld [vmem:[%s4 + $0x248] sm:$0xff]
  %v12299 = vld [vmem:[%s4 + $0x250] sm:$0xff]
  %v12300 = vld [vmem:[%s4 + $0x258] sm:$0xff]
  %v12301 = vld [vmem:[%s4 + $0x260] sm:$0xff]
  %v12302 = vld [vmem:[%s4 + $0x268] sm:$0xff]
  %v12303 = vld [vmem:[%s4 + $0x270] sm:$0xff]
  %v12304 = vld [vmem:[%s4 + $0x278] sm:$0xff]
  %vm12305 = vcmask 916480
  %v12307 = vsel %vm12305, %v12229, 0
  %v12310 = vsel %vm12305, %v12234, 0
  %v12313 = vsel %vm12305, %v12239, 0
  %v12316 = vsel %vm12305, %v12244, 0
  %v12319 = vsel %vm12305, %v12249, 0
  %v12322 = vsel %vm12305, %v12254, 0
  %v12325 = vsel %vm12305, %v12259, 0
  %v12328 = vsel %vm12305, %v12264, 0
  %v12331 = vsel %vm12305, %v12269, 0
  %v12334 = vsel %vm12305, %v12274, 0
  %v12337 = vsel %vm12305, %v12279, 0
  %v12340 = vsel %vm12305, %v12284, 0
  %v12343 = vsel %vm12305, %v12289, 0
  %v12346 = vsel %vm12305, %v12294, 0
  %v12349 = vsel %vm12305, %v12299, 0
  %v12352 = vsel %vm12305, %v12304, 0
  %12354 = vmatprep.subr.mxu0 %v12070
  %12355 = vmatpush1.msra.mxu0 %v12069
  %12356 = vmatprep.subr.mxu0 %v12072
  %12357 = vmatpush1.msra.mxu0 %v12071
  %12358 = vmatprep.subr.mxu0 %v12074
  %12359 = vmatpush1.msra.mxu0 %v12073
  %12360 = vmatprep.subr.mxu0 %v12076
  %12361 = vmatpush1.msra.mxu0 %v12075
  %12362 = vmatprep.subr.mxu0 %v12078
  %12363 = vmatpush1.msra.mxu0 %v12077
  %12364 = vmatprep.subr.mxu0 %v12080
  %12365 = vmatpush1.msra.mxu0 %v12079
  %12366 = vmatprep.subr.mxu0 %v12082
  %12367 = vmatpush1.msra.mxu0 %v12081
  %12368 = vmatprep.subr.mxu0 %v12084
  %12369 = vmatpush1.msra.mxu0 %v12083
  %12370 = vmatprep.subr.mxu0 %v12086
  %12371 = vmatpush1.msra.mxu0 %v12085
  %12372 = vmatprep.subr.mxu0 %v12088
  %12373 = vmatpush1.msra.mxu0 %v12087
  %12374 = vmatprep.subr.mxu0 %v12090
  %12375 = vmatpush1.msra.mxu0 %v12089
  %12376 = vmatprep.subr.mxu0 %v12092
  %12377 = vmatpush1.msra.mxu0 %v12091
  %12378 = vmatprep.subr.mxu0 %v12094
  %12379 = vmatpush1.msra.mxu0 %v12093
  %12380 = vmatprep.subr.mxu0 %v12096
  %12381 = vmatpush1.msra.mxu0 %v12095
  %12382 = vmatprep.subr.mxu0 %v12098
  %12383 = vmatpush1.msra.mxu0 %v12097
  %12384 = vmatprep.subr.mxu0 %v12100
  %12385 = vmatpush1.msra.mxu0 %v12099
  %12386 = vmatprep.subr.mxu0 %v12102
  %12387 = vmatpush1.msra.mxu0 %v12101
  %12388 = vmatprep.subr.mxu0 %v12104
  %12389 = vmatpush1.msra.mxu0 %v12103
  %12390 = vmatprep.subr.mxu0 %v12106
  %12391 = vmatpush1.msra.mxu0 %v12105
  %12392 = vmatprep.subr.mxu0 %v12108
  %12393 = vmatpush1.msra.mxu0 %v12107
  %12394 = vmatprep.subr.mxu0 %v12110
  %12395 = vmatpush1.msra.mxu0 %v12109
  %12396 = vmatprep.subr.mxu0 %v12112
  %12397 = vmatpush1.msra.mxu0 %v12111
  %12398 = vmatprep.subr.mxu0 %v12114
  %12399 = vmatpush1.msra.mxu0 %v12113
  %12400 = vmatprep.subr.mxu0 %v12116
  %12401 = vmatpush1.msra.mxu0 %v12115
  %12402 = vmatprep.subr.mxu0 %v12118
  %12403 = vmatpush1.msra.mxu0 %v12117
  %12404 = vmatprep.subr.mxu0 %v12120
  %12405 = vmatpush1.msra.mxu0 %v12119
  %12406 = vmatprep.subr.mxu0 %v12122
  %12407 = vmatpush1.msra.mxu0 %v12121
  %12408 = vmatprep.subr.mxu0 %v12124
  %12409 = vmatpush1.msra.mxu0 %v12123
  %12410 = vmatprep.subr.mxu0 %v12126
  %12411 = vmatpush1.msra.mxu0 %v12125
  %12412 = vmatprep.subr.mxu0 %v12128
  %12413 = vmatpush1.msra.mxu0 %v12127
  %12414 = vmatprep.subr.mxu0 %v12130
  %12415 = vmatpush1.msra.mxu0 %v12129
  %12416 = vmatprep.subr.mxu0 %v12132
  %12417 = vmatpush1.msra.mxu0 %v12131
  %12418 = vmatprep.mubr.f32.mxu0 %v12226
  %12419 = vmatmul.mubr.f32.gmra.mrb[0].mxu0 %v12225
  %v12420 = vpop.f32.mrb[0].mxu0
  %v12421 = vadd.f32 0.0, %v12420
  %v12422 = vpop.f32.mrb[0].mxu0
  %v12423 = vadd.f32 0.0, %v12422
  %12424 = vmatprep.mubr.f32.mxu0 %v12231
  %12425 = vmatmul.mubr.f32.gmra.mrb[0].mxu0 %v12230
  %v12426 = vpop.f32.mrb[0].mxu0
  %v12427 = vadd.f32 0.0, %v12426
  %v12428 = vpop.f32.mrb[0].mxu0
  %v12429 = vadd.f32 0.0, %v12428
  %12430 = vmatprep.mubr.f32.mxu0 %v12236
  %12431 = vmatmul.mubr.f32.gmra.mrb[0].mxu0 %v12235
  %v12432 = vpop.f32.mrb[0].mxu0
  %v12433 = vadd.f32 0.0, %v12432
  %v12434 = vpop.f32.mrb[0].mxu0
  %v12435 = vadd.f32 0.0, %v12434
  %12436 = vmatprep.mubr.f32.mxu0 %v12241
  %12437 = vmatmul.mubr.f32.gmra.mrb[0].mxu0 %v12240
  %v12438 = vpop.f32.mrb[0].mxu0
  %v12439 = vadd.f32 0.0, %v12438
  %v12440 = vpop.f32.mrb[0].mxu0
  %v12441 = vadd.f32 0.0, %v12440
  %12442 = vmatprep.mubr.f32.mxu0 %v12246
  %12443 = vmatmul.mubr.f32.gmra.mrb[0].mxu0 %v12245
  %v12444 = vpop.f32.mrb[0].mxu0
  %v12445 = vadd.f32 0.0, %v12444
  %v12446 = vpop.f32.mrb[0].mxu0
  %v12447 = vadd.f32 0.0, %v12446
  %12448 = vmatprep.mubr.f32.mxu0 %v12251
  %12449 = vmatmul.mubr.f32.gmra.mrb[0].mxu0 %v12250
  %v12450 = vpop.f32.mrb[0].mxu0
  %v12451 = vadd.f32 0.0, %v12450
  %v12452 = vpop.f32.mrb[0].mxu0
  %v12453 = vadd.f32 0.0, %v12452
  %12454 = vmatprep.mubr.f32.mxu0 %v12256
  %12455 = vmatmul.mubr.f32.gmra.mrb[0].mxu0 %v12255
  %v12456 = vpop.f32.mrb[0].mxu0
  %v12457 = vadd.f32 0.0, %v12456
  %v12458 = vpop.f32.mrb[0].mxu0
  %v12459 = vadd.f32 0.0, %v12458
  %12460 = vmatprep.mubr.f32.mxu0 %v12261
  %12461 = vmatmul.mubr.f32.gmra.mrb[0].mxu0 %v12260
  %v12462 = vpop.f32.mrb[0].mxu0
  %v12463 = vadd.f32 0.0, %v12462
  %v12464 = vpop.f32.mrb[0].mxu0
  %v12465 = vadd.f32 0.0, %v12464
  %12466 = vmatprep.mubr.f32.mxu0 %v12266
  %12467 = vmatmul.mubr.f32.gmra.mrb[0].mxu0 %v12265
  %v12468 = vpop.f32.mrb[0].mxu0
  %v12469 = vadd.f32 0.0, %v12468
  %v12470 = vpop.f32.mrb[0].mxu0
  %v12471 = vadd.f32 0.0, %v12470
  %12472 = vmatprep.mubr.f32.mxu0 %v12271
  %12473 = vmatmul.mubr.f32.gmra.mrb[0].mxu0 %v12270
  %v12474 = vpop.f32.mrb[0].mxu0
  %v12475 = vadd.f32 0.0, %v12474
  %v12476 = vpop.f32.mrb[0].mxu0
  %v12477 = vadd.f32 0.0, %v12476
  %12478 = vmatprep.mubr.f32.mxu0 %v12276
  %12479 = vmatmul.mubr.f32.gmra.mrb[0].mxu0 %v12275
  %v12480 = vpop.f32.mrb[0].mxu0
  %v12481 = vadd.f32 0.0, %v12480
  %v12482 = vpop.f32.mrb[0].mxu0
  %v12483 = vadd.f32 0.0, %v12482
  %12484 = vmatprep.mubr.f32.mxu0 %v12281
  %12485 = vmatmul.mubr.f32.gmra.mrb[0].mxu0 %v12280
  %v12486 = vpop.f32.mrb[0].mxu0
  %v12487 = vadd.f32 0.0, %v12486
  %v12488 = vpop.f32.mrb[0].mxu0
  %v12489 = vadd.f32 0.0, %v12488
  %12490 = vmatprep.mubr.f32.mxu0 %v12286
  %12491 = vmatmul.mubr.f32.gmra.mrb[0].mxu0 %v12285
  %v12492 = vpop.f32.mrb[0].mxu0
  %v12493 = vadd.f32 0.0, %v12492
  %v12494 = vpop.f32.mrb[0].mxu0
  %v12495 = vadd.f32 0.0, %v12494
  %12496 = vmatprep.mubr.f32.mxu0 %v12291
  %12497 = vmatmul.mubr.f32.gmra.mrb[0].mxu0 %v12290
  %v12498 = vpop.f32.mrb[0].mxu0
  %v12499 = vadd.f32 0.0, %v12498
  %v12500 = vpop.f32.mrb[0].mxu0
  %v12501 = vadd.f32 0.0, %v12500
  %12502 = vmatprep.mubr.f32.mxu0 %v12296
  %12503 = vmatmul.mubr.f32.gmra.mrb[0].mxu0 %v12295
  %v12504 = vpop.f32.mrb[0].mxu0
  %v12505 = vadd.f32 0.0, %v12504
  %v12506 = vpop.f32.mrb[0].mxu0
  %v12507 = vadd.f32 0.0, %v12506
  %12508 = vmatprep.mubr.f32.mxu0 %v12301
  %12509 = vmatmul.mubr.f32.gmra.mrb[0].mxu0 %v12300
  %v12510 = vpop.f32.mrb[0].mxu0
  %v12511 = vadd.f32 0.0, %v12510
  %v12512 = vpop.f32.mrb[0].mxu0
  %v12513 = vadd.f32 0.0, %v12512
  %12514 = vdwg.mxu0
  %12515 = vmatprep.subr.mxu0 %v12134
  %12516 = vmatpush1.msra.mxu0 %v12133
  %12517 = vmatprep.subr.mxu0 %v12136
  %12518 = vmatpush1.msra.mxu0 %v12135
  %12519 = vmatprep.subr.mxu0 %v12138
  %12520 = vmatpush1.msra.mxu0 %v12137
  %12521 = vmatprep.subr.mxu0 %v12140
  %12522 = vmatpush1.msra.mxu0 %v12139
  %12523 = vmatprep.subr.mxu0 %v12142
  %12524 = vmatpush1.msra.mxu0 %v12141
  %12525 = vmatprep.subr.mxu0 %v12144
  %12526 = vmatpush1.msra.mxu0 %v12143
  %12527 = vmatprep.subr.mxu0 %v12146
  %12528 = vmatpush1.msra.mxu0 %v12145
  %12529 = vmatprep.subr.mxu0 %v12148
  %12530 = vmatpush1.msra.mxu0 %v12147
  %12531 = vmatprep.subr.mxu0 %v12150
  %12532 = vmatpush1.msra.mxu0 %v12149
  %12533 = vmatprep.subr.mxu0 %v12152
  %12534 = vmatpush1.msra.mxu0 %v12151
  %12535 = vmatprep.subr.mxu0 %v12154
  %12536 = vmatpush1.msra.mxu0 %v12153
  %12537 = vmatprep.subr.mxu0 %v12156
  %12538 = vmatpush1.msra.mxu0 %v12155
  %12539 = vmatprep.subr.mxu0 %v12158
  %12540 = vmatpush1.msra.mxu0 %v12157
  %12541 = vmatprep.subr.mxu0 %v12160
  %12542 = vmatpush1.msra.mxu0 %v12159
  %12543 = vmatprep.subr.mxu0 %v12162
  %12544 = vmatpush1.msra.mxu0 %v12161
  %12545 = vmatprep.subr.mxu0 %v12164
  %12546 = vmatpush1.msra.mxu0 %v12163
  %12547 = vmatprep.subr.mxu0 %v12166
  %12548 = vmatpush1.msra.mxu0 %v12165
  %12549 = vmatprep.subr.mxu0 %v12168
  %12550 = vmatpush1.msra.mxu0 %v12167
  %12551 = vmatprep.subr.mxu0 %v12170
  %12552 = vmatpush1.msra.mxu0 %v12169
  %12553 = vmatprep.subr.mxu0 %v12172
  %12554 = vmatpush1.msra.mxu0 %v12171
  %12555 = vmatprep.subr.mxu0 %v12174
  %12556 = vmatpush1.msra.mxu0 %v12173
  %12557 = vmatprep.subr.mxu0 %v12176
  %12558 = vmatpush1.msra.mxu0 %v12175
  %12559 = vmatprep.subr.mxu0 %v12178
  %12560 = vmatpush1.msra.mxu0 %v12177
  %12561 = vmatprep.subr.mxu0 %v12180
  %12562 = vmatpush1.msra.mxu0 %v12179
  %12563 = vmatprep.subr.mxu0 %v12182
  %12564 = vmatpush1.msra.mxu0 %v12181
  %12565 = vmatprep.subr.mxu0 %v12184
  %12566 = vmatpush1.msra.mxu0 %v12183
  %12567 = vmatprep.subr.mxu0 %v12186
  %12568 = vmatpush1.msra.mxu0 %v12185
  %12569 = vmatprep.subr.mxu0 %v12188
  %12570 = vmatpush1.msra.mxu0 %v12187
  %12571 = vmatprep.subr.mxu0 %v12190
  %12572 = vmatpush1.msra.mxu0 %v12189
  %12573 = vmatprep.subr.mxu0 %v12192
  %12574 = vmatpush1.msra.mxu0 %v12191
  %12575 = vmatprep.subr.mxu0 %v12194
  %12576 = vmatpush1.msra.mxu0 %v12193
  %12577 = vmatprep.subr.mxu0 %v12196
  %12578 = vmatpush1.msra.mxu0 %v12195
  %12579 = vmatprep.mubr.f32.mxu0 %v12228
  %12580 = vmatmul.mubr.f32.gmra.mrb[0].mxu0 %v12227
  %v12581 = vpop.f32.mrb[0].mxu0
  %v12582 = vadd.f32 %v12421, %v12581
  %v12583 = vpop.f32.mrb[0].mxu0
  %v12584 = vadd.f32 %v12423, %v12583
  %12585 = vmatprep.mubr.f32.mxu0 %v12233
  %12586 = vmatmul.mubr.f32.gmra.mrb[0].mxu0 %v12232
  %v12587 = vpop.f32.mrb[0].mxu0
  %v12588 = vadd.f32 %v12427, %v12587
  %v12589 = vpop.f32.mrb[0].mxu0
  %v12590 = vadd.f32 %v12429, %v12589
  %12591 = vmatprep.mubr.f32.mxu0 %v12238
  %12592 = vmatmul.mubr.f32.gmra.mrb[0].mxu0 %v12237
  %v12593 = vpop.f32.mrb[0].mxu0
  %v12594 = vadd.f32 %v12433, %v12593
  %v12595 = vpop.f32.mrb[0].mxu0
  %v12596 = vadd.f32 %v12435, %v12595
  %12597 = vmatprep.mubr.f32.mxu0 %v12243
  %12598 = vmatmul.mubr.f32.gmra.mrb[0].mxu0 %v12242
  %v12599 = vpop.f32.mrb[0].mxu0
  %v12600 = vadd.f32 %v12439, %v12599
  %v12601 = vpop.f32.mrb[0].mxu0
  %v12602 = vadd.f32 %v12441, %v12601
  %12603 = vmatprep.mubr.f32.mxu0 %v12248
  %12604 = vmatmul.mubr.f32.gmra.mrb[0].mxu0 %v12247
  %v12605 = vpop.f32.mrb[0].mxu0
  %v12606 = vadd.f32 %v12445, %v12605
  %v12607 = vpop.f32.mrb[0].mxu0
  %v12608 = vadd.f32 %v12447, %v12607
  %12609 = vmatprep.mubr.f32.mxu0 %v12253
  %12610 = vmatmul.mubr.f32.gmra.mrb[0].mxu0 %v12252
  %v12611 = vpop.f32.mrb[0].mxu0
  %v12612 = vadd.f32 %v12451, %v12611
  %v12613 = vpop.f32.mrb[0].mxu0
  %v12614 = vadd.f32 %v12453, %v12613
  %12615 = vmatprep.mubr.f32.mxu0 %v12258
  %12616 = vmatmul.mubr.f32.gmra.mrb[0].mxu0 %v12257
  %v12617 = vpop.f32.mrb[0].mxu0
  %v12618 = vadd.f32 %v12457, %v12617
  %v12619 = vpop.f32.mrb[0].mxu0
  %v12620 = vadd.f32 %v12459, %v12619
  %12621 = vmatprep.mubr.f32.mxu0 %v12263
  %12622 = vmatmul.mubr.f32.gmra.mrb[0].mxu0 %v12262
  %v12623 = vpop.f32.mrb[0].mxu0
  %v12624 = vadd.f32 %v12463, %v12623
  %v12625 = vpop.f32.mrb[0].mxu0
  %v12626 = vadd.f32 %v12465, %v12625
  %12627 = vmatprep.mubr.f32.mxu0 %v12268
  %12628 = vmatmul.mubr.f32.gmra.mrb[0].mxu0 %v12267
  %v12629 = vpop.f32.mrb[0].mxu0
  %v12630 = vadd.f32 %v12469, %v12629
  %v12631 = vpop.f32.mrb[0].mxu0
  %v12632 = vadd.f32 %v12471, %v12631
  %12633 = vmatprep.mubr.f32.mxu0 %v12273
  %12634 = vmatmul.mubr.f32.gmra.mrb[0].mxu0 %v12272
  %v12635 = vpop.f32.mrb[0].mxu0
  %v12636 = vadd.f32 %v12475, %v12635
  %v12637 = vpop.f32.mrb[0].mxu0
  %v12638 = vadd.f32 %v12477, %v12637
  %12639 = vmatprep.mubr.f32.mxu0 %v12278
  %12640 = vmatmul.mubr.f32.gmra.mrb[0].mxu0 %v12277
  %v12641 = vpop.f32.mrb[0].mxu0
  %v12642 = vadd.f32 %v12481, %v12641
  %v12643 = vpop.f32.mrb[0].mxu0
  %v12644 = vadd.f32 %v12483, %v12643
  %12645 = vmatprep.mubr.f32.mxu0 %v12283
  %12646 = vmatmul.mubr.f32.gmra.mrb[0].mxu0 %v12282
  %v12647 = vpop.f32.mrb[0].mxu0
  %v12648 = vadd.f32 %v12487, %v12647
  %v12649 = vpop.f32.mrb[0].mxu0
  %v12650 = vadd.f32 %v12489, %v12649
  %12651 = vmatprep.mubr.f32.mxu0 %v12288
  %12652 = vmatmul.mubr.f32.gmra.mrb[0].mxu0 %v12287
  %v12653 = vpop.f32.mrb[0].mxu0
  %v12654 = vadd.f32 %v12493, %v12653
  %v12655 = vpop.f32.mrb[0].mxu0
  %v12656 = vadd.f32 %v12495, %v12655
  %12657 = vmatprep.mubr.f32.mxu0 %v12293
  %12658 = vmatmul.mubr.f32.gmra.mrb[0].mxu0 %v12292
  %v12659 = vpop.f32.mrb[0].mxu0
  %v12660 = vadd.f32 %v12499, %v12659
  %v12661 = vpop.f32.mrb[0].mxu0
  %v12662 = vadd.f32 %v12501, %v12661
  %12663 = vmatprep.mubr.f32.mxu0 %v12298
  %12664 = vmatmul.mubr.f32.gmra.mrb[0].mxu0 %v12297
  %v12665 = vpop.f32.mrb[0].mxu0
  %v12666 = vadd.f32 %v12505, %v12665
  %v12667 = vpop.f32.mrb[0].mxu0
  %v12668 = vadd.f32 %v12507, %v12667
  %12669 = vmatprep.mubr.f32.mxu0 %v12303
  %12670 = vmatmul.mubr.f32.gmra.mrb[0].mxu0 %v12302
  %v12671 = vpop.f32.mrb[0].mxu0
  %v12672 = vadd.f32 %v12511, %v12671
  %v12673 = vpop.f32.mrb[0].mxu0
  %v12674 = vadd.f32 %v12513, %v12673
  %12675 = vdwg.mxu0
  %12676 = vmatprep.subr.mxu0 %v12198
  %12677 = vmatpush1.msra.mxu0 %v12197
  %12678 = vmatprep.subr.mxu0 %v12200
  %12679 = vmatpush1.msra.mxu0 %v12199
  %12680 = vmatprep.subr.mxu0 %v12202
  %12681 = vmatpush1.msra.mxu0 %v12201
  %12682 = vmatprep.subr.mxu0 %v12204
  %12683 = vmatpush1.msra.mxu0 %v12203
  %12684 = vmatprep.subr.mxu0 %v12206
  %12685 = vmatpush1.msra.mxu0 %v12205
  %12686 = vmatprep.subr.mxu0 %v12208
  %12687 = vmatpush1.msra.mxu0 %v12207
  %12688 = vmatprep.subr.mxu0 %v12210
  %12689 = vmatpush1.msra.mxu0 %v12209
  %12690 = vmatprep.subr.mxu0 %v12212
  %12691 = vmatpush1.msra.mxu0 %v12211
  %12692 = vmatprep.subr.mxu0 %v12214
  %12693 = vmatpush1.msra.mxu0 %v12213
  %12694 = vmatprep.subr.mxu0 %v12216
  %12695 = vmatpush1.msra.mxu0 %v12215
  %12696 = vmatprep.subr.mxu0 %v12218
  %12697 = vmatpush1.msra.mxu0 %v12217
  %12698 = vmatprep.subr.mxu0 %v12220
  %12699 = vmatpush1.msra.mxu0 %v12219
  %12700 = vmatprep.subr.mxu0 %v12222
  %12701 = vmatpush1.msra.mxu0 %v12221
  %12702 = vmatprep.subr.mxu0 %v12224
  %12703 = vmatpush1.msra.mxu0 %v12223
  %12704 = vmatprep.subr.mxu0 0.0
  %12705 = vmatpush1.msra.mxu0 0.0
  %12706 = vmatprep.subr.mxu0 0.0
  %12707 = vmatpush1.msra.mxu0 0.0
  %12708 = vmatprep.subr.mxu0 0.0
  %12709 = vmatpush1.msra.mxu0 0.0
  %12710 = vmatprep.subr.mxu0 0.0
  %12711 = vmatpush1.msra.mxu0 0.0
  %12712 = vmatprep.subr.mxu0 0.0
  %12713 = vmatpush1.msra.mxu0 0.0
  %12714 = vmatprep.subr.mxu0 0.0
  %12715 = vmatpush1.msra.mxu0 0.0
  %12716 = vmatprep.subr.mxu0 0.0
  %12717 = vmatpush1.msra.mxu0 0.0
  %12718 = vmatprep.subr.mxu0 0.0
  %12719 = vmatpush1.msra.mxu0 0.0
  %12720 = vmatprep.subr.mxu0 0.0
  %12721 = vmatpush1.msra.mxu0 0.0
  %12722 = vmatprep.subr.mxu0 0.0
  %12723 = vmatpush1.msra.mxu0 0.0
  %12724 = vmatprep.subr.mxu0 0.0
  %12725 = vmatpush1.msra.mxu0 0.0
  %12726 = vmatprep.subr.mxu0 0.0
  %12727 = vmatpush1.msra.mxu0 0.0
  %12728 = vmatprep.subr.mxu0 0.0
  %12729 = vmatpush1.msra.mxu0 0.0
  %12730 = vmatprep.subr.mxu0 0.0
  %12731 = vmatpush1.msra.mxu0 0.0
  %12732 = vmatprep.subr.mxu0 0.0
  %12733 = vmatpush1.msra.mxu0 0.0
  %12734 = vmatprep.subr.mxu0 0.0
  %12735 = vmatpush1.msra.mxu0 0.0
  %12736 = vmatprep.subr.mxu0 0.0
  %12737 = vmatpush1.msra.mxu0 0.0
  %12738 = vmatprep.subr.mxu0 0.0
  %12739 = vmatpush1.msra.mxu0 0.0
  %12740 = vmatprep.mubr.f32.mxu0 0.0
  %12741 = vmatmul.mubr.f32.gmra.mrb[0].mxu0 %v12307
  %v12742 = vpop.f32.mrb[0].mxu0
  %v12743 = vadd.f32 %v12582, %v12742
  %v12744 = vpop.f32.mrb[0].mxu0
  %v12745 = vadd.f32 %v12584, %v12744
  %12746 = vmatprep.mubr.f32.mxu0 0.0
  %12747 = vmatmul.mubr.f32.gmra.mrb[0].mxu0 %v12310
  %v12748 = vpop.f32.mrb[0].mxu0
  %v12749 = vadd.f32 %v12588, %v12748
  %v12750 = vpop.f32.mrb[0].mxu0
  %v12751 = vadd.f32 %v12590, %v12750
  %12752 = vmatprep.mubr.f32.mxu0 0.0
  %12753 = vmatmul.mubr.f32.gmra.mrb[0].mxu0 %v12313
  %v12754 = vpop.f32.mrb[0].mxu0
  %v12755 = vadd.f32 %v12594, %v12754
  %v12756 = vpop.f32.mrb[0].mxu0
  %v12757 = vadd.f32 %v12596, %v12756
  %12758 = vmatprep.mubr.f32.mxu0 0.0
  %12759 = vmatmul.mubr.f32.gmra.mrb[0].mxu0 %v12316
  %v12760 = vpop.f32.mrb[0].mxu0
  %v12761 = vadd.f32 %v12600, %v12760
  %v12762 = vpop.f32.mrb[0].mxu0
  %v12763 = vadd.f32 %v12602, %v12762
  %12764 = vmatprep.mubr.f32.mxu0 0.0
  %12765 = vmatmul.mubr.f32.gmra.mrb[0].mxu0 %v12319
  %v12766 = vpop.f32.mrb[0].mxu0
  %v12767 = vadd.f32 %v12606, %v12766
  %v12768 = vpop.f32.mrb[0].mxu0
  %v12769 = vadd.f32 %v12608, %v12768
  %12770 = vmatprep.mubr.f32.mxu0 0.0
  %12771 = vmatmul.mubr.f32.gmra.mrb[0].mxu0 %v12322
  %v12772 = vpop.f32.mrb[0].mxu0
  %v12773 = vadd.f32 %v12612, %v12772
  %v12774 = vpop.f32.mrb[0].mxu0
  %v12775 = vadd.f32 %v12614, %v12774
  %12776 = vmatprep.mubr.f32.mxu0 0.0
  %12777 = vmatmul.mubr.f32.gmra.mrb[0].mxu0 %v12325
  %v12778 = vpop.f32.mrb[0].mxu0
  %v12779 = vadd.f32 %v12618, %v12778
  %v12780 = vpop.f32.mrb[0].mxu0
  %v12781 = vadd.f32 %v12620, %v12780
  %12782 = vmatprep.mubr.f32.mxu0 0.0
  %12783 = vmatmul.mubr.f32.gmra.mrb[0].mxu0 %v12328
  %v12784 = vpop.f32.mrb[0].mxu0
  %v12785 = vadd.f32 %v12624, %v12784
  %v12786 = vpop.f32.mrb[0].mxu0
  %v12787 = vadd.f32 %v12626, %v12786
  %12788 = vmatprep.mubr.f32.mxu0 0.0
  %12789 = vmatmul.mubr.f32.gmra.mrb[0].mxu0 %v12331
  %v12790 = vpop.f32.mrb[0].mxu0
  %v12791 = vadd.f32 %v12630, %v12790
  %v12792 = vpop.f32.mrb[0].mxu0
  %v12793 = vadd.f32 %v12632, %v12792
  %12794 = vmatprep.mubr.f32.mxu0 0.0
  %12795 = vmatmul.mubr.f32.gmra.mrb[0].mxu0 %v12334
  %v12796 = vpop.f32.mrb[0].mxu0
  %v12797 = vadd.f32 %v12636, %v12796
  %v12798 = vpop.f32.mrb[0].mxu0
  %v12799 = vadd.f32 %v12638, %v12798
  %12800 = vmatprep.mubr.f32.mxu0 0.0
  %12801 = vmatmul.mubr.f32.gmra.mrb[0].mxu0 %v12337
  %v12802 = vpop.f32.mrb[0].mxu0
  %v12803 = vadd.f32 %v12642, %v12802
  %v12804 = vpop.f32.mrb[0].mxu0
  %v12805 = vadd.f32 %v12644, %v12804
  %12806 = vmatprep.mubr.f32.mxu0 0.0
  %12807 = vmatmul.mubr.f32.gmra.mrb[0].mxu0 %v12340
  %v12808 = vpop.f32.mrb[0].mxu0
  %v12809 = vadd.f32 %v12648, %v12808
  %v12810 = vpop.f32.mrb[0].mxu0
  %v12811 = vadd.f32 %v12650, %v12810
  %12812 = vmatprep.mubr.f32.mxu0 0.0
  %12813 = vmatmul.mubr.f32.gmra.mrb[0].mxu0 %v12343
  %v12814 = vpop.f32.mrb[0].mxu0
  %v12815 = vadd.f32 %v12654, %v12814
  %v12816 = vpop.f32.mrb[0].mxu0
  %v12817 = vadd.f32 %v12656, %v12816
  %12818 = vmatprep.mubr.f32.mxu0 0.0
  %12819 = vmatmul.mubr.f32.gmra.mrb[0].mxu0 %v12346
  %v12820 = vpop.f32.mrb[0].mxu0
  %v12821 = vadd.f32 %v12660, %v12820
  %v12822 = vpop.f32.mrb[0].mxu0
  %v12823 = vadd.f32 %v12662, %v12822
  %12824 = vmatprep.mubr.f32.mxu0 0.0
  %12825 = vmatmul.mubr.f32.gmra.mrb[0].mxu0 %v12349
  %v12826 = vpop.f32.mrb[0].mxu0
  %v12827 = vadd.f32 %v12666, %v12826
  %v12828 = vpop.f32.mrb[0].mxu0
  %v12829 = vadd.f32 %v12668, %v12828
  %12830 = vmatprep.mubr.f32.mxu0 0.0
  %12831 = vmatmul.mubr.f32.gmra.mrb[0].mxu0 %v12352
  %v12832 = vpop.f32.mrb[0].mxu0
  %v12833 = vadd.f32 %v12672, %v12832
  %v12834 = vpop.f32.mrb[0].mxu0
  %v12835 = vadd.f32 %v12674, %v12834
  %12836 = vdwg.mxu0
  %12837 = vst [vmem:[%s7] sm:$0xff] %v12743
  %12838 = vst.msk [vmem:[%s7 + $0x8] sm:$0xff] %vm9260, %v12745
  %12839 = vst [vmem:[%s7 + $0x10] sm:$0xff] %v12749
  %12840 = vst.msk [vmem:[%s7 + $0x18] sm:$0xff] %vm9260, %v12751
  %12841 = vst [vmem:[%s7 + $0x20] sm:$0xff] %v12755
  %12842 = vst.msk [vmem:[%s7 + $0x28] sm:$0xff] %vm9260, %v12757
  %12843 = vst [vmem:[%s7 + $0x30] sm:$0xff] %v12761
  %12844 = vst.msk [vmem:[%s7 + $0x38] sm:$0xff] %vm9260, %v12763
  %12845 = vst [vmem:[%s7 + $0x40] sm:$0xff] %v12767
  %12846 = vst.msk [vmem:[%s7 + $0x48] sm:$0xff] %vm9260, %v12769
  %12847 = vst [vmem:[%s7 + $0x50] sm:$0xff] %v12773
  %12848 = vst.msk [vmem:[%s7 + $0x58] sm:$0xff] %vm9260, %v12775
  %12849 = vst [vmem:[%s7 + $0x60] sm:$0xff] %v12779
  %12850 = vst.msk [vmem:[%s7 + $0x68] sm:$0xff] %vm9260, %v12781
  %12851 = vst [vmem:[%s7 + $0x70] sm:$0xff] %v12785
  %12852 = vst.msk [vmem:[%s7 + $0x78] sm:$0xff] %vm9260, %v12787
  %12853 = vst [vmem:[%s7 + $0x80] sm:$0xff] %v12791
  %12854 = vst.msk [vmem:[%s7 + $0x88] sm:$0xff] %vm9260, %v12793
  %12855 = vst [vmem:[%s7 + $0x90] sm:$0xff] %v12797
  %12856 = vst.msk [vmem:[%s7 + $0x98] sm:$0xff] %vm9260, %v12799
  %12857 = vst [vmem:[%s7 + $0xa0] sm:$0xff] %v12803
  %12858 = vst.msk [vmem:[%s7 + $0xa8] sm:$0xff] %vm9260, %v12805
  %12859 = vst [vmem:[%s7 + $0xb0] sm:$0xff] %v12809
  %12860 = vst.msk [vmem:[%s7 + $0xb8] sm:$0xff] %vm9260, %v12811
  %12861 = vst [vmem:[%s7 + $0xc0] sm:$0xff] %v12815
  %12862 = vst.msk [vmem:[%s7 + $0xc8] sm:$0xff] %vm9260, %v12817
  %12863 = vst [vmem:[%s7 + $0xd0] sm:$0xff] %v12821
  %12864 = vst.msk [vmem:[%s7 + $0xd8] sm:$0xff] %vm9260, %v12823
  %12865 = vst [vmem:[%s7 + $0xe0] sm:$0xff] %v12827
  %12866 = vst.msk [vmem:[%s7 + $0xe8] sm:$0xff] %vm9260, %v12829
  %12867 = vst [vmem:[%s7 + $0xf0] sm:$0xff] %v12833
  %12868 = vst.msk [vmem:[%s7 + $0xf8] sm:$0xff] %vm9260, %v12835
  // Predicated region
  $region30: #{fused_forward.1} parent=0 // pred_check
    _
  $region31: #{fused_forward.1} parent=0 // pred_check_branch
    %12870 = sbr.rel (0) target = $region33
  $region32: #{fused_forward.1} parent=0 // pred_region
    _
  $region33: #{fused_forward.1} parent=0 // pred_fallthru
    _
  // Predicated region
  $region34: #{fused_forward.1} parent=0 // pred_check
    _
  $region35: #{fused_forward.1} parent=0 // pred_check_branch
    %12872 = sbr.rel (0) target = $region37
  $region36: #{fused_forward.1} parent=0 // pred_region
    _
  $region37: #{fused_forward.1} parent=0 // pred_fallthru
    _

</llo_original>
